<compile_context>
chip_gen: v7x
topology: tpu7x:2x2x1
jax: 0.10.0
libtpu: 0.0.40
codegen_flags: <defaults>
</compile_context>

<pallas_src>
import functools
import math

import jax
import jax.numpy as jnp
import numpy as np
from jax.experimental import pallas as pl
from jax.experimental.pallas import tpu as pltpu


# ----------------------------------------------------------------------------
# Fused DualStreamLayer kernel (one batch element per grid step)
# ----------------------------------------------------------------------------

def _dual_stream_kernel(
        vis_ref, txt_ref, vmask_ref, tmask_ref,
        sav_w, sav_b, sat_w, sat_b, cav_w, cav_b, cat_w, cat_b,
        ffv_w1, ffv_b1, ffv_w2, ffv_b2, fft_w1, fft_b1, fft_w2, fft_b2,
        ln1v, ln2v, ln3v, ln1t, ln2t, ln3t,
        vis_out_ref, txt_out_ref, *, num_heads):
    f32 = jnp.float32
    vis_in = vis_ref[0].astype(f32)          # (SV, D)
    txt_in = txt_ref[0].astype(f32)          # (ST, D)
    vmask = vmask_ref[0]                     # (1, SV)  1 = keep, 0 = mask
    tmask = tmask_ref[0]                     # (1, ST)

    def attn(x_q, x_kv, mask, w_ref, b_ref):
        """MultiHeadAttention; w_ref: (D, 4D) = [Wq|Wk|Wv|Wo], b_ref: (1, 4D)."""
        D = x_q.shape[-1]
        hd = D // num_heads
        scale = 1.0 / math.sqrt(hd)
        w = w_ref[...]
        b = b_ref[...]
        wq, wk, wv, wo = (w[:, 0:D], w[:, D:2 * D], w[:, 2 * D:3 * D], w[:, 3 * D:4 * D])
        bq, bk, bv, bo = (b[:, 0:D], b[:, D:2 * D], b[:, 2 * D:3 * D], b[:, 3 * D:4 * D])
        # Scale folded once into Q (not per-head score matrices).
        q = (jnp.dot(x_q, wq, preferred_element_type=f32) + bq) * scale
        k = jnp.dot(x_kv, wk, preferred_element_type=f32) + bk
        v = jnp.dot(x_kv, wv, preferred_element_type=f32) + bv
        parts = []
        for h in range(num_heads):           # static loop, num_heads is small
            sl = slice(h * hd, (h + 1) * hd)
            s = jax.lax.dot_general(q[:, sl], k[:, sl],
                                    (((1,), (1,)), ((), ())),
                                    preferred_element_type=f32)      # (Sq, Sk)
            if mask is not None:             # statically skipped when mask=None
                s = jnp.where(mask == 0.0, -1e30, s)
            s = s - jnp.max(s, axis=-1, keepdims=True)
            p = jnp.exp(s)
            p = p * pl.reciprocal(jnp.sum(p, axis=-1, keepdims=True), approx=False)
            parts.append(jnp.dot(p, v[:, sl], preferred_element_type=f32))
        ctx = jnp.concatenate(parts, axis=-1)                        # (Sq, D)
        return jnp.dot(ctx, wo, preferred_element_type=f32) + bo

    def add_ln(x, y, gb_ref, eps=1e-5):
        """LayerNorm(x + y); gb_ref: (2, D) with row 0 = gamma, row 1 = beta."""
        gb = gb_ref[...]
        z = x + y
        mu = jnp.mean(z, axis=-1, keepdims=True)
        var = jnp.mean((z - mu) ** 2, axis=-1, keepdims=True)        # biased (torch LN)
        zn = (z - mu) * jax.lax.rsqrt(var + eps)
        return zn * gb[0:1, :] + gb[1:2, :]

    def ffn(x, w1_ref, b1_ref, w2_ref, b2_ref):
        """linear2(relu(linear1(x))); dropout = identity (eval)."""
        h = jnp.dot(x, w1_ref[...], preferred_element_type=f32) + b1_ref[...]
        h = jnp.maximum(h, 0.0)
        return jnp.dot(h, w2_ref[...], preferred_element_type=f32) + b2_ref[...]

    # --- DualStreamLayer.forward ---------------------------------------------
    vis = add_ln(vis_in, attn(vis_in, vis_in, vmask, sav_w, sav_b), ln1v)
    txt = add_ln(txt_in, attn(txt_in, txt_in, tmask, sat_w, sat_b), ln1t)
    vis = add_ln(vis, attn(vis, txt, tmask, cav_w, cav_b), ln2v)
    # cross_attn_text is called with mask=None in the PyTorch module.
    txt = add_ln(txt, attn(txt, vis, None, cat_w, cat_b), ln2t)
    vis = add_ln(vis, ffn(vis, ffv_w1, ffv_b1, ffv_w2, ffv_b2), ln3v)
    txt = add_ln(txt, ffn(txt, fft_w1, fft_b1, fft_w2, fft_b2), ln3t)

    vis_out_ref[0] = vis.astype(vis_out_ref.dtype)
    txt_out_ref[0] = txt.astype(txt_out_ref.dtype)


# ----------------------------------------------------------------------------
# pallas_call wrapper for one DualStreamLayer
# ----------------------------------------------------------------------------

def dual_stream_layer(p, visual, text, visual_mask, text_mask, num_heads):
    B, SV, D = visual.shape
    ST = text.shape[1]
    if visual_mask is None:
        visual_mask = jnp.ones((B, SV), jnp.float32)
    if text_mask is None:
        text_mask = jnp.ones((B, ST), jnp.float32)
    vmask3 = visual_mask.reshape(B, 1, SV).astype(jnp.float32)
    tmask3 = text_mask.reshape(B, 1, ST).astype(jnp.float32)

    def rep(arr):
        """Grid-invariant (replicated) full-array block; DMA'd once and reused."""
        n = len(arr.shape)
        return pl.BlockSpec(arr.shape, lambda b, _n=n: (0,) * _n)

    weight_args = [
        p["self_attn_visual"]["w"], p["self_attn_visual"]["b"],
        p["self_attn_text"]["w"], p["self_attn_text"]["b"],
        p["cross_attn_visual"]["w"], p["cross_attn_visual"]["b"],
        p["cross_attn_text"]["w"], p["cross_attn_text"]["b"],
        p["ff_visual"]["w1"], p["ff_visual"]["b1"],
        p["ff_visual"]["w2"], p["ff_visual"]["b2"],
        p["ff_text"]["w1"], p["ff_text"]["b1"],
        p["ff_text"]["w2"], p["ff_text"]["b2"],
        p["norm1_visual"], p["norm2_visual"], p["norm3_visual"],
        p["norm1_text"], p["norm2_text"], p["norm3_text"],
    ]

    in_specs = [
        pl.BlockSpec((1, SV, D), lambda b: (b, 0, 0)),
        pl.BlockSpec((1, ST, D), lambda b: (b, 0, 0)),
        pl.BlockSpec((1, 1, SV), lambda b: (b, 0, 0)),
        pl.BlockSpec((1, 1, ST), lambda b: (b, 0, 0)),
    ] + [rep(a) for a in weight_args]

    out_shapes = (jax.ShapeDtypeStruct((B, SV, D), jnp.float32),
                  jax.ShapeDtypeStruct((B, ST, D), jnp.float32))
    out_specs = (pl.BlockSpec((1, SV, D), lambda b: (b, 0, 0)),
                 pl.BlockSpec((1, ST, D), lambda b: (b, 0, 0)))

    kern = functools.partial(_dual_stream_kernel, num_heads=num_heads)
    vis_out, txt_out = pl.pallas_call(
        kern,
        out_shape=out_shapes,
        grid=(B,),
        in_specs=in_specs,
        out_specs=out_specs,
        compiler_params=pltpu.CompilerParams(dimension_semantics=("parallel",)),
    )(visual, text, vmask3, tmask3, *weight_args)
    return vis_out, txt_out


def cross_attention_forward(params, visual_feature, text_feature,
                            text_mask=None, visual_mask=None, *, num_heads):
    """CrossAttentionModel.forward (top-level dropout = identity in eval)."""
    visual, text = visual_feature, text_feature
    for layer_params in params["layers"]:
        visual, text = dual_stream_layer(layer_params, visual, text,
                                         visual_mask, text_mask, num_heads)
    return visual, text


# ----------------------------------------------------------------------------
# Deterministic parameter init (synthetic; shapes follow the module __init__)
# ----------------------------------------------------------------------------

def _init_mha(key, D):
    kw, kb = jax.random.split(key)
    return {"w": jax.random.normal(kw, (D, 4 * D), jnp.float32) * 0.05,   # [Wq|Wk|Wv|Wo]
            "b": jax.random.normal(kb, (1, 4 * D), jnp.float32) * 0.05}   # [bq|bk|bv|bo]


def _init_ffn(key, D, H):
    k1, k2, k3, k4 = jax.random.split(key, 4)
    return {"w1": jax.random.normal(k1, (D, H), jnp.float32) * 0.05,
            "b1": jax.random.normal(k2, (1, H), jnp.float32) * 0.05,
            "w2": jax.random.normal(k3, (H, D), jnp.float32) * 0.05,
            "b2": jax.random.normal(k4, (1, D), jnp.float32) * 0.05}


def _init_ln(D):
    return jnp.concatenate([jnp.ones((1, D), jnp.float32),
                            jnp.zeros((1, D), jnp.float32)], axis=0)      # (2, D)


def _init_layer(key, D, H):
    ks = jax.random.split(key, 6)
    return {
        "self_attn_visual": _init_mha(ks[0], D),
        "self_attn_text": _init_mha(ks[1], D),
        "cross_attn_visual": _init_mha(ks[2], D),
        "cross_attn_text": _init_mha(ks[3], D),
        "ff_visual": _init_ffn(ks[4], D, H),
        "ff_text": _init_ffn(ks[5], D, H),
        "norm1_visual": _init_ln(D), "norm2_visual": _init_ln(D), "norm3_visual": _init_ln(D),
        "norm1_text": _init_ln(D), "norm2_text": _init_ln(D), "norm3_text": _init_ln(D),
    }


def init_model(key, D, H, num_layers):
    keys = jax.random.split(key, num_layers)
    return {"layers": [_init_layer(k, D, H) for k in keys]}


# ----------------------------------------------------------------------------
# Pure-JAX reference (mirrors the PyTorch forward; used only for validation)
# ----------------------------------------------------------------------------

def _ref_mha(q, k, v, mask, p, num_heads):
    B, Sq, D = q.shape
    Sk = k.shape[1]
    hd = D // num_heads
    w, b = p["w"], p["b"]
    wq, wk, wv, wo = w[:, :D], w[:, D:2 * D], w[:, 2 * D:3 * D], w[:, 3 * D:]
    bq, bk, bv, bo = b[:, :D], b[:, D:2 * D], b[:, 2 * D:3 * D], b[:, 3 * D:]
    Q = (q @ wq + bq).reshape(B, Sq, num_heads, hd).transpose(0, 2, 1, 3)
    K = (k @ wk + bk).reshape(B, Sk, num_heads, hd).transpose(0, 2, 1, 3)
    V = (v @ wv + bv).reshape(B, Sk, num_heads, hd).transpose(0, 2, 1, 3)
    s = jnp.einsum("bhqd,bhkd->bhqk", Q, K) / math.sqrt(hd)
    if mask is not None:
        s = jnp.where(mask[:, None, None, :] == 0, -1e30, s)
    a = jax.nn.softmax(s, axis=-1)
    o = jnp.einsum("bhqk,bhkd->bhqd", a, V).transpose(0, 2, 1, 3).reshape(B, Sq, D)
    return o @ wo + bo


def _ref_add_ln(x, y, gb, eps=1e-5):
    z = x + y
    mu = jnp.mean(z, axis=-1, keepdims=True)
    var = jnp.mean((z - mu) ** 2, axis=-1, keepdims=True)
    return (z - mu) / jnp.sqrt(var + eps) * gb[0:1] + gb[1:2]


def _ref_ffn(x, p):
    return jnp.maximum(x @ p["w1"] + p["b1"], 0.0) @ p["w2"] + p["b2"]


def _ref_layer(p, visual, text, visual_mask, text_mask, num_heads):
    visual = _ref_add_ln(visual, _ref_mha(visual, visual, visual, visual_mask,
                                          p["self_attn_visual"], num_heads),
                         p["norm1_visual"])
    text = _ref_add_ln(text, _ref_mha(text, text, text, text_mask,
                                      p["self_attn_text"], num_heads),
                       p["norm1_text"])
    visual = _ref_add_ln(visual, _ref_mha(visual, text, text, text_mask,
                                          p["cross_attn_visual"], num_heads),
                         p["norm2_visual"])
    text = _ref_add_ln(text, _ref_mha(text, visual, visual, None,
                                      p["cross_attn_text"], num_heads),
                       p["norm2_text"])
    visual = _ref_add_ln(visual, _ref_ffn(visual, p["ff_visual"]), p["norm3_visual"])
    text = _ref_add_ln(text, _ref_ffn(text, p["ff_text"]), p["norm3_text"])
    return visual, text


def cross_attention_reference(params, visual, text, text_mask, visual_mask, num_heads):
    for lp in params["layers"]:
        visual, text = _ref_layer(lp, visual, text, visual_mask, text_mask, num_heads)
    return visual, text


# ----------------------------------------------------------------------------

if __name__ == "__main__":
    D, HIDDEN, NUM_HEADS, NUM_LAYERS = 32, 64, 4, 2
    B, SV, ST = 2, 16, 8

    root = jax.random.PRNGKey(0)
    kp, kvi, kti = jax.random.split(root, 3)
    params = init_model(kp, D, HIDDEN, NUM_LAYERS)

    visual_input = jax.random.normal(kvi, (B, SV, D), jnp.float32)
    text_input = jax.random.normal(kti, (B, ST, D), jnp.float32)
    visual_mask = jnp.ones((B, SV), jnp.float32)
    text_mask = jnp.ones((B, ST), jnp.float32).at[1, ST - 2:].set(0.0)

    vis_out, txt_out = cross_attention_forward(
        params, visual_input, text_input,
        text_mask=text_mask, visual_mask=visual_mask, num_heads=NUM_HEADS)
    jax.block_until_ready((vis_out, txt_out))

    vis_ref, txt_ref = cross_attention_reference(
        params, visual_input, text_input, text_mask, visual_mask, NUM_HEADS)

    assert np.allclose(np.asarray(vis_out), np.asarray(vis_ref), atol=5e-4, rtol=5e-4)
    assert np.allclose(np.asarray(txt_out), np.asarray(txt_ref), atol=5e-4, rtol=5e-4)

    print("KERNEL_OK")
</pallas_src>

<mosaic_0001>
module attributes {stable_mosaic.version = 11 : i64} {
  func.func @_dual_stream_kernel(%arg0: i32, %arg1: memref<1x16x32xf32, #tpu.memory_space<vmem>>, %arg2: memref<1x8x32xf32, #tpu.memory_space<vmem>>, %arg3: memref<1x1x16xf32, #tpu.memory_space<vmem>>, %arg4: memref<1x1x8xf32, #tpu.memory_space<vmem>>, %arg5: memref<32x128xf32, #tpu.memory_space<vmem>>, %arg6: memref<1x128xf32, #tpu.memory_space<vmem>>, %arg7: memref<32x128xf32, #tpu.memory_space<vmem>>, %arg8: memref<1x128xf32, #tpu.memory_space<vmem>>, %arg9: memref<32x128xf32, #tpu.memory_space<vmem>>, %arg10: memref<1x128xf32, #tpu.memory_space<vmem>>, %arg11: memref<32x128xf32, #tpu.memory_space<vmem>>, %arg12: memref<1x128xf32, #tpu.memory_space<vmem>>, %arg13: memref<32x64xf32, #tpu.memory_space<vmem>>, %arg14: memref<1x64xf32, #tpu.memory_space<vmem>>, %arg15: memref<64x32xf32, #tpu.memory_space<vmem>>, %arg16: memref<1x32xf32, #tpu.memory_space<vmem>>, %arg17: memref<32x64xf32, #tpu.memory_space<vmem>>, %arg18: memref<1x64xf32, #tpu.memory_space<vmem>>, %arg19: memref<64x32xf32, #tpu.memory_space<vmem>>, %arg20: memref<1x32xf32, #tpu.memory_space<vmem>>, %arg21: memref<2x32xf32, #tpu.memory_space<vmem>>, %arg22: memref<2x32xf32, #tpu.memory_space<vmem>>, %arg23: memref<2x32xf32, #tpu.memory_space<vmem>>, %arg24: memref<2x32xf32, #tpu.memory_space<vmem>>, %arg25: memref<2x32xf32, #tpu.memory_space<vmem>>, %arg26: memref<2x32xf32, #tpu.memory_space<vmem>>, %arg27: memref<1x16x32xf32, #tpu.memory_space<vmem>>, %arg28: memref<1x8x32xf32, #tpu.memory_space<vmem>>) attributes {dimension_semantics = [#tpu.dimension_semantics<parallel>], iteration_bounds = array<i64: 2>, scalar_prefetch = 0 : i64, scratch_operands = 0 : i64, tpu.core_type = #tpu.core_type<tc>, window_params = [{transform_indices = @transform_0, window_bounds = array<i64: 1, 16, 32>}, {transform_indices = @transform_1, window_bounds = array<i64: 1, 8, 32>}, {transform_indices = @transform_2, window_bounds = array<i64: 1, 1, 16>}, {transform_indices = @transform_3, window_bounds = array<i64: 1, 1, 8>}, {pipeline_mode = #tpu.pipeline_mode<synchronous>, transform_indices = @transform_4, window_bounds = array<i64: 32, 128>}, {pipeline_mode = #tpu.pipeline_mode<synchronous>, transform_indices = @transform_5, window_bounds = array<i64: 1, 128>}, {pipeline_mode = #tpu.pipeline_mode<synchronous>, transform_indices = @transform_6, window_bounds = array<i64: 32, 128>}, {pipeline_mode = #tpu.pipeline_mode<synchronous>, transform_indices = @transform_7, window_bounds = array<i64: 1, 128>}, {pipeline_mode = #tpu.pipeline_mode<synchronous>, transform_indices = @transform_8, window_bounds = array<i64: 32, 128>}, {pipeline_mode = #tpu.pipeline_mode<synchronous>, transform_indices = @transform_9, window_bounds = array<i64: 1, 128>}, {pipeline_mode = #tpu.pipeline_mode<synchronous>, transform_indices = @transform_10, window_bounds = array<i64: 32, 128>}, {pipeline_mode = #tpu.pipeline_mode<synchronous>, transform_indices = @transform_11, window_bounds = array<i64: 1, 128>}, {pipeline_mode = #tpu.pipeline_mode<synchronous>, transform_indices = @transform_12, window_bounds = array<i64: 32, 64>}, {pipeline_mode = #tpu.pipeline_mode<synchronous>, transform_indices = @transform_13, window_bounds = array<i64: 1, 64>}, {pipeline_mode = #tpu.pipeline_mode<synchronous>, transform_indices = @transform_14, window_bounds = array<i64: 64, 32>}, {pipeline_mode = #tpu.pipeline_mode<synchronous>, transform_indices = @transform_15, window_bounds = array<i64: 1, 32>}, {pipeline_mode = #tpu.pipeline_mode<synchronous>, transform_indices = @transform_16, window_bounds = array<i64: 32, 64>}, {pipeline_mode = #tpu.pipeline_mode<synchronous>, transform_indices = @transform_17, window_bounds = array<i64: 1, 64>}, {pipeline_mode = #tpu.pipeline_mode<synchronous>, transform_indices = @transform_18, window_bounds = array<i64: 64, 32>}, {pipeline_mode = #tpu.pipeline_mode<synchronous>, transform_indices = @transform_19, window_bounds = array<i64: 1, 32>}, {pipeline_mode = #tpu.pipeline_mode<synchronous>, transform_indices = @transform_20, window_bounds = array<i64: 2, 32>}, {pipeline_mode = #tpu.pipeline_mode<synchronous>, transform_indices = @transform_21, window_bounds = array<i64: 2, 32>}, {pipeline_mode = #tpu.pipeline_mode<synchronous>, transform_indices = @transform_22, window_bounds = array<i64: 2, 32>}, {pipeline_mode = #tpu.pipeline_mode<synchronous>, transform_indices = @transform_23, window_bounds = array<i64: 2, 32>}, {pipeline_mode = #tpu.pipeline_mode<synchronous>, transform_indices = @transform_24, window_bounds = array<i64: 2, 32>}, {pipeline_mode = #tpu.pipeline_mode<synchronous>, transform_indices = @transform_25, window_bounds = array<i64: 2, 32>}, {transform_indices = @transform_26, window_bounds = array<i64: 1, 16, 32>}, {transform_indices = @transform_27, window_bounds = array<i64: 1, 8, 32>}]} {
    %c0 = arith.constant 0 : index
    %c0_0 = arith.constant 0 : index
    %c0_1 = arith.constant 0 : index
    %0 = vector.load %arg1[%c0, %c0_0, %c0_1] : memref<1x16x32xf32, #tpu.memory_space<vmem>>, vector<1x16x32xf32>
    %1 = vector.shape_cast %0 : vector<1x16x32xf32> to vector<16x32xf32>
    %c0_2 = arith.constant 0 : index
    %c0_3 = arith.constant 0 : index
    %c0_4 = arith.constant 0 : index
    %2 = vector.load %arg2[%c0_2, %c0_3, %c0_4] : memref<1x8x32xf32, #tpu.memory_space<vmem>>, vector<1x8x32xf32>
    %3 = vector.shape_cast %2 : vector<1x8x32xf32> to vector<8x32xf32>
    %c0_5 = arith.constant 0 : index
    %c0_6 = arith.constant 0 : index
    %c0_7 = arith.constant 0 : index
    %4 = vector.load %arg3[%c0_5, %c0_6, %c0_7] : memref<1x1x16xf32, #tpu.memory_space<vmem>>, vector<1x1x16xf32>
    %5 = vector.shape_cast %4 : vector<1x1x16xf32> to vector<1x16xf32>
    %c0_8 = arith.constant 0 : index
    %c0_9 = arith.constant 0 : index
    %c0_10 = arith.constant 0 : index
    %6 = vector.load %arg4[%c0_8, %c0_9, %c0_10] : memref<1x1x8xf32, #tpu.memory_space<vmem>>, vector<1x1x8xf32>
    %7 = vector.shape_cast %6 : vector<1x1x8xf32> to vector<1x8xf32>
    %c0_11 = arith.constant 0 : index
    %c0_12 = arith.constant 0 : index
    %8 = vector.load %arg5[%c0_11, %c0_12] : memref<32x128xf32, #tpu.memory_space<vmem>>, vector<32x128xf32>
    %c0_13 = arith.constant 0 : index
    %c0_14 = arith.constant 0 : index
    %9 = vector.load %arg6[%c0_13, %c0_14] : memref<1x128xf32, #tpu.memory_space<vmem>>, vector<1x128xf32>
    %10 = vector.extract_strided_slice %8 {offsets = [0, 0], sizes = [32, 32], strides = [1, 1]} : vector<32x128xf32> to vector<32x32xf32>
    %11 = vector.extract_strided_slice %8 {offsets = [0, 32], sizes = [32, 32], strides = [1, 1]} : vector<32x128xf32> to vector<32x32xf32>
    %12 = vector.extract_strided_slice %8 {offsets = [0, 64], sizes = [32, 32], strides = [1, 1]} : vector<32x128xf32> to vector<32x32xf32>
    %13 = vector.extract_strided_slice %8 {offsets = [0, 96], sizes = [32, 32], strides = [1, 1]} : vector<32x128xf32> to vector<32x32xf32>
    %14 = vector.extract_strided_slice %9 {offsets = [0, 0], sizes = [1, 32], strides = [1, 1]} : vector<1x128xf32> to vector<1x32xf32>
    %15 = vector.extract_strided_slice %9 {offsets = [0, 32], sizes = [1, 32], strides = [1, 1]} : vector<1x128xf32> to vector<1x32xf32>
    %16 = vector.extract_strided_slice %9 {offsets = [0, 64], sizes = [1, 32], strides = [1, 1]} : vector<1x128xf32> to vector<1x32xf32>
    %17 = vector.extract_strided_slice %9 {offsets = [0, 96], sizes = [1, 32], strides = [1, 1]} : vector<1x128xf32> to vector<1x32xf32>
    %cst = arith.constant dense<0.000000e+00> : vector<16x32xf32>
    %18 = tpu.matmul %1, %10, %cst {dimension_numbers = #tpu.dot_dimension_numbers<[1], [0], [0], [1], [0, 0, 1, 1], [], []>} : vector<16x32xf32>, vector<32x32xf32>, vector<16x32xf32> -> vector<16x32xf32>
    %19 = vector.broadcast %14 : vector<1x32xf32> to vector<16x32xf32>
    %20 = arith.addf %18, %19 : vector<16x32xf32>
    %cst_15 = arith.constant 0.353553385 : f32
    %21 = vector.broadcast %cst_15 : f32 to vector<16x32xf32>
    %22 = arith.mulf %20, %21 : vector<16x32xf32>
    %cst_16 = arith.constant dense<0.000000e+00> : vector<16x32xf32>
    %23 = tpu.matmul %1, %11, %cst_16 {dimension_numbers = #tpu.dot_dimension_numbers<[1], [0], [0], [1], [0, 0, 1, 1], [], []>} : vector<16x32xf32>, vector<32x32xf32>, vector<16x32xf32> -> vector<16x32xf32>
    %24 = vector.broadcast %15 : vector<1x32xf32> to vector<16x32xf32>
    %25 = arith.addf %23, %24 : vector<16x32xf32>
    %cst_17 = arith.constant dense<0.000000e+00> : vector<16x32xf32>
    %26 = tpu.matmul %1, %12, %cst_17 {dimension_numbers = #tpu.dot_dimension_numbers<[1], [0], [0], [1], [0, 0, 1, 1], [], []>} : vector<16x32xf32>, vector<32x32xf32>, vector<16x32xf32> -> vector<16x32xf32>
    %27 = vector.broadcast %16 : vector<1x32xf32> to vector<16x32xf32>
    %28 = arith.addf %26, %27 : vector<16x32xf32>
    %29 = vector.extract_strided_slice %22 {offsets = [0, 0], sizes = [16, 8], strides = [1, 1]} : vector<16x32xf32> to vector<16x8xf32>
    %30 = vector.extract_strided_slice %25 {offsets = [0, 0], sizes = [16, 8], strides = [1, 1]} : vector<16x32xf32> to vector<16x8xf32>
    %cst_18 = arith.constant dense<0.000000e+00> : vector<16x16xf32>
    %31 = tpu.matmul %29, %30, %cst_18 {dimension_numbers = #tpu.dot_dimension_numbers<[1], [1], [0], [0], [0, 0, 1, 0], [], []>} : vector<16x8xf32>, vector<16x8xf32>, vector<16x16xf32> -> vector<16x16xf32>
    %cst_19 = arith.constant 0.000000e+00 : f32
    %32 = vector.broadcast %cst_19 : f32 to vector<1x16xf32>
    %33 = arith.cmpf oeq, %5, %32 : vector<1x16xf32>
    %cst_20 = arith.constant -1.000000e+30 : f32
    %34 = vector.shape_cast %33 : vector<1x16xi1> to vector<1x16xi1>
    %35 = vector.broadcast %34 : vector<1x16xi1> to vector<16x16xi1>
    %36 = vector.broadcast %cst_20 : f32 to vector<16x16xf32>
    %37 = arith.select %35, %36, %31 : vector<16x16xi1>, vector<16x16xf32>
    %cst_21 = arith.constant dense<0xFF800000> : vector<16xf32>
    %38 = vector.multi_reduction <maximumf>, %37, %cst_21 [1] : vector<16x16xf32> to vector<16xf32>
    %39 = vector.shape_cast %38 : vector<16xf32> to vector<16x1xf32>
    %40 = vector.broadcast %39 : vector<16x1xf32> to vector<16x16xf32>
    %41 = arith.subf %37, %40 : vector<16x16xf32>
    %42 = math.exp %41 : vector<16x16xf32>
    %cst_22 = arith.constant dense<0.000000e+00> : vector<16xf32>
    %43 = vector.multi_reduction <add>, %42, %cst_22 [1] : vector<16x16xf32> to vector<16xf32>
    %44 = vector.shape_cast %43 : vector<16xf32> to vector<16x1xf32>
    %45 = tpu.reciprocal %44 : vector<16x1xf32> -> vector<16x1xf32>
    %46 = vector.broadcast %45 : vector<16x1xf32> to vector<16x16xf32>
    %47 = arith.mulf %42, %46 : vector<16x16xf32>
    %48 = vector.extract_strided_slice %28 {offsets = [0, 0], sizes = [16, 8], strides = [1, 1]} : vector<16x32xf32> to vector<16x8xf32>
    %cst_23 = arith.constant dense<0.000000e+00> : vector<16x8xf32>
    %49 = tpu.matmul %47, %48, %cst_23 {dimension_numbers = #tpu.dot_dimension_numbers<[1], [0], [0], [1], [0, 0, 1, 1], [], []>} : vector<16x16xf32>, vector<16x8xf32>, vector<16x8xf32> -> vector<16x8xf32>
    %50 = vector.extract_strided_slice %22 {offsets = [0, 8], sizes = [16, 8], strides = [1, 1]} : vector<16x32xf32> to vector<16x8xf32>
    %51 = vector.extract_strided_slice %25 {offsets = [0, 8], sizes = [16, 8], strides = [1, 1]} : vector<16x32xf32> to vector<16x8xf32>
    %cst_24 = arith.constant dense<0.000000e+00> : vector<16x16xf32>
    %52 = tpu.matmul %50, %51, %cst_24 {dimension_numbers = #tpu.dot_dimension_numbers<[1], [1], [0], [0], [0, 0, 1, 0], [], []>} : vector<16x8xf32>, vector<16x8xf32>, vector<16x16xf32> -> vector<16x16xf32>
    %cst_25 = arith.constant 0.000000e+00 : f32
    %53 = vector.broadcast %cst_25 : f32 to vector<1x16xf32>
    %54 = arith.cmpf oeq, %5, %53 : vector<1x16xf32>
    %cst_26 = arith.constant -1.000000e+30 : f32
    %55 = vector.shape_cast %54 : vector<1x16xi1> to vector<1x16xi1>
    %56 = vector.broadcast %55 : vector<1x16xi1> to vector<16x16xi1>
    %57 = vector.broadcast %cst_26 : f32 to vector<16x16xf32>
    %58 = arith.select %56, %57, %52 : vector<16x16xi1>, vector<16x16xf32>
    %cst_27 = arith.constant dense<0xFF800000> : vector<16xf32>
    %59 = vector.multi_reduction <maximumf>, %58, %cst_27 [1] : vector<16x16xf32> to vector<16xf32>
    %60 = vector.shape_cast %59 : vector<16xf32> to vector<16x1xf32>
    %61 = vector.broadcast %60 : vector<16x1xf32> to vector<16x16xf32>
    %62 = arith.subf %58, %61 : vector<16x16xf32>
    %63 = math.exp %62 : vector<16x16xf32>
    %cst_28 = arith.constant dense<0.000000e+00> : vector<16xf32>
    %64 = vector.multi_reduction <add>, %63, %cst_28 [1] : vector<16x16xf32> to vector<16xf32>
    %65 = vector.shape_cast %64 : vector<16xf32> to vector<16x1xf32>
    %66 = tpu.reciprocal %65 : vector<16x1xf32> -> vector<16x1xf32>
    %67 = vector.broadcast %66 : vector<16x1xf32> to vector<16x16xf32>
    %68 = arith.mulf %63, %67 : vector<16x16xf32>
    %69 = vector.extract_strided_slice %28 {offsets = [0, 8], sizes = [16, 8], strides = [1, 1]} : vector<16x32xf32> to vector<16x8xf32>
    %cst_29 = arith.constant dense<0.000000e+00> : vector<16x8xf32>
    %70 = tpu.matmul %68, %69, %cst_29 {dimension_numbers = #tpu.dot_dimension_numbers<[1], [0], [0], [1], [0, 0, 1, 1], [], []>} : vector<16x16xf32>, vector<16x8xf32>, vector<16x8xf32> -> vector<16x8xf32>
    %71 = vector.extract_strided_slice %22 {offsets = [0, 16], sizes = [16, 8], strides = [1, 1]} : vector<16x32xf32> to vector<16x8xf32>
    %72 = vector.extract_strided_slice %25 {offsets = [0, 16], sizes = [16, 8], strides = [1, 1]} : vector<16x32xf32> to vector<16x8xf32>
    %cst_30 = arith.constant dense<0.000000e+00> : vector<16x16xf32>
    %73 = tpu.matmul %71, %72, %cst_30 {dimension_numbers = #tpu.dot_dimension_numbers<[1], [1], [0], [0], [0, 0, 1, 0], [], []>} : vector<16x8xf32>, vector<16x8xf32>, vector<16x16xf32> -> vector<16x16xf32>
    %cst_31 = arith.constant 0.000000e+00 : f32
    %74 = vector.broadcast %cst_31 : f32 to vector<1x16xf32>
    %75 = arith.cmpf oeq, %5, %74 : vector<1x16xf32>
    %cst_32 = arith.constant -1.000000e+30 : f32
    %76 = vector.shape_cast %75 : vector<1x16xi1> to vector<1x16xi1>
    %77 = vector.broadcast %76 : vector<1x16xi1> to vector<16x16xi1>
    %78 = vector.broadcast %cst_32 : f32 to vector<16x16xf32>
    %79 = arith.select %77, %78, %73 : vector<16x16xi1>, vector<16x16xf32>
    %cst_33 = arith.constant dense<0xFF800000> : vector<16xf32>
    %80 = vector.multi_reduction <maximumf>, %79, %cst_33 [1] : vector<16x16xf32> to vector<16xf32>
    %81 = vector.shape_cast %80 : vector<16xf32> to vector<16x1xf32>
    %82 = vector.broadcast %81 : vector<16x1xf32> to vector<16x16xf32>
    %83 = arith.subf %79, %82 : vector<16x16xf32>
    %84 = math.exp %83 : vector<16x16xf32>
    %cst_34 = arith.constant dense<0.000000e+00> : vector<16xf32>
    %85 = vector.multi_reduction <add>, %84, %cst_34 [1] : vector<16x16xf32> to vector<16xf32>
    %86 = vector.shape_cast %85 : vector<16xf32> to vector<16x1xf32>
    %87 = tpu.reciprocal %86 : vector<16x1xf32> -> vector<16x1xf32>
    %88 = vector.broadcast %87 : vector<16x1xf32> to vector<16x16xf32>
    %89 = arith.mulf %84, %88 : vector<16x16xf32>
    %90 = vector.extract_strided_slice %28 {offsets = [0, 16], sizes = [16, 8], strides = [1, 1]} : vector<16x32xf32> to vector<16x8xf32>
    %cst_35 = arith.constant dense<0.000000e+00> : vector<16x8xf32>
    %91 = tpu.matmul %89, %90, %cst_35 {dimension_numbers = #tpu.dot_dimension_numbers<[1], [0], [0], [1], [0, 0, 1, 1], [], []>} : vector<16x16xf32>, vector<16x8xf32>, vector<16x8xf32> -> vector<16x8xf32>
    %92 = vector.extract_strided_slice %22 {offsets = [0, 24], sizes = [16, 8], strides = [1, 1]} : vector<16x32xf32> to vector<16x8xf32>
    %93 = vector.extract_strided_slice %25 {offsets = [0, 24], sizes = [16, 8], strides = [1, 1]} : vector<16x32xf32> to vector<16x8xf32>
    %cst_36 = arith.constant dense<0.000000e+00> : vector<16x16xf32>
    %94 = tpu.matmul %92, %93, %cst_36 {dimension_numbers = #tpu.dot_dimension_numbers<[1], [1], [0], [0], [0, 0, 1, 0], [], []>} : vector<16x8xf32>, vector<16x8xf32>, vector<16x16xf32> -> vector<16x16xf32>
    %cst_37 = arith.constant 0.000000e+00 : f32
    %95 = vector.broadcast %cst_37 : f32 to vector<1x16xf32>
    %96 = arith.cmpf oeq, %5, %95 : vector<1x16xf32>
    %cst_38 = arith.constant -1.000000e+30 : f32
    %97 = vector.shape_cast %96 : vector<1x16xi1> to vector<1x16xi1>
    %98 = vector.broadcast %97 : vector<1x16xi1> to vector<16x16xi1>
    %99 = vector.broadcast %cst_38 : f32 to vector<16x16xf32>
    %100 = arith.select %98, %99, %94 : vector<16x16xi1>, vector<16x16xf32>
    %cst_39 = arith.constant dense<0xFF800000> : vector<16xf32>
    %101 = vector.multi_reduction <maximumf>, %100, %cst_39 [1] : vector<16x16xf32> to vector<16xf32>
    %102 = vector.shape_cast %101 : vector<16xf32> to vector<16x1xf32>
    %103 = vector.broadcast %102 : vector<16x1xf32> to vector<16x16xf32>
    %104 = arith.subf %100, %103 : vector<16x16xf32>
    %105 = math.exp %104 : vector<16x16xf32>
    %cst_40 = arith.constant dense<0.000000e+00> : vector<16xf32>
    %106 = vector.multi_reduction <add>, %105, %cst_40 [1] : vector<16x16xf32> to vector<16xf32>
    %107 = vector.shape_cast %106 : vector<16xf32> to vector<16x1xf32>
    %108 = tpu.reciprocal %107 : vector<16x1xf32> -> vector<16x1xf32>
    %109 = vector.broadcast %108 : vector<16x1xf32> to vector<16x16xf32>
    %110 = arith.mulf %105, %109 : vector<16x16xf32>
    %111 = vector.extract_strided_slice %28 {offsets = [0, 24], sizes = [16, 8], strides = [1, 1]} : vector<16x32xf32> to vector<16x8xf32>
    %cst_41 = arith.constant dense<0.000000e+00> : vector<16x8xf32>
    %112 = tpu.matmul %110, %111, %cst_41 {dimension_numbers = #tpu.dot_dimension_numbers<[1], [0], [0], [1], [0, 0, 1, 1], [], []>} : vector<16x16xf32>, vector<16x8xf32>, vector<16x8xf32> -> vector<16x8xf32>
    %113 = tpu.concatenate %49, %70, %91, %112 in 1 : vector<16x8xf32>, vector<16x8xf32>, vector<16x8xf32>, vector<16x8xf32> -> vector<16x32xf32>
    %cst_42 = arith.constant dense<0.000000e+00> : vector<16x32xf32>
    %114 = tpu.matmul %113, %13, %cst_42 {dimension_numbers = #tpu.dot_dimension_numbers<[1], [0], [0], [1], [0, 0, 1, 1], [], []>} : vector<16x32xf32>, vector<32x32xf32>, vector<16x32xf32> -> vector<16x32xf32>
    %115 = vector.broadcast %17 : vector<1x32xf32> to vector<16x32xf32>
    %116 = arith.addf %114, %115 : vector<16x32xf32>
    %c0_43 = arith.constant 0 : index
    %c0_44 = arith.constant 0 : index
    %117 = vector.load %arg21[%c0_43, %c0_44] : memref<2x32xf32, #tpu.memory_space<vmem>>, vector<2x32xf32>
    %118 = arith.addf %1, %116 : vector<16x32xf32>
    %cst_45 = arith.constant dense<0.000000e+00> : vector<16xf32>
    %119 = vector.multi_reduction <add>, %118, %cst_45 [1] : vector<16x32xf32> to vector<16xf32>
    %120 = vector.shape_cast %119 : vector<16xf32> to vector<16x1xf32>
    %cst_46 = arith.constant 3.200000e+01 : f32
    %121 = vector.broadcast %cst_46 : f32 to vector<16x1xf32>
    %122 = arith.divf %120, %121 : vector<16x1xf32>
    %123 = vector.broadcast %122 : vector<16x1xf32> to vector<16x32xf32>
    %124 = arith.subf %118, %123 : vector<16x32xf32>
    %125 = arith.mulf %124, %124 : vector<16x32xf32>
    %cst_47 = arith.constant dense<0.000000e+00> : vector<16xf32>
    %126 = vector.multi_reduction <add>, %125, %cst_47 [1] : vector<16x32xf32> to vector<16xf32>
    %127 = vector.shape_cast %126 : vector<16xf32> to vector<16x1xf32>
    %cst_48 = arith.constant 3.200000e+01 : f32
    %128 = vector.broadcast %cst_48 : f32 to vector<16x1xf32>
    %129 = arith.divf %127, %128 : vector<16x1xf32>
    %130 = vector.broadcast %122 : vector<16x1xf32> to vector<16x32xf32>
    %131 = arith.subf %118, %130 : vector<16x32xf32>
    %cst_49 = arith.constant 9.99999974E-6 : f32
    %132 = vector.broadcast %cst_49 : f32 to vector<16x1xf32>
    %133 = arith.addf %129, %132 : vector<16x1xf32>
    %134 = math.rsqrt %133 : vector<16x1xf32>
    %135 = vector.broadcast %134 : vector<16x1xf32> to vector<16x32xf32>
    %136 = arith.mulf %131, %135 : vector<16x32xf32>
    %137 = vector.extract_strided_slice %117 {offsets = [0, 0], sizes = [1, 32], strides = [1, 1]} : vector<2x32xf32> to vector<1x32xf32>
    %138 = vector.broadcast %137 : vector<1x32xf32> to vector<16x32xf32>
    %139 = arith.mulf %136, %138 : vector<16x32xf32>
    %140 = vector.extract_strided_slice %117 {offsets = [1, 0], sizes = [1, 32], strides = [1, 1]} : vector<2x32xf32> to vector<1x32xf32>
    %141 = vector.broadcast %140 : vector<1x32xf32> to vector<16x32xf32>
    %142 = arith.addf %139, %141 : vector<16x32xf32>
    %c0_50 = arith.constant 0 : index
    %c0_51 = arith.constant 0 : index
    %143 = vector.load %arg7[%c0_50, %c0_51] : memref<32x128xf32, #tpu.memory_space<vmem>>, vector<32x128xf32>
    %c0_52 = arith.constant 0 : index
    %c0_53 = arith.constant 0 : index
    %144 = vector.load %arg8[%c0_52, %c0_53] : memref<1x128xf32, #tpu.memory_space<vmem>>, vector<1x128xf32>
    %145 = vector.extract_strided_slice %143 {offsets = [0, 0], sizes = [32, 32], strides = [1, 1]} : vector<32x128xf32> to vector<32x32xf32>
    %146 = vector.extract_strided_slice %143 {offsets = [0, 32], sizes = [32, 32], strides = [1, 1]} : vector<32x128xf32> to vector<32x32xf32>
    %147 = vector.extract_strided_slice %143 {offsets = [0, 64], sizes = [32, 32], strides = [1, 1]} : vector<32x128xf32> to vector<32x32xf32>
    %148 = vector.extract_strided_slice %143 {offsets = [0, 96], sizes = [32, 32], strides = [1, 1]} : vector<32x128xf32> to vector<32x32xf32>
    %149 = vector.extract_strided_slice %144 {offsets = [0, 0], sizes = [1, 32], strides = [1, 1]} : vector<1x128xf32> to vector<1x32xf32>
    %150 = vector.extract_strided_slice %144 {offsets = [0, 32], sizes = [1, 32], strides = [1, 1]} : vector<1x128xf32> to vector<1x32xf32>
    %151 = vector.extract_strided_slice %144 {offsets = [0, 64], sizes = [1, 32], strides = [1, 1]} : vector<1x128xf32> to vector<1x32xf32>
    %152 = vector.extract_strided_slice %144 {offsets = [0, 96], sizes = [1, 32], strides = [1, 1]} : vector<1x128xf32> to vector<1x32xf32>
    %cst_54 = arith.constant dense<0.000000e+00> : vector<8x32xf32>
    %153 = tpu.matmul %3, %145, %cst_54 {dimension_numbers = #tpu.dot_dimension_numbers<[1], [0], [0], [1], [0, 0, 1, 1], [], []>} : vector<8x32xf32>, vector<32x32xf32>, vector<8x32xf32> -> vector<8x32xf32>
    %154 = vector.broadcast %149 : vector<1x32xf32> to vector<8x32xf32>
    %155 = arith.addf %153, %154 : vector<8x32xf32>
    %cst_55 = arith.constant 0.353553385 : f32
    %156 = vector.broadcast %cst_55 : f32 to vector<8x32xf32>
    %157 = arith.mulf %155, %156 : vector<8x32xf32>
    %cst_56 = arith.constant dense<0.000000e+00> : vector<8x32xf32>
    %158 = tpu.matmul %3, %146, %cst_56 {dimension_numbers = #tpu.dot_dimension_numbers<[1], [0], [0], [1], [0, 0, 1, 1], [], []>} : vector<8x32xf32>, vector<32x32xf32>, vector<8x32xf32> -> vector<8x32xf32>
    %159 = vector.broadcast %150 : vector<1x32xf32> to vector<8x32xf32>
    %160 = arith.addf %158, %159 : vector<8x32xf32>
    %cst_57 = arith.constant dense<0.000000e+00> : vector<8x32xf32>
    %161 = tpu.matmul %3, %147, %cst_57 {dimension_numbers = #tpu.dot_dimension_numbers<[1], [0], [0], [1], [0, 0, 1, 1], [], []>} : vector<8x32xf32>, vector<32x32xf32>, vector<8x32xf32> -> vector<8x32xf32>
    %162 = vector.broadcast %151 : vector<1x32xf32> to vector<8x32xf32>
    %163 = arith.addf %161, %162 : vector<8x32xf32>
    %164 = vector.extract_strided_slice %157 {offsets = [0, 0], sizes = [8, 8], strides = [1, 1]} : vector<8x32xf32> to vector<8x8xf32>
    %165 = vector.extract_strided_slice %160 {offsets = [0, 0], sizes = [8, 8], strides = [1, 1]} : vector<8x32xf32> to vector<8x8xf32>
    %cst_58 = arith.constant dense<0.000000e+00> : vector<8x8xf32>
    %166 = tpu.matmul %164, %165, %cst_58 {dimension_numbers = #tpu.dot_dimension_numbers<[1], [1], [0], [0], [0, 0, 1, 0], [], []>} : vector<8x8xf32>, vector<8x8xf32>, vector<8x8xf32> -> vector<8x8xf32>
    %cst_59 = arith.constant 0.000000e+00 : f32
    %167 = vector.broadcast %cst_59 : f32 to vector<1x8xf32>
    %168 = arith.cmpf oeq, %7, %167 : vector<1x8xf32>
    %cst_60 = arith.constant -1.000000e+30 : f32
    %169 = vector.shape_cast %168 : vector<1x8xi1> to vector<1x8xi1>
    %170 = vector.broadcast %169 : vector<1x8xi1> to vector<8x8xi1>
    %171 = vector.broadcast %cst_60 : f32 to vector<8x8xf32>
    %172 = arith.select %170, %171, %166 : vector<8x8xi1>, vector<8x8xf32>
    %cst_61 = arith.constant dense<0xFF800000> : vector<8xf32>
    %173 = vector.multi_reduction <maximumf>, %172, %cst_61 [1] : vector<8x8xf32> to vector<8xf32>
    %174 = vector.shape_cast %173 : vector<8xf32> to vector<8x1xf32>
    %175 = vector.broadcast %174 : vector<8x1xf32> to vector<8x8xf32>
    %176 = arith.subf %172, %175 : vector<8x8xf32>
    %177 = math.exp %176 : vector<8x8xf32>
    %cst_62 = arith.constant dense<0.000000e+00> : vector<8xf32>
    %178 = vector.multi_reduction <add>, %177, %cst_62 [1] : vector<8x8xf32> to vector<8xf32>
    %179 = vector.shape_cast %178 : vector<8xf32> to vector<8x1xf32>
    %180 = tpu.reciprocal %179 : vector<8x1xf32> -> vector<8x1xf32>
    %181 = vector.broadcast %180 : vector<8x1xf32> to vector<8x8xf32>
    %182 = arith.mulf %177, %181 : vector<8x8xf32>
    %183 = vector.extract_strided_slice %163 {offsets = [0, 0], sizes = [8, 8], strides = [1, 1]} : vector<8x32xf32> to vector<8x8xf32>
    %cst_63 = arith.constant dense<0.000000e+00> : vector<8x8xf32>
    %184 = tpu.matmul %182, %183, %cst_63 {dimension_numbers = #tpu.dot_dimension_numbers<[1], [0], [0], [1], [0, 0, 1, 1], [], []>} : vector<8x8xf32>, vector<8x8xf32>, vector<8x8xf32> -> vector<8x8xf32>
    %185 = vector.extract_strided_slice %157 {offsets = [0, 8], sizes = [8, 8], strides = [1, 1]} : vector<8x32xf32> to vector<8x8xf32>
    %186 = vector.extract_strided_slice %160 {offsets = [0, 8], sizes = [8, 8], strides = [1, 1]} : vector<8x32xf32> to vector<8x8xf32>
    %cst_64 = arith.constant dense<0.000000e+00> : vector<8x8xf32>
    %187 = tpu.matmul %185, %186, %cst_64 {dimension_numbers = #tpu.dot_dimension_numbers<[1], [1], [0], [0], [0, 0, 1, 0], [], []>} : vector<8x8xf32>, vector<8x8xf32>, vector<8x8xf32> -> vector<8x8xf32>
    %cst_65 = arith.constant 0.000000e+00 : f32
    %188 = vector.broadcast %cst_65 : f32 to vector<1x8xf32>
    %189 = arith.cmpf oeq, %7, %188 : vector<1x8xf32>
    %cst_66 = arith.constant -1.000000e+30 : f32
    %190 = vector.shape_cast %189 : vector<1x8xi1> to vector<1x8xi1>
    %191 = vector.broadcast %190 : vector<1x8xi1> to vector<8x8xi1>
    %192 = vector.broadcast %cst_66 : f32 to vector<8x8xf32>
    %193 = arith.select %191, %192, %187 : vector<8x8xi1>, vector<8x8xf32>
    %cst_67 = arith.constant dense<0xFF800000> : vector<8xf32>
    %194 = vector.multi_reduction <maximumf>, %193, %cst_67 [1] : vector<8x8xf32> to vector<8xf32>
    %195 = vector.shape_cast %194 : vector<8xf32> to vector<8x1xf32>
    %196 = vector.broadcast %195 : vector<8x1xf32> to vector<8x8xf32>
    %197 = arith.subf %193, %196 : vector<8x8xf32>
    %198 = math.exp %197 : vector<8x8xf32>
    %cst_68 = arith.constant dense<0.000000e+00> : vector<8xf32>
    %199 = vector.multi_reduction <add>, %198, %cst_68 [1] : vector<8x8xf32> to vector<8xf32>
    %200 = vector.shape_cast %199 : vector<8xf32> to vector<8x1xf32>
    %201 = tpu.reciprocal %200 : vector<8x1xf32> -> vector<8x1xf32>
    %202 = vector.broadcast %201 : vector<8x1xf32> to vector<8x8xf32>
    %203 = arith.mulf %198, %202 : vector<8x8xf32>
    %204 = vector.extract_strided_slice %163 {offsets = [0, 8], sizes = [8, 8], strides = [1, 1]} : vector<8x32xf32> to vector<8x8xf32>
    %cst_69 = arith.constant dense<0.000000e+00> : vector<8x8xf32>
    %205 = tpu.matmul %203, %204, %cst_69 {dimension_numbers = #tpu.dot_dimension_numbers<[1], [0], [0], [1], [0, 0, 1, 1], [], []>} : vector<8x8xf32>, vector<8x8xf32>, vector<8x8xf32> -> vector<8x8xf32>
    %206 = vector.extract_strided_slice %157 {offsets = [0, 16], sizes = [8, 8], strides = [1, 1]} : vector<8x32xf32> to vector<8x8xf32>
    %207 = vector.extract_strided_slice %160 {offsets = [0, 16], sizes = [8, 8], strides = [1, 1]} : vector<8x32xf32> to vector<8x8xf32>
    %cst_70 = arith.constant dense<0.000000e+00> : vector<8x8xf32>
    %208 = tpu.matmul %206, %207, %cst_70 {dimension_numbers = #tpu.dot_dimension_numbers<[1], [1], [0], [0], [0, 0, 1, 0], [], []>} : vector<8x8xf32>, vector<8x8xf32>, vector<8x8xf32> -> vector<8x8xf32>
    %cst_71 = arith.constant 0.000000e+00 : f32
    %209 = vector.broadcast %cst_71 : f32 to vector<1x8xf32>
    %210 = arith.cmpf oeq, %7, %209 : vector<1x8xf32>
    %cst_72 = arith.constant -1.000000e+30 : f32
    %211 = vector.shape_cast %210 : vector<1x8xi1> to vector<1x8xi1>
    %212 = vector.broadcast %211 : vector<1x8xi1> to vector<8x8xi1>
    %213 = vector.broadcast %cst_72 : f32 to vector<8x8xf32>
    %214 = arith.select %212, %213, %208 : vector<8x8xi1>, vector<8x8xf32>
    %cst_73 = arith.constant dense<0xFF800000> : vector<8xf32>
    %215 = vector.multi_reduction <maximumf>, %214, %cst_73 [1] : vector<8x8xf32> to vector<8xf32>
    %216 = vector.shape_cast %215 : vector<8xf32> to vector<8x1xf32>
    %217 = vector.broadcast %216 : vector<8x1xf32> to vector<8x8xf32>
    %218 = arith.subf %214, %217 : vector<8x8xf32>
    %219 = math.exp %218 : vector<8x8xf32>
    %cst_74 = arith.constant dense<0.000000e+00> : vector<8xf32>
    %220 = vector.multi_reduction <add>, %219, %cst_74 [1] : vector<8x8xf32> to vector<8xf32>
    %221 = vector.shape_cast %220 : vector<8xf32> to vector<8x1xf32>
    %222 = tpu.reciprocal %221 : vector<8x1xf32> -> vector<8x1xf32>
    %223 = vector.broadcast %222 : vector<8x1xf32> to vector<8x8xf32>
    %224 = arith.mulf %219, %223 : vector<8x8xf32>
    %225 = vector.extract_strided_slice %163 {offsets = [0, 16], sizes = [8, 8], strides = [1, 1]} : vector<8x32xf32> to vector<8x8xf32>
    %cst_75 = arith.constant dense<0.000000e+00> : vector<8x8xf32>
    %226 = tpu.matmul %224, %225, %cst_75 {dimension_numbers = #tpu.dot_dimension_numbers<[1], [0], [0], [1], [0, 0, 1, 1], [], []>} : vector<8x8xf32>, vector<8x8xf32>, vector<8x8xf32> -> vector<8x8xf32>
    %227 = vector.extract_strided_slice %157 {offsets = [0, 24], sizes = [8, 8], strides = [1, 1]} : vector<8x32xf32> to vector<8x8xf32>
    %228 = vector.extract_strided_slice %160 {offsets = [0, 24], sizes = [8, 8], strides = [1, 1]} : vector<8x32xf32> to vector<8x8xf32>
    %cst_76 = arith.constant dense<0.000000e+00> : vector<8x8xf32>
    %229 = tpu.matmul %227, %228, %cst_76 {dimension_numbers = #tpu.dot_dimension_numbers<[1], [1], [0], [0], [0, 0, 1, 0], [], []>} : vector<8x8xf32>, vector<8x8xf32>, vector<8x8xf32> -> vector<8x8xf32>
    %cst_77 = arith.constant 0.000000e+00 : f32
    %230 = vector.broadcast %cst_77 : f32 to vector<1x8xf32>
    %231 = arith.cmpf oeq, %7, %230 : vector<1x8xf32>
    %cst_78 = arith.constant -1.000000e+30 : f32
    %232 = vector.shape_cast %231 : vector<1x8xi1> to vector<1x8xi1>
    %233 = vector.broadcast %232 : vector<1x8xi1> to vector<8x8xi1>
    %234 = vector.broadcast %cst_78 : f32 to vector<8x8xf32>
    %235 = arith.select %233, %234, %229 : vector<8x8xi1>, vector<8x8xf32>
    %cst_79 = arith.constant dense<0xFF800000> : vector<8xf32>
    %236 = vector.multi_reduction <maximumf>, %235, %cst_79 [1] : vector<8x8xf32> to vector<8xf32>
    %237 = vector.shape_cast %236 : vector<8xf32> to vector<8x1xf32>
    %238 = vector.broadcast %237 : vector<8x1xf32> to vector<8x8xf32>
    %239 = arith.subf %235, %238 : vector<8x8xf32>
    %240 = math.exp %239 : vector<8x8xf32>
    %cst_80 = arith.constant dense<0.000000e+00> : vector<8xf32>
    %241 = vector.multi_reduction <add>, %240, %cst_80 [1] : vector<8x8xf32> to vector<8xf32>
    %242 = vector.shape_cast %241 : vector<8xf32> to vector<8x1xf32>
    %243 = tpu.reciprocal %242 : vector<8x1xf32> -> vector<8x1xf32>
    %244 = vector.broadcast %243 : vector<8x1xf32> to vector<8x8xf32>
    %245 = arith.mulf %240, %244 : vector<8x8xf32>
    %246 = vector.extract_strided_slice %163 {offsets = [0, 24], sizes = [8, 8], strides = [1, 1]} : vector<8x32xf32> to vector<8x8xf32>
    %cst_81 = arith.constant dense<0.000000e+00> : vector<8x8xf32>
    %247 = tpu.matmul %245, %246, %cst_81 {dimension_numbers = #tpu.dot_dimension_numbers<[1], [0], [0], [1], [0, 0, 1, 1], [], []>} : vector<8x8xf32>, vector<8x8xf32>, vector<8x8xf32> -> vector<8x8xf32>
    %248 = tpu.concatenate %184, %205, %226, %247 in 1 : vector<8x8xf32>, vector<8x8xf32>, vector<8x8xf32>, vector<8x8xf32> -> vector<8x32xf32>
    %cst_82 = arith.constant dense<0.000000e+00> : vector<8x32xf32>
    %249 = tpu.matmul %248, %148, %cst_82 {dimension_numbers = #tpu.dot_dimension_numbers<[1], [0], [0], [1], [0, 0, 1, 1], [], []>} : vector<8x32xf32>, vector<32x32xf32>, vector<8x32xf32> -> vector<8x32xf32>
    %250 = vector.broadcast %152 : vector<1x32xf32> to vector<8x32xf32>
    %251 = arith.addf %249, %250 : vector<8x32xf32>
    %c0_83 = arith.constant 0 : index
    %c0_84 = arith.constant 0 : index
    %252 = vector.load %arg24[%c0_83, %c0_84] : memref<2x32xf32, #tpu.memory_space<vmem>>, vector<2x32xf32>
    %253 = arith.addf %3, %251 : vector<8x32xf32>
    %cst_85 = arith.constant dense<0.000000e+00> : vector<8xf32>
    %254 = vector.multi_reduction <add>, %253, %cst_85 [1] : vector<8x32xf32> to vector<8xf32>
    %255 = vector.shape_cast %254 : vector<8xf32> to vector<8x1xf32>
    %cst_86 = arith.constant 3.200000e+01 : f32
    %256 = vector.broadcast %cst_86 : f32 to vector<8x1xf32>
    %257 = arith.divf %255, %256 : vector<8x1xf32>
    %258 = vector.broadcast %257 : vector<8x1xf32> to vector<8x32xf32>
    %259 = arith.subf %253, %258 : vector<8x32xf32>
    %260 = arith.mulf %259, %259 : vector<8x32xf32>
    %cst_87 = arith.constant dense<0.000000e+00> : vector<8xf32>
    %261 = vector.multi_reduction <add>, %260, %cst_87 [1] : vector<8x32xf32> to vector<8xf32>
    %262 = vector.shape_cast %261 : vector<8xf32> to vector<8x1xf32>
    %cst_88 = arith.constant 3.200000e+01 : f32
    %263 = vector.broadcast %cst_88 : f32 to vector<8x1xf32>
    %264 = arith.divf %262, %263 : vector<8x1xf32>
    %265 = vector.broadcast %257 : vector<8x1xf32> to vector<8x32xf32>
    %266 = arith.subf %253, %265 : vector<8x32xf32>
    %cst_89 = arith.constant 9.99999974E-6 : f32
    %267 = vector.broadcast %cst_89 : f32 to vector<8x1xf32>
    %268 = arith.addf %264, %267 : vector<8x1xf32>
    %269 = math.rsqrt %268 : vector<8x1xf32>
    %270 = vector.broadcast %269 : vector<8x1xf32> to vector<8x32xf32>
    %271 = arith.mulf %266, %270 : vector<8x32xf32>
    %272 = vector.extract_strided_slice %252 {offsets = [0, 0], sizes = [1, 32], strides = [1, 1]} : vector<2x32xf32> to vector<1x32xf32>
    %273 = vector.broadcast %272 : vector<1x32xf32> to vector<8x32xf32>
    %274 = arith.mulf %271, %273 : vector<8x32xf32>
    %275 = vector.extract_strided_slice %252 {offsets = [1, 0], sizes = [1, 32], strides = [1, 1]} : vector<2x32xf32> to vector<1x32xf32>
    %276 = vector.broadcast %275 : vector<1x32xf32> to vector<8x32xf32>
    %277 = arith.addf %274, %276 : vector<8x32xf32>
    %c0_90 = arith.constant 0 : index
    %c0_91 = arith.constant 0 : index
    %278 = vector.load %arg9[%c0_90, %c0_91] : memref<32x128xf32, #tpu.memory_space<vmem>>, vector<32x128xf32>
    %c0_92 = arith.constant 0 : index
    %c0_93 = arith.constant 0 : index
    %279 = vector.load %arg10[%c0_92, %c0_93] : memref<1x128xf32, #tpu.memory_space<vmem>>, vector<1x128xf32>
    %280 = vector.extract_strided_slice %278 {offsets = [0, 0], sizes = [32, 32], strides = [1, 1]} : vector<32x128xf32> to vector<32x32xf32>
    %281 = vector.extract_strided_slice %278 {offsets = [0, 32], sizes = [32, 32], strides = [1, 1]} : vector<32x128xf32> to vector<32x32xf32>
    %282 = vector.extract_strided_slice %278 {offsets = [0, 64], sizes = [32, 32], strides = [1, 1]} : vector<32x128xf32> to vector<32x32xf32>
    %283 = vector.extract_strided_slice %278 {offsets = [0, 96], sizes = [32, 32], strides = [1, 1]} : vector<32x128xf32> to vector<32x32xf32>
    %284 = vector.extract_strided_slice %279 {offsets = [0, 0], sizes = [1, 32], strides = [1, 1]} : vector<1x128xf32> to vector<1x32xf32>
    %285 = vector.extract_strided_slice %279 {offsets = [0, 32], sizes = [1, 32], strides = [1, 1]} : vector<1x128xf32> to vector<1x32xf32>
    %286 = vector.extract_strided_slice %279 {offsets = [0, 64], sizes = [1, 32], strides = [1, 1]} : vector<1x128xf32> to vector<1x32xf32>
    %287 = vector.extract_strided_slice %279 {offsets = [0, 96], sizes = [1, 32], strides = [1, 1]} : vector<1x128xf32> to vector<1x32xf32>
    %cst_94 = arith.constant dense<0.000000e+00> : vector<16x32xf32>
    %288 = tpu.matmul %142, %280, %cst_94 {dimension_numbers = #tpu.dot_dimension_numbers<[1], [0], [0], [1], [0, 0, 1, 1], [], []>} : vector<16x32xf32>, vector<32x32xf32>, vector<16x32xf32> -> vector<16x32xf32>
    %289 = vector.broadcast %284 : vector<1x32xf32> to vector<16x32xf32>
    %290 = arith.addf %288, %289 : vector<16x32xf32>
    %cst_95 = arith.constant 0.353553385 : f32
    %291 = vector.broadcast %cst_95 : f32 to vector<16x32xf32>
    %292 = arith.mulf %290, %291 : vector<16x32xf32>
    %cst_96 = arith.constant dense<0.000000e+00> : vector<8x32xf32>
    %293 = tpu.matmul %277, %281, %cst_96 {dimension_numbers = #tpu.dot_dimension_numbers<[1], [0], [0], [1], [0, 0, 1, 1], [], []>} : vector<8x32xf32>, vector<32x32xf32>, vector<8x32xf32> -> vector<8x32xf32>
    %294 = vector.broadcast %285 : vector<1x32xf32> to vector<8x32xf32>
    %295 = arith.addf %293, %294 : vector<8x32xf32>
    %cst_97 = arith.constant dense<0.000000e+00> : vector<8x32xf32>
    %296 = tpu.matmul %277, %282, %cst_97 {dimension_numbers = #tpu.dot_dimension_numbers<[1], [0], [0], [1], [0, 0, 1, 1], [], []>} : vector<8x32xf32>, vector<32x32xf32>, vector<8x32xf32> -> vector<8x32xf32>
    %297 = vector.broadcast %286 : vector<1x32xf32> to vector<8x32xf32>
    %298 = arith.addf %296, %297 : vector<8x32xf32>
    %299 = vector.extract_strided_slice %292 {offsets = [0, 0], sizes = [16, 8], strides = [1, 1]} : vector<16x32xf32> to vector<16x8xf32>
    %300 = vector.extract_strided_slice %295 {offsets = [0, 0], sizes = [8, 8], strides = [1, 1]} : vector<8x32xf32> to vector<8x8xf32>
    %cst_98 = arith.constant dense<0.000000e+00> : vector<16x8xf32>
    %301 = tpu.matmul %299, %300, %cst_98 {dimension_numbers = #tpu.dot_dimension_numbers<[1], [1], [0], [0], [0, 0, 1, 0], [], []>} : vector<16x8xf32>, vector<8x8xf32>, vector<16x8xf32> -> vector<16x8xf32>
    %cst_99 = arith.constant 0.000000e+00 : f32
    %302 = vector.broadcast %cst_99 : f32 to vector<1x8xf32>
    %303 = arith.cmpf oeq, %7, %302 : vector<1x8xf32>
    %cst_100 = arith.constant -1.000000e+30 : f32
    %304 = vector.shape_cast %303 : vector<1x8xi1> to vector<1x8xi1>
    %305 = vector.broadcast %304 : vector<1x8xi1> to vector<16x8xi1>
    %306 = vector.broadcast %cst_100 : f32 to vector<16x8xf32>
    %307 = arith.select %305, %306, %301 : vector<16x8xi1>, vector<16x8xf32>
    %cst_101 = arith.constant dense<0xFF800000> : vector<16xf32>
    %308 = vector.multi_reduction <maximumf>, %307, %cst_101 [1] : vector<16x8xf32> to vector<16xf32>
    %309 = vector.shape_cast %308 : vector<16xf32> to vector<16x1xf32>
    %310 = vector.broadcast %309 : vector<16x1xf32> to vector<16x8xf32>
    %311 = arith.subf %307, %310 : vector<16x8xf32>
    %312 = math.exp %311 : vector<16x8xf32>
    %cst_102 = arith.constant dense<0.000000e+00> : vector<16xf32>
    %313 = vector.multi_reduction <add>, %312, %cst_102 [1] : vector<16x8xf32> to vector<16xf32>
    %314 = vector.shape_cast %313 : vector<16xf32> to vector<16x1xf32>
    %315 = tpu.reciprocal %314 : vector<16x1xf32> -> vector<16x1xf32>
    %316 = vector.broadcast %315 : vector<16x1xf32> to vector<16x8xf32>
    %317 = arith.mulf %312, %316 : vector<16x8xf32>
    %318 = vector.extract_strided_slice %298 {offsets = [0, 0], sizes = [8, 8], strides = [1, 1]} : vector<8x32xf32> to vector<8x8xf32>
    %cst_103 = arith.constant dense<0.000000e+00> : vector<16x8xf32>
    %319 = tpu.matmul %317, %318, %cst_103 {dimension_numbers = #tpu.dot_dimension_numbers<[1], [0], [0], [1], [0, 0, 1, 1], [], []>} : vector<16x8xf32>, vector<8x8xf32>, vector<16x8xf32> -> vector<16x8xf32>
    %320 = vector.extract_strided_slice %292 {offsets = [0, 8], sizes = [16, 8], strides = [1, 1]} : vector<16x32xf32> to vector<16x8xf32>
    %321 = vector.extract_strided_slice %295 {offsets = [0, 8], sizes = [8, 8], strides = [1, 1]} : vector<8x32xf32> to vector<8x8xf32>
    %cst_104 = arith.constant dense<0.000000e+00> : vector<16x8xf32>
    %322 = tpu.matmul %320, %321, %cst_104 {dimension_numbers = #tpu.dot_dimension_numbers<[1], [1], [0], [0], [0, 0, 1, 0], [], []>} : vector<16x8xf32>, vector<8x8xf32>, vector<16x8xf32> -> vector<16x8xf32>
    %cst_105 = arith.constant 0.000000e+00 : f32
    %323 = vector.broadcast %cst_105 : f32 to vector<1x8xf32>
    %324 = arith.cmpf oeq, %7, %323 : vector<1x8xf32>
    %cst_106 = arith.constant -1.000000e+30 : f32
    %325 = vector.shape_cast %324 : vector<1x8xi1> to vector<1x8xi1>
    %326 = vector.broadcast %325 : vector<1x8xi1> to vector<16x8xi1>
    %327 = vector.broadcast %cst_106 : f32 to vector<16x8xf32>
    %328 = arith.select %326, %327, %322 : vector<16x8xi1>, vector<16x8xf32>
    %cst_107 = arith.constant dense<0xFF800000> : vector<16xf32>
    %329 = vector.multi_reduction <maximumf>, %328, %cst_107 [1] : vector<16x8xf32> to vector<16xf32>
    %330 = vector.shape_cast %329 : vector<16xf32> to vector<16x1xf32>
    %331 = vector.broadcast %330 : vector<16x1xf32> to vector<16x8xf32>
    %332 = arith.subf %328, %331 : vector<16x8xf32>
    %333 = math.exp %332 : vector<16x8xf32>
    %cst_108 = arith.constant dense<0.000000e+00> : vector<16xf32>
    %334 = vector.multi_reduction <add>, %333, %cst_108 [1] : vector<16x8xf32> to vector<16xf32>
    %335 = vector.shape_cast %334 : vector<16xf32> to vector<16x1xf32>
    %336 = tpu.reciprocal %335 : vector<16x1xf32> -> vector<16x1xf32>
    %337 = vector.broadcast %336 : vector<16x1xf32> to vector<16x8xf32>
    %338 = arith.mulf %333, %337 : vector<16x8xf32>
    %339 = vector.extract_strided_slice %298 {offsets = [0, 8], sizes = [8, 8], strides = [1, 1]} : vector<8x32xf32> to vector<8x8xf32>
    %cst_109 = arith.constant dense<0.000000e+00> : vector<16x8xf32>
    %340 = tpu.matmul %338, %339, %cst_109 {dimension_numbers = #tpu.dot_dimension_numbers<[1], [0], [0], [1], [0, 0, 1, 1], [], []>} : vector<16x8xf32>, vector<8x8xf32>, vector<16x8xf32> -> vector<16x8xf32>
    %341 = vector.extract_strided_slice %292 {offsets = [0, 16], sizes = [16, 8], strides = [1, 1]} : vector<16x32xf32> to vector<16x8xf32>
    %342 = vector.extract_strided_slice %295 {offsets = [0, 16], sizes = [8, 8], strides = [1, 1]} : vector<8x32xf32> to vector<8x8xf32>
    %cst_110 = arith.constant dense<0.000000e+00> : vector<16x8xf32>
    %343 = tpu.matmul %341, %342, %cst_110 {dimension_numbers = #tpu.dot_dimension_numbers<[1], [1], [0], [0], [0, 0, 1, 0], [], []>} : vector<16x8xf32>, vector<8x8xf32>, vector<16x8xf32> -> vector<16x8xf32>
    %cst_111 = arith.constant 0.000000e+00 : f32
    %344 = vector.broadcast %cst_111 : f32 to vector<1x8xf32>
    %345 = arith.cmpf oeq, %7, %344 : vector<1x8xf32>
    %cst_112 = arith.constant -1.000000e+30 : f32
    %346 = vector.shape_cast %345 : vector<1x8xi1> to vector<1x8xi1>
    %347 = vector.broadcast %346 : vector<1x8xi1> to vector<16x8xi1>
    %348 = vector.broadcast %cst_112 : f32 to vector<16x8xf32>
    %349 = arith.select %347, %348, %343 : vector<16x8xi1>, vector<16x8xf32>
    %cst_113 = arith.constant dense<0xFF800000> : vector<16xf32>
    %350 = vector.multi_reduction <maximumf>, %349, %cst_113 [1] : vector<16x8xf32> to vector<16xf32>
    %351 = vector.shape_cast %350 : vector<16xf32> to vector<16x1xf32>
    %352 = vector.broadcast %351 : vector<16x1xf32> to vector<16x8xf32>
    %353 = arith.subf %349, %352 : vector<16x8xf32>
    %354 = math.exp %353 : vector<16x8xf32>
    %cst_114 = arith.constant dense<0.000000e+00> : vector<16xf32>
    %355 = vector.multi_reduction <add>, %354, %cst_114 [1] : vector<16x8xf32> to vector<16xf32>
    %356 = vector.shape_cast %355 : vector<16xf32> to vector<16x1xf32>
    %357 = tpu.reciprocal %356 : vector<16x1xf32> -> vector<16x1xf32>
    %358 = vector.broadcast %357 : vector<16x1xf32> to vector<16x8xf32>
    %359 = arith.mulf %354, %358 : vector<16x8xf32>
    %360 = vector.extract_strided_slice %298 {offsets = [0, 16], sizes = [8, 8], strides = [1, 1]} : vector<8x32xf32> to vector<8x8xf32>
    %cst_115 = arith.constant dense<0.000000e+00> : vector<16x8xf32>
    %361 = tpu.matmul %359, %360, %cst_115 {dimension_numbers = #tpu.dot_dimension_numbers<[1], [0], [0], [1], [0, 0, 1, 1], [], []>} : vector<16x8xf32>, vector<8x8xf32>, vector<16x8xf32> -> vector<16x8xf32>
    %362 = vector.extract_strided_slice %292 {offsets = [0, 24], sizes = [16, 8], strides = [1, 1]} : vector<16x32xf32> to vector<16x8xf32>
    %363 = vector.extract_strided_slice %295 {offsets = [0, 24], sizes = [8, 8], strides = [1, 1]} : vector<8x32xf32> to vector<8x8xf32>
    %cst_116 = arith.constant dense<0.000000e+00> : vector<16x8xf32>
    %364 = tpu.matmul %362, %363, %cst_116 {dimension_numbers = #tpu.dot_dimension_numbers<[1], [1], [0], [0], [0, 0, 1, 0], [], []>} : vector<16x8xf32>, vector<8x8xf32>, vector<16x8xf32> -> vector<16x8xf32>
    %cst_117 = arith.constant 0.000000e+00 : f32
    %365 = vector.broadcast %cst_117 : f32 to vector<1x8xf32>
    %366 = arith.cmpf oeq, %7, %365 : vector<1x8xf32>
    %cst_118 = arith.constant -1.000000e+30 : f32
    %367 = vector.shape_cast %366 : vector<1x8xi1> to vector<1x8xi1>
    %368 = vector.broadcast %367 : vector<1x8xi1> to vector<16x8xi1>
    %369 = vector.broadcast %cst_118 : f32 to vector<16x8xf32>
    %370 = arith.select %368, %369, %364 : vector<16x8xi1>, vector<16x8xf32>
    %cst_119 = arith.constant dense<0xFF800000> : vector<16xf32>
    %371 = vector.multi_reduction <maximumf>, %370, %cst_119 [1] : vector<16x8xf32> to vector<16xf32>
    %372 = vector.shape_cast %371 : vector<16xf32> to vector<16x1xf32>
    %373 = vector.broadcast %372 : vector<16x1xf32> to vector<16x8xf32>
    %374 = arith.subf %370, %373 : vector<16x8xf32>
    %375 = math.exp %374 : vector<16x8xf32>
    %cst_120 = arith.constant dense<0.000000e+00> : vector<16xf32>
    %376 = vector.multi_reduction <add>, %375, %cst_120 [1] : vector<16x8xf32> to vector<16xf32>
    %377 = vector.shape_cast %376 : vector<16xf32> to vector<16x1xf32>
    %378 = tpu.reciprocal %377 : vector<16x1xf32> -> vector<16x1xf32>
    %379 = vector.broadcast %378 : vector<16x1xf32> to vector<16x8xf32>
    %380 = arith.mulf %375, %379 : vector<16x8xf32>
    %381 = vector.extract_strided_slice %298 {offsets = [0, 24], sizes = [8, 8], strides = [1, 1]} : vector<8x32xf32> to vector<8x8xf32>
    %cst_121 = arith.constant dense<0.000000e+00> : vector<16x8xf32>
    %382 = tpu.matmul %380, %381, %cst_121 {dimension_numbers = #tpu.dot_dimension_numbers<[1], [0], [0], [1], [0, 0, 1, 1], [], []>} : vector<16x8xf32>, vector<8x8xf32>, vector<16x8xf32> -> vector<16x8xf32>
    %383 = tpu.concatenate %319, %340, %361, %382 in 1 : vector<16x8xf32>, vector<16x8xf32>, vector<16x8xf32>, vector<16x8xf32> -> vector<16x32xf32>
    %cst_122 = arith.constant dense<0.000000e+00> : vector<16x32xf32>
    %384 = tpu.matmul %383, %283, %cst_122 {dimension_numbers = #tpu.dot_dimension_numbers<[1], [0], [0], [1], [0, 0, 1, 1], [], []>} : vector<16x32xf32>, vector<32x32xf32>, vector<16x32xf32> -> vector<16x32xf32>
    %385 = vector.broadcast %287 : vector<1x32xf32> to vector<16x32xf32>
    %386 = arith.addf %384, %385 : vector<16x32xf32>
    %c0_123 = arith.constant 0 : index
    %c0_124 = arith.constant 0 : index
    %387 = vector.load %arg22[%c0_123, %c0_124] : memref<2x32xf32, #tpu.memory_space<vmem>>, vector<2x32xf32>
    %388 = arith.addf %142, %386 : vector<16x32xf32>
    %cst_125 = arith.constant dense<0.000000e+00> : vector<16xf32>
    %389 = vector.multi_reduction <add>, %388, %cst_125 [1] : vector<16x32xf32> to vector<16xf32>
    %390 = vector.shape_cast %389 : vector<16xf32> to vector<16x1xf32>
    %cst_126 = arith.constant 3.200000e+01 : f32
    %391 = vector.broadcast %cst_126 : f32 to vector<16x1xf32>
    %392 = arith.divf %390, %391 : vector<16x1xf32>
    %393 = vector.broadcast %392 : vector<16x1xf32> to vector<16x32xf32>
    %394 = arith.subf %388, %393 : vector<16x32xf32>
    %395 = arith.mulf %394, %394 : vector<16x32xf32>
    %cst_127 = arith.constant dense<0.000000e+00> : vector<16xf32>
    %396 = vector.multi_reduction <add>, %395, %cst_127 [1] : vector<16x32xf32> to vector<16xf32>
    %397 = vector.shape_cast %396 : vector<16xf32> to vector<16x1xf32>
    %cst_128 = arith.constant 3.200000e+01 : f32
    %398 = vector.broadcast %cst_128 : f32 to vector<16x1xf32>
    %399 = arith.divf %397, %398 : vector<16x1xf32>
    %400 = vector.broadcast %392 : vector<16x1xf32> to vector<16x32xf32>
    %401 = arith.subf %388, %400 : vector<16x32xf32>
    %cst_129 = arith.constant 9.99999974E-6 : f32
    %402 = vector.broadcast %cst_129 : f32 to vector<16x1xf32>
    %403 = arith.addf %399, %402 : vector<16x1xf32>
    %404 = math.rsqrt %403 : vector<16x1xf32>
    %405 = vector.broadcast %404 : vector<16x1xf32> to vector<16x32xf32>
    %406 = arith.mulf %401, %405 : vector<16x32xf32>
    %407 = vector.extract_strided_slice %387 {offsets = [0, 0], sizes = [1, 32], strides = [1, 1]} : vector<2x32xf32> to vector<1x32xf32>
    %408 = vector.broadcast %407 : vector<1x32xf32> to vector<16x32xf32>
    %409 = arith.mulf %406, %408 : vector<16x32xf32>
    %410 = vector.extract_strided_slice %387 {offsets = [1, 0], sizes = [1, 32], strides = [1, 1]} : vector<2x32xf32> to vector<1x32xf32>
    %411 = vector.broadcast %410 : vector<1x32xf32> to vector<16x32xf32>
    %412 = arith.addf %409, %411 : vector<16x32xf32>
    %c0_130 = arith.constant 0 : index
    %c0_131 = arith.constant 0 : index
    %413 = vector.load %arg11[%c0_130, %c0_131] : memref<32x128xf32, #tpu.memory_space<vmem>>, vector<32x128xf32>
    %c0_132 = arith.constant 0 : index
    %c0_133 = arith.constant 0 : index
    %414 = vector.load %arg12[%c0_132, %c0_133] : memref<1x128xf32, #tpu.memory_space<vmem>>, vector<1x128xf32>
    %415 = vector.extract_strided_slice %413 {offsets = [0, 0], sizes = [32, 32], strides = [1, 1]} : vector<32x128xf32> to vector<32x32xf32>
    %416 = vector.extract_strided_slice %413 {offsets = [0, 32], sizes = [32, 32], strides = [1, 1]} : vector<32x128xf32> to vector<32x32xf32>
    %417 = vector.extract_strided_slice %413 {offsets = [0, 64], sizes = [32, 32], strides = [1, 1]} : vector<32x128xf32> to vector<32x32xf32>
    %418 = vector.extract_strided_slice %413 {offsets = [0, 96], sizes = [32, 32], strides = [1, 1]} : vector<32x128xf32> to vector<32x32xf32>
    %419 = vector.extract_strided_slice %414 {offsets = [0, 0], sizes = [1, 32], strides = [1, 1]} : vector<1x128xf32> to vector<1x32xf32>
    %420 = vector.extract_strided_slice %414 {offsets = [0, 32], sizes = [1, 32], strides = [1, 1]} : vector<1x128xf32> to vector<1x32xf32>
    %421 = vector.extract_strided_slice %414 {offsets = [0, 64], sizes = [1, 32], strides = [1, 1]} : vector<1x128xf32> to vector<1x32xf32>
    %422 = vector.extract_strided_slice %414 {offsets = [0, 96], sizes = [1, 32], strides = [1, 1]} : vector<1x128xf32> to vector<1x32xf32>
    %cst_134 = arith.constant dense<0.000000e+00> : vector<8x32xf32>
    %423 = tpu.matmul %277, %415, %cst_134 {dimension_numbers = #tpu.dot_dimension_numbers<[1], [0], [0], [1], [0, 0, 1, 1], [], []>} : vector<8x32xf32>, vector<32x32xf32>, vector<8x32xf32> -> vector<8x32xf32>
    %424 = vector.broadcast %419 : vector<1x32xf32> to vector<8x32xf32>
    %425 = arith.addf %423, %424 : vector<8x32xf32>
    %cst_135 = arith.constant 0.353553385 : f32
    %426 = vector.broadcast %cst_135 : f32 to vector<8x32xf32>
    %427 = arith.mulf %425, %426 : vector<8x32xf32>
    %cst_136 = arith.constant dense<0.000000e+00> : vector<16x32xf32>
    %428 = tpu.matmul %412, %416, %cst_136 {dimension_numbers = #tpu.dot_dimension_numbers<[1], [0], [0], [1], [0, 0, 1, 1], [], []>} : vector<16x32xf32>, vector<32x32xf32>, vector<16x32xf32> -> vector<16x32xf32>
    %429 = vector.broadcast %420 : vector<1x32xf32> to vector<16x32xf32>
    %430 = arith.addf %428, %429 : vector<16x32xf32>
    %cst_137 = arith.constant dense<0.000000e+00> : vector<16x32xf32>
    %431 = tpu.matmul %412, %417, %cst_137 {dimension_numbers = #tpu.dot_dimension_numbers<[1], [0], [0], [1], [0, 0, 1, 1], [], []>} : vector<16x32xf32>, vector<32x32xf32>, vector<16x32xf32> -> vector<16x32xf32>
    %432 = vector.broadcast %421 : vector<1x32xf32> to vector<16x32xf32>
    %433 = arith.addf %431, %432 : vector<16x32xf32>
    %434 = vector.extract_strided_slice %427 {offsets = [0, 0], sizes = [8, 8], strides = [1, 1]} : vector<8x32xf32> to vector<8x8xf32>
    %435 = vector.extract_strided_slice %430 {offsets = [0, 0], sizes = [16, 8], strides = [1, 1]} : vector<16x32xf32> to vector<16x8xf32>
    %cst_138 = arith.constant dense<0.000000e+00> : vector<8x16xf32>
    %436 = tpu.matmul %434, %435, %cst_138 {dimension_numbers = #tpu.dot_dimension_numbers<[1], [1], [0], [0], [0, 0, 1, 0], [], []>} : vector<8x8xf32>, vector<16x8xf32>, vector<8x16xf32> -> vector<8x16xf32>
    %cst_139 = arith.constant dense<0xFF800000> : vector<8xf32>
    %437 = vector.multi_reduction <maximumf>, %436, %cst_139 [1] : vector<8x16xf32> to vector<8xf32>
    %438 = vector.shape_cast %437 : vector<8xf32> to vector<8x1xf32>
    %439 = vector.broadcast %438 : vector<8x1xf32> to vector<8x16xf32>
    %440 = arith.subf %436, %439 : vector<8x16xf32>
    %441 = math.exp %440 : vector<8x16xf32>
    %cst_140 = arith.constant dense<0.000000e+00> : vector<8xf32>
    %442 = vector.multi_reduction <add>, %441, %cst_140 [1] : vector<8x16xf32> to vector<8xf32>
    %443 = vector.shape_cast %442 : vector<8xf32> to vector<8x1xf32>
    %444 = tpu.reciprocal %443 : vector<8x1xf32> -> vector<8x1xf32>
    %445 = vector.broadcast %444 : vector<8x1xf32> to vector<8x16xf32>
    %446 = arith.mulf %441, %445 : vector<8x16xf32>
    %447 = vector.extract_strided_slice %433 {offsets = [0, 0], sizes = [16, 8], strides = [1, 1]} : vector<16x32xf32> to vector<16x8xf32>
    %cst_141 = arith.constant dense<0.000000e+00> : vector<8x8xf32>
    %448 = tpu.matmul %446, %447, %cst_141 {dimension_numbers = #tpu.dot_dimension_numbers<[1], [0], [0], [1], [0, 0, 1, 1], [], []>} : vector<8x16xf32>, vector<16x8xf32>, vector<8x8xf32> -> vector<8x8xf32>
    %449 = vector.extract_strided_slice %427 {offsets = [0, 8], sizes = [8, 8], strides = [1, 1]} : vector<8x32xf32> to vector<8x8xf32>
    %450 = vector.extract_strided_slice %430 {offsets = [0, 8], sizes = [16, 8], strides = [1, 1]} : vector<16x32xf32> to vector<16x8xf32>
    %cst_142 = arith.constant dense<0.000000e+00> : vector<8x16xf32>
    %451 = tpu.matmul %449, %450, %cst_142 {dimension_numbers = #tpu.dot_dimension_numbers<[1], [1], [0], [0], [0, 0, 1, 0], [], []>} : vector<8x8xf32>, vector<16x8xf32>, vector<8x16xf32> -> vector<8x16xf32>
    %cst_143 = arith.constant dense<0xFF800000> : vector<8xf32>
    %452 = vector.multi_reduction <maximumf>, %451, %cst_143 [1] : vector<8x16xf32> to vector<8xf32>
    %453 = vector.shape_cast %452 : vector<8xf32> to vector<8x1xf32>
    %454 = vector.broadcast %453 : vector<8x1xf32> to vector<8x16xf32>
    %455 = arith.subf %451, %454 : vector<8x16xf32>
    %456 = math.exp %455 : vector<8x16xf32>
    %cst_144 = arith.constant dense<0.000000e+00> : vector<8xf32>
    %457 = vector.multi_reduction <add>, %456, %cst_144 [1] : vector<8x16xf32> to vector<8xf32>
    %458 = vector.shape_cast %457 : vector<8xf32> to vector<8x1xf32>
    %459 = tpu.reciprocal %458 : vector<8x1xf32> -> vector<8x1xf32>
    %460 = vector.broadcast %459 : vector<8x1xf32> to vector<8x16xf32>
    %461 = arith.mulf %456, %460 : vector<8x16xf32>
    %462 = vector.extract_strided_slice %433 {offsets = [0, 8], sizes = [16, 8], strides = [1, 1]} : vector<16x32xf32> to vector<16x8xf32>
    %cst_145 = arith.constant dense<0.000000e+00> : vector<8x8xf32>
    %463 = tpu.matmul %461, %462, %cst_145 {dimension_numbers = #tpu.dot_dimension_numbers<[1], [0], [0], [1], [0, 0, 1, 1], [], []>} : vector<8x16xf32>, vector<16x8xf32>, vector<8x8xf32> -> vector<8x8xf32>
    %464 = vector.extract_strided_slice %427 {offsets = [0, 16], sizes = [8, 8], strides = [1, 1]} : vector<8x32xf32> to vector<8x8xf32>
    %465 = vector.extract_strided_slice %430 {offsets = [0, 16], sizes = [16, 8], strides = [1, 1]} : vector<16x32xf32> to vector<16x8xf32>
    %cst_146 = arith.constant dense<0.000000e+00> : vector<8x16xf32>
    %466 = tpu.matmul %464, %465, %cst_146 {dimension_numbers = #tpu.dot_dimension_numbers<[1], [1], [0], [0], [0, 0, 1, 0], [], []>} : vector<8x8xf32>, vector<16x8xf32>, vector<8x16xf32> -> vector<8x16xf32>
    %cst_147 = arith.constant dense<0xFF800000> : vector<8xf32>
    %467 = vector.multi_reduction <maximumf>, %466, %cst_147 [1] : vector<8x16xf32> to vector<8xf32>
    %468 = vector.shape_cast %467 : vector<8xf32> to vector<8x1xf32>
    %469 = vector.broadcast %468 : vector<8x1xf32> to vector<8x16xf32>
    %470 = arith.subf %466, %469 : vector<8x16xf32>
    %471 = math.exp %470 : vector<8x16xf32>
    %cst_148 = arith.constant dense<0.000000e+00> : vector<8xf32>
    %472 = vector.multi_reduction <add>, %471, %cst_148 [1] : vector<8x16xf32> to vector<8xf32>
    %473 = vector.shape_cast %472 : vector<8xf32> to vector<8x1xf32>
    %474 = tpu.reciprocal %473 : vector<8x1xf32> -> vector<8x1xf32>
    %475 = vector.broadcast %474 : vector<8x1xf32> to vector<8x16xf32>
    %476 = arith.mulf %471, %475 : vector<8x16xf32>
    %477 = vector.extract_strided_slice %433 {offsets = [0, 16], sizes = [16, 8], strides = [1, 1]} : vector<16x32xf32> to vector<16x8xf32>
    %cst_149 = arith.constant dense<0.000000e+00> : vector<8x8xf32>
    %478 = tpu.matmul %476, %477, %cst_149 {dimension_numbers = #tpu.dot_dimension_numbers<[1], [0], [0], [1], [0, 0, 1, 1], [], []>} : vector<8x16xf32>, vector<16x8xf32>, vector<8x8xf32> -> vector<8x8xf32>
    %479 = vector.extract_strided_slice %427 {offsets = [0, 24], sizes = [8, 8], strides = [1, 1]} : vector<8x32xf32> to vector<8x8xf32>
    %480 = vector.extract_strided_slice %430 {offsets = [0, 24], sizes = [16, 8], strides = [1, 1]} : vector<16x32xf32> to vector<16x8xf32>
    %cst_150 = arith.constant dense<0.000000e+00> : vector<8x16xf32>
    %481 = tpu.matmul %479, %480, %cst_150 {dimension_numbers = #tpu.dot_dimension_numbers<[1], [1], [0], [0], [0, 0, 1, 0], [], []>} : vector<8x8xf32>, vector<16x8xf32>, vector<8x16xf32> -> vector<8x16xf32>
    %cst_151 = arith.constant dense<0xFF800000> : vector<8xf32>
    %482 = vector.multi_reduction <maximumf>, %481, %cst_151 [1] : vector<8x16xf32> to vector<8xf32>
    %483 = vector.shape_cast %482 : vector<8xf32> to vector<8x1xf32>
    %484 = vector.broadcast %483 : vector<8x1xf32> to vector<8x16xf32>
    %485 = arith.subf %481, %484 : vector<8x16xf32>
    %486 = math.exp %485 : vector<8x16xf32>
    %cst_152 = arith.constant dense<0.000000e+00> : vector<8xf32>
    %487 = vector.multi_reduction <add>, %486, %cst_152 [1] : vector<8x16xf32> to vector<8xf32>
    %488 = vector.shape_cast %487 : vector<8xf32> to vector<8x1xf32>
    %489 = tpu.reciprocal %488 : vector<8x1xf32> -> vector<8x1xf32>
    %490 = vector.broadcast %489 : vector<8x1xf32> to vector<8x16xf32>
    %491 = arith.mulf %486, %490 : vector<8x16xf32>
    %492 = vector.extract_strided_slice %433 {offsets = [0, 24], sizes = [16, 8], strides = [1, 1]} : vector<16x32xf32> to vector<16x8xf32>
    %cst_153 = arith.constant dense<0.000000e+00> : vector<8x8xf32>
    %493 = tpu.matmul %491, %492, %cst_153 {dimension_numbers = #tpu.dot_dimension_numbers<[1], [0], [0], [1], [0, 0, 1, 1], [], []>} : vector<8x16xf32>, vector<16x8xf32>, vector<8x8xf32> -> vector<8x8xf32>
    %494 = tpu.concatenate %448, %463, %478, %493 in 1 : vector<8x8xf32>, vector<8x8xf32>, vector<8x8xf32>, vector<8x8xf32> -> vector<8x32xf32>
    %cst_154 = arith.constant dense<0.000000e+00> : vector<8x32xf32>
    %495 = tpu.matmul %494, %418, %cst_154 {dimension_numbers = #tpu.dot_dimension_numbers<[1], [0], [0], [1], [0, 0, 1, 1], [], []>} : vector<8x32xf32>, vector<32x32xf32>, vector<8x32xf32> -> vector<8x32xf32>
    %496 = vector.broadcast %422 : vector<1x32xf32> to vector<8x32xf32>
    %497 = arith.addf %495, %496 : vector<8x32xf32>
    %c0_155 = arith.constant 0 : index
    %c0_156 = arith.constant 0 : index
    %498 = vector.load %arg25[%c0_155, %c0_156] : memref<2x32xf32, #tpu.memory_space<vmem>>, vector<2x32xf32>
    %499 = arith.addf %277, %497 : vector<8x32xf32>
    %cst_157 = arith.constant dense<0.000000e+00> : vector<8xf32>
    %500 = vector.multi_reduction <add>, %499, %cst_157 [1] : vector<8x32xf32> to vector<8xf32>
    %501 = vector.shape_cast %500 : vector<8xf32> to vector<8x1xf32>
    %cst_158 = arith.constant 3.200000e+01 : f32
    %502 = vector.broadcast %cst_158 : f32 to vector<8x1xf32>
    %503 = arith.divf %501, %502 : vector<8x1xf32>
    %504 = vector.broadcast %503 : vector<8x1xf32> to vector<8x32xf32>
    %505 = arith.subf %499, %504 : vector<8x32xf32>
    %506 = arith.mulf %505, %505 : vector<8x32xf32>
    %cst_159 = arith.constant dense<0.000000e+00> : vector<8xf32>
    %507 = vector.multi_reduction <add>, %506, %cst_159 [1] : vector<8x32xf32> to vector<8xf32>
    %508 = vector.shape_cast %507 : vector<8xf32> to vector<8x1xf32>
    %cst_160 = arith.constant 3.200000e+01 : f32
    %509 = vector.broadcast %cst_160 : f32 to vector<8x1xf32>
    %510 = arith.divf %508, %509 : vector<8x1xf32>
    %511 = vector.broadcast %503 : vector<8x1xf32> to vector<8x32xf32>
    %512 = arith.subf %499, %511 : vector<8x32xf32>
    %cst_161 = arith.constant 9.99999974E-6 : f32
    %513 = vector.broadcast %cst_161 : f32 to vector<8x1xf32>
    %514 = arith.addf %510, %513 : vector<8x1xf32>
    %515 = math.rsqrt %514 : vector<8x1xf32>
    %516 = vector.broadcast %515 : vector<8x1xf32> to vector<8x32xf32>
    %517 = arith.mulf %512, %516 : vector<8x32xf32>
    %518 = vector.extract_strided_slice %498 {offsets = [0, 0], sizes = [1, 32], strides = [1, 1]} : vector<2x32xf32> to vector<1x32xf32>
    %519 = vector.broadcast %518 : vector<1x32xf32> to vector<8x32xf32>
    %520 = arith.mulf %517, %519 : vector<8x32xf32>
    %521 = vector.extract_strided_slice %498 {offsets = [1, 0], sizes = [1, 32], strides = [1, 1]} : vector<2x32xf32> to vector<1x32xf32>
    %522 = vector.broadcast %521 : vector<1x32xf32> to vector<8x32xf32>
    %523 = arith.addf %520, %522 : vector<8x32xf32>
    %c0_162 = arith.constant 0 : index
    %c0_163 = arith.constant 0 : index
    %524 = vector.load %arg13[%c0_162, %c0_163] : memref<32x64xf32, #tpu.memory_space<vmem>>, vector<32x64xf32>
    %cst_164 = arith.constant dense<0.000000e+00> : vector<16x64xf32>
    %525 = tpu.matmul %412, %524, %cst_164 {dimension_numbers = #tpu.dot_dimension_numbers<[1], [0], [0], [1], [0, 0, 1, 1], [], []>} : vector<16x32xf32>, vector<32x64xf32>, vector<16x64xf32> -> vector<16x64xf32>
    %c0_165 = arith.constant 0 : index
    %c0_166 = arith.constant 0 : index
    %526 = vector.load %arg14[%c0_165, %c0_166] : memref<1x64xf32, #tpu.memory_space<vmem>>, vector<1x64xf32>
    %527 = vector.broadcast %526 : vector<1x64xf32> to vector<16x64xf32>
    %528 = arith.addf %525, %527 : vector<16x64xf32>
    %cst_167 = arith.constant 0.000000e+00 : f32
    %529 = vector.broadcast %cst_167 : f32 to vector<16x64xf32>
    %530 = arith.maximumf %528, %529 : vector<16x64xf32>
    %c0_168 = arith.constant 0 : index
    %c0_169 = arith.constant 0 : index
    %531 = vector.load %arg15[%c0_168, %c0_169] : memref<64x32xf32, #tpu.memory_space<vmem>>, vector<64x32xf32>
    %cst_170 = arith.constant dense<0.000000e+00> : vector<16x32xf32>
    %532 = tpu.matmul %530, %531, %cst_170 {dimension_numbers = #tpu.dot_dimension_numbers<[1], [0], [0], [1], [0, 0, 1, 1], [], []>} : vector<16x64xf32>, vector<64x32xf32>, vector<16x32xf32> -> vector<16x32xf32>
    %c0_171 = arith.constant 0 : index
    %c0_172 = arith.constant 0 : index
    %533 = vector.load %arg16[%c0_171, %c0_172] : memref<1x32xf32, #tpu.memory_space<vmem>>, vector<1x32xf32>
    %534 = vector.broadcast %533 : vector<1x32xf32> to vector<16x32xf32>
    %535 = arith.addf %532, %534 : vector<16x32xf32>
    %c0_173 = arith.constant 0 : index
    %c0_174 = arith.constant 0 : index
    %536 = vector.load %arg23[%c0_173, %c0_174] : memref<2x32xf32, #tpu.memory_space<vmem>>, vector<2x32xf32>
    %537 = arith.addf %412, %535 : vector<16x32xf32>
    %cst_175 = arith.constant dense<0.000000e+00> : vector<16xf32>
    %538 = vector.multi_reduction <add>, %537, %cst_175 [1] : vector<16x32xf32> to vector<16xf32>
    %539 = vector.shape_cast %538 : vector<16xf32> to vector<16x1xf32>
    %cst_176 = arith.constant 3.200000e+01 : f32
    %540 = vector.broadcast %cst_176 : f32 to vector<16x1xf32>
    %541 = arith.divf %539, %540 : vector<16x1xf32>
    %542 = vector.broadcast %541 : vector<16x1xf32> to vector<16x32xf32>
    %543 = arith.subf %537, %542 : vector<16x32xf32>
    %544 = arith.mulf %543, %543 : vector<16x32xf32>
    %cst_177 = arith.constant dense<0.000000e+00> : vector<16xf32>
    %545 = vector.multi_reduction <add>, %544, %cst_177 [1] : vector<16x32xf32> to vector<16xf32>
    %546 = vector.shape_cast %545 : vector<16xf32> to vector<16x1xf32>
    %cst_178 = arith.constant 3.200000e+01 : f32
    %547 = vector.broadcast %cst_178 : f32 to vector<16x1xf32>
    %548 = arith.divf %546, %547 : vector<16x1xf32>
    %549 = vector.broadcast %541 : vector<16x1xf32> to vector<16x32xf32>
    %550 = arith.subf %537, %549 : vector<16x32xf32>
    %cst_179 = arith.constant 9.99999974E-6 : f32
    %551 = vector.broadcast %cst_179 : f32 to vector<16x1xf32>
    %552 = arith.addf %548, %551 : vector<16x1xf32>
    %553 = math.rsqrt %552 : vector<16x1xf32>
    %554 = vector.broadcast %553 : vector<16x1xf32> to vector<16x32xf32>
    %555 = arith.mulf %550, %554 : vector<16x32xf32>
    %556 = vector.extract_strided_slice %536 {offsets = [0, 0], sizes = [1, 32], strides = [1, 1]} : vector<2x32xf32> to vector<1x32xf32>
    %557 = vector.broadcast %556 : vector<1x32xf32> to vector<16x32xf32>
    %558 = arith.mulf %555, %557 : vector<16x32xf32>
    %559 = vector.extract_strided_slice %536 {offsets = [1, 0], sizes = [1, 32], strides = [1, 1]} : vector<2x32xf32> to vector<1x32xf32>
    %560 = vector.broadcast %559 : vector<1x32xf32> to vector<16x32xf32>
    %561 = arith.addf %558, %560 : vector<16x32xf32>
    %c0_180 = arith.constant 0 : index
    %c0_181 = arith.constant 0 : index
    %562 = vector.load %arg17[%c0_180, %c0_181] : memref<32x64xf32, #tpu.memory_space<vmem>>, vector<32x64xf32>
    %cst_182 = arith.constant dense<0.000000e+00> : vector<8x64xf32>
    %563 = tpu.matmul %523, %562, %cst_182 {dimension_numbers = #tpu.dot_dimension_numbers<[1], [0], [0], [1], [0, 0, 1, 1], [], []>} : vector<8x32xf32>, vector<32x64xf32>, vector<8x64xf32> -> vector<8x64xf32>
    %c0_183 = arith.constant 0 : index
    %c0_184 = arith.constant 0 : index
    %564 = vector.load %arg18[%c0_183, %c0_184] : memref<1x64xf32, #tpu.memory_space<vmem>>, vector<1x64xf32>
    %565 = vector.broadcast %564 : vector<1x64xf32> to vector<8x64xf32>
    %566 = arith.addf %563, %565 : vector<8x64xf32>
    %cst_185 = arith.constant 0.000000e+00 : f32
    %567 = vector.broadcast %cst_185 : f32 to vector<8x64xf32>
    %568 = arith.maximumf %566, %567 : vector<8x64xf32>
    %c0_186 = arith.constant 0 : index
    %c0_187 = arith.constant 0 : index
    %569 = vector.load %arg19[%c0_186, %c0_187] : memref<64x32xf32, #tpu.memory_space<vmem>>, vector<64x32xf32>
    %cst_188 = arith.constant dense<0.000000e+00> : vector<8x32xf32>
    %570 = tpu.matmul %568, %569, %cst_188 {dimension_numbers = #tpu.dot_dimension_numbers<[1], [0], [0], [1], [0, 0, 1, 1], [], []>} : vector<8x64xf32>, vector<64x32xf32>, vector<8x32xf32> -> vector<8x32xf32>
    %c0_189 = arith.constant 0 : index
    %c0_190 = arith.constant 0 : index
    %571 = vector.load %arg20[%c0_189, %c0_190] : memref<1x32xf32, #tpu.memory_space<vmem>>, vector<1x32xf32>
    %572 = vector.broadcast %571 : vector<1x32xf32> to vector<8x32xf32>
    %573 = arith.addf %570, %572 : vector<8x32xf32>
    %c0_191 = arith.constant 0 : index
    %c0_192 = arith.constant 0 : index
    %574 = vector.load %arg26[%c0_191, %c0_192] : memref<2x32xf32, #tpu.memory_space<vmem>>, vector<2x32xf32>
    %575 = arith.addf %523, %573 : vector<8x32xf32>
    %cst_193 = arith.constant dense<0.000000e+00> : vector<8xf32>
    %576 = vector.multi_reduction <add>, %575, %cst_193 [1] : vector<8x32xf32> to vector<8xf32>
    %577 = vector.shape_cast %576 : vector<8xf32> to vector<8x1xf32>
    %cst_194 = arith.constant 3.200000e+01 : f32
    %578 = vector.broadcast %cst_194 : f32 to vector<8x1xf32>
    %579 = arith.divf %577, %578 : vector<8x1xf32>
    %580 = vector.broadcast %579 : vector<8x1xf32> to vector<8x32xf32>
    %581 = arith.subf %575, %580 : vector<8x32xf32>
    %582 = arith.mulf %581, %581 : vector<8x32xf32>
    %cst_195 = arith.constant dense<0.000000e+00> : vector<8xf32>
    %583 = vector.multi_reduction <add>, %582, %cst_195 [1] : vector<8x32xf32> to vector<8xf32>
    %584 = vector.shape_cast %583 : vector<8xf32> to vector<8x1xf32>
    %cst_196 = arith.constant 3.200000e+01 : f32
    %585 = vector.broadcast %cst_196 : f32 to vector<8x1xf32>
    %586 = arith.divf %584, %585 : vector<8x1xf32>
    %587 = vector.broadcast %579 : vector<8x1xf32> to vector<8x32xf32>
    %588 = arith.subf %575, %587 : vector<8x32xf32>
    %cst_197 = arith.constant 9.99999974E-6 : f32
    %589 = vector.broadcast %cst_197 : f32 to vector<8x1xf32>
    %590 = arith.addf %586, %589 : vector<8x1xf32>
    %591 = math.rsqrt %590 : vector<8x1xf32>
    %592 = vector.broadcast %591 : vector<8x1xf32> to vector<8x32xf32>
    %593 = arith.mulf %588, %592 : vector<8x32xf32>
    %594 = vector.extract_strided_slice %574 {offsets = [0, 0], sizes = [1, 32], strides = [1, 1]} : vector<2x32xf32> to vector<1x32xf32>
    %595 = vector.broadcast %594 : vector<1x32xf32> to vector<8x32xf32>
    %596 = arith.mulf %593, %595 : vector<8x32xf32>
    %597 = vector.extract_strided_slice %574 {offsets = [1, 0], sizes = [1, 32], strides = [1, 1]} : vector<2x32xf32> to vector<1x32xf32>
    %598 = vector.broadcast %597 : vector<1x32xf32> to vector<8x32xf32>
    %599 = arith.addf %596, %598 : vector<8x32xf32>
    %c0_198 = arith.constant 0 : index
    %c0_199 = arith.constant 0 : index
    %c0_200 = arith.constant 0 : index
    %600 = vector.load %arg27[%c0_198, %c0_199, %c0_200] : memref<1x16x32xf32, #tpu.memory_space<vmem>>, vector<1x16x32xf32>
    %601 = vector.shape_cast %600 : vector<1x16x32xf32> to vector<16x32xf32>
    %602 = vector.shape_cast %561 : vector<16x32xf32> to vector<1x16x32xf32>
    tpu.vector_store %arg27[%c0_198, %c0_199, %c0_200], %602 {strides = array<i32>} : memref<1x16x32xf32, #tpu.memory_space<vmem>>, vector<1x16x32xf32>,
    %c0_201 = arith.constant 0 : index
    %c0_202 = arith.constant 0 : index
    %c0_203 = arith.constant 0 : index
    %603 = vector.load %arg28[%c0_201, %c0_202, %c0_203] : memref<1x8x32xf32, #tpu.memory_space<vmem>>, vector<1x8x32xf32>
    %604 = vector.shape_cast %603 : vector<1x8x32xf32> to vector<8x32xf32>
    %605 = vector.shape_cast %599 : vector<8x32xf32> to vector<1x8x32xf32>
    tpu.vector_store %arg28[%c0_201, %c0_202, %c0_203], %605 {strides = array<i32>} : memref<1x8x32xf32, #tpu.memory_space<vmem>>, vector<1x8x32xf32>,
    return
  }
  func.func @transform_0(%arg0: i32) -> (i32, i32, i32) {
    %c0_i32 = arith.constant 0 : i32
    %c0_i32_0 = arith.constant 0 : i32
    %c0_i32_1 = arith.constant 0 : i32
    return %arg0, %c0_i32, %c0_i32_0 : i32, i32, i32
  }
  func.func @transform_1(%arg0: i32) -> (i32, i32, i32) {
    %c0_i32 = arith.constant 0 : i32
    %c0_i32_0 = arith.constant 0 : i32
    %c0_i32_1 = arith.constant 0 : i32
    return %arg0, %c0_i32, %c0_i32_0 : i32, i32, i32
  }
  func.func @transform_2(%arg0: i32) -> (i32, i32, i32) {
    %c0_i32 = arith.constant 0 : i32
    %c0_i32_0 = arith.constant 0 : i32
    %c0_i32_1 = arith.constant 0 : i32
    return %arg0, %c0_i32, %c0_i32_0 : i32, i32, i32
  }
  func.func @transform_3(%arg0: i32) -> (i32, i32, i32) {
    %c0_i32 = arith.constant 0 : i32
    %c0_i32_0 = arith.constant 0 : i32
    %c0_i32_1 = arith.constant 0 : i32
    return %arg0, %c0_i32, %c0_i32_0 : i32, i32, i32
  }
  func.func @transform_4(%arg0: i32) -> (i32, i32) {
    %c0_i32 = arith.constant 0 : i32
    %c0_i32_0 = arith.constant 0 : i32
    %c0_i32_1 = arith.constant 0 : i32
    return %c0_i32, %c0_i32_0 : i32, i32
  }
  func.func @transform_5(%arg0: i32) -> (i32, i32) {
    %c0_i32 = arith.constant 0 : i32
    %c0_i32_0 = arith.constant 0 : i32
    %c0_i32_1 = arith.constant 0 : i32
    return %c0_i32, %c0_i32_0 : i32, i32
  }
  func.func @transform_6(%arg0: i32) -> (i32, i32) {
    %c0_i32 = arith.constant 0 : i32
    %c0_i32_0 = arith.constant 0 : i32
    %c0_i32_1 = arith.constant 0 : i32
    return %c0_i32, %c0_i32_0 : i32, i32
  }
  func.func @transform_7(%arg0: i32) -> (i32, i32) {
    %c0_i32 = arith.constant 0 : i32
    %c0_i32_0 = arith.constant 0 : i32
    %c0_i32_1 = arith.constant 0 : i32
    return %c0_i32, %c0_i32_0 : i32, i32
  }
  func.func @transform_8(%arg0: i32) -> (i32, i32) {
    %c0_i32 = arith.constant 0 : i32
    %c0_i32_0 = arith.constant 0 : i32
    %c0_i32_1 = arith.constant 0 : i32
    return %c0_i32, %c0_i32_0 : i32, i32
  }
  func.func @transform_9(%arg0: i32) -> (i32, i32) {
    %c0_i32 = arith.constant 0 : i32
    %c0_i32_0 = arith.constant 0 : i32
    %c0_i32_1 = arith.constant 0 : i32
    return %c0_i32, %c0_i32_0 : i32, i32
  }
  func.func @transform_10(%arg0: i32) -> (i32, i32) {
    %c0_i32 = arith.constant 0 : i32
    %c0_i32_0 = arith.constant 0 : i32
    %c0_i32_1 = arith.constant 0 : i32
    return %c0_i32, %c0_i32_0 : i32, i32
  }
  func.func @transform_11(%arg0: i32) -> (i32, i32) {
    %c0_i32 = arith.constant 0 : i32
    %c0_i32_0 = arith.constant 0 : i32
    %c0_i32_1 = arith.constant 0 : i32
    return %c0_i32, %c0_i32_0 : i32, i32
  }
  func.func @transform_12(%arg0: i32) -> (i32, i32) {
    %c0_i32 = arith.constant 0 : i32
    %c0_i32_0 = arith.constant 0 : i32
    %c0_i32_1 = arith.constant 0 : i32
    return %c0_i32, %c0_i32_0 : i32, i32
  }
  func.func @transform_13(%arg0: i32) -> (i32, i32) {
    %c0_i32 = arith.constant 0 : i32
    %c0_i32_0 = arith.constant 0 : i32
    %c0_i32_1 = arith.constant 0 : i32
    return %c0_i32, %c0_i32_0 : i32, i32
  }
  func.func @transform_14(%arg0: i32) -> (i32, i32) {
    %c0_i32 = arith.constant 0 : i32
    %c0_i32_0 = arith.constant 0 : i32
    %c0_i32_1 = arith.constant 0 : i32
    return %c0_i32, %c0_i32_0 : i32, i32
  }
  func.func @transform_15(%arg0: i32) -> (i32, i32) {
    %c0_i32 = arith.constant 0 : i32
    %c0_i32_0 = arith.constant 0 : i32
    %c0_i32_1 = arith.constant 0 : i32
    return %c0_i32, %c0_i32_0 : i32, i32
  }
  func.func @transform_16(%arg0: i32) -> (i32, i32) {
    %c0_i32 = arith.constant 0 : i32
    %c0_i32_0 = arith.constant 0 : i32
    %c0_i32_1 = arith.constant 0 : i32
    return %c0_i32, %c0_i32_0 : i32, i32
  }
  func.func @transform_17(%arg0: i32) -> (i32, i32) {
    %c0_i32 = arith.constant 0 : i32
    %c0_i32_0 = arith.constant 0 : i32
    %c0_i32_1 = arith.constant 0 : i32
    return %c0_i32, %c0_i32_0 : i32, i32
  }
  func.func @transform_18(%arg0: i32) -> (i32, i32) {
    %c0_i32 = arith.constant 0 : i32
    %c0_i32_0 = arith.constant 0 : i32
    %c0_i32_1 = arith.constant 0 : i32
    return %c0_i32, %c0_i32_0 : i32, i32
  }
  func.func @transform_19(%arg0: i32) -> (i32, i32) {
    %c0_i32 = arith.constant 0 : i32
    %c0_i32_0 = arith.constant 0 : i32
    %c0_i32_1 = arith.constant 0 : i32
    return %c0_i32, %c0_i32_0 : i32, i32
  }
  func.func @transform_20(%arg0: i32) -> (i32, i32) {
    %c0_i32 = arith.constant 0 : i32
    %c0_i32_0 = arith.constant 0 : i32
    %c0_i32_1 = arith.constant 0 : i32
    return %c0_i32, %c0_i32_0 : i32, i32
  }
  func.func @transform_21(%arg0: i32) -> (i32, i32) {
    %c0_i32 = arith.constant 0 : i32
    %c0_i32_0 = arith.constant 0 : i32
    %c0_i32_1 = arith.constant 0 : i32
    return %c0_i32, %c0_i32_0 : i32, i32
  }
  func.func @transform_22(%arg0: i32) -> (i32, i32) {
    %c0_i32 = arith.constant 0 : i32
    %c0_i32_0 = arith.constant 0 : i32
    %c0_i32_1 = arith.constant 0 : i32
    return %c0_i32, %c0_i32_0 : i32, i32
  }
  func.func @transform_23(%arg0: i32) -> (i32, i32) {
    %c0_i32 = arith.constant 0 : i32
    %c0_i32_0 = arith.constant 0 : i32
    %c0_i32_1 = arith.constant 0 : i32
    return %c0_i32, %c0_i32_0 : i32, i32
  }
  func.func @transform_24(%arg0: i32) -> (i32, i32) {
    %c0_i32 = arith.constant 0 : i32
    %c0_i32_0 = arith.constant 0 : i32
    %c0_i32_1 = arith.constant 0 : i32
    return %c0_i32, %c0_i32_0 : i32, i32
  }
  func.func @transform_25(%arg0: i32) -> (i32, i32) {
    %c0_i32 = arith.constant 0 : i32
    %c0_i32_0 = arith.constant 0 : i32
    %c0_i32_1 = arith.constant 0 : i32
    return %c0_i32, %c0_i32_0 : i32, i32
  }
  func.func @transform_26(%arg0: i32) -> (i32, i32, i32) {
    %c0_i32 = arith.constant 0 : i32
    %c0_i32_0 = arith.constant 0 : i32
    %c0_i32_1 = arith.constant 0 : i32
    return %arg0, %c0_i32, %c0_i32_0 : i32, i32, i32
  }
  func.func @transform_27(%arg0: i32) -> (i32, i32, i32) {
    %c0_i32 = arith.constant 0 : i32
    %c0_i32_0 = arith.constant 0 : i32
    %c0_i32_1 = arith.constant 0 : i32
    return %arg0, %c0_i32, %c0_i32_0 : i32, i32, i32
  }
}

</mosaic_0001>

<llo_original>
// kernel: tpu_custom_call.1
$region0: #{tpu_custom_call.1}
  #allocation0 [shape = 'u32[]', space=smem, size = 0x4, offset = 0x4, fixed_abs, tag = 'smem constant byte address 0x4 - core index']
  #allocation1 [shape = 'u32[144,128]{1,0:T(1,128)}', space=vmem, size = 0x12000, scoped, tag = 'internal scratch']
  %s0 = inlined_call_operand.vmem [shape: f32[2,16,32], index: 0, kind: input, shape index: {}]
  %s1 = inlined_call_operand.hbm [shape: f32[2,8,32], index: 1, kind: input, shape index: {}]
  %s2 = inlined_call_operand.vmem [shape: f32[2,1,16], index: 2, kind: input, shape index: {}]
  %s3 = inlined_call_operand.vmem [shape: f32[2,1,8], index: 3, kind: input, shape index: {}]
  %s4 = inlined_call_operand.vmem [shape: f32[32,128], index: 4, kind: input, shape index: {}]
  %s5 = inlined_call_operand.vmem [shape: f32[1,128], index: 5, kind: input, shape index: {}]
  %s6 = inlined_call_operand.vmem [shape: f32[32,128], index: 6, kind: input, shape index: {}]
  %s7 = inlined_call_operand.vmem [shape: f32[1,128], index: 7, kind: input, shape index: {}]
  %s8 = inlined_call_operand.vmem [shape: f32[32,128], index: 8, kind: input, shape index: {}]
  %s9 = inlined_call_operand.vmem [shape: f32[1,128], index: 9, kind: input, shape index: {}]
  %s10 = inlined_call_operand.vmem [shape: f32[32,128], index: 10, kind: input, shape index: {}]
  %s11 = inlined_call_operand.vmem [shape: f32[1,128], index: 11, kind: input, shape index: {}]
  %s12 = inlined_call_operand.hbm [shape: f32[32,64], index: 12, kind: input, shape index: {}]
  %s13 = inlined_call_operand.vmem [shape: f32[1,64], index: 13, kind: input, shape index: {}]
  %s14 = inlined_call_operand.vmem [shape: f32[64,32], index: 14, kind: input, shape index: {}]
  %s15 = inlined_call_operand.vmem [shape: f32[1,32], index: 15, kind: input, shape index: {}]
  %s16 = inlined_call_operand.hbm [shape: f32[32,64], index: 16, kind: input, shape index: {}]
  %s17 = inlined_call_operand.vmem [shape: f32[1,64], index: 17, kind: input, shape index: {}]
  %s18 = inlined_call_operand.vmem [shape: f32[64,32], index: 18, kind: input, shape index: {}]
  %s19 = inlined_call_operand.vmem [shape: f32[1,32], index: 19, kind: input, shape index: {}]
  %s20 = inlined_call_operand.vmem [shape: f32[2,32], index: 20, kind: input, shape index: {}]
  %s21 = inlined_call_operand.vmem [shape: f32[2,32], index: 21, kind: input, shape index: {}]
  %s22 = inlined_call_operand.vmem [shape: f32[2,32], index: 22, kind: input, shape index: {}]
  %s23 = inlined_call_operand.vmem [shape: f32[2,32], index: 23, kind: input, shape index: {}]
  %s24 = inlined_call_operand.vmem [shape: f32[2,32], index: 24, kind: input, shape index: {}]
  %s25 = inlined_call_operand.vmem [shape: f32[2,32], index: 25, kind: input, shape index: {}]
  %s26 = inlined_call_operand.hbm [shape: f32[2,16,32], index: 26, kind: output, shape index: {0}]
  %s27 = inlined_call_operand.hbm [shape: f32[2,8,32], index: 27, kind: output, shape index: {1}]
  %28 = xla_tuple %s26, %s27
  %s29 = sld [smem:[#allocation0]]
  $region157: #{tpu_custom_call.1} parent=0
    _
  %s31 = ssub.s32 1, %s29
  %s32 = scalar_select 0, %s31, %s29
  $region1: #{tpu_custom_call.1} parent=0
    #allocation2 [shape = 'u8[8192]{0}', space=vmem, size = 0x2000, scoped, tag = 'input window, operand 1']
    #allocation3 [shape = 's32[2]{0}', space=sflag, size = 0x8, scoped, tag = 'scoped memory for tpu_custom_call.1']
    #allocation4 [shape = 's32[2]{0}', space=sflag, size = 0x8, scoped, tag = 'scoped memory for tpu_custom_call.1']
    #allocation5 [shape = 'u8[16384]{0}', space=vmem, size = 0x4000, scoped, tag = 'input window, operand 12, single buffered']
    #allocation6 [shape = 's32[1]{0}', space=sflag, size = 0x4, scoped, tag = 'scoped memory for tpu_custom_call.1']
    #allocation7 [shape = 'u8[16384]{0}', space=vmem, size = 0x4000, scoped, tag = 'input window, operand 16, single buffered']
    #allocation8 [shape = 'u8[16384]{0}', space=vmem, size = 0x4000, scoped, tag = 'output window, operand 0']
    #allocation9 [shape = 'u8[8192]{0}', space=vmem, size = 0x2000, scoped, tag = 'output window, operand 1']
    #allocation10 [shape = 's32[2]{0}', space=sflag, size = 0x8, scoped, tag = 'scoped memory for tpu_custom_call.1']
    %33 = vsyncpa [#allocation3], 0
    %s34 = scalar_lea.sflag [#allocation3], 1
    %35 = vsyncpa %s34, 0
    %36 = vsyncpa [#allocation6], 0
    %37 = vsyncpa [#allocation4], 0
    %s38 = scalar_lea.sflag [#allocation4], 1
    %39 = vsyncpa %s38, 0
    %40 = vsyncpa [#allocation10], 0
    %s41 = scalar_lea.sflag [#allocation10], 1
    %42 = vsyncpa %s41, 0
    loop: start=0, step=1, limit=4
    $region2: #{tpu_custom_call.1} parent=1 // loop_pre_header
      _
    $region3: #{tpu_custom_call.1} parent=1 // loop_header
      %s44 = sphi 0, %s48
      %p45 = scmp.ge.s32.totalorder %s44, 4
      %s54 = sphi 0, %s56
      %s57 = sphi 0, %s54
      %s58 = sphi 0, %s57
      %s74 = sphi 0, %s58
      %s80 = sphi 0, %s82
      %s83 = sphi 0, %s80
      %s84 = sphi 0, %s83
      %s100 = sphi 0, %s84
      %s106 = sphi 0, %s108
      %s109 = sphi 0, %s106
      %s110 = sphi 0, %s109
      %s126 = sphi 0, %s110
      %s132 = sphi 0, %s134
      %s135 = sphi 0, %s132
      %s136 = sphi 0, %s135
      %s152 = sphi 0, %s136
      %s156 = sphi 0, %s156
      %s158 = sphi 0, %s156
      %s159 = sphi 0, %s158
      %s173 = sphi 0, %s159
      %s177 = sphi 0, %s177
      %s179 = sphi 0, %s177
      %s180 = sphi 0, %s179
      %s194 = sphi 0, %s180
      %s198 = sphi 0, %s198
      %s200 = sphi 0, %s198
      %s201 = sphi 0, %s200
      %s215 = sphi 0, %s201
      %s219 = sphi 0, %s219
      %s221 = sphi 0, %s219
      %s222 = sphi 0, %s221
      %s236 = sphi 0, %s222
      %s240 = sphi 0, %s240
      %s242 = sphi 0, %s240
      %s243 = sphi 0, %s242
      %s257 = sphi 0, %s243
      %s261 = sphi 0, %s261
      %s263 = sphi 0, %s261
      %s264 = sphi 0, %s263
      %s278 = sphi 0, %s264
      %s282 = sphi 0, %s282
      %s284 = sphi 0, %s282
      %s285 = sphi 0, %s284
      %s299 = sphi 0, %s285
      %s303 = sphi 0, %s303
      %s305 = sphi 0, %s303
      %s306 = sphi 0, %s305
      %s320 = sphi 0, %s306
      %s324 = sphi 0, %s324
      %s326 = sphi 0, %s324
      %s327 = sphi 0, %s326
      %s341 = sphi 0, %s327
      %s345 = sphi 0, %s345
      %s347 = sphi 0, %s345
      %s348 = sphi 0, %s347
      %s362 = sphi 0, %s348
      %s366 = sphi 0, %s366
      %s368 = sphi 0, %s366
      %s369 = sphi 0, %s368
      %s383 = sphi 0, %s369
      %s387 = sphi 0, %s387
      %s389 = sphi 0, %s387
      %s390 = sphi 0, %s389
      %s404 = sphi 0, %s390
      %s408 = sphi 0, %s408
      %s410 = sphi 0, %s408
      %s411 = sphi 0, %s410
      %s425 = sphi 0, %s411
      %s429 = sphi 0, %s429
      %s431 = sphi 0, %s429
      %s432 = sphi 0, %s431
      %s446 = sphi 0, %s432
      %s450 = sphi 0, %s450
      %s452 = sphi 0, %s450
      %s453 = sphi 0, %s452
      %s467 = sphi 0, %s453
      %s471 = sphi 0, %s471
      %s473 = sphi 0, %s471
      %s474 = sphi 0, %s473
      %s488 = sphi 0, %s474
      %s492 = sphi 0, %s492
      %s494 = sphi 0, %s492
      %s495 = sphi 0, %s494
      %s509 = sphi 0, %s495
      %s513 = sphi 0, %s513
      %s515 = sphi 0, %s513
      %s516 = sphi 0, %s515
      %s530 = sphi 0, %s516
      %s534 = sphi 0, %s534
      %s536 = sphi 0, %s534
      %s537 = sphi 0, %s536
      %s551 = sphi 0, %s537
      %s555 = sphi 0, %s555
      %s557 = sphi 0, %s555
      %s558 = sphi 0, %s557
      %s572 = sphi 0, %s558
      %s576 = sphi 0, %s576
      %s578 = sphi 0, %s576
      %s579 = sphi 0, %s578
      %s593 = sphi 0, %s579
      %s597 = sphi 0, %s597
      %s599 = sphi 0, %s597
      %s600 = sphi 0, %s599
      %s614 = sphi 0, %s600
      %s620 = sphi 0, %s622
      %s623 = sphi 0, %s620
      %s624 = sphi 0, %s623
      %s640 = sphi 0, %s624
      %s646 = sphi 0, %s648
      %s649 = sphi 0, %s646
      %s650 = sphi 0, %s649
      %s666 = sphi 0, %s650
    $region4: #{tpu_custom_call.1} parent=1 // loop_header_branch
      %47 = sbr.rel (%p45) target = $region8
    $region5: #{tpu_custom_call.1} parent=1 // loop_body
      %s49 = ssub.s32 %s44, 1
      %s50 = ssub.s32 %s44, 2
      %s51 = sadd.s32 %s44, 1
      %s52 = ssub.s32 %s44, %s51
      %p53 = scmp.eq.s32.totalorder %s52, 0
      %s55 = sadd.s32 %s54, 1
      %s56 = scalar_select %p53, %s54, %s55
      %p59 = pneg %p53
      %p60 = scmp.eq.s32.totalorder %s44, 1
      %p61 = por %p59, %p60
      %p62 = scmp.ne.s32.totalorder %s54, %s57
      %p63 = scmp.eq.s32.totalorder %s44, 0
      %p64 = por %p62, %p63
      %p65 = scmp.ne.s32.totalorder %s54, %s57
      %p66 = scmp.eq.s32.totalorder %s49, 1
      %p67 = por %p65, %p66
      %p68 = scmp.ne.s32.totalorder %s57, %s58
      %p69 = scmp.eq.s32.totalorder %s49, 0
      %p70 = por %p68, %p69
      %p71 = scmp.ne.s32.totalorder %s57, %s58
      %p72 = scmp.eq.s32.totalorder %s50, 1
      %p73 = por %p71, %p72
      %p75 = scmp.ne.s32.totalorder %s58, %s74
      %p76 = scmp.eq.s32.totalorder %s50, 0
      %p77 = por %p75, %p76
      %s78 = ssub.s32 %s44, %s51
      %p79 = scmp.eq.s32.totalorder %s78, 0
      %s81 = sadd.s32 %s80, 1
      %s82 = scalar_select %p79, %s80, %s81
      %p85 = pneg %p79
      %p86 = scmp.eq.s32.totalorder %s44, 1
      %p87 = por %p85, %p86
      %p88 = scmp.ne.s32.totalorder %s80, %s83
      %p89 = scmp.eq.s32.totalorder %s44, 0
      %p90 = por %p88, %p89
      %p91 = scmp.ne.s32.totalorder %s80, %s83
      %p92 = scmp.eq.s32.totalorder %s49, 1
      %p93 = por %p91, %p92
      %p94 = scmp.ne.s32.totalorder %s83, %s84
      %p95 = scmp.eq.s32.totalorder %s49, 0
      %p96 = por %p94, %p95
      %p97 = scmp.ne.s32.totalorder %s83, %s84
      %p98 = scmp.eq.s32.totalorder %s50, 1
      %p99 = por %p97, %p98
      %p101 = scmp.ne.s32.totalorder %s84, %s100
      %p102 = scmp.eq.s32.totalorder %s50, 0
      %p103 = por %p101, %p102
      %s104 = ssub.s32 %s44, %s51
      %p105 = scmp.eq.s32.totalorder %s104, 0
      %s107 = sadd.s32 %s106, 1
      %s108 = scalar_select %p105, %s106, %s107
      %p111 = pneg %p105
      %p112 = scmp.eq.s32.totalorder %s44, 1
      %p113 = por %p111, %p112
      %p114 = scmp.ne.s32.totalorder %s106, %s109
      %p115 = scmp.eq.s32.totalorder %s44, 0
      %p116 = por %p114, %p115
      %p117 = scmp.ne.s32.totalorder %s106, %s109
      %p118 = scmp.eq.s32.totalorder %s49, 1
      %p119 = por %p117, %p118
      %p120 = scmp.ne.s32.totalorder %s109, %s110
      %p121 = scmp.eq.s32.totalorder %s49, 0
      %p122 = por %p120, %p121
      %p123 = scmp.ne.s32.totalorder %s109, %s110
      %p124 = scmp.eq.s32.totalorder %s50, 1
      %p125 = por %p123, %p124
      %p127 = scmp.ne.s32.totalorder %s110, %s126
      %p128 = scmp.eq.s32.totalorder %s50, 0
      %p129 = por %p127, %p128
      %s130 = ssub.s32 %s44, %s51
      %p131 = scmp.eq.s32.totalorder %s130, 0
      %s133 = sadd.s32 %s132, 1
      %s134 = scalar_select %p131, %s132, %s133
      %p137 = pneg %p131
      %p138 = scmp.eq.s32.totalorder %s44, 1
      %p139 = por %p137, %p138
      %p140 = scmp.ne.s32.totalorder %s132, %s135
      %p141 = scmp.eq.s32.totalorder %s44, 0
      %p142 = por %p140, %p141
      %p143 = scmp.ne.s32.totalorder %s132, %s135
      %p144 = scmp.eq.s32.totalorder %s49, 1
      %p145 = por %p143, %p144
      %p146 = scmp.ne.s32.totalorder %s135, %s136
      %p147 = scmp.eq.s32.totalorder %s49, 0
      %p148 = por %p146, %p147
      %p149 = scmp.ne.s32.totalorder %s135, %s136
      %p150 = scmp.eq.s32.totalorder %s50, 1
      %p151 = por %p149, %p150
      %p153 = scmp.ne.s32.totalorder %s136, %s152
      %p154 = scmp.eq.s32.totalorder %s50, 0
      %p155 = por %p153, %p154
      %s157 = sadd.s32 %s156, 1
      %p160 = scmp.eq.s32.totalorder %s44, 1
      %p161 = scmp.ne.s32.totalorder %s156, %s158
      %p162 = scmp.eq.s32.totalorder %s44, 0
      %p163 = por %p161, %p162
      %p164 = scmp.ne.s32.totalorder %s156, %s158
      %p165 = scmp.eq.s32.totalorder %s49, 1
      %p166 = por %p164, %p165
      %p167 = scmp.ne.s32.totalorder %s158, %s159
      %p168 = scmp.eq.s32.totalorder %s49, 0
      %p169 = por %p167, %p168
      %p170 = scmp.ne.s32.totalorder %s158, %s159
      %p171 = scmp.eq.s32.totalorder %s50, 1
      %p172 = por %p170, %p171
      %p174 = scmp.ne.s32.totalorder %s159, %s173
      %p175 = scmp.eq.s32.totalorder %s50, 0
      %p176 = por %p174, %p175
      %s178 = sadd.s32 %s177, 1
      %p181 = scmp.eq.s32.totalorder %s44, 1
      %p182 = scmp.ne.s32.totalorder %s177, %s179
      %p183 = scmp.eq.s32.totalorder %s44, 0
      %p184 = por %p182, %p183
      %p185 = scmp.ne.s32.totalorder %s177, %s179
      %p186 = scmp.eq.s32.totalorder %s49, 1
      %p187 = por %p185, %p186
      %p188 = scmp.ne.s32.totalorder %s179, %s180
      %p189 = scmp.eq.s32.totalorder %s49, 0
      %p190 = por %p188, %p189
      %p191 = scmp.ne.s32.totalorder %s179, %s180
      %p192 = scmp.eq.s32.totalorder %s50, 1
      %p193 = por %p191, %p192
      %p195 = scmp.ne.s32.totalorder %s180, %s194
      %p196 = scmp.eq.s32.totalorder %s50, 0
      %p197 = por %p195, %p196
      %s199 = sadd.s32 %s198, 1
      %p202 = scmp.eq.s32.totalorder %s44, 1
      %p203 = scmp.ne.s32.totalorder %s198, %s200
      %p204 = scmp.eq.s32.totalorder %s44, 0
      %p205 = por %p203, %p204
      %p206 = scmp.ne.s32.totalorder %s198, %s200
      %p207 = scmp.eq.s32.totalorder %s49, 1
      %p208 = por %p206, %p207
      %p209 = scmp.ne.s32.totalorder %s200, %s201
      %p210 = scmp.eq.s32.totalorder %s49, 0
      %p211 = por %p209, %p210
      %p212 = scmp.ne.s32.totalorder %s200, %s201
      %p213 = scmp.eq.s32.totalorder %s50, 1
      %p214 = por %p212, %p213
      %p216 = scmp.ne.s32.totalorder %s201, %s215
      %p217 = scmp.eq.s32.totalorder %s50, 0
      %p218 = por %p216, %p217
      %s220 = sadd.s32 %s219, 1
      %p223 = scmp.eq.s32.totalorder %s44, 1
      %p224 = scmp.ne.s32.totalorder %s219, %s221
      %p225 = scmp.eq.s32.totalorder %s44, 0
      %p226 = por %p224, %p225
      %p227 = scmp.ne.s32.totalorder %s219, %s221
      %p228 = scmp.eq.s32.totalorder %s49, 1
      %p229 = por %p227, %p228
      %p230 = scmp.ne.s32.totalorder %s221, %s222
      %p231 = scmp.eq.s32.totalorder %s49, 0
      %p232 = por %p230, %p231
      %p233 = scmp.ne.s32.totalorder %s221, %s222
      %p234 = scmp.eq.s32.totalorder %s50, 1
      %p235 = por %p233, %p234
      %p237 = scmp.ne.s32.totalorder %s222, %s236
      %p238 = scmp.eq.s32.totalorder %s50, 0
      %p239 = por %p237, %p238
      %s241 = sadd.s32 %s240, 1
      %p244 = scmp.eq.s32.totalorder %s44, 1
      %p245 = scmp.ne.s32.totalorder %s240, %s242
      %p246 = scmp.eq.s32.totalorder %s44, 0
      %p247 = por %p245, %p246
      %p248 = scmp.ne.s32.totalorder %s240, %s242
      %p249 = scmp.eq.s32.totalorder %s49, 1
      %p250 = por %p248, %p249
      %p251 = scmp.ne.s32.totalorder %s242, %s243
      %p252 = scmp.eq.s32.totalorder %s49, 0
      %p253 = por %p251, %p252
      %p254 = scmp.ne.s32.totalorder %s242, %s243
      %p255 = scmp.eq.s32.totalorder %s50, 1
      %p256 = por %p254, %p255
      %p258 = scmp.ne.s32.totalorder %s243, %s257
      %p259 = scmp.eq.s32.totalorder %s50, 0
      %p260 = por %p258, %p259
      %s262 = sadd.s32 %s261, 1
      %p265 = scmp.eq.s32.totalorder %s44, 1
      %p266 = scmp.ne.s32.totalorder %s261, %s263
      %p267 = scmp.eq.s32.totalorder %s44, 0
      %p268 = por %p266, %p267
      %p269 = scmp.ne.s32.totalorder %s261, %s263
      %p270 = scmp.eq.s32.totalorder %s49, 1
      %p271 = por %p269, %p270
      %p272 = scmp.ne.s32.totalorder %s263, %s264
      %p273 = scmp.eq.s32.totalorder %s49, 0
      %p274 = por %p272, %p273
      %p275 = scmp.ne.s32.totalorder %s263, %s264
      %p276 = scmp.eq.s32.totalorder %s50, 1
      %p277 = por %p275, %p276
      %p279 = scmp.ne.s32.totalorder %s264, %s278
      %p280 = scmp.eq.s32.totalorder %s50, 0
      %p281 = por %p279, %p280
      %s283 = sadd.s32 %s282, 1
      %p286 = scmp.eq.s32.totalorder %s44, 1
      %p287 = scmp.ne.s32.totalorder %s282, %s284
      %p288 = scmp.eq.s32.totalorder %s44, 0
      %p289 = por %p287, %p288
      %p290 = scmp.ne.s32.totalorder %s282, %s284
      %p291 = scmp.eq.s32.totalorder %s49, 1
      %p292 = por %p290, %p291
      %p293 = scmp.ne.s32.totalorder %s284, %s285
      %p294 = scmp.eq.s32.totalorder %s49, 0
      %p295 = por %p293, %p294
      %p296 = scmp.ne.s32.totalorder %s284, %s285
      %p297 = scmp.eq.s32.totalorder %s50, 1
      %p298 = por %p296, %p297
      %p300 = scmp.ne.s32.totalorder %s285, %s299
      %p301 = scmp.eq.s32.totalorder %s50, 0
      %p302 = por %p300, %p301
      %s304 = sadd.s32 %s303, 1
      %p307 = scmp.eq.s32.totalorder %s44, 1
      %p308 = scmp.ne.s32.totalorder %s303, %s305
      %p309 = scmp.eq.s32.totalorder %s44, 0
      %p310 = por %p308, %p309
      %p311 = scmp.ne.s32.totalorder %s303, %s305
      %p312 = scmp.eq.s32.totalorder %s49, 1
      %p313 = por %p311, %p312
      %p314 = scmp.ne.s32.totalorder %s305, %s306
      %p315 = scmp.eq.s32.totalorder %s49, 0
      %p316 = por %p314, %p315
      %p317 = scmp.ne.s32.totalorder %s305, %s306
      %p318 = scmp.eq.s32.totalorder %s50, 1
      %p319 = por %p317, %p318
      %p321 = scmp.ne.s32.totalorder %s306, %s320
      %p322 = scmp.eq.s32.totalorder %s50, 0
      %p323 = por %p321, %p322
      %s325 = sadd.s32 %s324, 1
      %p328 = scmp.eq.s32.totalorder %s44, 1
      %p329 = scmp.ne.s32.totalorder %s324, %s326
      %p330 = scmp.eq.s32.totalorder %s44, 0
      %p331 = por %p329, %p330
      %p332 = scmp.ne.s32.totalorder %s324, %s326
      %p333 = scmp.eq.s32.totalorder %s49, 1
      %p334 = por %p332, %p333
      %p335 = scmp.ne.s32.totalorder %s326, %s327
      %p336 = scmp.eq.s32.totalorder %s49, 0
      %p337 = por %p335, %p336
      %p338 = scmp.ne.s32.totalorder %s326, %s327
      %p339 = scmp.eq.s32.totalorder %s50, 1
      %p340 = por %p338, %p339
      %p342 = scmp.ne.s32.totalorder %s327, %s341
      %p343 = scmp.eq.s32.totalorder %s50, 0
      %p344 = por %p342, %p343
      %s346 = sadd.s32 %s345, 1
      %p349 = scmp.eq.s32.totalorder %s44, 1
      %p350 = scmp.ne.s32.totalorder %s345, %s347
      %p351 = scmp.eq.s32.totalorder %s44, 0
      %p352 = por %p350, %p351
      %p353 = scmp.ne.s32.totalorder %s345, %s347
      %p354 = scmp.eq.s32.totalorder %s49, 1
      %p355 = por %p353, %p354
      %p356 = scmp.ne.s32.totalorder %s347, %s348
      %p357 = scmp.eq.s32.totalorder %s49, 0
      %p358 = por %p356, %p357
      %p359 = scmp.ne.s32.totalorder %s347, %s348
      %p360 = scmp.eq.s32.totalorder %s50, 1
      %p361 = por %p359, %p360
      %p363 = scmp.ne.s32.totalorder %s348, %s362
      %p364 = scmp.eq.s32.totalorder %s50, 0
      %p365 = por %p363, %p364
      %s367 = sadd.s32 %s366, 1
      %p370 = scmp.eq.s32.totalorder %s44, 1
      %p371 = scmp.ne.s32.totalorder %s366, %s368
      %p372 = scmp.eq.s32.totalorder %s44, 0
      %p373 = por %p371, %p372
      %p374 = scmp.ne.s32.totalorder %s366, %s368
      %p375 = scmp.eq.s32.totalorder %s49, 1
      %p376 = por %p374, %p375
      %p377 = scmp.ne.s32.totalorder %s368, %s369
      %p378 = scmp.eq.s32.totalorder %s49, 0
      %p379 = por %p377, %p378
      %p380 = scmp.ne.s32.totalorder %s368, %s369
      %p381 = scmp.eq.s32.totalorder %s50, 1
      %p382 = por %p380, %p381
      %p384 = scmp.ne.s32.totalorder %s369, %s383
      %p385 = scmp.eq.s32.totalorder %s50, 0
      %p386 = por %p384, %p385
      %s388 = sadd.s32 %s387, 1
      %p391 = scmp.eq.s32.totalorder %s44, 1
      %p392 = scmp.ne.s32.totalorder %s387, %s389
      %p393 = scmp.eq.s32.totalorder %s44, 0
      %p394 = por %p392, %p393
      %p395 = scmp.ne.s32.totalorder %s387, %s389
      %p396 = scmp.eq.s32.totalorder %s49, 1
      %p397 = por %p395, %p396
      %p398 = scmp.ne.s32.totalorder %s389, %s390
      %p399 = scmp.eq.s32.totalorder %s49, 0
      %p400 = por %p398, %p399
      %p401 = scmp.ne.s32.totalorder %s389, %s390
      %p402 = scmp.eq.s32.totalorder %s50, 1
      %p403 = por %p401, %p402
      %p405 = scmp.ne.s32.totalorder %s390, %s404
      %p406 = scmp.eq.s32.totalorder %s50, 0
      %p407 = por %p405, %p406
      %s409 = sadd.s32 %s408, 1
      %p412 = scmp.eq.s32.totalorder %s44, 1
      %p413 = scmp.ne.s32.totalorder %s408, %s410
      %p414 = scmp.eq.s32.totalorder %s44, 0
      %p415 = por %p413, %p414
      %p416 = scmp.ne.s32.totalorder %s408, %s410
      %p417 = scmp.eq.s32.totalorder %s49, 1
      %p418 = por %p416, %p417
      %p419 = scmp.ne.s32.totalorder %s410, %s411
      %p420 = scmp.eq.s32.totalorder %s49, 0
      %p421 = por %p419, %p420
      %p422 = scmp.ne.s32.totalorder %s410, %s411
      %p423 = scmp.eq.s32.totalorder %s50, 1
      %p424 = por %p422, %p423
      %p426 = scmp.ne.s32.totalorder %s411, %s425
      %p427 = scmp.eq.s32.totalorder %s50, 0
      %p428 = por %p426, %p427
      %s430 = sadd.s32 %s429, 1
      %p433 = scmp.eq.s32.totalorder %s44, 1
      %p434 = scmp.ne.s32.totalorder %s429, %s431
      %p435 = scmp.eq.s32.totalorder %s44, 0
      %p436 = por %p434, %p435
      %p437 = scmp.ne.s32.totalorder %s429, %s431
      %p438 = scmp.eq.s32.totalorder %s49, 1
      %p439 = por %p437, %p438
      %p440 = scmp.ne.s32.totalorder %s431, %s432
      %p441 = scmp.eq.s32.totalorder %s49, 0
      %p442 = por %p440, %p441
      %p443 = scmp.ne.s32.totalorder %s431, %s432
      %p444 = scmp.eq.s32.totalorder %s50, 1
      %p445 = por %p443, %p444
      %p447 = scmp.ne.s32.totalorder %s432, %s446
      %p448 = scmp.eq.s32.totalorder %s50, 0
      %p449 = por %p447, %p448
      %s451 = sadd.s32 %s450, 1
      %p454 = scmp.eq.s32.totalorder %s44, 1
      %p455 = scmp.ne.s32.totalorder %s450, %s452
      %p456 = scmp.eq.s32.totalorder %s44, 0
      %p457 = por %p455, %p456
      %p458 = scmp.ne.s32.totalorder %s450, %s452
      %p459 = scmp.eq.s32.totalorder %s49, 1
      %p460 = por %p458, %p459
      %p461 = scmp.ne.s32.totalorder %s452, %s453
      %p462 = scmp.eq.s32.totalorder %s49, 0
      %p463 = por %p461, %p462
      %p464 = scmp.ne.s32.totalorder %s452, %s453
      %p465 = scmp.eq.s32.totalorder %s50, 1
      %p466 = por %p464, %p465
      %p468 = scmp.ne.s32.totalorder %s453, %s467
      %p469 = scmp.eq.s32.totalorder %s50, 0
      %p470 = por %p468, %p469
      %s472 = sadd.s32 %s471, 1
      %p475 = scmp.eq.s32.totalorder %s44, 1
      %p476 = scmp.ne.s32.totalorder %s471, %s473
      %p477 = scmp.eq.s32.totalorder %s44, 0
      %p478 = por %p476, %p477
      %p479 = scmp.ne.s32.totalorder %s471, %s473
      %p480 = scmp.eq.s32.totalorder %s49, 1
      %p481 = por %p479, %p480
      %p482 = scmp.ne.s32.totalorder %s473, %s474
      %p483 = scmp.eq.s32.totalorder %s49, 0
      %p484 = por %p482, %p483
      %p485 = scmp.ne.s32.totalorder %s473, %s474
      %p486 = scmp.eq.s32.totalorder %s50, 1
      %p487 = por %p485, %p486
      %p489 = scmp.ne.s32.totalorder %s474, %s488
      %p490 = scmp.eq.s32.totalorder %s50, 0
      %p491 = por %p489, %p490
      %s493 = sadd.s32 %s492, 1
      %p496 = scmp.eq.s32.totalorder %s44, 1
      %p497 = scmp.ne.s32.totalorder %s492, %s494
      %p498 = scmp.eq.s32.totalorder %s44, 0
      %p499 = por %p497, %p498
      %p500 = scmp.ne.s32.totalorder %s492, %s494
      %p501 = scmp.eq.s32.totalorder %s49, 1
      %p502 = por %p500, %p501
      %p503 = scmp.ne.s32.totalorder %s494, %s495
      %p504 = scmp.eq.s32.totalorder %s49, 0
      %p505 = por %p503, %p504
      %p506 = scmp.ne.s32.totalorder %s494, %s495
      %p507 = scmp.eq.s32.totalorder %s50, 1
      %p508 = por %p506, %p507
      %p510 = scmp.ne.s32.totalorder %s495, %s509
      %p511 = scmp.eq.s32.totalorder %s50, 0
      %p512 = por %p510, %p511
      %s514 = sadd.s32 %s513, 1
      %p517 = scmp.eq.s32.totalorder %s44, 1
      %p518 = scmp.ne.s32.totalorder %s513, %s515
      %p519 = scmp.eq.s32.totalorder %s44, 0
      %p520 = por %p518, %p519
      %p521 = scmp.ne.s32.totalorder %s513, %s515
      %p522 = scmp.eq.s32.totalorder %s49, 1
      %p523 = por %p521, %p522
      %p524 = scmp.ne.s32.totalorder %s515, %s516
      %p525 = scmp.eq.s32.totalorder %s49, 0
      %p526 = por %p524, %p525
      %p527 = scmp.ne.s32.totalorder %s515, %s516
      %p528 = scmp.eq.s32.totalorder %s50, 1
      %p529 = por %p527, %p528
      %p531 = scmp.ne.s32.totalorder %s516, %s530
      %p532 = scmp.eq.s32.totalorder %s50, 0
      %p533 = por %p531, %p532
      %s535 = sadd.s32 %s534, 1
      %p538 = scmp.eq.s32.totalorder %s44, 1
      %p539 = scmp.ne.s32.totalorder %s534, %s536
      %p540 = scmp.eq.s32.totalorder %s44, 0
      %p541 = por %p539, %p540
      %p542 = scmp.ne.s32.totalorder %s534, %s536
      %p543 = scmp.eq.s32.totalorder %s49, 1
      %p544 = por %p542, %p543
      %p545 = scmp.ne.s32.totalorder %s536, %s537
      %p546 = scmp.eq.s32.totalorder %s49, 0
      %p547 = por %p545, %p546
      %p548 = scmp.ne.s32.totalorder %s536, %s537
      %p549 = scmp.eq.s32.totalorder %s50, 1
      %p550 = por %p548, %p549
      %p552 = scmp.ne.s32.totalorder %s537, %s551
      %p553 = scmp.eq.s32.totalorder %s50, 0
      %p554 = por %p552, %p553
      %s556 = sadd.s32 %s555, 1
      %p559 = scmp.eq.s32.totalorder %s44, 1
      %p560 = scmp.ne.s32.totalorder %s555, %s557
      %p561 = scmp.eq.s32.totalorder %s44, 0
      %p562 = por %p560, %p561
      %p563 = scmp.ne.s32.totalorder %s555, %s557
      %p564 = scmp.eq.s32.totalorder %s49, 1
      %p565 = por %p563, %p564
      %p566 = scmp.ne.s32.totalorder %s557, %s558
      %p567 = scmp.eq.s32.totalorder %s49, 0
      %p568 = por %p566, %p567
      %p569 = scmp.ne.s32.totalorder %s557, %s558
      %p570 = scmp.eq.s32.totalorder %s50, 1
      %p571 = por %p569, %p570
      %p573 = scmp.ne.s32.totalorder %s558, %s572
      %p574 = scmp.eq.s32.totalorder %s50, 0
      %p575 = por %p573, %p574
      %s577 = sadd.s32 %s576, 1
      %p580 = scmp.eq.s32.totalorder %s44, 1
      %p581 = scmp.ne.s32.totalorder %s576, %s578
      %p582 = scmp.eq.s32.totalorder %s44, 0
      %p583 = por %p581, %p582
      %p584 = scmp.ne.s32.totalorder %s576, %s578
      %p585 = scmp.eq.s32.totalorder %s49, 1
      %p586 = por %p584, %p585
      %p587 = scmp.ne.s32.totalorder %s578, %s579
      %p588 = scmp.eq.s32.totalorder %s49, 0
      %p589 = por %p587, %p588
      %p590 = scmp.ne.s32.totalorder %s578, %s579
      %p591 = scmp.eq.s32.totalorder %s50, 1
      %p592 = por %p590, %p591
      %p594 = scmp.ne.s32.totalorder %s579, %s593
      %p595 = scmp.eq.s32.totalorder %s50, 0
      %p596 = por %p594, %p595
      %s598 = sadd.s32 %s597, 1
      %p601 = scmp.eq.s32.totalorder %s44, 1
      %p602 = scmp.ne.s32.totalorder %s597, %s599
      %p603 = scmp.eq.s32.totalorder %s44, 0
      %p604 = por %p602, %p603
      %p605 = scmp.ne.s32.totalorder %s597, %s599
      %p606 = scmp.eq.s32.totalorder %s49, 1
      %p607 = por %p605, %p606
      %p608 = scmp.ne.s32.totalorder %s599, %s600
      %p609 = scmp.eq.s32.totalorder %s49, 0
      %p610 = por %p608, %p609
      %p611 = scmp.ne.s32.totalorder %s599, %s600
      %p612 = scmp.eq.s32.totalorder %s50, 1
      %p613 = por %p611, %p612
      %p615 = scmp.ne.s32.totalorder %s600, %s614
      %p616 = scmp.eq.s32.totalorder %s50, 0
      %p617 = por %p615, %p616
      %s618 = ssub.s32 %s44, %s51
      %p619 = scmp.eq.s32.totalorder %s618, 0
      %s621 = sadd.s32 %s620, 1
      %s622 = scalar_select %p619, %s620, %s621
      %p625 = pneg %p619
      %p626 = scmp.eq.s32.totalorder %s44, 1
      %p627 = por %p625, %p626
      %p628 = scmp.ne.s32.totalorder %s620, %s623
      %p629 = scmp.eq.s32.totalorder %s44, 0
      %p630 = por %p628, %p629
      %p631 = scmp.ne.s32.totalorder %s620, %s623
      %p632 = scmp.eq.s32.totalorder %s49, 1
      %p633 = por %p631, %p632
      %p634 = scmp.ne.s32.totalorder %s623, %s624
      %p635 = scmp.eq.s32.totalorder %s49, 0
      %p636 = por %p634, %p635
      %p637 = scmp.ne.s32.totalorder %s623, %s624
      %p638 = scmp.eq.s32.totalorder %s50, 1
      %p639 = por %p637, %p638
      %p641 = scmp.ne.s32.totalorder %s624, %s640
      %p642 = scmp.eq.s32.totalorder %s50, 0
      %p643 = por %p641, %p642
      %s644 = ssub.s32 %s44, %s51
      %p645 = scmp.eq.s32.totalorder %s644, 0
      %s647 = sadd.s32 %s646, 1
      %s648 = scalar_select %p645, %s646, %s647
      %p651 = pneg %p645
      %p652 = scmp.eq.s32.totalorder %s44, 1
      %p653 = por %p651, %p652
      %p654 = scmp.ne.s32.totalorder %s646, %s649
      %p655 = scmp.eq.s32.totalorder %s44, 0
      %p656 = por %p654, %p655
      %p657 = scmp.ne.s32.totalorder %s646, %s649
      %p658 = scmp.eq.s32.totalorder %s49, 1
      %p659 = por %p657, %p658
      %p660 = scmp.ne.s32.totalorder %s649, %s650
      %p661 = scmp.eq.s32.totalorder %s49, 0
      %p662 = por %p660, %p661
      %p663 = scmp.ne.s32.totalorder %s649, %s650
      %p664 = scmp.eq.s32.totalorder %s50, 1
      %p665 = por %p663, %p664
      %p667 = scmp.ne.s32.totalorder %s650, %s666
      %p668 = scmp.eq.s32.totalorder %s50, 0
      %p669 = por %p667, %p668
      %p670 = scmp.le.s32.totalorder 1, %s44
      %p671 = scmp.lt.s32.totalorder %s44, 3
      %p672 = pnand %p670, %p671
      %p673 = pneg %p672
      // Predicated region
      $region9: #{tpu_custom_call.1} parent=5 // pred_check
        _
      $region10: #{tpu_custom_call.1} parent=5 // pred_check_branch
        %675 = sbr.rel (%p672) target = $region12
      $region11: #{tpu_custom_call.1} parent=5 // pred_region
        %s676 = ssub.s32 %s44, 1
        // Predicated region
        $region13: #{tpu_custom_call.1} parent=11 // pred_check
          %p677 = pneg %p169
        $region14: #{tpu_custom_call.1} parent=11 // pred_check_branch
          %679 = sbr.rel (%p677) target = $region16
        $region15: #{tpu_custom_call.1} parent=11 // pred_region
          _
        $region16: #{tpu_custom_call.1} parent=11 // pred_fallthru
          _
        // Predicated region
        $region17: #{tpu_custom_call.1} parent=11 // pred_check
          %p680 = pneg %p190
        $region18: #{tpu_custom_call.1} parent=11 // pred_check_branch
          %682 = sbr.rel (%p680) target = $region20
        $region19: #{tpu_custom_call.1} parent=11 // pred_region
          _
        $region20: #{tpu_custom_call.1} parent=11 // pred_fallthru
          _
        // Predicated region
        $region21: #{tpu_custom_call.1} parent=11 // pred_check
          %p683 = pneg %p211
        $region22: #{tpu_custom_call.1} parent=11 // pred_check_branch
          %685 = sbr.rel (%p683) target = $region24
        $region23: #{tpu_custom_call.1} parent=11 // pred_region
          _
        $region24: #{tpu_custom_call.1} parent=11 // pred_fallthru
          _
        // Predicated region
        $region25: #{tpu_custom_call.1} parent=11 // pred_check
          %p686 = pneg %p232
        $region26: #{tpu_custom_call.1} parent=11 // pred_check_branch
          %688 = sbr.rel (%p686) target = $region28
        $region27: #{tpu_custom_call.1} parent=11 // pred_region
          _
        $region28: #{tpu_custom_call.1} parent=11 // pred_fallthru
          _
        // Predicated region
        $region29: #{tpu_custom_call.1} parent=11 // pred_check
          %p689 = pneg %p253
        $region30: #{tpu_custom_call.1} parent=11 // pred_check_branch
          %691 = sbr.rel (%p689) target = $region32
        $region31: #{tpu_custom_call.1} parent=11 // pred_region
          _
        $region32: #{tpu_custom_call.1} parent=11 // pred_fallthru
          _
        // Predicated region
        $region33: #{tpu_custom_call.1} parent=11 // pred_check
          %p692 = pneg %p274
        $region34: #{tpu_custom_call.1} parent=11 // pred_check_branch
          %694 = sbr.rel (%p692) target = $region36
        $region35: #{tpu_custom_call.1} parent=11 // pred_region
          _
        $region36: #{tpu_custom_call.1} parent=11 // pred_fallthru
          _
        // Predicated region
        $region37: #{tpu_custom_call.1} parent=11 // pred_check
          %p695 = pneg %p295
        $region38: #{tpu_custom_call.1} parent=11 // pred_check_branch
          %697 = sbr.rel (%p695) target = $region40
        $region39: #{tpu_custom_call.1} parent=11 // pred_region
          _
        $region40: #{tpu_custom_call.1} parent=11 // pred_fallthru
          _
        // Predicated region
        $region41: #{tpu_custom_call.1} parent=11 // pred_check
          %p698 = pneg %p316
        $region42: #{tpu_custom_call.1} parent=11 // pred_check_branch
          %700 = sbr.rel (%p698) target = $region44
        $region43: #{tpu_custom_call.1} parent=11 // pred_region
          _
        $region44: #{tpu_custom_call.1} parent=11 // pred_fallthru
          _
        // Predicated region
        $region45: #{tpu_custom_call.1} parent=11 // pred_check
          %p701 = pneg %p337
        $region46: #{tpu_custom_call.1} parent=11 // pred_check_branch
          %703 = sbr.rel (%p701) target = $region48
        $region47: #{tpu_custom_call.1} parent=11 // pred_region
          %s705 = ssub.s32 512, 512
          %706 = vsyncadd [#allocation6], %s705
          %s707 = sshll.u32 [#allocation5], 4
          %s708 = int_to_ptr.vmem [resolvable:$true] %s707
          %713 = dma.hbm_to_vmem [thread:$0]  %s12, 512, %s708, [#allocation6], 128, 128, 8
        $region48: #{tpu_custom_call.1} parent=11 // pred_fallthru
          _
        // Predicated region
        $region49: #{tpu_custom_call.1} parent=11 // pred_check
          %p714 = pneg %p358
        $region50: #{tpu_custom_call.1} parent=11 // pred_check_branch
          %716 = sbr.rel (%p714) target = $region52
        $region51: #{tpu_custom_call.1} parent=11 // pred_region
          _
        $region52: #{tpu_custom_call.1} parent=11 // pred_fallthru
          _
        // Predicated region
        $region53: #{tpu_custom_call.1} parent=11 // pred_check
          %p717 = pneg %p379
        $region54: #{tpu_custom_call.1} parent=11 // pred_check_branch
          %719 = sbr.rel (%p717) target = $region56
        $region55: #{tpu_custom_call.1} parent=11 // pred_region
          _
        $region56: #{tpu_custom_call.1} parent=11 // pred_fallthru
          _
        // Predicated region
        $region57: #{tpu_custom_call.1} parent=11 // pred_check
          %p720 = pneg %p400
        $region58: #{tpu_custom_call.1} parent=11 // pred_check_branch
          %722 = sbr.rel (%p720) target = $region60
        $region59: #{tpu_custom_call.1} parent=11 // pred_region
          _
        $region60: #{tpu_custom_call.1} parent=11 // pred_fallthru
          _
        // Predicated region
        $region61: #{tpu_custom_call.1} parent=11 // pred_check
          %p723 = pneg %p421
        $region62: #{tpu_custom_call.1} parent=11 // pred_check_branch
          %725 = sbr.rel (%p723) target = $region64
        $region63: #{tpu_custom_call.1} parent=11 // pred_region
          %s727 = ssub.s32 512, 512
          %728 = vsyncadd [#allocation6], %s727
          %s729 = sshll.u32 [#allocation7], 4
          %s730 = int_to_ptr.vmem [resolvable:$true] %s729
          %735 = dma.hbm_to_vmem [thread:$0]  %s16, 512, %s730, [#allocation6], 128, 128, 8
        $region64: #{tpu_custom_call.1} parent=11 // pred_fallthru
          _
        // Predicated region
        $region65: #{tpu_custom_call.1} parent=11 // pred_check
          %p736 = pneg %p442
        $region66: #{tpu_custom_call.1} parent=11 // pred_check_branch
          %738 = sbr.rel (%p736) target = $region68
        $region67: #{tpu_custom_call.1} parent=11 // pred_region
          _
        $region68: #{tpu_custom_call.1} parent=11 // pred_fallthru
          _
        // Predicated region
        $region69: #{tpu_custom_call.1} parent=11 // pred_check
          %p739 = pneg %p463
        $region70: #{tpu_custom_call.1} parent=11 // pred_check_branch
          %741 = sbr.rel (%p739) target = $region72
        $region71: #{tpu_custom_call.1} parent=11 // pred_region
          _
        $region72: #{tpu_custom_call.1} parent=11 // pred_fallthru
          _
        // Predicated region
        $region73: #{tpu_custom_call.1} parent=11 // pred_check
          %p742 = pneg %p484
        $region74: #{tpu_custom_call.1} parent=11 // pred_check_branch
          %744 = sbr.rel (%p742) target = $region76
        $region75: #{tpu_custom_call.1} parent=11 // pred_region
          _
        $region76: #{tpu_custom_call.1} parent=11 // pred_fallthru
          _
        // Predicated region
        $region77: #{tpu_custom_call.1} parent=11 // pred_check
          %p745 = pneg %p505
        $region78: #{tpu_custom_call.1} parent=11 // pred_check_branch
          %747 = sbr.rel (%p745) target = $region80
        $region79: #{tpu_custom_call.1} parent=11 // pred_region
          _
        $region80: #{tpu_custom_call.1} parent=11 // pred_fallthru
          _
        // Predicated region
        $region81: #{tpu_custom_call.1} parent=11 // pred_check
          %p748 = pneg %p526
        $region82: #{tpu_custom_call.1} parent=11 // pred_check_branch
          %750 = sbr.rel (%p748) target = $region84
        $region83: #{tpu_custom_call.1} parent=11 // pred_region
          _
        $region84: #{tpu_custom_call.1} parent=11 // pred_fallthru
          _
        // Predicated region
        $region85: #{tpu_custom_call.1} parent=11 // pred_check
          %p751 = pneg %p547
        $region86: #{tpu_custom_call.1} parent=11 // pred_check_branch
          %753 = sbr.rel (%p751) target = $region88
        $region87: #{tpu_custom_call.1} parent=11 // pred_region
          _
        $region88: #{tpu_custom_call.1} parent=11 // pred_fallthru
          _
        // Predicated region
        $region89: #{tpu_custom_call.1} parent=11 // pred_check
          %p754 = pneg %p568
        $region90: #{tpu_custom_call.1} parent=11 // pred_check_branch
          %756 = sbr.rel (%p754) target = $region92
        $region91: #{tpu_custom_call.1} parent=11 // pred_region
          _
        $region92: #{tpu_custom_call.1} parent=11 // pred_fallthru
          _
        // Predicated region
        $region93: #{tpu_custom_call.1} parent=11 // pred_check
          %p757 = pneg %p589
        $region94: #{tpu_custom_call.1} parent=11 // pred_check_branch
          %759 = sbr.rel (%p757) target = $region96
        $region95: #{tpu_custom_call.1} parent=11 // pred_region
          _
        $region96: #{tpu_custom_call.1} parent=11 // pred_fallthru
          _
        // Predicated region
        $region97: #{tpu_custom_call.1} parent=11 // pred_check
          %p760 = pneg %p610
        $region98: #{tpu_custom_call.1} parent=11 // pred_check_branch
          %762 = sbr.rel (%p760) target = $region100
        $region99: #{tpu_custom_call.1} parent=11 // pred_region
          _
        $region100: #{tpu_custom_call.1} parent=11 // pred_fallthru
          _
      $region12: #{tpu_custom_call.1} parent=5 // pred_fallthru
        _
      %p763 = scmp.lt.s32.totalorder %s44, 2
      // Predicated region
      $region101: #{tpu_custom_call.1} parent=5 // pred_check
        %p764 = pneg %p763
      $region102: #{tpu_custom_call.1} parent=5 // pred_check_branch
        %766 = sbr.rel (%p764) target = $region104
      $region103: #{tpu_custom_call.1} parent=5 // pred_region
        // Predicated region
        $region105: #{tpu_custom_call.1} parent=103 // pred_check
          %p767 = pneg %p64
        $region106: #{tpu_custom_call.1} parent=103 // pred_check_branch
          %769 = sbr.rel (%p767) target = $region108
        $region107: #{tpu_custom_call.1} parent=103 // pred_region
          %p770 = scmp.lt.s32.totalorder %s44, 1
          %s771 = scalar_select %p770, %s44, 1
          %s772 = smul.addr %s771, 2
          %s773 = smul.addr %s772, 8
          %s774 = scalar_lea.vmem %s0, %s773
        $region108: #{tpu_custom_call.1} parent=103 // pred_fallthru
          _
        // Predicated region
        $region109: #{tpu_custom_call.1} parent=103 // pred_check
          %p775 = pneg %p90
        $region110: #{tpu_custom_call.1} parent=103 // pred_check_branch
          %777 = sbr.rel (%p775) target = $region112
        $region111: #{tpu_custom_call.1} parent=103 // pred_region
          %s778 = sand.u32 %s80, 1
          %s779 = scalar_lea.sflag [#allocation3], %s778
          %s780 = sand.u32 %s80, 1
          %s781 = smul.addr %s780, 8
          %s782 = scalar_lea.vmem [#allocation2], %s781
          %s784 = ssub.s32 128, 128
          %785 = vsyncadd %s779, %s784
          %s786 = smul.addr %s44, 128
          %s787 = scalar_lea.hbm %s1, %s786
          %s789 = sshll.u32 %s782, 4
          %s790 = int_to_ptr.vmem [resolvable:$true] %s789
          %792 = dma.hbm_to_vmem [thread:$0]  %s787, 128, %s790, %s779
        $region112: #{tpu_custom_call.1} parent=103 // pred_fallthru
          _
        // Predicated region
        $region113: #{tpu_custom_call.1} parent=103 // pred_check
          %p793 = pneg %p116
        $region114: #{tpu_custom_call.1} parent=103 // pred_check_branch
          %795 = sbr.rel (%p793) target = $region116
        $region115: #{tpu_custom_call.1} parent=103 // pred_region
          %p796 = scmp.lt.s32.totalorder %s44, 1
          %s797 = scalar_select %p796, %s44, 1
          %s798 = scalar_lea.vmem %s2, %s797
        $region116: #{tpu_custom_call.1} parent=103 // pred_fallthru
          _
        // Predicated region
        $region117: #{tpu_custom_call.1} parent=103 // pred_check
          %p799 = pneg %p142
        $region118: #{tpu_custom_call.1} parent=103 // pred_check_branch
          %801 = sbr.rel (%p799) target = $region120
        $region119: #{tpu_custom_call.1} parent=103 // pred_region
          %p802 = scmp.lt.s32.totalorder %s44, 1
          %s803 = scalar_select %p802, %s44, 1
          %s804 = scalar_lea.vmem %s3, %s803
        $region120: #{tpu_custom_call.1} parent=103 // pred_fallthru
          _
      $region104: #{tpu_custom_call.1} parent=5 // pred_fallthru
        _
      %p805 = scmp.le.s32.totalorder 1, %s44
      %p806 = scmp.lt.s32.totalorder %s44, 3
      %p807 = pnand %p805, %p806
      %p808 = pneg %p807
      // Predicated region
      $region121: #{tpu_custom_call.1} parent=5 // pred_check
        _
      $region122: #{tpu_custom_call.1} parent=5 // pred_check_branch
        %810 = sbr.rel (%p807) target = $region124
      $region123: #{tpu_custom_call.1} parent=5 // pred_region
        %s811 = ssub.s32 %s44, 1
        %s812 = sand.u32 %s83, 1
        %s813 = scalar_lea.sflag [#allocation3], %s812
        %s814 = sand.u32 %s83, 1
        %s815 = smul.addr %s814, 8
        %s816 = scalar_lea.vmem [#allocation2], %s815
        // Predicated region
        $region125: #{tpu_custom_call.1} parent=123 // pred_check
          %p817 = pneg %p96
        $region126: #{tpu_custom_call.1} parent=123 // pred_check_branch
          %819 = sbr.rel (%p817) target = $region128
        $region127: #{tpu_custom_call.1} parent=123 // pred_region
          %820 = dma.done %s813, 128
        $region128: #{tpu_custom_call.1} parent=123 // pred_fallthru
          _
        // Predicated region
        $region129: #{tpu_custom_call.1} parent=123 // pred_check
          %p821 = pneg %p337
        $region130: #{tpu_custom_call.1} parent=123 // pred_check_branch
          %823 = sbr.rel (%p821) target = $region132
        $region131: #{tpu_custom_call.1} parent=123 // pred_region
          %824 = dma.done [#allocation6], 512
        $region132: #{tpu_custom_call.1} parent=123 // pred_fallthru
          _
        // Predicated region
        $region133: #{tpu_custom_call.1} parent=123 // pred_check
          %p825 = pneg %p421
        $region134: #{tpu_custom_call.1} parent=123 // pred_check_branch
          %827 = sbr.rel (%p825) target = $region136
        $region135: #{tpu_custom_call.1} parent=123 // pred_region
          %828 = dma.done [#allocation6], 512
        $region136: #{tpu_custom_call.1} parent=123 // pred_fallthru
          _
        %p829 = scmp.lt.s32.totalorder %s49, 1
        %s830 = scalar_select %p829, %s49, 1
        %s831 = smul.addr %s830, 2
        %s832 = smul.addr %s831, 8
        %s833 = scalar_lea.vmem %s0, %s832
        %p834 = pneg %p70
        %p835 = pneg %p67
        %s836 = sand.u32 %s83, 1
        %s837 = scalar_lea.sflag [#allocation3], %s836
        %s838 = sand.u32 %s83, 1
        %s839 = smul.addr %s838, 8
        %s840 = scalar_lea.vmem [#allocation2], %s839
        %p841 = pneg %p96
        %p842 = pneg %p93
        %p843 = scmp.lt.s32.totalorder %s49, 1
        %s844 = scalar_select %p843, %s49, 1
        %s845 = scalar_lea.vmem %s2, %s844
        %p846 = pneg %p122
        %p847 = pneg %p119
        %p848 = scmp.lt.s32.totalorder %s49, 1
        %s849 = scalar_select %p848, %s49, 1
        %s850 = scalar_lea.vmem %s3, %s849
        %p851 = pneg %p148
        %p852 = pneg %p145
        %p853 = pneg %p169
        %p854 = pneg %p166
        %p855 = pneg %p190
        %p856 = pneg %p187
        %p857 = pneg %p211
        %p858 = pneg %p208
        %p859 = pneg %p232
        %p860 = pneg %p229
        %p861 = pneg %p253
        %p862 = pneg %p250
        %p863 = pneg %p274
        %p864 = pneg %p271
        %p865 = pneg %p295
        %p866 = pneg %p292
        %p867 = pneg %p316
        %p868 = pneg %p313
        %p869 = pneg %p337
        %p870 = pneg %p334
        %p871 = pneg %p358
        %p872 = pneg %p355
        %p873 = pneg %p379
        %p874 = pneg %p376
        %p875 = pneg %p400
        %p876 = pneg %p397
        %p877 = pneg %p421
        %p878 = pneg %p418
        %p879 = pneg %p442
        %p880 = pneg %p439
        %p881 = pneg %p463
        %p882 = pneg %p460
        %p883 = pneg %p484
        %p884 = pneg %p481
        %p885 = pneg %p505
        %p886 = pneg %p502
        %p887 = pneg %p526
        %p888 = pneg %p523
        %p889 = pneg %p547
        %p890 = pneg %p544
        %p891 = pneg %p568
        %p892 = pneg %p565
        %p893 = pneg %p589
        %p894 = pneg %p586
        %p895 = pneg %p610
        %p896 = pneg %p607
        %p897 = pneg %p636
        %p898 = pneg %p633
        %s899 = sand.u32 %s623, 1
        %s900 = scalar_lea.sflag [#allocation4], %s899
        %s901 = sand.u32 %s623, 1
        %s902 = smul.addr %s901, 16
        %s903 = scalar_lea.vmem [#allocation8], %s902
        %p904 = pneg %p662
        %p905 = pneg %p659
        %s906 = sand.u32 %s649, 1
        %s907 = scalar_lea.sflag [#allocation10], %s906
        %s908 = sand.u32 %s649, 1
        %s909 = smul.addr %s908, 8
        %s910 = scalar_lea.vmem [#allocation9], %s909
        %p911 = scmp.lt.s32.totalorder %s49, 1
        %s912 = scalar_select %p911, %s49, 1
        %s913 = smul.addr %s912, 2
        %s914 = smul.addr %s913, 8
        %s915 = scalar_lea.vmem %s0, %s914
        %p916 = scmp.lt.s32.totalorder %s49, 1
        %s917 = scalar_select %p916, %s49, 1
        %s918 = scalar_lea.vmem %s2, %s917
        %p919 = scmp.lt.s32.totalorder %s49, 1
        %s920 = scalar_select %p919, %s49, 1
        %s921 = scalar_lea.vmem %s3, %s920
        %v922 = vld [vmem:[%s915] sm:$0xff]
        %v923 = vld [vmem:[%s915 + $0x8] sm:$0xff]
        %v924 = vld [vmem:[%s816] sm:$0xff]
        %v925 = vld [vmem:[%s918] sm:$0x1]
        %v926 = vld [vmem:[%s921] sm:$0x1]
        %v927 = vld [vmem:[%s4] sm:$0xff]
        %v928 = vld [vmem:[%s4 + $0x8] sm:$0xff]
        %v929 = vld [vmem:[%s4 + $0x10] sm:$0xff]
        %v930 = vld [vmem:[%s4 + $0x18] sm:$0xff]
        %v931 = vld [vmem:[%s5] sm:$0x1]
        %v933 = vlaneseq
        %v934 = vshrl.u32 %v933, 7
        %v935 = vsub.s32 0, %v934
        %v936 = vrot.slane %v931, %v935
        %vm938 = vcmask 261120
        %v940 = vsel %vm938, %v922, 0
        %v943 = vsel %vm938, %v923, 0
        %945 = vmatprep.subr.mxu0 0.0
        %946 = vmatpush1.msra.mxu0 %v927
        %947 = vmatprep.subr.mxu0 0.0
        %948 = vmatpush1.msra.mxu0 %v928
        %949 = vmatprep.subr.mxu0 0.0
        %950 = vmatpush1.msra.mxu0 %v929
        %951 = vmatprep.subr.mxu0 0.0
        %952 = vmatpush1.msra.mxu0 %v930
        %953 = vmatprep.subr.mxu0 0.0
        %954 = vmatpush1.msra.mxu0 0.0
        %955 = vmatprep.subr.mxu0 0.0
        %956 = vmatpush1.msra.mxu0 0.0
        %957 = vmatprep.subr.mxu0 0.0
        %958 = vmatpush1.msra.mxu0 0.0
        %959 = vmatprep.subr.mxu0 0.0
        %960 = vmatpush1.msra.mxu0 0.0
        %961 = vmatprep.subr.mxu0 0.0
        %962 = vmatpush1.msra.mxu0 0.0
        %963 = vmatprep.subr.mxu0 0.0
        %964 = vmatpush1.msra.mxu0 0.0
        %965 = vmatprep.subr.mxu0 0.0
        %966 = vmatpush1.msra.mxu0 0.0
        %967 = vmatprep.subr.mxu0 0.0
        %968 = vmatpush1.msra.mxu0 0.0
        %969 = vmatprep.subr.mxu0 0.0
        %970 = vmatpush1.msra.mxu0 0.0
        %971 = vmatprep.subr.mxu0 0.0
        %972 = vmatpush1.msra.mxu0 0.0
        %973 = vmatprep.subr.mxu0 0.0
        %974 = vmatpush1.msra.mxu0 0.0
        %975 = vmatprep.subr.mxu0 0.0
        %976 = vmatpush1.msra.mxu0 0.0
        %977 = vmatprep.subr.mxu0 0.0
        %978 = vmatpush1.msra.mxu0 0.0
        %979 = vmatprep.subr.mxu0 0.0
        %980 = vmatpush1.msra.mxu0 0.0
        %981 = vmatprep.subr.mxu0 0.0
        %982 = vmatpush1.msra.mxu0 0.0
        %983 = vmatprep.subr.mxu0 0.0
        %984 = vmatpush1.msra.mxu0 0.0
        %985 = vmatprep.subr.mxu0 0.0
        %986 = vmatpush1.msra.mxu0 0.0
        %987 = vmatprep.subr.mxu0 0.0
        %988 = vmatpush1.msra.mxu0 0.0
        %989 = vmatprep.subr.mxu0 0.0
        %990 = vmatpush1.msra.mxu0 0.0
        %991 = vmatprep.subr.mxu0 0.0
        %992 = vmatpush1.msra.mxu0 0.0
        %993 = vmatprep.subr.mxu0 0.0
        %994 = vmatpush1.msra.mxu0 0.0
        %995 = vmatprep.subr.mxu0 0.0
        %996 = vmatpush1.msra.mxu0 0.0
        %997 = vmatprep.subr.mxu0 0.0
        %998 = vmatpush1.msra.mxu0 0.0
        %999 = vmatprep.subr.mxu0 0.0
        %1000 = vmatpush1.msra.mxu0 0.0
        %1001 = vmatprep.subr.mxu0 0.0
        %1002 = vmatpush1.msra.mxu0 0.0
        %1003 = vmatprep.subr.mxu0 0.0
        %1004 = vmatpush1.msra.mxu0 0.0
        %1005 = vmatprep.subr.mxu0 0.0
        %1006 = vmatpush1.msra.mxu0 0.0
        %1007 = vmatprep.subr.mxu0 0.0
        %1008 = vmatpush1.msra.mxu0 0.0
        %1009 = vmatprep.mubr.f32.mxu0 0.0
        %1010 = vmatmul.mubr.f32.gmra.mrb[0].mxu0 %v940
        %v1011 = vpop.f32.mrb[0].mxu0
        %v1012 = vadd.f32 %v936, %v1011
        %v1013 = vpop.f32.mrb[0].mxu0
        %1014 = vmatprep.mubr.f32.mxu0 0.0
        %1015 = vmatmul.mubr.f32.gmra.mrb[0].mxu0 %v943
        %v1016 = vpop.f32.mrb[0].mxu0
        %v1017 = vadd.f32 %v936, %v1016
        %v1018 = vpop.f32.mrb[0].mxu0
        %1019 = vdwg.mxu0
        %v1020 = vmul.f32 %v1012, 0.35355338
        %v1021 = vmul.f32 %v1017, 0.35355338
        %1026 = vrot.lane.b32.xlu0 %v927, 96
        %v1027 = vpop.permute.xlu0 %1026
        %1028 = vrot.lane.b32.xlu0 %v928, 96
        %v1029 = vpop.permute.xlu0 %1028
        %1030 = vrot.lane.b32.xlu0 %v929, 96
        %v1031 = vpop.permute.xlu0 %1030
        %1032 = vrot.lane.b32.xlu0 %v930, 96
        %v1033 = vpop.permute.xlu0 %1032
        %1038 = vrot.lane.b32.xlu0 %v936, 96
        %v1039 = vpop.permute.xlu0 %1038
        %1041 = vmatprep.subr.mxu0 0.0
        %1042 = vmatpush1.msra.mxu0 %v1027
        %1043 = vmatprep.subr.mxu0 0.0
        %1044 = vmatpush1.msra.mxu0 %v1029
        %1045 = vmatprep.subr.mxu0 0.0
        %1046 = vmatpush1.msra.mxu0 %v1031
        %1047 = vmatprep.subr.mxu0 0.0
        %1048 = vmatpush1.msra.mxu0 %v1033
        %1049 = vmatprep.subr.mxu0 0.0
        %1050 = vmatpush1.msra.mxu0 0.0
        %1051 = vmatprep.subr.mxu0 0.0
        %1052 = vmatpush1.msra.mxu0 0.0
        %1053 = vmatprep.subr.mxu0 0.0
        %1054 = vmatpush1.msra.mxu0 0.0
        %1055 = vmatprep.subr.mxu0 0.0
        %1056 = vmatpush1.msra.mxu0 0.0
        %1057 = vmatprep.subr.mxu0 0.0
        %1058 = vmatpush1.msra.mxu0 0.0
        %1059 = vmatprep.subr.mxu0 0.0
        %1060 = vmatpush1.msra.mxu0 0.0
        %1061 = vmatprep.subr.mxu0 0.0
        %1062 = vmatpush1.msra.mxu0 0.0
        %1063 = vmatprep.subr.mxu0 0.0
        %1064 = vmatpush1.msra.mxu0 0.0
        %1065 = vmatprep.subr.mxu0 0.0
        %1066 = vmatpush1.msra.mxu0 0.0
        %1067 = vmatprep.subr.mxu0 0.0
        %1068 = vmatpush1.msra.mxu0 0.0
        %1069 = vmatprep.subr.mxu0 0.0
        %1070 = vmatpush1.msra.mxu0 0.0
        %1071 = vmatprep.subr.mxu0 0.0
        %1072 = vmatpush1.msra.mxu0 0.0
        %1073 = vmatprep.subr.mxu0 0.0
        %1074 = vmatpush1.msra.mxu0 0.0
        %1075 = vmatprep.subr.mxu0 0.0
        %1076 = vmatpush1.msra.mxu0 0.0
        %1077 = vmatprep.subr.mxu0 0.0
        %1078 = vmatpush1.msra.mxu0 0.0
        %1079 = vmatprep.subr.mxu0 0.0
        %1080 = vmatpush1.msra.mxu0 0.0
        %1081 = vmatprep.subr.mxu0 0.0
        %1082 = vmatpush1.msra.mxu0 0.0
        %1083 = vmatprep.subr.mxu0 0.0
        %1084 = vmatpush1.msra.mxu0 0.0
        %1085 = vmatprep.subr.mxu0 0.0
        %1086 = vmatpush1.msra.mxu0 0.0
        %1087 = vmatprep.subr.mxu0 0.0
        %1088 = vmatpush1.msra.mxu0 0.0
        %1089 = vmatprep.subr.mxu0 0.0
        %1090 = vmatpush1.msra.mxu0 0.0
        %1091 = vmatprep.subr.mxu0 0.0
        %1092 = vmatpush1.msra.mxu0 0.0
        %1093 = vmatprep.subr.mxu0 0.0
        %1094 = vmatpush1.msra.mxu0 0.0
        %1095 = vmatprep.subr.mxu0 0.0
        %1096 = vmatpush1.msra.mxu0 0.0
        %1097 = vmatprep.subr.mxu0 0.0
        %1098 = vmatpush1.msra.mxu0 0.0
        %1099 = vmatprep.subr.mxu0 0.0
        %1100 = vmatpush1.msra.mxu0 0.0
        %1101 = vmatprep.subr.mxu0 0.0
        %1102 = vmatpush1.msra.mxu0 0.0
        %1103 = vmatprep.subr.mxu0 0.0
        %1104 = vmatpush1.msra.mxu0 0.0
        %1105 = vmatprep.mubr.f32.mxu0 0.0
        %1106 = vmatmul.mubr.f32.gmra.mrb[0].mxu0 %v940
        %v1107 = vpop.f32.mrb[0].mxu0
        %v1108 = vadd.f32 %v1039, %v1107
        %v1109 = vpop.f32.mrb[0].mxu0
        %1110 = vmatprep.mubr.f32.mxu0 0.0
        %1111 = vmatmul.mubr.f32.gmra.mrb[0].mxu0 %v943
        %v1112 = vpop.f32.mrb[0].mxu0
        %v1113 = vadd.f32 %v1039, %v1112
        %v1114 = vpop.f32.mrb[0].mxu0
        %1115 = vdwg.mxu0
        %1116 = vrot.lane.b32.xlu0 %v927, 64
        %v1117 = vpop.permute.xlu0 %1116
        %1118 = vrot.lane.b32.xlu0 %v928, 64
        %v1119 = vpop.permute.xlu0 %1118
        %1120 = vrot.lane.b32.xlu0 %v929, 64
        %v1121 = vpop.permute.xlu0 %1120
        %1122 = vrot.lane.b32.xlu0 %v930, 64
        %v1123 = vpop.permute.xlu0 %1122
        %1128 = vrot.lane.b32.xlu0 %v936, 64
        %v1129 = vpop.permute.xlu0 %1128
        %1131 = vmatprep.subr.mxu0 0.0
        %1132 = vmatpush1.msra.mxu0 %v1117
        %1133 = vmatprep.subr.mxu0 0.0
        %1134 = vmatpush1.msra.mxu0 %v1119
        %1135 = vmatprep.subr.mxu0 0.0
        %1136 = vmatpush1.msra.mxu0 %v1121
        %1137 = vmatprep.subr.mxu0 0.0
        %1138 = vmatpush1.msra.mxu0 %v1123
        %1139 = vmatprep.subr.mxu0 0.0
        %1140 = vmatpush1.msra.mxu0 0.0
        %1141 = vmatprep.subr.mxu0 0.0
        %1142 = vmatpush1.msra.mxu0 0.0
        %1143 = vmatprep.subr.mxu0 0.0
        %1144 = vmatpush1.msra.mxu0 0.0
        %1145 = vmatprep.subr.mxu0 0.0
        %1146 = vmatpush1.msra.mxu0 0.0
        %1147 = vmatprep.subr.mxu0 0.0
        %1148 = vmatpush1.msra.mxu0 0.0
        %1149 = vmatprep.subr.mxu0 0.0
        %1150 = vmatpush1.msra.mxu0 0.0
        %1151 = vmatprep.subr.mxu0 0.0
        %1152 = vmatpush1.msra.mxu0 0.0
        %1153 = vmatprep.subr.mxu0 0.0
        %1154 = vmatpush1.msra.mxu0 0.0
        %1155 = vmatprep.subr.mxu0 0.0
        %1156 = vmatpush1.msra.mxu0 0.0
        %1157 = vmatprep.subr.mxu0 0.0
        %1158 = vmatpush1.msra.mxu0 0.0
        %1159 = vmatprep.subr.mxu0 0.0
        %1160 = vmatpush1.msra.mxu0 0.0
        %1161 = vmatprep.subr.mxu0 0.0
        %1162 = vmatpush1.msra.mxu0 0.0
        %1163 = vmatprep.subr.mxu0 0.0
        %1164 = vmatpush1.msra.mxu0 0.0
        %1165 = vmatprep.subr.mxu0 0.0
        %1166 = vmatpush1.msra.mxu0 0.0
        %1167 = vmatprep.subr.mxu0 0.0
        %1168 = vmatpush1.msra.mxu0 0.0
        %1169 = vmatprep.subr.mxu0 0.0
        %1170 = vmatpush1.msra.mxu0 0.0
        %1171 = vmatprep.subr.mxu0 0.0
        %1172 = vmatpush1.msra.mxu0 0.0
        %1173 = vmatprep.subr.mxu0 0.0
        %1174 = vmatpush1.msra.mxu0 0.0
        %1175 = vmatprep.subr.mxu0 0.0
        %1176 = vmatpush1.msra.mxu0 0.0
        %1177 = vmatprep.subr.mxu0 0.0
        %1178 = vmatpush1.msra.mxu0 0.0
        %1179 = vmatprep.subr.mxu0 0.0
        %1180 = vmatpush1.msra.mxu0 0.0
        %1181 = vmatprep.subr.mxu0 0.0
        %1182 = vmatpush1.msra.mxu0 0.0
        %1183 = vmatprep.subr.mxu0 0.0
        %1184 = vmatpush1.msra.mxu0 0.0
        %1185 = vmatprep.subr.mxu0 0.0
        %1186 = vmatpush1.msra.mxu0 0.0
        %1187 = vmatprep.subr.mxu0 0.0
        %1188 = vmatpush1.msra.mxu0 0.0
        %1189 = vmatprep.subr.mxu0 0.0
        %1190 = vmatpush1.msra.mxu0 0.0
        %1191 = vmatprep.subr.mxu0 0.0
        %1192 = vmatpush1.msra.mxu0 0.0
        %1193 = vmatprep.subr.mxu0 0.0
        %1194 = vmatpush1.msra.mxu0 0.0
        %1195 = vmatprep.mubr.f32.mxu0 0.0
        %1196 = vmatmul.mubr.f32.gmra.mrb[0].mxu0 %v940
        %v1197 = vpop.f32.mrb[0].mxu0
        %v1198 = vadd.f32 %v1129, %v1197
        %v1199 = vpop.f32.mrb[0].mxu0
        %1200 = vmatprep.mubr.f32.mxu0 0.0
        %1201 = vmatmul.mubr.f32.gmra.mrb[0].mxu0 %v943
        %v1202 = vpop.f32.mrb[0].mxu0
        %v1203 = vadd.f32 %v1129, %v1202
        %v1204 = vpop.f32.mrb[0].mxu0
        %1205 = vdwg.mxu0
        %vm1206 = vcmask 64512
        %v1208 = vsel %vm1206, %v1020, 0
        %v1211 = vsel %vm1206, %v1021, 0
        %v1214 = vsel %vm1206, %v1108, 0
        %v1217 = vsel %vm1206, %v1113, 0
        %1219 = vmatprep.subr.mxu0 0.0
        %1220 = vmatpush1.xpose.msra.mxu0 %v1214
        %1221 = vmatprep.subr.mxu0 0.0
        %1222 = vmatpush1.xpose.msra.mxu0 %v1217
        %1223 = vmatprep.subr.mxu0 0.0
        %1224 = vmatpush1.xpose.msra.mxu0 0.0
        %1225 = vmatprep.subr.mxu0 0.0
        %1226 = vmatpush1.xpose.msra.mxu0 0.0
        %1227 = vmatprep.subr.mxu0 0.0
        %1228 = vmatpush1.xpose.msra.mxu0 0.0
        %1229 = vmatprep.subr.mxu0 0.0
        %1230 = vmatpush1.xpose.msra.mxu0 0.0
        %1231 = vmatprep.subr.mxu0 0.0
        %1232 = vmatpush1.xpose.msra.mxu0 0.0
        %1233 = vmatprep.subr.mxu0 0.0
        %1234 = vmatpush1.xpose.msra.mxu0 0.0
        %1235 = vmatprep.subr.mxu0 0.0
        %1236 = vmatpush1.xpose.msra.mxu0 0.0
        %1237 = vmatprep.subr.mxu0 0.0
        %1238 = vmatpush1.xpose.msra.mxu0 0.0
        %1239 = vmatprep.subr.mxu0 0.0
        %1240 = vmatpush1.xpose.msra.mxu0 0.0
        %1241 = vmatprep.subr.mxu0 0.0
        %1242 = vmatpush1.xpose.msra.mxu0 0.0
        %1243 = vmatprep.subr.mxu0 0.0
        %1244 = vmatpush1.xpose.msra.mxu0 0.0
        %1245 = vmatprep.subr.mxu0 0.0
        %1246 = vmatpush1.xpose.msra.mxu0 0.0
        %1247 = vmatprep.subr.mxu0 0.0
        %1248 = vmatpush1.xpose.msra.mxu0 0.0
        %1249 = vmatprep.subr.mxu0 0.0
        %1250 = vmatpush1.xpose.msra.mxu0 0.0
        %1251 = vmatprep.subr.mxu0 0.0
        %1252 = vmatpush1.xpose.msra.mxu0 0.0
        %1253 = vmatprep.subr.mxu0 0.0
        %1254 = vmatpush1.xpose.msra.mxu0 0.0
        %1255 = vmatprep.subr.mxu0 0.0
        %1256 = vmatpush1.xpose.msra.mxu0 0.0
        %1257 = vmatprep.subr.mxu0 0.0
        %1258 = vmatpush1.xpose.msra.mxu0 0.0
        %1259 = vmatprep.subr.mxu0 0.0
        %1260 = vmatpush1.xpose.msra.mxu0 0.0
        %1261 = vmatprep.subr.mxu0 0.0
        %1262 = vmatpush1.xpose.msra.mxu0 0.0
        %1263 = vmatprep.subr.mxu0 0.0
        %1264 = vmatpush1.xpose.msra.mxu0 0.0
        %1265 = vmatprep.subr.mxu0 0.0
        %1266 = vmatpush1.xpose.msra.mxu0 0.0
        %1267 = vmatprep.subr.mxu0 0.0
        %1268 = vmatpush1.xpose.msra.mxu0 0.0
        %1269 = vmatprep.subr.mxu0 0.0
        %1270 = vmatpush1.xpose.msra.mxu0 0.0
        %1271 = vmatprep.subr.mxu0 0.0
        %1272 = vmatpush1.xpose.msra.mxu0 0.0
        %1273 = vmatprep.subr.mxu0 0.0
        %1274 = vmatpush1.xpose.msra.mxu0 0.0
        %1275 = vmatprep.subr.mxu0 0.0
        %1276 = vmatpush1.xpose.msra.mxu0 0.0
        %1277 = vmatprep.subr.mxu0 0.0
        %1278 = vmatpush1.xpose.msra.mxu0 0.0
        %1279 = vmatprep.subr.mxu0 0.0
        %1280 = vmatpush1.xpose.msra.mxu0 0.0
        %1281 = vmatprep.subr.mxu0 0.0
        %1282 = vmatpush1.xpose.msra.mxu0 0.0
        %1283 = vmatprep.mubr.f32.mxu0 0.0
        %1284 = vmatmul.mubr.f32.gmra.mrb[0].mxu0 %v1208
        %v1285 = vpop.f32.mrb[0].mxu0
        %v1286 = vadd.f32 0.0, %v1285
        %v1287 = vpop.f32.mrb[0].mxu0
        %1288 = vmatprep.mubr.f32.mxu0 0.0
        %1289 = vmatmul.mubr.f32.gmra.mrb[0].mxu0 %v1211
        %v1290 = vpop.f32.mrb[0].mxu0
        %v1291 = vadd.f32 0.0, %v1290
        %v1292 = vpop.f32.mrb[0].mxu0
        %1293 = vdwg.mxu0
        %vm1294 = vcmp.eq.f32.partialorder %v925, 0.0
        %v1295 = vsel %vm1294, 1, 0
        %v1296 = vlaneseq
        %v1297 = vshrl.u32 %v1296, 7
        %v1298 = vsub.s32 0, %v1297
        %v1299 = vrot.slane %v1295, %v1298
        %vm1300 = vcmp.eq.s32.totalorder %v1299, 1
        %v1301 = vsel %vm1300, -1e+30, %v1286
        %v1302 = vsel %vm1300, -1e+30, %v1291
        %vm1303 = vcmask 130048
        %v1304 = vsel %vm1303, %v1301, -inf
        %1305 = vmax.xlane.f32.xlu0 %v1304
        %v1306 = vpop.xlane.xlu0 %1305
        %v1307 = vsel %vm1303, %v1302, -inf
        %1308 = vmax.xlane.f32.xlu0 %v1307
        %v1309 = vpop.xlane.xlu0 %1308
        %v1310 = vsub.f32 %v1301, %v1306
        %v1311 = vsub.f32 %v1302, %v1309
        %v1312 = vmul.f32 %v1310, 1.442695
        %v1313 = vpow.pop %v1312
        %v1314 = vmul.f32 %v1311, 1.442695
        %v1315 = vpow.pop %v1314
        %v1316 = vsel %vm1303, %v1313, 0.0
        %1317 = vadd.xlane.f32.xlu0 %v1316
        %v1318 = vpop.xlane.xlu0 %1317
        %v1319 = vsel %vm1303, %v1315, 0.0
        %1320 = vadd.xlane.f32.xlu0 %v1319
        %v1321 = vpop.xlane.xlu0 %1320
        %v1322 = vrcp.pop %v1318
        %v1323 = vrcp.pop %v1321
        %v1324 = vmul.f32 %v1313, %v1322
        %v1325 = vmul.f32 %v1315, %v1323
        %v1327 = vsel %vm1303, %v1324, 0
        %v1330 = vsel %vm1303, %v1325, 0
        %1332 = vmatprep.subr.mxu0 0.0
        %1333 = vmatpush1.msra.mxu0 %v1198
        %1334 = vmatprep.subr.mxu0 0.0
        %1335 = vmatpush1.msra.mxu0 %v1203
        %1336 = vmatprep.subr.mxu0 0.0
        %1337 = vmatpush1.msra.mxu0 0.0
        %1338 = vmatprep.subr.mxu0 0.0
        %1339 = vmatpush1.msra.mxu0 0.0
        %1340 = vmatprep.subr.mxu0 0.0
        %1341 = vmatpush1.msra.mxu0 0.0
        %1342 = vmatprep.subr.mxu0 0.0
        %1343 = vmatpush1.msra.mxu0 0.0
        %1344 = vmatprep.subr.mxu0 0.0
        %1345 = vmatpush1.msra.mxu0 0.0
        %1346 = vmatprep.subr.mxu0 0.0
        %1347 = vmatpush1.msra.mxu0 0.0
        %1348 = vmatprep.subr.mxu0 0.0
        %1349 = vmatpush1.msra.mxu0 0.0
        %1350 = vmatprep.subr.mxu0 0.0
        %1351 = vmatpush1.msra.mxu0 0.0
        %1352 = vmatprep.subr.mxu0 0.0
        %1353 = vmatpush1.msra.mxu0 0.0
        %1354 = vmatprep.subr.mxu0 0.0
        %1355 = vmatpush1.msra.mxu0 0.0
        %1356 = vmatprep.subr.mxu0 0.0
        %1357 = vmatpush1.msra.mxu0 0.0
        %1358 = vmatprep.subr.mxu0 0.0
        %1359 = vmatpush1.msra.mxu0 0.0
        %1360 = vmatprep.subr.mxu0 0.0
        %1361 = vmatpush1.msra.mxu0 0.0
        %1362 = vmatprep.subr.mxu0 0.0
        %1363 = vmatpush1.msra.mxu0 0.0
        %1364 = vmatprep.subr.mxu0 0.0
        %1365 = vmatpush1.msra.mxu0 0.0
        %1366 = vmatprep.subr.mxu0 0.0
        %1367 = vmatpush1.msra.mxu0 0.0
        %1368 = vmatprep.subr.mxu0 0.0
        %1369 = vmatpush1.msra.mxu0 0.0
        %1370 = vmatprep.subr.mxu0 0.0
        %1371 = vmatpush1.msra.mxu0 0.0
        %1372 = vmatprep.subr.mxu0 0.0
        %1373 = vmatpush1.msra.mxu0 0.0
        %1374 = vmatprep.subr.mxu0 0.0
        %1375 = vmatpush1.msra.mxu0 0.0
        %1376 = vmatprep.subr.mxu0 0.0
        %1377 = vmatpush1.msra.mxu0 0.0
        %1378 = vmatprep.subr.mxu0 0.0
        %1379 = vmatpush1.msra.mxu0 0.0
        %1380 = vmatprep.subr.mxu0 0.0
        %1381 = vmatpush1.msra.mxu0 0.0
        %1382 = vmatprep.subr.mxu0 0.0
        %1383 = vmatpush1.msra.mxu0 0.0
        %1384 = vmatprep.subr.mxu0 0.0
        %1385 = vmatpush1.msra.mxu0 0.0
        %1386 = vmatprep.subr.mxu0 0.0
        %1387 = vmatpush1.msra.mxu0 0.0
        %1388 = vmatprep.subr.mxu0 0.0
        %1389 = vmatpush1.msra.mxu0 0.0
        %1390 = vmatprep.subr.mxu0 0.0
        %1391 = vmatpush1.msra.mxu0 0.0
        %1392 = vmatprep.subr.mxu0 0.0
        %1393 = vmatpush1.msra.mxu0 0.0
        %1394 = vmatprep.subr.mxu0 0.0
        %1395 = vmatpush1.msra.mxu0 0.0
        %1396 = vmatprep.mubr.f32.mxu0 0.0
        %1397 = vmatmul.mubr.f32.gmra.mrb[0].mxu0 %v1327
        %v1398 = vpop.f32.mrb[0].mxu0
        %v1399 = vadd.f32 0.0, %v1398
        %v1400 = vpop.f32.mrb[0].mxu0
        %1401 = vmatprep.mubr.f32.mxu0 0.0
        %1402 = vmatmul.mubr.f32.gmra.mrb[0].mxu0 %v1330
        %v1403 = vpop.f32.mrb[0].mxu0
        %v1404 = vadd.f32 0.0, %v1403
        %v1405 = vpop.f32.mrb[0].mxu0
        %1406 = vdwg.mxu0
        %1407 = vrot.lane.b32.xlu0 %v1020, 120
        %v1408 = vpop.permute.xlu0 %1407
        %1409 = vrot.lane.b32.xlu0 %v1021, 120
        %v1410 = vpop.permute.xlu0 %1409
        %1411 = vrot.lane.b32.xlu0 %v1108, 120
        %v1412 = vpop.permute.xlu0 %1411
        %1413 = vrot.lane.b32.xlu0 %v1113, 120
        %v1414 = vpop.permute.xlu0 %1413
        %v1415 = vsel %vm1206, %v1408, 0
        %v1417 = vsel %vm1206, %v1410, 0
        %v1419 = vsel %vm1206, %v1412, 0
        %v1421 = vsel %vm1206, %v1414, 0
        %1423 = vmatprep.subr.mxu0 0.0
        %1424 = vmatpush1.xpose.msra.mxu0 %v1419
        %1425 = vmatprep.subr.mxu0 0.0
        %1426 = vmatpush1.xpose.msra.mxu0 %v1421
        %1427 = vmatprep.subr.mxu0 0.0
        %1428 = vmatpush1.xpose.msra.mxu0 0.0
        %1429 = vmatprep.subr.mxu0 0.0
        %1430 = vmatpush1.xpose.msra.mxu0 0.0
        %1431 = vmatprep.subr.mxu0 0.0
        %1432 = vmatpush1.xpose.msra.mxu0 0.0
        %1433 = vmatprep.subr.mxu0 0.0
        %1434 = vmatpush1.xpose.msra.mxu0 0.0
        %1435 = vmatprep.subr.mxu0 0.0
        %1436 = vmatpush1.xpose.msra.mxu0 0.0
        %1437 = vmatprep.subr.mxu0 0.0
        %1438 = vmatpush1.xpose.msra.mxu0 0.0
        %1439 = vmatprep.subr.mxu0 0.0
        %1440 = vmatpush1.xpose.msra.mxu0 0.0
        %1441 = vmatprep.subr.mxu0 0.0
        %1442 = vmatpush1.xpose.msra.mxu0 0.0
        %1443 = vmatprep.subr.mxu0 0.0
        %1444 = vmatpush1.xpose.msra.mxu0 0.0
        %1445 = vmatprep.subr.mxu0 0.0
        %1446 = vmatpush1.xpose.msra.mxu0 0.0
        %1447 = vmatprep.subr.mxu0 0.0
        %1448 = vmatpush1.xpose.msra.mxu0 0.0
        %1449 = vmatprep.subr.mxu0 0.0
        %1450 = vmatpush1.xpose.msra.mxu0 0.0
        %1451 = vmatprep.subr.mxu0 0.0
        %1452 = vmatpush1.xpose.msra.mxu0 0.0
        %1453 = vmatprep.subr.mxu0 0.0
        %1454 = vmatpush1.xpose.msra.mxu0 0.0
        %1455 = vmatprep.subr.mxu0 0.0
        %1456 = vmatpush1.xpose.msra.mxu0 0.0
        %1457 = vmatprep.subr.mxu0 0.0
        %1458 = vmatpush1.xpose.msra.mxu0 0.0
        %1459 = vmatprep.subr.mxu0 0.0
        %1460 = vmatpush1.xpose.msra.mxu0 0.0
        %1461 = vmatprep.subr.mxu0 0.0
        %1462 = vmatpush1.xpose.msra.mxu0 0.0
        %1463 = vmatprep.subr.mxu0 0.0
        %1464 = vmatpush1.xpose.msra.mxu0 0.0
        %1465 = vmatprep.subr.mxu0 0.0
        %1466 = vmatpush1.xpose.msra.mxu0 0.0
        %1467 = vmatprep.subr.mxu0 0.0
        %1468 = vmatpush1.xpose.msra.mxu0 0.0
        %1469 = vmatprep.subr.mxu0 0.0
        %1470 = vmatpush1.xpose.msra.mxu0 0.0
        %1471 = vmatprep.subr.mxu0 0.0
        %1472 = vmatpush1.xpose.msra.mxu0 0.0
        %1473 = vmatprep.subr.mxu0 0.0
        %1474 = vmatpush1.xpose.msra.mxu0 0.0
        %1475 = vmatprep.subr.mxu0 0.0
        %1476 = vmatpush1.xpose.msra.mxu0 0.0
        %1477 = vmatprep.subr.mxu0 0.0
        %1478 = vmatpush1.xpose.msra.mxu0 0.0
        %1479 = vmatprep.subr.mxu0 0.0
        %1480 = vmatpush1.xpose.msra.mxu0 0.0
        %1481 = vmatprep.subr.mxu0 0.0
        %1482 = vmatpush1.xpose.msra.mxu0 0.0
        %1483 = vmatprep.subr.mxu0 0.0
        %1484 = vmatpush1.xpose.msra.mxu0 0.0
        %1485 = vmatprep.subr.mxu0 0.0
        %1486 = vmatpush1.xpose.msra.mxu0 0.0
        %1487 = vmatprep.mubr.f32.mxu0 0.0
        %1488 = vmatmul.mubr.f32.gmra.mrb[0].mxu0 %v1415
        %v1489 = vpop.f32.mrb[0].mxu0
        %v1490 = vadd.f32 0.0, %v1489
        %v1491 = vpop.f32.mrb[0].mxu0
        %1492 = vmatprep.mubr.f32.mxu0 0.0
        %1493 = vmatmul.mubr.f32.gmra.mrb[0].mxu0 %v1417
        %v1494 = vpop.f32.mrb[0].mxu0
        %v1495 = vadd.f32 0.0, %v1494
        %v1496 = vpop.f32.mrb[0].mxu0
        %1497 = vdwg.mxu0
        %v1498 = vsel %vm1300, -1e+30, %v1490
        %v1499 = vsel %vm1300, -1e+30, %v1495
        %v1500 = vsel %vm1303, %v1498, -inf
        %1501 = vmax.xlane.f32.xlu0 %v1500
        %v1502 = vpop.xlane.xlu0 %1501
        %v1503 = vsel %vm1303, %v1499, -inf
        %1504 = vmax.xlane.f32.xlu0 %v1503
        %v1505 = vpop.xlane.xlu0 %1504
        %v1506 = vsub.f32 %v1498, %v1502
        %v1507 = vsub.f32 %v1499, %v1505
        %v1508 = vmul.f32 %v1506, 1.442695
        %v1509 = vpow.pop %v1508
        %v1510 = vmul.f32 %v1507, 1.442695
        %v1511 = vpow.pop %v1510
        %v1512 = vsel %vm1303, %v1509, 0.0
        %1513 = vadd.xlane.f32.xlu0 %v1512
        %v1514 = vpop.xlane.xlu0 %1513
        %v1515 = vsel %vm1303, %v1511, 0.0
        %1516 = vadd.xlane.f32.xlu0 %v1515
        %v1517 = vpop.xlane.xlu0 %1516
        %v1518 = vrcp.pop %v1514
        %v1519 = vrcp.pop %v1517
        %v1520 = vmul.f32 %v1509, %v1518
        %v1521 = vmul.f32 %v1511, %v1519
        %1524 = vrot.lane.b32.xlu0 %v1198, 120
        %v1525 = vpop.permute.xlu0 %1524
        %1526 = vrot.lane.b32.xlu0 %v1203, 120
        %v1527 = vpop.permute.xlu0 %1526
        %v1531 = vsel %vm1303, %v1520, 0
        %v1534 = vsel %vm1303, %v1521, 0
        %1536 = vmatprep.subr.mxu0 0.0
        %1537 = vmatpush1.msra.mxu0 %v1525
        %1538 = vmatprep.subr.mxu0 0.0
        %1539 = vmatpush1.msra.mxu0 %v1527
        %1540 = vmatprep.subr.mxu0 0.0
        %1541 = vmatpush1.msra.mxu0 0.0
        %1542 = vmatprep.subr.mxu0 0.0
        %1543 = vmatpush1.msra.mxu0 0.0
        %1544 = vmatprep.subr.mxu0 0.0
        %1545 = vmatpush1.msra.mxu0 0.0
        %1546 = vmatprep.subr.mxu0 0.0
        %1547 = vmatpush1.msra.mxu0 0.0
        %1548 = vmatprep.subr.mxu0 0.0
        %1549 = vmatpush1.msra.mxu0 0.0
        %1550 = vmatprep.subr.mxu0 0.0
        %1551 = vmatpush1.msra.mxu0 0.0
        %1552 = vmatprep.subr.mxu0 0.0
        %1553 = vmatpush1.msra.mxu0 0.0
        %1554 = vmatprep.subr.mxu0 0.0
        %1555 = vmatpush1.msra.mxu0 0.0
        %1556 = vmatprep.subr.mxu0 0.0
        %1557 = vmatpush1.msra.mxu0 0.0
        %1558 = vmatprep.subr.mxu0 0.0
        %1559 = vmatpush1.msra.mxu0 0.0
        %1560 = vmatprep.subr.mxu0 0.0
        %1561 = vmatpush1.msra.mxu0 0.0
        %1562 = vmatprep.subr.mxu0 0.0
        %1563 = vmatpush1.msra.mxu0 0.0
        %1564 = vmatprep.subr.mxu0 0.0
        %1565 = vmatpush1.msra.mxu0 0.0
        %1566 = vmatprep.subr.mxu0 0.0
        %1567 = vmatpush1.msra.mxu0 0.0
        %1568 = vmatprep.subr.mxu0 0.0
        %1569 = vmatpush1.msra.mxu0 0.0
        %1570 = vmatprep.subr.mxu0 0.0
        %1571 = vmatpush1.msra.mxu0 0.0
        %1572 = vmatprep.subr.mxu0 0.0
        %1573 = vmatpush1.msra.mxu0 0.0
        %1574 = vmatprep.subr.mxu0 0.0
        %1575 = vmatpush1.msra.mxu0 0.0
        %1576 = vmatprep.subr.mxu0 0.0
        %1577 = vmatpush1.msra.mxu0 0.0
        %1578 = vmatprep.subr.mxu0 0.0
        %1579 = vmatpush1.msra.mxu0 0.0
        %1580 = vmatprep.subr.mxu0 0.0
        %1581 = vmatpush1.msra.mxu0 0.0
        %1582 = vmatprep.subr.mxu0 0.0
        %1583 = vmatpush1.msra.mxu0 0.0
        %1584 = vmatprep.subr.mxu0 0.0
        %1585 = vmatpush1.msra.mxu0 0.0
        %1586 = vmatprep.subr.mxu0 0.0
        %1587 = vmatpush1.msra.mxu0 0.0
        %1588 = vmatprep.subr.mxu0 0.0
        %1589 = vmatpush1.msra.mxu0 0.0
        %1590 = vmatprep.subr.mxu0 0.0
        %1591 = vmatpush1.msra.mxu0 0.0
        %1592 = vmatprep.subr.mxu0 0.0
        %1593 = vmatpush1.msra.mxu0 0.0
        %1594 = vmatprep.subr.mxu0 0.0
        %1595 = vmatpush1.msra.mxu0 0.0
        %1596 = vmatprep.subr.mxu0 0.0
        %1597 = vmatpush1.msra.mxu0 0.0
        %1598 = vmatprep.subr.mxu0 0.0
        %1599 = vmatpush1.msra.mxu0 0.0
        %1600 = vmatprep.mubr.f32.mxu0 0.0
        %1601 = vmatmul.mubr.f32.gmra.mrb[0].mxu0 %v1531
        %v1602 = vpop.f32.mrb[0].mxu0
        %v1603 = vadd.f32 0.0, %v1602
        %v1604 = vpop.f32.mrb[0].mxu0
        %1605 = vmatprep.mubr.f32.mxu0 0.0
        %1606 = vmatmul.mubr.f32.gmra.mrb[0].mxu0 %v1534
        %v1607 = vpop.f32.mrb[0].mxu0
        %v1608 = vadd.f32 0.0, %v1607
        %v1609 = vpop.f32.mrb[0].mxu0
        %1610 = vdwg.mxu0
        %1611 = vrot.lane.b32.xlu0 %v1020, 112
        %v1612 = vpop.permute.xlu0 %1611
        %1613 = vrot.lane.b32.xlu0 %v1021, 112
        %v1614 = vpop.permute.xlu0 %1613
        %1615 = vrot.lane.b32.xlu0 %v1108, 112
        %v1616 = vpop.permute.xlu0 %1615
        %1617 = vrot.lane.b32.xlu0 %v1113, 112
        %v1618 = vpop.permute.xlu0 %1617
        %v1619 = vsel %vm1206, %v1612, 0
        %v1621 = vsel %vm1206, %v1614, 0
        %v1623 = vsel %vm1206, %v1616, 0
        %v1625 = vsel %vm1206, %v1618, 0
        %1627 = vmatprep.subr.mxu0 0.0
        %1628 = vmatpush1.xpose.msra.mxu0 %v1623
        %1629 = vmatprep.subr.mxu0 0.0
        %1630 = vmatpush1.xpose.msra.mxu0 %v1625
        %1631 = vmatprep.subr.mxu0 0.0
        %1632 = vmatpush1.xpose.msra.mxu0 0.0
        %1633 = vmatprep.subr.mxu0 0.0
        %1634 = vmatpush1.xpose.msra.mxu0 0.0
        %1635 = vmatprep.subr.mxu0 0.0
        %1636 = vmatpush1.xpose.msra.mxu0 0.0
        %1637 = vmatprep.subr.mxu0 0.0
        %1638 = vmatpush1.xpose.msra.mxu0 0.0
        %1639 = vmatprep.subr.mxu0 0.0
        %1640 = vmatpush1.xpose.msra.mxu0 0.0
        %1641 = vmatprep.subr.mxu0 0.0
        %1642 = vmatpush1.xpose.msra.mxu0 0.0
        %1643 = vmatprep.subr.mxu0 0.0
        %1644 = vmatpush1.xpose.msra.mxu0 0.0
        %1645 = vmatprep.subr.mxu0 0.0
        %1646 = vmatpush1.xpose.msra.mxu0 0.0
        %1647 = vmatprep.subr.mxu0 0.0
        %1648 = vmatpush1.xpose.msra.mxu0 0.0
        %1649 = vmatprep.subr.mxu0 0.0
        %1650 = vmatpush1.xpose.msra.mxu0 0.0
        %1651 = vmatprep.subr.mxu0 0.0
        %1652 = vmatpush1.xpose.msra.mxu0 0.0
        %1653 = vmatprep.subr.mxu0 0.0
        %1654 = vmatpush1.xpose.msra.mxu0 0.0
        %1655 = vmatprep.subr.mxu0 0.0
        %1656 = vmatpush1.xpose.msra.mxu0 0.0
        %1657 = vmatprep.subr.mxu0 0.0
        %1658 = vmatpush1.xpose.msra.mxu0 0.0
        %1659 = vmatprep.subr.mxu0 0.0
        %1660 = vmatpush1.xpose.msra.mxu0 0.0
        %1661 = vmatprep.subr.mxu0 0.0
        %1662 = vmatpush1.xpose.msra.mxu0 0.0
        %1663 = vmatprep.subr.mxu0 0.0
        %1664 = vmatpush1.xpose.msra.mxu0 0.0
        %1665 = vmatprep.subr.mxu0 0.0
        %1666 = vmatpush1.xpose.msra.mxu0 0.0
        %1667 = vmatprep.subr.mxu0 0.0
        %1668 = vmatpush1.xpose.msra.mxu0 0.0
        %1669 = vmatprep.subr.mxu0 0.0
        %1670 = vmatpush1.xpose.msra.mxu0 0.0
        %1671 = vmatprep.subr.mxu0 0.0
        %1672 = vmatpush1.xpose.msra.mxu0 0.0
        %1673 = vmatprep.subr.mxu0 0.0
        %1674 = vmatpush1.xpose.msra.mxu0 0.0
        %1675 = vmatprep.subr.mxu0 0.0
        %1676 = vmatpush1.xpose.msra.mxu0 0.0
        %1677 = vmatprep.subr.mxu0 0.0
        %1678 = vmatpush1.xpose.msra.mxu0 0.0
        %1679 = vmatprep.subr.mxu0 0.0
        %1680 = vmatpush1.xpose.msra.mxu0 0.0
        %1681 = vmatprep.subr.mxu0 0.0
        %1682 = vmatpush1.xpose.msra.mxu0 0.0
        %1683 = vmatprep.subr.mxu0 0.0
        %1684 = vmatpush1.xpose.msra.mxu0 0.0
        %1685 = vmatprep.subr.mxu0 0.0
        %1686 = vmatpush1.xpose.msra.mxu0 0.0
        %1687 = vmatprep.subr.mxu0 0.0
        %1688 = vmatpush1.xpose.msra.mxu0 0.0
        %1689 = vmatprep.subr.mxu0 0.0
        %1690 = vmatpush1.xpose.msra.mxu0 0.0
        %1691 = vmatprep.mubr.f32.mxu0 0.0
        %1692 = vmatmul.mubr.f32.gmra.mrb[0].mxu0 %v1619
        %v1693 = vpop.f32.mrb[0].mxu0
        %v1694 = vadd.f32 0.0, %v1693
        %v1695 = vpop.f32.mrb[0].mxu0
        %1696 = vmatprep.mubr.f32.mxu0 0.0
        %1697 = vmatmul.mubr.f32.gmra.mrb[0].mxu0 %v1621
        %v1698 = vpop.f32.mrb[0].mxu0
        %v1699 = vadd.f32 0.0, %v1698
        %v1700 = vpop.f32.mrb[0].mxu0
        %1701 = vdwg.mxu0
        %v1702 = vsel %vm1300, -1e+30, %v1694
        %v1703 = vsel %vm1300, -1e+30, %v1699
        %v1704 = vsel %vm1303, %v1702, -inf
        %1705 = vmax.xlane.f32.xlu0 %v1704
        %v1706 = vpop.xlane.xlu0 %1705
        %v1707 = vsel %vm1303, %v1703, -inf
        %1708 = vmax.xlane.f32.xlu0 %v1707
        %v1709 = vpop.xlane.xlu0 %1708
        %v1710 = vsub.f32 %v1702, %v1706
        %v1711 = vsub.f32 %v1703, %v1709
        %v1712 = vmul.f32 %v1710, 1.442695
        %v1713 = vpow.pop %v1712
        %v1714 = vmul.f32 %v1711, 1.442695
        %v1715 = vpow.pop %v1714
        %v1716 = vsel %vm1303, %v1713, 0.0
        %1717 = vadd.xlane.f32.xlu0 %v1716
        %v1718 = vpop.xlane.xlu0 %1717
        %v1719 = vsel %vm1303, %v1715, 0.0
        %1720 = vadd.xlane.f32.xlu0 %v1719
        %v1721 = vpop.xlane.xlu0 %1720
        %v1722 = vrcp.pop %v1718
        %v1723 = vrcp.pop %v1721
        %v1724 = vmul.f32 %v1713, %v1722
        %v1725 = vmul.f32 %v1715, %v1723
        %1726 = vrot.lane.b32.xlu0 %v1198, 112
        %v1727 = vpop.permute.xlu0 %1726
        %1728 = vrot.lane.b32.xlu0 %v1203, 112
        %v1729 = vpop.permute.xlu0 %1728
        %v1733 = vsel %vm1303, %v1724, 0
        %v1736 = vsel %vm1303, %v1725, 0
        %1738 = vmatprep.subr.mxu0 0.0
        %1739 = vmatpush1.msra.mxu0 %v1727
        %1740 = vmatprep.subr.mxu0 0.0
        %1741 = vmatpush1.msra.mxu0 %v1729
        %1742 = vmatprep.subr.mxu0 0.0
        %1743 = vmatpush1.msra.mxu0 0.0
        %1744 = vmatprep.subr.mxu0 0.0
        %1745 = vmatpush1.msra.mxu0 0.0
        %1746 = vmatprep.subr.mxu0 0.0
        %1747 = vmatpush1.msra.mxu0 0.0
        %1748 = vmatprep.subr.mxu0 0.0
        %1749 = vmatpush1.msra.mxu0 0.0
        %1750 = vmatprep.subr.mxu0 0.0
        %1751 = vmatpush1.msra.mxu0 0.0
        %1752 = vmatprep.subr.mxu0 0.0
        %1753 = vmatpush1.msra.mxu0 0.0
        %1754 = vmatprep.subr.mxu0 0.0
        %1755 = vmatpush1.msra.mxu0 0.0
        %1756 = vmatprep.subr.mxu0 0.0
        %1757 = vmatpush1.msra.mxu0 0.0
        %1758 = vmatprep.subr.mxu0 0.0
        %1759 = vmatpush1.msra.mxu0 0.0
        %1760 = vmatprep.subr.mxu0 0.0
        %1761 = vmatpush1.msra.mxu0 0.0
        %1762 = vmatprep.subr.mxu0 0.0
        %1763 = vmatpush1.msra.mxu0 0.0
        %1764 = vmatprep.subr.mxu0 0.0
        %1765 = vmatpush1.msra.mxu0 0.0
        %1766 = vmatprep.subr.mxu0 0.0
        %1767 = vmatpush1.msra.mxu0 0.0
        %1768 = vmatprep.subr.mxu0 0.0
        %1769 = vmatpush1.msra.mxu0 0.0
        %1770 = vmatprep.subr.mxu0 0.0
        %1771 = vmatpush1.msra.mxu0 0.0
        %1772 = vmatprep.subr.mxu0 0.0
        %1773 = vmatpush1.msra.mxu0 0.0
        %1774 = vmatprep.subr.mxu0 0.0
        %1775 = vmatpush1.msra.mxu0 0.0
        %1776 = vmatprep.subr.mxu0 0.0
        %1777 = vmatpush1.msra.mxu0 0.0
        %1778 = vmatprep.subr.mxu0 0.0
        %1779 = vmatpush1.msra.mxu0 0.0
        %1780 = vmatprep.subr.mxu0 0.0
        %1781 = vmatpush1.msra.mxu0 0.0
        %1782 = vmatprep.subr.mxu0 0.0
        %1783 = vmatpush1.msra.mxu0 0.0
        %1784 = vmatprep.subr.mxu0 0.0
        %1785 = vmatpush1.msra.mxu0 0.0
        %1786 = vmatprep.subr.mxu0 0.0
        %1787 = vmatpush1.msra.mxu0 0.0
        %1788 = vmatprep.subr.mxu0 0.0
        %1789 = vmatpush1.msra.mxu0 0.0
        %1790 = vmatprep.subr.mxu0 0.0
        %1791 = vmatpush1.msra.mxu0 0.0
        %1792 = vmatprep.subr.mxu0 0.0
        %1793 = vmatpush1.msra.mxu0 0.0
        %1794 = vmatprep.subr.mxu0 0.0
        %1795 = vmatpush1.msra.mxu0 0.0
        %1796 = vmatprep.subr.mxu0 0.0
        %1797 = vmatpush1.msra.mxu0 0.0
        %1798 = vmatprep.subr.mxu0 0.0
        %1799 = vmatpush1.msra.mxu0 0.0
        %1800 = vmatprep.subr.mxu0 0.0
        %1801 = vmatpush1.msra.mxu0 0.0
        %1802 = vmatprep.mubr.f32.mxu0 0.0
        %1803 = vmatmul.mubr.f32.gmra.mrb[0].mxu0 %v1733
        %v1804 = vpop.f32.mrb[0].mxu0
        %v1805 = vadd.f32 0.0, %v1804
        %v1806 = vpop.f32.mrb[0].mxu0
        %1807 = vmatprep.mubr.f32.mxu0 0.0
        %1808 = vmatmul.mubr.f32.gmra.mrb[0].mxu0 %v1736
        %v1809 = vpop.f32.mrb[0].mxu0
        %v1810 = vadd.f32 0.0, %v1809
        %v1811 = vpop.f32.mrb[0].mxu0
        %1812 = vdwg.mxu0
        %1813 = vrot.lane.b32.xlu0 %v1020, 104
        %v1814 = vpop.permute.xlu0 %1813
        %1815 = vrot.lane.b32.xlu0 %v1021, 104
        %v1816 = vpop.permute.xlu0 %1815
        %1817 = vrot.lane.b32.xlu0 %v1108, 104
        %v1818 = vpop.permute.xlu0 %1817
        %1819 = vrot.lane.b32.xlu0 %v1113, 104
        %v1820 = vpop.permute.xlu0 %1819
        %v1821 = vsel %vm1206, %v1814, 0
        %v1823 = vsel %vm1206, %v1816, 0
        %v1825 = vsel %vm1206, %v1818, 0
        %v1827 = vsel %vm1206, %v1820, 0
        %1829 = vmatprep.subr.mxu0 0.0
        %1830 = vmatpush1.xpose.msra.mxu0 %v1825
        %1831 = vmatprep.subr.mxu0 0.0
        %1832 = vmatpush1.xpose.msra.mxu0 %v1827
        %1833 = vmatprep.subr.mxu0 0.0
        %1834 = vmatpush1.xpose.msra.mxu0 0.0
        %1835 = vmatprep.subr.mxu0 0.0
        %1836 = vmatpush1.xpose.msra.mxu0 0.0
        %1837 = vmatprep.subr.mxu0 0.0
        %1838 = vmatpush1.xpose.msra.mxu0 0.0
        %1839 = vmatprep.subr.mxu0 0.0
        %1840 = vmatpush1.xpose.msra.mxu0 0.0
        %1841 = vmatprep.subr.mxu0 0.0
        %1842 = vmatpush1.xpose.msra.mxu0 0.0
        %1843 = vmatprep.subr.mxu0 0.0
        %1844 = vmatpush1.xpose.msra.mxu0 0.0
        %1845 = vmatprep.subr.mxu0 0.0
        %1846 = vmatpush1.xpose.msra.mxu0 0.0
        %1847 = vmatprep.subr.mxu0 0.0
        %1848 = vmatpush1.xpose.msra.mxu0 0.0
        %1849 = vmatprep.subr.mxu0 0.0
        %1850 = vmatpush1.xpose.msra.mxu0 0.0
        %1851 = vmatprep.subr.mxu0 0.0
        %1852 = vmatpush1.xpose.msra.mxu0 0.0
        %1853 = vmatprep.subr.mxu0 0.0
        %1854 = vmatpush1.xpose.msra.mxu0 0.0
        %1855 = vmatprep.subr.mxu0 0.0
        %1856 = vmatpush1.xpose.msra.mxu0 0.0
        %1857 = vmatprep.subr.mxu0 0.0
        %1858 = vmatpush1.xpose.msra.mxu0 0.0
        %1859 = vmatprep.subr.mxu0 0.0
        %1860 = vmatpush1.xpose.msra.mxu0 0.0
        %1861 = vmatprep.subr.mxu0 0.0
        %1862 = vmatpush1.xpose.msra.mxu0 0.0
        %1863 = vmatprep.subr.mxu0 0.0
        %1864 = vmatpush1.xpose.msra.mxu0 0.0
        %1865 = vmatprep.subr.mxu0 0.0
        %1866 = vmatpush1.xpose.msra.mxu0 0.0
        %1867 = vmatprep.subr.mxu0 0.0
        %1868 = vmatpush1.xpose.msra.mxu0 0.0
        %1869 = vmatprep.subr.mxu0 0.0
        %1870 = vmatpush1.xpose.msra.mxu0 0.0
        %1871 = vmatprep.subr.mxu0 0.0
        %1872 = vmatpush1.xpose.msra.mxu0 0.0
        %1873 = vmatprep.subr.mxu0 0.0
        %1874 = vmatpush1.xpose.msra.mxu0 0.0
        %1875 = vmatprep.subr.mxu0 0.0
        %1876 = vmatpush1.xpose.msra.mxu0 0.0
        %1877 = vmatprep.subr.mxu0 0.0
        %1878 = vmatpush1.xpose.msra.mxu0 0.0
        %1879 = vmatprep.subr.mxu0 0.0
        %1880 = vmatpush1.xpose.msra.mxu0 0.0
        %1881 = vmatprep.subr.mxu0 0.0
        %1882 = vmatpush1.xpose.msra.mxu0 0.0
        %1883 = vmatprep.subr.mxu0 0.0
        %1884 = vmatpush1.xpose.msra.mxu0 0.0
        %1885 = vmatprep.subr.mxu0 0.0
        %1886 = vmatpush1.xpose.msra.mxu0 0.0
        %1887 = vmatprep.subr.mxu0 0.0
        %1888 = vmatpush1.xpose.msra.mxu0 0.0
        %1889 = vmatprep.subr.mxu0 0.0
        %1890 = vmatpush1.xpose.msra.mxu0 0.0
        %1891 = vmatprep.subr.mxu0 0.0
        %1892 = vmatpush1.xpose.msra.mxu0 0.0
        %1893 = vmatprep.mubr.f32.mxu0 0.0
        %1894 = vmatmul.mubr.f32.gmra.mrb[0].mxu0 %v1821
        %v1895 = vpop.f32.mrb[0].mxu0
        %v1896 = vadd.f32 0.0, %v1895
        %v1897 = vpop.f32.mrb[0].mxu0
        %1898 = vmatprep.mubr.f32.mxu0 0.0
        %1899 = vmatmul.mubr.f32.gmra.mrb[0].mxu0 %v1823
        %v1900 = vpop.f32.mrb[0].mxu0
        %v1901 = vadd.f32 0.0, %v1900
        %v1902 = vpop.f32.mrb[0].mxu0
        %1903 = vdwg.mxu0
        %v1904 = vsel %vm1300, -1e+30, %v1896
        %v1905 = vsel %vm1300, -1e+30, %v1901
        %v1906 = vsel %vm1303, %v1904, -inf
        %1907 = vmax.xlane.f32.xlu0 %v1906
        %v1908 = vpop.xlane.xlu0 %1907
        %v1909 = vsel %vm1303, %v1905, -inf
        %1910 = vmax.xlane.f32.xlu0 %v1909
        %v1911 = vpop.xlane.xlu0 %1910
        %v1912 = vsub.f32 %v1904, %v1908
        %v1913 = vsub.f32 %v1905, %v1911
        %v1914 = vmul.f32 %v1912, 1.442695
        %v1915 = vpow.pop %v1914
        %v1916 = vmul.f32 %v1913, 1.442695
        %v1917 = vpow.pop %v1916
        %v1918 = vsel %vm1303, %v1915, 0.0
        %1919 = vadd.xlane.f32.xlu0 %v1918
        %v1920 = vpop.xlane.xlu0 %1919
        %v1921 = vsel %vm1303, %v1917, 0.0
        %1922 = vadd.xlane.f32.xlu0 %v1921
        %v1923 = vpop.xlane.xlu0 %1922
        %v1924 = vrcp.pop %v1920
        %v1925 = vrcp.pop %v1923
        %v1926 = vmul.f32 %v1915, %v1924
        %v1927 = vmul.f32 %v1917, %v1925
        %1928 = vrot.lane.b32.xlu0 %v1198, 104
        %v1929 = vpop.permute.xlu0 %1928
        %1930 = vrot.lane.b32.xlu0 %v1203, 104
        %v1931 = vpop.permute.xlu0 %1930
        %v1935 = vsel %vm1303, %v1926, 0
        %v1938 = vsel %vm1303, %v1927, 0
        %1940 = vmatprep.subr.mxu0 0.0
        %1941 = vmatpush1.msra.mxu0 %v1929
        %1942 = vmatprep.subr.mxu0 0.0
        %1943 = vmatpush1.msra.mxu0 %v1931
        %1944 = vmatprep.subr.mxu0 0.0
        %1945 = vmatpush1.msra.mxu0 0.0
        %1946 = vmatprep.subr.mxu0 0.0
        %1947 = vmatpush1.msra.mxu0 0.0
        %1948 = vmatprep.subr.mxu0 0.0
        %1949 = vmatpush1.msra.mxu0 0.0
        %1950 = vmatprep.subr.mxu0 0.0
        %1951 = vmatpush1.msra.mxu0 0.0
        %1952 = vmatprep.subr.mxu0 0.0
        %1953 = vmatpush1.msra.mxu0 0.0
        %1954 = vmatprep.subr.mxu0 0.0
        %1955 = vmatpush1.msra.mxu0 0.0
        %1956 = vmatprep.subr.mxu0 0.0
        %1957 = vmatpush1.msra.mxu0 0.0
        %1958 = vmatprep.subr.mxu0 0.0
        %1959 = vmatpush1.msra.mxu0 0.0
        %1960 = vmatprep.subr.mxu0 0.0
        %1961 = vmatpush1.msra.mxu0 0.0
        %1962 = vmatprep.subr.mxu0 0.0
        %1963 = vmatpush1.msra.mxu0 0.0
        %1964 = vmatprep.subr.mxu0 0.0
        %1965 = vmatpush1.msra.mxu0 0.0
        %1966 = vmatprep.subr.mxu0 0.0
        %1967 = vmatpush1.msra.mxu0 0.0
        %1968 = vmatprep.subr.mxu0 0.0
        %1969 = vmatpush1.msra.mxu0 0.0
        %1970 = vmatprep.subr.mxu0 0.0
        %1971 = vmatpush1.msra.mxu0 0.0
        %1972 = vmatprep.subr.mxu0 0.0
        %1973 = vmatpush1.msra.mxu0 0.0
        %1974 = vmatprep.subr.mxu0 0.0
        %1975 = vmatpush1.msra.mxu0 0.0
        %1976 = vmatprep.subr.mxu0 0.0
        %1977 = vmatpush1.msra.mxu0 0.0
        %1978 = vmatprep.subr.mxu0 0.0
        %1979 = vmatpush1.msra.mxu0 0.0
        %1980 = vmatprep.subr.mxu0 0.0
        %1981 = vmatpush1.msra.mxu0 0.0
        %1982 = vmatprep.subr.mxu0 0.0
        %1983 = vmatpush1.msra.mxu0 0.0
        %1984 = vmatprep.subr.mxu0 0.0
        %1985 = vmatpush1.msra.mxu0 0.0
        %1986 = vmatprep.subr.mxu0 0.0
        %1987 = vmatpush1.msra.mxu0 0.0
        %1988 = vmatprep.subr.mxu0 0.0
        %1989 = vmatpush1.msra.mxu0 0.0
        %1990 = vmatprep.subr.mxu0 0.0
        %1991 = vmatpush1.msra.mxu0 0.0
        %1992 = vmatprep.subr.mxu0 0.0
        %1993 = vmatpush1.msra.mxu0 0.0
        %1994 = vmatprep.subr.mxu0 0.0
        %1995 = vmatpush1.msra.mxu0 0.0
        %1996 = vmatprep.subr.mxu0 0.0
        %1997 = vmatpush1.msra.mxu0 0.0
        %1998 = vmatprep.subr.mxu0 0.0
        %1999 = vmatpush1.msra.mxu0 0.0
        %2000 = vmatprep.subr.mxu0 0.0
        %2001 = vmatpush1.msra.mxu0 0.0
        %2002 = vmatprep.subr.mxu0 0.0
        %2003 = vmatpush1.msra.mxu0 0.0
        %2004 = vmatprep.mubr.f32.mxu0 0.0
        %2005 = vmatmul.mubr.f32.gmra.mrb[0].mxu0 %v1935
        %v2006 = vpop.f32.mrb[0].mxu0
        %v2007 = vadd.f32 0.0, %v2006
        %v2008 = vpop.f32.mrb[0].mxu0
        %2009 = vmatprep.mubr.f32.mxu0 0.0
        %2010 = vmatmul.mubr.f32.gmra.mrb[0].mxu0 %v1938
        %v2011 = vpop.f32.mrb[0].mxu0
        %v2012 = vadd.f32 0.0, %v2011
        %v2013 = vpop.f32.mrb[0].mxu0
        %2014 = vdwg.mxu0
        %2017 = vrot.lane.b32.xlu0 %v1603, 8
        %v2018 = vpop.permute.xlu0 %2017
        %2019 = vrot.lane.b32.xlu0 %v1608, 8
        %v2020 = vpop.permute.xlu0 %2019
        %2025 = vrot.lane.b32.xlu0 %v1805, 16
        %v2026 = vpop.permute.xlu0 %2025
        %2027 = vrot.lane.b32.xlu0 %v1810, 16
        %v2028 = vpop.permute.xlu0 %2027
        %2033 = vrot.lane.b32.xlu0 %v2007, 24
        %v2034 = vpop.permute.xlu0 %2033
        %2035 = vrot.lane.b32.xlu0 %v2012, 24
        %v2036 = vpop.permute.xlu0 %2035
        %v2039 = vsel %vm1206, %v1399, %v2018
        %v2040 = vsel %vm1206, %v1404, %v2020
        %v2041 = vsel %vm1303, %v2039, %v2026
        %v2042 = vsel %vm1303, %v2040, %v2028
        %vm2043 = vcmask 195584
        %v2044 = vsel %vm2043, %v2041, %v2034
        %v2045 = vsel %vm2043, %v2042, %v2036
        %2046 = vrot.lane.b32.xlu0 %v927, 32
        %v2047 = vpop.permute.xlu0 %2046
        %2048 = vrot.lane.b32.xlu0 %v928, 32
        %v2049 = vpop.permute.xlu0 %2048
        %2050 = vrot.lane.b32.xlu0 %v929, 32
        %v2051 = vpop.permute.xlu0 %2050
        %2052 = vrot.lane.b32.xlu0 %v930, 32
        %v2053 = vpop.permute.xlu0 %2052
        %2058 = vrot.lane.b32.xlu0 %v936, 32
        %v2059 = vpop.permute.xlu0 %2058
        %v2062 = vsel %vm938, %v2044, 0
        %v2065 = vsel %vm938, %v2045, 0
        %2067 = vmatprep.subr.mxu0 0.0
        %2068 = vmatpush1.msra.mxu0 %v2047
        %2069 = vmatprep.subr.mxu0 0.0
        %2070 = vmatpush1.msra.mxu0 %v2049
        %2071 = vmatprep.subr.mxu0 0.0
        %2072 = vmatpush1.msra.mxu0 %v2051
        %2073 = vmatprep.subr.mxu0 0.0
        %2074 = vmatpush1.msra.mxu0 %v2053
        %2075 = vmatprep.subr.mxu0 0.0
        %2076 = vmatpush1.msra.mxu0 0.0
        %2077 = vmatprep.subr.mxu0 0.0
        %2078 = vmatpush1.msra.mxu0 0.0
        %2079 = vmatprep.subr.mxu0 0.0
        %2080 = vmatpush1.msra.mxu0 0.0
        %2081 = vmatprep.subr.mxu0 0.0
        %2082 = vmatpush1.msra.mxu0 0.0
        %2083 = vmatprep.subr.mxu0 0.0
        %2084 = vmatpush1.msra.mxu0 0.0
        %2085 = vmatprep.subr.mxu0 0.0
        %2086 = vmatpush1.msra.mxu0 0.0
        %2087 = vmatprep.subr.mxu0 0.0
        %2088 = vmatpush1.msra.mxu0 0.0
        %2089 = vmatprep.subr.mxu0 0.0
        %2090 = vmatpush1.msra.mxu0 0.0
        %2091 = vmatprep.subr.mxu0 0.0
        %2092 = vmatpush1.msra.mxu0 0.0
        %2093 = vmatprep.subr.mxu0 0.0
        %2094 = vmatpush1.msra.mxu0 0.0
        %2095 = vmatprep.subr.mxu0 0.0
        %2096 = vmatpush1.msra.mxu0 0.0
        %2097 = vmatprep.subr.mxu0 0.0
        %2098 = vmatpush1.msra.mxu0 0.0
        %2099 = vmatprep.subr.mxu0 0.0
        %2100 = vmatpush1.msra.mxu0 0.0
        %2101 = vmatprep.subr.mxu0 0.0
        %2102 = vmatpush1.msra.mxu0 0.0
        %2103 = vmatprep.subr.mxu0 0.0
        %2104 = vmatpush1.msra.mxu0 0.0
        %2105 = vmatprep.subr.mxu0 0.0
        %2106 = vmatpush1.msra.mxu0 0.0
        %2107 = vmatprep.subr.mxu0 0.0
        %2108 = vmatpush1.msra.mxu0 0.0
        %2109 = vmatprep.subr.mxu0 0.0
        %2110 = vmatpush1.msra.mxu0 0.0
        %2111 = vmatprep.subr.mxu0 0.0
        %2112 = vmatpush1.msra.mxu0 0.0
        %2113 = vmatprep.subr.mxu0 0.0
        %2114 = vmatpush1.msra.mxu0 0.0
        %2115 = vmatprep.subr.mxu0 0.0
        %2116 = vmatpush1.msra.mxu0 0.0
        %2117 = vmatprep.subr.mxu0 0.0
        %2118 = vmatpush1.msra.mxu0 0.0
        %2119 = vmatprep.subr.mxu0 0.0
        %2120 = vmatpush1.msra.mxu0 0.0
        %2121 = vmatprep.subr.mxu0 0.0
        %2122 = vmatpush1.msra.mxu0 0.0
        %2123 = vmatprep.subr.mxu0 0.0
        %2124 = vmatpush1.msra.mxu0 0.0
        %2125 = vmatprep.subr.mxu0 0.0
        %2126 = vmatpush1.msra.mxu0 0.0
        %2127 = vmatprep.subr.mxu0 0.0
        %2128 = vmatpush1.msra.mxu0 0.0
        %2129 = vmatprep.subr.mxu0 0.0
        %2130 = vmatpush1.msra.mxu0 0.0
        %2131 = vmatprep.mubr.f32.mxu0 0.0
        %2132 = vmatmul.mubr.f32.gmra.mrb[0].mxu0 %v2062
        %v2133 = vpop.f32.mrb[0].mxu0
        %v2134 = vadd.f32 %v2059, %v2133
        %v2135 = vpop.f32.mrb[0].mxu0
        %2136 = vmatprep.mubr.f32.mxu0 0.0
        %2137 = vmatmul.mubr.f32.gmra.mrb[0].mxu0 %v2065
        %v2138 = vpop.f32.mrb[0].mxu0
        %v2139 = vadd.f32 %v2059, %v2138
        %v2140 = vpop.f32.mrb[0].mxu0
        %2141 = vdwg.mxu0
        %v2142 = vld [vmem:[%s20] sm:$0x3]
        %v2143 = vadd.f32 %v922, %v2134
        %v2144 = vadd.f32 %v923, %v2139
        %v2145 = vsel %vm938, %v2143, 0.0
        %2146 = vadd.xlane.f32.xlu0 %v2145
        %v2147 = vpop.xlane.xlu0 %2146
        %v2148 = vsel %vm938, %v2144, 0.0
        %2149 = vadd.xlane.f32.xlu0 %v2148
        %v2150 = vpop.xlane.xlu0 %2149
        %v2151 = vrcp.pop 32.0
        %v2152 = vmul.f32 %v2147, %v2151
        %v2153 = vmul.f32 %v2150, %v2151
        %v2154 = vsub.f32 %v2143, %v2152
        %v2155 = vsub.f32 %v2144, %v2153
        %v2156 = vmul.f32 %v2154, %v2154
        %v2157 = vmul.f32 %v2155, %v2155
        %v2158 = vsel %vm938, %v2156, 0.0
        %2159 = vadd.xlane.f32.xlu0 %v2158
        %v2160 = vpop.xlane.xlu0 %2159
        %v2161 = vsel %vm938, %v2157, 0.0
        %2162 = vadd.xlane.f32.xlu0 %v2161
        %v2163 = vpop.xlane.xlu0 %2162
        %v2164 = vmul.f32 %v2160, %v2151
        %v2165 = vmul.f32 %v2163, %v2151
        %v2166 = vadd.f32 %v2164, 1e-05
        %v2167 = vadd.f32 %v2165, 1e-05
        %v2168 = vrsqrt.pop %v2166
        %v2169 = vrsqrt.pop %v2167
        %v2170 = vmul.f32 %v2154, %v2168
        %v2171 = vmul.f32 %v2155, %v2169
        %v2172 = vlaneseq
        %v2173 = vshrl.u32 %v2172, 7
        %v2174 = vsub.s32 0, %v2173
        %v2175 = vrot.slane %v2142, %v2174
        %v2176 = vmul.f32 %v2170, %v2175
        %v2177 = vmul.f32 %v2171, %v2175
        %v2178 = vlaneseq
        %v2179 = vshrl.u32 %v2178, 7
        %v2180 = vsub.s32 1, %v2179
        %v2181 = vrot.slane %v2142, %v2180
        %v2182 = vadd.f32 %v2176, %v2181
        %v2183 = vadd.f32 %v2177, %v2181
        %v2184 = vld [vmem:[%s6] sm:$0xff]
        %v2185 = vld [vmem:[%s6 + $0x8] sm:$0xff]
        %v2186 = vld [vmem:[%s6 + $0x10] sm:$0xff]
        %v2187 = vld [vmem:[%s6 + $0x18] sm:$0xff]
        %v2188 = vld [vmem:[%s7] sm:$0x1]
        %v2190 = vlaneseq
        %v2191 = vshrl.u32 %v2190, 7
        %v2192 = vsub.s32 0, %v2191
        %v2193 = vrot.slane %v2188, %v2192
        %v2196 = vsel %vm938, %v924, 0
        %2198 = vmatprep.subr.mxu0 0.0
        %2199 = vmatpush1.msra.mxu0 %v2184
        %2200 = vmatprep.subr.mxu0 0.0
        %2201 = vmatpush1.msra.mxu0 %v2185
        %2202 = vmatprep.subr.mxu0 0.0
        %2203 = vmatpush1.msra.mxu0 %v2186
        %2204 = vmatprep.subr.mxu0 0.0
        %2205 = vmatpush1.msra.mxu0 %v2187
        %2206 = vmatprep.subr.mxu0 0.0
        %2207 = vmatpush1.msra.mxu0 0.0
        %2208 = vmatprep.subr.mxu0 0.0
        %2209 = vmatpush1.msra.mxu0 0.0
        %2210 = vmatprep.subr.mxu0 0.0
        %2211 = vmatpush1.msra.mxu0 0.0
        %2212 = vmatprep.subr.mxu0 0.0
        %2213 = vmatpush1.msra.mxu0 0.0
        %2214 = vmatprep.subr.mxu0 0.0
        %2215 = vmatpush1.msra.mxu0 0.0
        %2216 = vmatprep.subr.mxu0 0.0
        %2217 = vmatpush1.msra.mxu0 0.0
        %2218 = vmatprep.subr.mxu0 0.0
        %2219 = vmatpush1.msra.mxu0 0.0
        %2220 = vmatprep.subr.mxu0 0.0
        %2221 = vmatpush1.msra.mxu0 0.0
        %2222 = vmatprep.subr.mxu0 0.0
        %2223 = vmatpush1.msra.mxu0 0.0
        %2224 = vmatprep.subr.mxu0 0.0
        %2225 = vmatpush1.msra.mxu0 0.0
        %2226 = vmatprep.subr.mxu0 0.0
        %2227 = vmatpush1.msra.mxu0 0.0
        %2228 = vmatprep.subr.mxu0 0.0
        %2229 = vmatpush1.msra.mxu0 0.0
        %2230 = vmatprep.subr.mxu0 0.0
        %2231 = vmatpush1.msra.mxu0 0.0
        %2232 = vmatprep.subr.mxu0 0.0
        %2233 = vmatpush1.msra.mxu0 0.0
        %2234 = vmatprep.subr.mxu0 0.0
        %2235 = vmatpush1.msra.mxu0 0.0
        %2236 = vmatprep.subr.mxu0 0.0
        %2237 = vmatpush1.msra.mxu0 0.0
        %2238 = vmatprep.subr.mxu0 0.0
        %2239 = vmatpush1.msra.mxu0 0.0
        %2240 = vmatprep.subr.mxu0 0.0
        %2241 = vmatpush1.msra.mxu0 0.0
        %2242 = vmatprep.subr.mxu0 0.0
        %2243 = vmatpush1.msra.mxu0 0.0
        %2244 = vmatprep.subr.mxu0 0.0
        %2245 = vmatpush1.msra.mxu0 0.0
        %2246 = vmatprep.subr.mxu0 0.0
        %2247 = vmatpush1.msra.mxu0 0.0
        %2248 = vmatprep.subr.mxu0 0.0
        %2249 = vmatpush1.msra.mxu0 0.0
        %2250 = vmatprep.subr.mxu0 0.0
        %2251 = vmatpush1.msra.mxu0 0.0
        %2252 = vmatprep.subr.mxu0 0.0
        %2253 = vmatpush1.msra.mxu0 0.0
        %2254 = vmatprep.subr.mxu0 0.0
        %2255 = vmatpush1.msra.mxu0 0.0
        %2256 = vmatprep.subr.mxu0 0.0
        %2257 = vmatpush1.msra.mxu0 0.0
        %2258 = vmatprep.subr.mxu0 0.0
        %2259 = vmatpush1.msra.mxu0 0.0
        %2260 = vmatprep.subr.mxu0 0.0
        %2261 = vmatpush1.msra.mxu0 0.0
        %2262 = vmatprep.mubr.f32.mxu0 0.0
        %2263 = vmatmul.mubr.f32.gmra.mrb[0].mxu0 %v2196
        %v2264 = vpop.f32.mrb[0].mxu0
        %v2265 = vadd.f32 %v2193, %v2264
        %v2266 = vpop.f32.mrb[0].mxu0
        %2267 = vdwg.mxu0
        %v2268 = vmul.f32 %v2265, 0.35355338
        %2273 = vrot.lane.b32.xlu0 %v2184, 96
        %v2274 = vpop.permute.xlu0 %2273
        %2275 = vrot.lane.b32.xlu0 %v2185, 96
        %v2276 = vpop.permute.xlu0 %2275
        %2277 = vrot.lane.b32.xlu0 %v2186, 96
        %v2278 = vpop.permute.xlu0 %2277
        %2279 = vrot.lane.b32.xlu0 %v2187, 96
        %v2280 = vpop.permute.xlu0 %2279
        %2285 = vrot.lane.b32.xlu0 %v2193, 96
        %v2286 = vpop.permute.xlu0 %2285
        %2288 = vmatprep.subr.mxu0 0.0
        %2289 = vmatpush1.msra.mxu0 %v2274
        %2290 = vmatprep.subr.mxu0 0.0
        %2291 = vmatpush1.msra.mxu0 %v2276
        %2292 = vmatprep.subr.mxu0 0.0
        %2293 = vmatpush1.msra.mxu0 %v2278
        %2294 = vmatprep.subr.mxu0 0.0
        %2295 = vmatpush1.msra.mxu0 %v2280
        %2296 = vmatprep.subr.mxu0 0.0
        %2297 = vmatpush1.msra.mxu0 0.0
        %2298 = vmatprep.subr.mxu0 0.0
        %2299 = vmatpush1.msra.mxu0 0.0
        %2300 = vmatprep.subr.mxu0 0.0
        %2301 = vmatpush1.msra.mxu0 0.0
        %2302 = vmatprep.subr.mxu0 0.0
        %2303 = vmatpush1.msra.mxu0 0.0
        %2304 = vmatprep.subr.mxu0 0.0
        %2305 = vmatpush1.msra.mxu0 0.0
        %2306 = vmatprep.subr.mxu0 0.0
        %2307 = vmatpush1.msra.mxu0 0.0
        %2308 = vmatprep.subr.mxu0 0.0
        %2309 = vmatpush1.msra.mxu0 0.0
        %2310 = vmatprep.subr.mxu0 0.0
        %2311 = vmatpush1.msra.mxu0 0.0
        %2312 = vmatprep.subr.mxu0 0.0
        %2313 = vmatpush1.msra.mxu0 0.0
        %2314 = vmatprep.subr.mxu0 0.0
        %2315 = vmatpush1.msra.mxu0 0.0
        %2316 = vmatprep.subr.mxu0 0.0
        %2317 = vmatpush1.msra.mxu0 0.0
        %2318 = vmatprep.subr.mxu0 0.0
        %2319 = vmatpush1.msra.mxu0 0.0
        %2320 = vmatprep.subr.mxu0 0.0
        %2321 = vmatpush1.msra.mxu0 0.0
        %2322 = vmatprep.subr.mxu0 0.0
        %2323 = vmatpush1.msra.mxu0 0.0
        %2324 = vmatprep.subr.mxu0 0.0
        %2325 = vmatpush1.msra.mxu0 0.0
        %2326 = vmatprep.subr.mxu0 0.0
        %2327 = vmatpush1.msra.mxu0 0.0
        %2328 = vmatprep.subr.mxu0 0.0
        %2329 = vmatpush1.msra.mxu0 0.0
        %2330 = vmatprep.subr.mxu0 0.0
        %2331 = vmatpush1.msra.mxu0 0.0
        %2332 = vmatprep.subr.mxu0 0.0
        %2333 = vmatpush1.msra.mxu0 0.0
        %2334 = vmatprep.subr.mxu0 0.0
        %2335 = vmatpush1.msra.mxu0 0.0
        %2336 = vmatprep.subr.mxu0 0.0
        %2337 = vmatpush1.msra.mxu0 0.0
        %2338 = vmatprep.subr.mxu0 0.0
        %2339 = vmatpush1.msra.mxu0 0.0
        %2340 = vmatprep.subr.mxu0 0.0
        %2341 = vmatpush1.msra.mxu0 0.0
        %2342 = vmatprep.subr.mxu0 0.0
        %2343 = vmatpush1.msra.mxu0 0.0
        %2344 = vmatprep.subr.mxu0 0.0
        %2345 = vmatpush1.msra.mxu0 0.0
        %2346 = vmatprep.subr.mxu0 0.0
        %2347 = vmatpush1.msra.mxu0 0.0
        %2348 = vmatprep.subr.mxu0 0.0
        %2349 = vmatpush1.msra.mxu0 0.0
        %2350 = vmatprep.subr.mxu0 0.0
        %2351 = vmatpush1.msra.mxu0 0.0
        %2352 = vmatprep.mubr.f32.mxu0 0.0
        %2353 = vmatmul.mubr.f32.gmra.mrb[0].mxu0 %v2196
        %v2354 = vpop.f32.mrb[0].mxu0
        %v2355 = vadd.f32 %v2286, %v2354
        %v2356 = vpop.f32.mrb[0].mxu0
        %2357 = vdwg.mxu0
        %2358 = vrot.lane.b32.xlu0 %v2184, 64
        %v2359 = vpop.permute.xlu0 %2358
        %2360 = vrot.lane.b32.xlu0 %v2185, 64
        %v2361 = vpop.permute.xlu0 %2360
        %2362 = vrot.lane.b32.xlu0 %v2186, 64
        %v2363 = vpop.permute.xlu0 %2362
        %2364 = vrot.lane.b32.xlu0 %v2187, 64
        %v2365 = vpop.permute.xlu0 %2364
        %2370 = vrot.lane.b32.xlu0 %v2193, 64
        %v2371 = vpop.permute.xlu0 %2370
        %2373 = vmatprep.subr.mxu0 0.0
        %2374 = vmatpush1.msra.mxu0 %v2359
        %2375 = vmatprep.subr.mxu0 0.0
        %2376 = vmatpush1.msra.mxu0 %v2361
        %2377 = vmatprep.subr.mxu0 0.0
        %2378 = vmatpush1.msra.mxu0 %v2363
        %2379 = vmatprep.subr.mxu0 0.0
        %2380 = vmatpush1.msra.mxu0 %v2365
        %2381 = vmatprep.subr.mxu0 0.0
        %2382 = vmatpush1.msra.mxu0 0.0
        %2383 = vmatprep.subr.mxu0 0.0
        %2384 = vmatpush1.msra.mxu0 0.0
        %2385 = vmatprep.subr.mxu0 0.0
        %2386 = vmatpush1.msra.mxu0 0.0
        %2387 = vmatprep.subr.mxu0 0.0
        %2388 = vmatpush1.msra.mxu0 0.0
        %2389 = vmatprep.subr.mxu0 0.0
        %2390 = vmatpush1.msra.mxu0 0.0
        %2391 = vmatprep.subr.mxu0 0.0
        %2392 = vmatpush1.msra.mxu0 0.0
        %2393 = vmatprep.subr.mxu0 0.0
        %2394 = vmatpush1.msra.mxu0 0.0
        %2395 = vmatprep.subr.mxu0 0.0
        %2396 = vmatpush1.msra.mxu0 0.0
        %2397 = vmatprep.subr.mxu0 0.0
        %2398 = vmatpush1.msra.mxu0 0.0
        %2399 = vmatprep.subr.mxu0 0.0
        %2400 = vmatpush1.msra.mxu0 0.0
        %2401 = vmatprep.subr.mxu0 0.0
        %2402 = vmatpush1.msra.mxu0 0.0
        %2403 = vmatprep.subr.mxu0 0.0
        %2404 = vmatpush1.msra.mxu0 0.0
        %2405 = vmatprep.subr.mxu0 0.0
        %2406 = vmatpush1.msra.mxu0 0.0
        %2407 = vmatprep.subr.mxu0 0.0
        %2408 = vmatpush1.msra.mxu0 0.0
        %2409 = vmatprep.subr.mxu0 0.0
        %2410 = vmatpush1.msra.mxu0 0.0
        %2411 = vmatprep.subr.mxu0 0.0
        %2412 = vmatpush1.msra.mxu0 0.0
        %2413 = vmatprep.subr.mxu0 0.0
        %2414 = vmatpush1.msra.mxu0 0.0
        %2415 = vmatprep.subr.mxu0 0.0
        %2416 = vmatpush1.msra.mxu0 0.0
        %2417 = vmatprep.subr.mxu0 0.0
        %2418 = vmatpush1.msra.mxu0 0.0
        %2419 = vmatprep.subr.mxu0 0.0
        %2420 = vmatpush1.msra.mxu0 0.0
        %2421 = vmatprep.subr.mxu0 0.0
        %2422 = vmatpush1.msra.mxu0 0.0
        %2423 = vmatprep.subr.mxu0 0.0
        %2424 = vmatpush1.msra.mxu0 0.0
        %2425 = vmatprep.subr.mxu0 0.0
        %2426 = vmatpush1.msra.mxu0 0.0
        %2427 = vmatprep.subr.mxu0 0.0
        %2428 = vmatpush1.msra.mxu0 0.0
        %2429 = vmatprep.subr.mxu0 0.0
        %2430 = vmatpush1.msra.mxu0 0.0
        %2431 = vmatprep.subr.mxu0 0.0
        %2432 = vmatpush1.msra.mxu0 0.0
        %2433 = vmatprep.subr.mxu0 0.0
        %2434 = vmatpush1.msra.mxu0 0.0
        %2435 = vmatprep.subr.mxu0 0.0
        %2436 = vmatpush1.msra.mxu0 0.0
        %2437 = vmatprep.mubr.f32.mxu0 0.0
        %2438 = vmatmul.mubr.f32.gmra.mrb[0].mxu0 %v2196
        %v2439 = vpop.f32.mrb[0].mxu0
        %v2440 = vadd.f32 %v2371, %v2439
        %v2441 = vpop.f32.mrb[0].mxu0
        %2442 = vdwg.mxu0
        %v2444 = vsel %vm1206, %v2268, 0
        %v2447 = vsel %vm1206, %v2355, 0
        %2449 = vmatprep.subr.mxu0 0.0
        %2450 = vmatpush1.xpose.msra.mxu0 %v2447
        %2451 = vmatprep.subr.mxu0 0.0
        %2452 = vmatpush1.xpose.msra.mxu0 0.0
        %2453 = vmatprep.subr.mxu0 0.0
        %2454 = vmatpush1.xpose.msra.mxu0 0.0
        %2455 = vmatprep.subr.mxu0 0.0
        %2456 = vmatpush1.xpose.msra.mxu0 0.0
        %2457 = vmatprep.subr.mxu0 0.0
        %2458 = vmatpush1.xpose.msra.mxu0 0.0
        %2459 = vmatprep.subr.mxu0 0.0
        %2460 = vmatpush1.xpose.msra.mxu0 0.0
        %2461 = vmatprep.subr.mxu0 0.0
        %2462 = vmatpush1.xpose.msra.mxu0 0.0
        %2463 = vmatprep.subr.mxu0 0.0
        %2464 = vmatpush1.xpose.msra.mxu0 0.0
        %2465 = vmatprep.subr.mxu0 0.0
        %2466 = vmatpush1.xpose.msra.mxu0 0.0
        %2467 = vmatprep.subr.mxu0 0.0
        %2468 = vmatpush1.xpose.msra.mxu0 0.0
        %2469 = vmatprep.subr.mxu0 0.0
        %2470 = vmatpush1.xpose.msra.mxu0 0.0
        %2471 = vmatprep.subr.mxu0 0.0
        %2472 = vmatpush1.xpose.msra.mxu0 0.0
        %2473 = vmatprep.subr.mxu0 0.0
        %2474 = vmatpush1.xpose.msra.mxu0 0.0
        %2475 = vmatprep.subr.mxu0 0.0
        %2476 = vmatpush1.xpose.msra.mxu0 0.0
        %2477 = vmatprep.subr.mxu0 0.0
        %2478 = vmatpush1.xpose.msra.mxu0 0.0
        %2479 = vmatprep.subr.mxu0 0.0
        %2480 = vmatpush1.xpose.msra.mxu0 0.0
        %2481 = vmatprep.subr.mxu0 0.0
        %2482 = vmatpush1.xpose.msra.mxu0 0.0
        %2483 = vmatprep.subr.mxu0 0.0
        %2484 = vmatpush1.xpose.msra.mxu0 0.0
        %2485 = vmatprep.subr.mxu0 0.0
        %2486 = vmatpush1.xpose.msra.mxu0 0.0
        %2487 = vmatprep.subr.mxu0 0.0
        %2488 = vmatpush1.xpose.msra.mxu0 0.0
        %2489 = vmatprep.subr.mxu0 0.0
        %2490 = vmatpush1.xpose.msra.mxu0 0.0
        %2491 = vmatprep.subr.mxu0 0.0
        %2492 = vmatpush1.xpose.msra.mxu0 0.0
        %2493 = vmatprep.subr.mxu0 0.0
        %2494 = vmatpush1.xpose.msra.mxu0 0.0
        %2495 = vmatprep.subr.mxu0 0.0
        %2496 = vmatpush1.xpose.msra.mxu0 0.0
        %2497 = vmatprep.subr.mxu0 0.0
        %2498 = vmatpush1.xpose.msra.mxu0 0.0
        %2499 = vmatprep.subr.mxu0 0.0
        %2500 = vmatpush1.xpose.msra.mxu0 0.0
        %2501 = vmatprep.subr.mxu0 0.0
        %2502 = vmatpush1.xpose.msra.mxu0 0.0
        %2503 = vmatprep.subr.mxu0 0.0
        %2504 = vmatpush1.xpose.msra.mxu0 0.0
        %2505 = vmatprep.subr.mxu0 0.0
        %2506 = vmatpush1.xpose.msra.mxu0 0.0
        %2507 = vmatprep.subr.mxu0 0.0
        %2508 = vmatpush1.xpose.msra.mxu0 0.0
        %2509 = vmatprep.subr.mxu0 0.0
        %2510 = vmatpush1.xpose.msra.mxu0 0.0
        %2511 = vmatprep.subr.mxu0 0.0
        %2512 = vmatpush1.xpose.msra.mxu0 0.0
        %2513 = vmatprep.mubr.f32.mxu0 0.0
        %2514 = vmatmul.mubr.f32.gmra.mrb[0].mxu0 %v2444
        %v2515 = vpop.f32.mrb[0].mxu0
        %v2516 = vadd.f32 0.0, %v2515
        %v2517 = vpop.f32.mrb[0].mxu0
        %2518 = vdwg.mxu0
        %vm2519 = vcmp.eq.f32.partialorder %v926, 0.0
        %v2520 = vsel %vm2519, 1, 0
        %v2521 = vlaneseq
        %v2522 = vshrl.u32 %v2521, 7
        %v2523 = vsub.s32 0, %v2522
        %v2524 = vrot.slane %v2520, %v2523
        %vm2525 = vcmp.eq.s32.totalorder %v2524, 1
        %v2526 = vsel %vm2525, -1e+30, %v2516
        %v2527 = vsel %vm1206, %v2526, -inf
        %2528 = vmax.xlane.f32.xlu0 %v2527
        %v2529 = vpop.xlane.xlu0 %2528
        %v2530 = vsub.f32 %v2526, %v2529
        %v2531 = vmul.f32 %v2530, 1.442695
        %v2532 = vpow.pop %v2531
        %v2533 = vsel %vm1206, %v2532, 0.0
        %2534 = vadd.xlane.f32.xlu0 %v2533
        %v2535 = vpop.xlane.xlu0 %2534
        %v2536 = vrcp.pop %v2535
        %v2537 = vmul.f32 %v2532, %v2536
        %v2539 = vsel %vm1206, %v2537, 0
        %2541 = vmatprep.subr.mxu0 0.0
        %2542 = vmatpush1.msra.mxu0 %v2440
        %2543 = vmatprep.subr.mxu0 0.0
        %2544 = vmatpush1.msra.mxu0 0.0
        %2545 = vmatprep.subr.mxu0 0.0
        %2546 = vmatpush1.msra.mxu0 0.0
        %2547 = vmatprep.subr.mxu0 0.0
        %2548 = vmatpush1.msra.mxu0 0.0
        %2549 = vmatprep.subr.mxu0 0.0
        %2550 = vmatpush1.msra.mxu0 0.0
        %2551 = vmatprep.subr.mxu0 0.0
        %2552 = vmatpush1.msra.mxu0 0.0
        %2553 = vmatprep.subr.mxu0 0.0
        %2554 = vmatpush1.msra.mxu0 0.0
        %2555 = vmatprep.subr.mxu0 0.0
        %2556 = vmatpush1.msra.mxu0 0.0
        %2557 = vmatprep.subr.mxu0 0.0
        %2558 = vmatpush1.msra.mxu0 0.0
        %2559 = vmatprep.subr.mxu0 0.0
        %2560 = vmatpush1.msra.mxu0 0.0
        %2561 = vmatprep.subr.mxu0 0.0
        %2562 = vmatpush1.msra.mxu0 0.0
        %2563 = vmatprep.subr.mxu0 0.0
        %2564 = vmatpush1.msra.mxu0 0.0
        %2565 = vmatprep.subr.mxu0 0.0
        %2566 = vmatpush1.msra.mxu0 0.0
        %2567 = vmatprep.subr.mxu0 0.0
        %2568 = vmatpush1.msra.mxu0 0.0
        %2569 = vmatprep.subr.mxu0 0.0
        %2570 = vmatpush1.msra.mxu0 0.0
        %2571 = vmatprep.subr.mxu0 0.0
        %2572 = vmatpush1.msra.mxu0 0.0
        %2573 = vmatprep.subr.mxu0 0.0
        %2574 = vmatpush1.msra.mxu0 0.0
        %2575 = vmatprep.subr.mxu0 0.0
        %2576 = vmatpush1.msra.mxu0 0.0
        %2577 = vmatprep.subr.mxu0 0.0
        %2578 = vmatpush1.msra.mxu0 0.0
        %2579 = vmatprep.subr.mxu0 0.0
        %2580 = vmatpush1.msra.mxu0 0.0
        %2581 = vmatprep.subr.mxu0 0.0
        %2582 = vmatpush1.msra.mxu0 0.0
        %2583 = vmatprep.subr.mxu0 0.0
        %2584 = vmatpush1.msra.mxu0 0.0
        %2585 = vmatprep.subr.mxu0 0.0
        %2586 = vmatpush1.msra.mxu0 0.0
        %2587 = vmatprep.subr.mxu0 0.0
        %2588 = vmatpush1.msra.mxu0 0.0
        %2589 = vmatprep.subr.mxu0 0.0
        %2590 = vmatpush1.msra.mxu0 0.0
        %2591 = vmatprep.subr.mxu0 0.0
        %2592 = vmatpush1.msra.mxu0 0.0
        %2593 = vmatprep.subr.mxu0 0.0
        %2594 = vmatpush1.msra.mxu0 0.0
        %2595 = vmatprep.subr.mxu0 0.0
        %2596 = vmatpush1.msra.mxu0 0.0
        %2597 = vmatprep.subr.mxu0 0.0
        %2598 = vmatpush1.msra.mxu0 0.0
        %2599 = vmatprep.subr.mxu0 0.0
        %2600 = vmatpush1.msra.mxu0 0.0
        %2601 = vmatprep.subr.mxu0 0.0
        %2602 = vmatpush1.msra.mxu0 0.0
        %2603 = vmatprep.subr.mxu0 0.0
        %2604 = vmatpush1.msra.mxu0 0.0
        %2605 = vmatprep.mubr.f32.mxu0 0.0
        %2606 = vmatmul.mubr.f32.gmra.mrb[0].mxu0 %v2539
        %v2607 = vpop.f32.mrb[0].mxu0
        %v2608 = vadd.f32 0.0, %v2607
        %v2609 = vpop.f32.mrb[0].mxu0
        %2610 = vdwg.mxu0
        %2611 = vrot.lane.b32.xlu0 %v2268, 120
        %v2612 = vpop.permute.xlu0 %2611
        %2613 = vrot.lane.b32.xlu0 %v2355, 120
        %v2614 = vpop.permute.xlu0 %2613
        %v2615 = vsel %vm1206, %v2612, 0
        %v2617 = vsel %vm1206, %v2614, 0
        %2619 = vmatprep.subr.mxu0 0.0
        %2620 = vmatpush1.xpose.msra.mxu0 %v2617
        %2621 = vmatprep.subr.mxu0 0.0
        %2622 = vmatpush1.xpose.msra.mxu0 0.0
        %2623 = vmatprep.subr.mxu0 0.0
        %2624 = vmatpush1.xpose.msra.mxu0 0.0
        %2625 = vmatprep.subr.mxu0 0.0
        %2626 = vmatpush1.xpose.msra.mxu0 0.0
        %2627 = vmatprep.subr.mxu0 0.0
        %2628 = vmatpush1.xpose.msra.mxu0 0.0
        %2629 = vmatprep.subr.mxu0 0.0
        %2630 = vmatpush1.xpose.msra.mxu0 0.0
        %2631 = vmatprep.subr.mxu0 0.0
        %2632 = vmatpush1.xpose.msra.mxu0 0.0
        %2633 = vmatprep.subr.mxu0 0.0
        %2634 = vmatpush1.xpose.msra.mxu0 0.0
        %2635 = vmatprep.subr.mxu0 0.0
        %2636 = vmatpush1.xpose.msra.mxu0 0.0
        %2637 = vmatprep.subr.mxu0 0.0
        %2638 = vmatpush1.xpose.msra.mxu0 0.0
        %2639 = vmatprep.subr.mxu0 0.0
        %2640 = vmatpush1.xpose.msra.mxu0 0.0
        %2641 = vmatprep.subr.mxu0 0.0
        %2642 = vmatpush1.xpose.msra.mxu0 0.0
        %2643 = vmatprep.subr.mxu0 0.0
        %2644 = vmatpush1.xpose.msra.mxu0 0.0
        %2645 = vmatprep.subr.mxu0 0.0
        %2646 = vmatpush1.xpose.msra.mxu0 0.0
        %2647 = vmatprep.subr.mxu0 0.0
        %2648 = vmatpush1.xpose.msra.mxu0 0.0
        %2649 = vmatprep.subr.mxu0 0.0
        %2650 = vmatpush1.xpose.msra.mxu0 0.0
        %2651 = vmatprep.subr.mxu0 0.0
        %2652 = vmatpush1.xpose.msra.mxu0 0.0
        %2653 = vmatprep.subr.mxu0 0.0
        %2654 = vmatpush1.xpose.msra.mxu0 0.0
        %2655 = vmatprep.subr.mxu0 0.0
        %2656 = vmatpush1.xpose.msra.mxu0 0.0
        %2657 = vmatprep.subr.mxu0 0.0
        %2658 = vmatpush1.xpose.msra.mxu0 0.0
        %2659 = vmatprep.subr.mxu0 0.0
        %2660 = vmatpush1.xpose.msra.mxu0 0.0
        %2661 = vmatprep.subr.mxu0 0.0
        %2662 = vmatpush1.xpose.msra.mxu0 0.0
        %2663 = vmatprep.subr.mxu0 0.0
        %2664 = vmatpush1.xpose.msra.mxu0 0.0
        %2665 = vmatprep.subr.mxu0 0.0
        %2666 = vmatpush1.xpose.msra.mxu0 0.0
        %2667 = vmatprep.subr.mxu0 0.0
        %2668 = vmatpush1.xpose.msra.mxu0 0.0
        %2669 = vmatprep.subr.mxu0 0.0
        %2670 = vmatpush1.xpose.msra.mxu0 0.0
        %2671 = vmatprep.subr.mxu0 0.0
        %2672 = vmatpush1.xpose.msra.mxu0 0.0
        %2673 = vmatprep.subr.mxu0 0.0
        %2674 = vmatpush1.xpose.msra.mxu0 0.0
        %2675 = vmatprep.subr.mxu0 0.0
        %2676 = vmatpush1.xpose.msra.mxu0 0.0
        %2677 = vmatprep.subr.mxu0 0.0
        %2678 = vmatpush1.xpose.msra.mxu0 0.0
        %2679 = vmatprep.subr.mxu0 0.0
        %2680 = vmatpush1.xpose.msra.mxu0 0.0
        %2681 = vmatprep.subr.mxu0 0.0
        %2682 = vmatpush1.xpose.msra.mxu0 0.0
        %2683 = vmatprep.mubr.f32.mxu0 0.0
        %2684 = vmatmul.mubr.f32.gmra.mrb[0].mxu0 %v2615
        %v2685 = vpop.f32.mrb[0].mxu0
        %v2686 = vadd.f32 0.0, %v2685
        %v2687 = vpop.f32.mrb[0].mxu0
        %2688 = vdwg.mxu0
        %v2689 = vsel %vm2525, -1e+30, %v2686
        %v2690 = vsel %vm1206, %v2689, -inf
        %2691 = vmax.xlane.f32.xlu0 %v2690
        %v2692 = vpop.xlane.xlu0 %2691
        %v2693 = vsub.f32 %v2689, %v2692
        %v2694 = vmul.f32 %v2693, 1.442695
        %v2695 = vpow.pop %v2694
        %v2696 = vsel %vm1206, %v2695, 0.0
        %2697 = vadd.xlane.f32.xlu0 %v2696
        %v2698 = vpop.xlane.xlu0 %2697
        %v2699 = vrcp.pop %v2698
        %v2700 = vmul.f32 %v2695, %v2699
        %2702 = vrot.lane.b32.xlu0 %v2440, 120
        %v2703 = vpop.permute.xlu0 %2702
        %v2706 = vsel %vm1206, %v2700, 0
        %2708 = vmatprep.subr.mxu0 0.0
        %2709 = vmatpush1.msra.mxu0 %v2703
        %2710 = vmatprep.subr.mxu0 0.0
        %2711 = vmatpush1.msra.mxu0 0.0
        %2712 = vmatprep.subr.mxu0 0.0
        %2713 = vmatpush1.msra.mxu0 0.0
        %2714 = vmatprep.subr.mxu0 0.0
        %2715 = vmatpush1.msra.mxu0 0.0
        %2716 = vmatprep.subr.mxu0 0.0
        %2717 = vmatpush1.msra.mxu0 0.0
        %2718 = vmatprep.subr.mxu0 0.0
        %2719 = vmatpush1.msra.mxu0 0.0
        %2720 = vmatprep.subr.mxu0 0.0
        %2721 = vmatpush1.msra.mxu0 0.0
        %2722 = vmatprep.subr.mxu0 0.0
        %2723 = vmatpush1.msra.mxu0 0.0
        %2724 = vmatprep.subr.mxu0 0.0
        %2725 = vmatpush1.msra.mxu0 0.0
        %2726 = vmatprep.subr.mxu0 0.0
        %2727 = vmatpush1.msra.mxu0 0.0
        %2728 = vmatprep.subr.mxu0 0.0
        %2729 = vmatpush1.msra.mxu0 0.0
        %2730 = vmatprep.subr.mxu0 0.0
        %2731 = vmatpush1.msra.mxu0 0.0
        %2732 = vmatprep.subr.mxu0 0.0
        %2733 = vmatpush1.msra.mxu0 0.0
        %2734 = vmatprep.subr.mxu0 0.0
        %2735 = vmatpush1.msra.mxu0 0.0
        %2736 = vmatprep.subr.mxu0 0.0
        %2737 = vmatpush1.msra.mxu0 0.0
        %2738 = vmatprep.subr.mxu0 0.0
        %2739 = vmatpush1.msra.mxu0 0.0
        %2740 = vmatprep.subr.mxu0 0.0
        %2741 = vmatpush1.msra.mxu0 0.0
        %2742 = vmatprep.subr.mxu0 0.0
        %2743 = vmatpush1.msra.mxu0 0.0
        %2744 = vmatprep.subr.mxu0 0.0
        %2745 = vmatpush1.msra.mxu0 0.0
        %2746 = vmatprep.subr.mxu0 0.0
        %2747 = vmatpush1.msra.mxu0 0.0
        %2748 = vmatprep.subr.mxu0 0.0
        %2749 = vmatpush1.msra.mxu0 0.0
        %2750 = vmatprep.subr.mxu0 0.0
        %2751 = vmatpush1.msra.mxu0 0.0
        %2752 = vmatprep.subr.mxu0 0.0
        %2753 = vmatpush1.msra.mxu0 0.0
        %2754 = vmatprep.subr.mxu0 0.0
        %2755 = vmatpush1.msra.mxu0 0.0
        %2756 = vmatprep.subr.mxu0 0.0
        %2757 = vmatpush1.msra.mxu0 0.0
        %2758 = vmatprep.subr.mxu0 0.0
        %2759 = vmatpush1.msra.mxu0 0.0
        %2760 = vmatprep.subr.mxu0 0.0
        %2761 = vmatpush1.msra.mxu0 0.0
        %2762 = vmatprep.subr.mxu0 0.0
        %2763 = vmatpush1.msra.mxu0 0.0
        %2764 = vmatprep.subr.mxu0 0.0
        %2765 = vmatpush1.msra.mxu0 0.0
        %2766 = vmatprep.subr.mxu0 0.0
        %2767 = vmatpush1.msra.mxu0 0.0
        %2768 = vmatprep.subr.mxu0 0.0
        %2769 = vmatpush1.msra.mxu0 0.0
        %2770 = vmatprep.subr.mxu0 0.0
        %2771 = vmatpush1.msra.mxu0 0.0
        %2772 = vmatprep.mubr.f32.mxu0 0.0
        %2773 = vmatmul.mubr.f32.gmra.mrb[0].mxu0 %v2706
        %v2774 = vpop.f32.mrb[0].mxu0
        %v2775 = vadd.f32 0.0, %v2774
        %v2776 = vpop.f32.mrb[0].mxu0
        %2777 = vdwg.mxu0
        %2778 = vrot.lane.b32.xlu0 %v2268, 112
        %v2779 = vpop.permute.xlu0 %2778
        %2780 = vrot.lane.b32.xlu0 %v2355, 112
        %v2781 = vpop.permute.xlu0 %2780
        %v2782 = vsel %vm1206, %v2779, 0
        %v2784 = vsel %vm1206, %v2781, 0
        %2786 = vmatprep.subr.mxu0 0.0
        %2787 = vmatpush1.xpose.msra.mxu0 %v2784
        %2788 = vmatprep.subr.mxu0 0.0
        %2789 = vmatpush1.xpose.msra.mxu0 0.0
        %2790 = vmatprep.subr.mxu0 0.0
        %2791 = vmatpush1.xpose.msra.mxu0 0.0
        %2792 = vmatprep.subr.mxu0 0.0
        %2793 = vmatpush1.xpose.msra.mxu0 0.0
        %2794 = vmatprep.subr.mxu0 0.0
        %2795 = vmatpush1.xpose.msra.mxu0 0.0
        %2796 = vmatprep.subr.mxu0 0.0
        %2797 = vmatpush1.xpose.msra.mxu0 0.0
        %2798 = vmatprep.subr.mxu0 0.0
        %2799 = vmatpush1.xpose.msra.mxu0 0.0
        %2800 = vmatprep.subr.mxu0 0.0
        %2801 = vmatpush1.xpose.msra.mxu0 0.0
        %2802 = vmatprep.subr.mxu0 0.0
        %2803 = vmatpush1.xpose.msra.mxu0 0.0
        %2804 = vmatprep.subr.mxu0 0.0
        %2805 = vmatpush1.xpose.msra.mxu0 0.0
        %2806 = vmatprep.subr.mxu0 0.0
        %2807 = vmatpush1.xpose.msra.mxu0 0.0
        %2808 = vmatprep.subr.mxu0 0.0
        %2809 = vmatpush1.xpose.msra.mxu0 0.0
        %2810 = vmatprep.subr.mxu0 0.0
        %2811 = vmatpush1.xpose.msra.mxu0 0.0
        %2812 = vmatprep.subr.mxu0 0.0
        %2813 = vmatpush1.xpose.msra.mxu0 0.0
        %2814 = vmatprep.subr.mxu0 0.0
        %2815 = vmatpush1.xpose.msra.mxu0 0.0
        %2816 = vmatprep.subr.mxu0 0.0
        %2817 = vmatpush1.xpose.msra.mxu0 0.0
        %2818 = vmatprep.subr.mxu0 0.0
        %2819 = vmatpush1.xpose.msra.mxu0 0.0
        %2820 = vmatprep.subr.mxu0 0.0
        %2821 = vmatpush1.xpose.msra.mxu0 0.0
        %2822 = vmatprep.subr.mxu0 0.0
        %2823 = vmatpush1.xpose.msra.mxu0 0.0
        %2824 = vmatprep.subr.mxu0 0.0
        %2825 = vmatpush1.xpose.msra.mxu0 0.0
        %2826 = vmatprep.subr.mxu0 0.0
        %2827 = vmatpush1.xpose.msra.mxu0 0.0
        %2828 = vmatprep.subr.mxu0 0.0
        %2829 = vmatpush1.xpose.msra.mxu0 0.0
        %2830 = vmatprep.subr.mxu0 0.0
        %2831 = vmatpush1.xpose.msra.mxu0 0.0
        %2832 = vmatprep.subr.mxu0 0.0
        %2833 = vmatpush1.xpose.msra.mxu0 0.0
        %2834 = vmatprep.subr.mxu0 0.0
        %2835 = vmatpush1.xpose.msra.mxu0 0.0
        %2836 = vmatprep.subr.mxu0 0.0
        %2837 = vmatpush1.xpose.msra.mxu0 0.0
        %2838 = vmatprep.subr.mxu0 0.0
        %2839 = vmatpush1.xpose.msra.mxu0 0.0
        %2840 = vmatprep.subr.mxu0 0.0
        %2841 = vmatpush1.xpose.msra.mxu0 0.0
        %2842 = vmatprep.subr.mxu0 0.0
        %2843 = vmatpush1.xpose.msra.mxu0 0.0
        %2844 = vmatprep.subr.mxu0 0.0
        %2845 = vmatpush1.xpose.msra.mxu0 0.0
        %2846 = vmatprep.subr.mxu0 0.0
        %2847 = vmatpush1.xpose.msra.mxu0 0.0
        %2848 = vmatprep.subr.mxu0 0.0
        %2849 = vmatpush1.xpose.msra.mxu0 0.0
        %2850 = vmatprep.mubr.f32.mxu0 0.0
        %2851 = vmatmul.mubr.f32.gmra.mrb[0].mxu0 %v2782
        %v2852 = vpop.f32.mrb[0].mxu0
        %v2853 = vadd.f32 0.0, %v2852
        %v2854 = vpop.f32.mrb[0].mxu0
        %2855 = vdwg.mxu0
        %v2856 = vsel %vm2525, -1e+30, %v2853
        %v2857 = vsel %vm1206, %v2856, -inf
        %2858 = vmax.xlane.f32.xlu0 %v2857
        %v2859 = vpop.xlane.xlu0 %2858
        %v2860 = vsub.f32 %v2856, %v2859
        %v2861 = vmul.f32 %v2860, 1.442695
        %v2862 = vpow.pop %v2861
        %v2863 = vsel %vm1206, %v2862, 0.0
        %2864 = vadd.xlane.f32.xlu0 %v2863
        %v2865 = vpop.xlane.xlu0 %2864
        %v2866 = vrcp.pop %v2865
        %v2867 = vmul.f32 %v2862, %v2866
        %2868 = vrot.lane.b32.xlu0 %v2440, 112
        %v2869 = vpop.permute.xlu0 %2868
        %v2872 = vsel %vm1206, %v2867, 0
        %2874 = vmatprep.subr.mxu0 0.0
        %2875 = vmatpush1.msra.mxu0 %v2869
        %2876 = vmatprep.subr.mxu0 0.0
        %2877 = vmatpush1.msra.mxu0 0.0
        %2878 = vmatprep.subr.mxu0 0.0
        %2879 = vmatpush1.msra.mxu0 0.0
        %2880 = vmatprep.subr.mxu0 0.0
        %2881 = vmatpush1.msra.mxu0 0.0
        %2882 = vmatprep.subr.mxu0 0.0
        %2883 = vmatpush1.msra.mxu0 0.0
        %2884 = vmatprep.subr.mxu0 0.0
        %2885 = vmatpush1.msra.mxu0 0.0
        %2886 = vmatprep.subr.mxu0 0.0
        %2887 = vmatpush1.msra.mxu0 0.0
        %2888 = vmatprep.subr.mxu0 0.0
        %2889 = vmatpush1.msra.mxu0 0.0
        %2890 = vmatprep.subr.mxu0 0.0
        %2891 = vmatpush1.msra.mxu0 0.0
        %2892 = vmatprep.subr.mxu0 0.0
        %2893 = vmatpush1.msra.mxu0 0.0
        %2894 = vmatprep.subr.mxu0 0.0
        %2895 = vmatpush1.msra.mxu0 0.0
        %2896 = vmatprep.subr.mxu0 0.0
        %2897 = vmatpush1.msra.mxu0 0.0
        %2898 = vmatprep.subr.mxu0 0.0
        %2899 = vmatpush1.msra.mxu0 0.0
        %2900 = vmatprep.subr.mxu0 0.0
        %2901 = vmatpush1.msra.mxu0 0.0
        %2902 = vmatprep.subr.mxu0 0.0
        %2903 = vmatpush1.msra.mxu0 0.0
        %2904 = vmatprep.subr.mxu0 0.0
        %2905 = vmatpush1.msra.mxu0 0.0
        %2906 = vmatprep.subr.mxu0 0.0
        %2907 = vmatpush1.msra.mxu0 0.0
        %2908 = vmatprep.subr.mxu0 0.0
        %2909 = vmatpush1.msra.mxu0 0.0
        %2910 = vmatprep.subr.mxu0 0.0
        %2911 = vmatpush1.msra.mxu0 0.0
        %2912 = vmatprep.subr.mxu0 0.0
        %2913 = vmatpush1.msra.mxu0 0.0
        %2914 = vmatprep.subr.mxu0 0.0
        %2915 = vmatpush1.msra.mxu0 0.0
        %2916 = vmatprep.subr.mxu0 0.0
        %2917 = vmatpush1.msra.mxu0 0.0
        %2918 = vmatprep.subr.mxu0 0.0
        %2919 = vmatpush1.msra.mxu0 0.0
        %2920 = vmatprep.subr.mxu0 0.0
        %2921 = vmatpush1.msra.mxu0 0.0
        %2922 = vmatprep.subr.mxu0 0.0
        %2923 = vmatpush1.msra.mxu0 0.0
        %2924 = vmatprep.subr.mxu0 0.0
        %2925 = vmatpush1.msra.mxu0 0.0
        %2926 = vmatprep.subr.mxu0 0.0
        %2927 = vmatpush1.msra.mxu0 0.0
        %2928 = vmatprep.subr.mxu0 0.0
        %2929 = vmatpush1.msra.mxu0 0.0
        %2930 = vmatprep.subr.mxu0 0.0
        %2931 = vmatpush1.msra.mxu0 0.0
        %2932 = vmatprep.subr.mxu0 0.0
        %2933 = vmatpush1.msra.mxu0 0.0
        %2934 = vmatprep.subr.mxu0 0.0
        %2935 = vmatpush1.msra.mxu0 0.0
        %2936 = vmatprep.subr.mxu0 0.0
        %2937 = vmatpush1.msra.mxu0 0.0
        %2938 = vmatprep.mubr.f32.mxu0 0.0
        %2939 = vmatmul.mubr.f32.gmra.mrb[0].mxu0 %v2872
        %v2940 = vpop.f32.mrb[0].mxu0
        %v2941 = vadd.f32 0.0, %v2940
        %v2942 = vpop.f32.mrb[0].mxu0
        %2943 = vdwg.mxu0
        %2944 = vrot.lane.b32.xlu0 %v2268, 104
        %v2945 = vpop.permute.xlu0 %2944
        %2946 = vrot.lane.b32.xlu0 %v2355, 104
        %v2947 = vpop.permute.xlu0 %2946
        %v2948 = vsel %vm1206, %v2945, 0
        %v2950 = vsel %vm1206, %v2947, 0
        %2952 = vmatprep.subr.mxu0 0.0
        %2953 = vmatpush1.xpose.msra.mxu0 %v2950
        %2954 = vmatprep.subr.mxu0 0.0
        %2955 = vmatpush1.xpose.msra.mxu0 0.0
        %2956 = vmatprep.subr.mxu0 0.0
        %2957 = vmatpush1.xpose.msra.mxu0 0.0
        %2958 = vmatprep.subr.mxu0 0.0
        %2959 = vmatpush1.xpose.msra.mxu0 0.0
        %2960 = vmatprep.subr.mxu0 0.0
        %2961 = vmatpush1.xpose.msra.mxu0 0.0
        %2962 = vmatprep.subr.mxu0 0.0
        %2963 = vmatpush1.xpose.msra.mxu0 0.0
        %2964 = vmatprep.subr.mxu0 0.0
        %2965 = vmatpush1.xpose.msra.mxu0 0.0
        %2966 = vmatprep.subr.mxu0 0.0
        %2967 = vmatpush1.xpose.msra.mxu0 0.0
        %2968 = vmatprep.subr.mxu0 0.0
        %2969 = vmatpush1.xpose.msra.mxu0 0.0
        %2970 = vmatprep.subr.mxu0 0.0
        %2971 = vmatpush1.xpose.msra.mxu0 0.0
        %2972 = vmatprep.subr.mxu0 0.0
        %2973 = vmatpush1.xpose.msra.mxu0 0.0
        %2974 = vmatprep.subr.mxu0 0.0
        %2975 = vmatpush1.xpose.msra.mxu0 0.0
        %2976 = vmatprep.subr.mxu0 0.0
        %2977 = vmatpush1.xpose.msra.mxu0 0.0
        %2978 = vmatprep.subr.mxu0 0.0
        %2979 = vmatpush1.xpose.msra.mxu0 0.0
        %2980 = vmatprep.subr.mxu0 0.0
        %2981 = vmatpush1.xpose.msra.mxu0 0.0
        %2982 = vmatprep.subr.mxu0 0.0
        %2983 = vmatpush1.xpose.msra.mxu0 0.0
        %2984 = vmatprep.subr.mxu0 0.0
        %2985 = vmatpush1.xpose.msra.mxu0 0.0
        %2986 = vmatprep.subr.mxu0 0.0
        %2987 = vmatpush1.xpose.msra.mxu0 0.0
        %2988 = vmatprep.subr.mxu0 0.0
        %2989 = vmatpush1.xpose.msra.mxu0 0.0
        %2990 = vmatprep.subr.mxu0 0.0
        %2991 = vmatpush1.xpose.msra.mxu0 0.0
        %2992 = vmatprep.subr.mxu0 0.0
        %2993 = vmatpush1.xpose.msra.mxu0 0.0
        %2994 = vmatprep.subr.mxu0 0.0
        %2995 = vmatpush1.xpose.msra.mxu0 0.0
        %2996 = vmatprep.subr.mxu0 0.0
        %2997 = vmatpush1.xpose.msra.mxu0 0.0
        %2998 = vmatprep.subr.mxu0 0.0
        %2999 = vmatpush1.xpose.msra.mxu0 0.0
        %3000 = vmatprep.subr.mxu0 0.0
        %3001 = vmatpush1.xpose.msra.mxu0 0.0
        %3002 = vmatprep.subr.mxu0 0.0
        %3003 = vmatpush1.xpose.msra.mxu0 0.0
        %3004 = vmatprep.subr.mxu0 0.0
        %3005 = vmatpush1.xpose.msra.mxu0 0.0
        %3006 = vmatprep.subr.mxu0 0.0
        %3007 = vmatpush1.xpose.msra.mxu0 0.0
        %3008 = vmatprep.subr.mxu0 0.0
        %3009 = vmatpush1.xpose.msra.mxu0 0.0
        %3010 = vmatprep.subr.mxu0 0.0
        %3011 = vmatpush1.xpose.msra.mxu0 0.0
        %3012 = vmatprep.subr.mxu0 0.0
        %3013 = vmatpush1.xpose.msra.mxu0 0.0
        %3014 = vmatprep.subr.mxu0 0.0
        %3015 = vmatpush1.xpose.msra.mxu0 0.0
        %3016 = vmatprep.mubr.f32.mxu0 0.0
        %3017 = vmatmul.mubr.f32.gmra.mrb[0].mxu0 %v2948
        %v3018 = vpop.f32.mrb[0].mxu0
        %v3019 = vadd.f32 0.0, %v3018
        %v3020 = vpop.f32.mrb[0].mxu0
        %3021 = vdwg.mxu0
        %v3022 = vsel %vm2525, -1e+30, %v3019
        %v3023 = vsel %vm1206, %v3022, -inf
        %3024 = vmax.xlane.f32.xlu0 %v3023
        %v3025 = vpop.xlane.xlu0 %3024
        %v3026 = vsub.f32 %v3022, %v3025
        %v3027 = vmul.f32 %v3026, 1.442695
        %v3028 = vpow.pop %v3027
        %v3029 = vsel %vm1206, %v3028, 0.0
        %3030 = vadd.xlane.f32.xlu0 %v3029
        %v3031 = vpop.xlane.xlu0 %3030
        %v3032 = vrcp.pop %v3031
        %v3033 = vmul.f32 %v3028, %v3032
        %3034 = vrot.lane.b32.xlu0 %v2440, 104
        %v3035 = vpop.permute.xlu0 %3034
        %v3038 = vsel %vm1206, %v3033, 0
        %3040 = vmatprep.subr.mxu0 0.0
        %3041 = vmatpush1.msra.mxu0 %v3035
        %3042 = vmatprep.subr.mxu0 0.0
        %3043 = vmatpush1.msra.mxu0 0.0
        %3044 = vmatprep.subr.mxu0 0.0
        %3045 = vmatpush1.msra.mxu0 0.0
        %3046 = vmatprep.subr.mxu0 0.0
        %3047 = vmatpush1.msra.mxu0 0.0
        %3048 = vmatprep.subr.mxu0 0.0
        %3049 = vmatpush1.msra.mxu0 0.0
        %3050 = vmatprep.subr.mxu0 0.0
        %3051 = vmatpush1.msra.mxu0 0.0
        %3052 = vmatprep.subr.mxu0 0.0
        %3053 = vmatpush1.msra.mxu0 0.0
        %3054 = vmatprep.subr.mxu0 0.0
        %3055 = vmatpush1.msra.mxu0 0.0
        %3056 = vmatprep.subr.mxu0 0.0
        %3057 = vmatpush1.msra.mxu0 0.0
        %3058 = vmatprep.subr.mxu0 0.0
        %3059 = vmatpush1.msra.mxu0 0.0
        %3060 = vmatprep.subr.mxu0 0.0
        %3061 = vmatpush1.msra.mxu0 0.0
        %3062 = vmatprep.subr.mxu0 0.0
        %3063 = vmatpush1.msra.mxu0 0.0
        %3064 = vmatprep.subr.mxu0 0.0
        %3065 = vmatpush1.msra.mxu0 0.0
        %3066 = vmatprep.subr.mxu0 0.0
        %3067 = vmatpush1.msra.mxu0 0.0
        %3068 = vmatprep.subr.mxu0 0.0
        %3069 = vmatpush1.msra.mxu0 0.0
        %3070 = vmatprep.subr.mxu0 0.0
        %3071 = vmatpush1.msra.mxu0 0.0
        %3072 = vmatprep.subr.mxu0 0.0
        %3073 = vmatpush1.msra.mxu0 0.0
        %3074 = vmatprep.subr.mxu0 0.0
        %3075 = vmatpush1.msra.mxu0 0.0
        %3076 = vmatprep.subr.mxu0 0.0
        %3077 = vmatpush1.msra.mxu0 0.0
        %3078 = vmatprep.subr.mxu0 0.0
        %3079 = vmatpush1.msra.mxu0 0.0
        %3080 = vmatprep.subr.mxu0 0.0
        %3081 = vmatpush1.msra.mxu0 0.0
        %3082 = vmatprep.subr.mxu0 0.0
        %3083 = vmatpush1.msra.mxu0 0.0
        %3084 = vmatprep.subr.mxu0 0.0
        %3085 = vmatpush1.msra.mxu0 0.0
        %3086 = vmatprep.subr.mxu0 0.0
        %3087 = vmatpush1.msra.mxu0 0.0
        %3088 = vmatprep.subr.mxu0 0.0
        %3089 = vmatpush1.msra.mxu0 0.0
        %3090 = vmatprep.subr.mxu0 0.0
        %3091 = vmatpush1.msra.mxu0 0.0
        %3092 = vmatprep.subr.mxu0 0.0
        %3093 = vmatpush1.msra.mxu0 0.0
        %3094 = vmatprep.subr.mxu0 0.0
        %3095 = vmatpush1.msra.mxu0 0.0
        %3096 = vmatprep.subr.mxu0 0.0
        %3097 = vmatpush1.msra.mxu0 0.0
        %3098 = vmatprep.subr.mxu0 0.0
        %3099 = vmatpush1.msra.mxu0 0.0
        %3100 = vmatprep.subr.mxu0 0.0
        %3101 = vmatpush1.msra.mxu0 0.0
        %3102 = vmatprep.subr.mxu0 0.0
        %3103 = vmatpush1.msra.mxu0 0.0
        %3104 = vmatprep.mubr.f32.mxu0 0.0
        %3105 = vmatmul.mubr.f32.gmra.mrb[0].mxu0 %v3038
        %v3106 = vpop.f32.mrb[0].mxu0
        %v3107 = vadd.f32 0.0, %v3106
        %v3108 = vpop.f32.mrb[0].mxu0
        %3109 = vdwg.mxu0
        %3111 = vrot.lane.b32.xlu0 %v2775, 8
        %v3112 = vpop.permute.xlu0 %3111
        %3115 = vrot.lane.b32.xlu0 %v2941, 16
        %v3116 = vpop.permute.xlu0 %3115
        %3119 = vrot.lane.b32.xlu0 %v3107, 24
        %v3120 = vpop.permute.xlu0 %3119
        %v3122 = vsel %vm1206, %v2608, %v3112
        %v3123 = vsel %vm1303, %v3122, %v3116
        %v3124 = vsel %vm2043, %v3123, %v3120
        %3125 = vrot.lane.b32.xlu0 %v2184, 32
        %v3126 = vpop.permute.xlu0 %3125
        %3127 = vrot.lane.b32.xlu0 %v2185, 32
        %v3128 = vpop.permute.xlu0 %3127
        %3129 = vrot.lane.b32.xlu0 %v2186, 32
        %v3130 = vpop.permute.xlu0 %3129
        %3131 = vrot.lane.b32.xlu0 %v2187, 32
        %v3132 = vpop.permute.xlu0 %3131
        %3137 = vrot.lane.b32.xlu0 %v2193, 32
        %v3138 = vpop.permute.xlu0 %3137
        %v3141 = vsel %vm938, %v3124, 0
        %3143 = vmatprep.subr.mxu0 0.0
        %3144 = vmatpush1.msra.mxu0 %v3126
        %3145 = vmatprep.subr.mxu0 0.0
        %3146 = vmatpush1.msra.mxu0 %v3128
        %3147 = vmatprep.subr.mxu0 0.0
        %3148 = vmatpush1.msra.mxu0 %v3130
        %3149 = vmatprep.subr.mxu0 0.0
        %3150 = vmatpush1.msra.mxu0 %v3132
        %3151 = vmatprep.subr.mxu0 0.0
        %3152 = vmatpush1.msra.mxu0 0.0
        %3153 = vmatprep.subr.mxu0 0.0
        %3154 = vmatpush1.msra.mxu0 0.0
        %3155 = vmatprep.subr.mxu0 0.0
        %3156 = vmatpush1.msra.mxu0 0.0
        %3157 = vmatprep.subr.mxu0 0.0
        %3158 = vmatpush1.msra.mxu0 0.0
        %3159 = vmatprep.subr.mxu0 0.0
        %3160 = vmatpush1.msra.mxu0 0.0
        %3161 = vmatprep.subr.mxu0 0.0
        %3162 = vmatpush1.msra.mxu0 0.0
        %3163 = vmatprep.subr.mxu0 0.0
        %3164 = vmatpush1.msra.mxu0 0.0
        %3165 = vmatprep.subr.mxu0 0.0
        %3166 = vmatpush1.msra.mxu0 0.0
        %3167 = vmatprep.subr.mxu0 0.0
        %3168 = vmatpush1.msra.mxu0 0.0
        %3169 = vmatprep.subr.mxu0 0.0
        %3170 = vmatpush1.msra.mxu0 0.0
        %3171 = vmatprep.subr.mxu0 0.0
        %3172 = vmatpush1.msra.mxu0 0.0
        %3173 = vmatprep.subr.mxu0 0.0
        %3174 = vmatpush1.msra.mxu0 0.0
        %3175 = vmatprep.subr.mxu0 0.0
        %3176 = vmatpush1.msra.mxu0 0.0
        %3177 = vmatprep.subr.mxu0 0.0
        %3178 = vmatpush1.msra.mxu0 0.0
        %3179 = vmatprep.subr.mxu0 0.0
        %3180 = vmatpush1.msra.mxu0 0.0
        %3181 = vmatprep.subr.mxu0 0.0
        %3182 = vmatpush1.msra.mxu0 0.0
        %3183 = vmatprep.subr.mxu0 0.0
        %3184 = vmatpush1.msra.mxu0 0.0
        %3185 = vmatprep.subr.mxu0 0.0
        %3186 = vmatpush1.msra.mxu0 0.0
        %3187 = vmatprep.subr.mxu0 0.0
        %3188 = vmatpush1.msra.mxu0 0.0
        %3189 = vmatprep.subr.mxu0 0.0
        %3190 = vmatpush1.msra.mxu0 0.0
        %3191 = vmatprep.subr.mxu0 0.0
        %3192 = vmatpush1.msra.mxu0 0.0
        %3193 = vmatprep.subr.mxu0 0.0
        %3194 = vmatpush1.msra.mxu0 0.0
        %3195 = vmatprep.subr.mxu0 0.0
        %3196 = vmatpush1.msra.mxu0 0.0
        %3197 = vmatprep.subr.mxu0 0.0
        %3198 = vmatpush1.msra.mxu0 0.0
        %3199 = vmatprep.subr.mxu0 0.0
        %3200 = vmatpush1.msra.mxu0 0.0
        %3201 = vmatprep.subr.mxu0 0.0
        %3202 = vmatpush1.msra.mxu0 0.0
        %3203 = vmatprep.subr.mxu0 0.0
        %3204 = vmatpush1.msra.mxu0 0.0
        %3205 = vmatprep.subr.mxu0 0.0
        %3206 = vmatpush1.msra.mxu0 0.0
        %3207 = vmatprep.mubr.f32.mxu0 0.0
        %3208 = vmatmul.mubr.f32.gmra.mrb[0].mxu0 %v3141
        %v3209 = vpop.f32.mrb[0].mxu0
        %v3210 = vadd.f32 %v3138, %v3209
        %v3211 = vpop.f32.mrb[0].mxu0
        %3212 = vdwg.mxu0
        %v3213 = vld [vmem:[%s23] sm:$0x3]
        %v3214 = vadd.f32 %v924, %v3210
        %v3215 = vsel %vm938, %v3214, 0.0
        %3216 = vadd.xlane.f32.xlu0 %v3215
        %v3217 = vpop.xlane.xlu0 %3216
        %v3218 = vmul.f32 %v3217, %v2151
        %v3219 = vsub.f32 %v3214, %v3218
        %v3220 = vmul.f32 %v3219, %v3219
        %v3221 = vsel %vm938, %v3220, 0.0
        %3222 = vadd.xlane.f32.xlu0 %v3221
        %v3223 = vpop.xlane.xlu0 %3222
        %v3224 = vmul.f32 %v3223, %v2151
        %v3225 = vadd.f32 %v3224, 1e-05
        %v3226 = vrsqrt.pop %v3225
        %v3227 = vmul.f32 %v3219, %v3226
        %v3228 = vlaneseq
        %v3229 = vshrl.u32 %v3228, 7
        %v3230 = vsub.s32 0, %v3229
        %v3231 = vrot.slane %v3213, %v3230
        %v3232 = vmul.f32 %v3227, %v3231
        %v3233 = vlaneseq
        %v3234 = vshrl.u32 %v3233, 7
        %v3235 = vsub.s32 1, %v3234
        %v3236 = vrot.slane %v3213, %v3235
        %v3237 = vadd.f32 %v3232, %v3236
        %v3238 = vld [vmem:[%s8] sm:$0xff]
        %v3239 = vld [vmem:[%s8 + $0x8] sm:$0xff]
        %v3240 = vld [vmem:[%s8 + $0x10] sm:$0xff]
        %v3241 = vld [vmem:[%s8 + $0x18] sm:$0xff]
        %v3242 = vld [vmem:[%s9] sm:$0x1]
        %v3244 = vlaneseq
        %v3245 = vshrl.u32 %v3244, 7
        %v3246 = vsub.s32 0, %v3245
        %v3247 = vrot.slane %v3242, %v3246
        %v3250 = vsel %vm938, %v2182, 0
        %v3253 = vsel %vm938, %v2183, 0
        %3255 = vmatprep.subr.mxu0 0.0
        %3256 = vmatpush1.msra.mxu0 %v3238
        %3257 = vmatprep.subr.mxu0 0.0
        %3258 = vmatpush1.msra.mxu0 %v3239
        %3259 = vmatprep.subr.mxu0 0.0
        %3260 = vmatpush1.msra.mxu0 %v3240
        %3261 = vmatprep.subr.mxu0 0.0
        %3262 = vmatpush1.msra.mxu0 %v3241
        %3263 = vmatprep.subr.mxu0 0.0
        %3264 = vmatpush1.msra.mxu0 0.0
        %3265 = vmatprep.subr.mxu0 0.0
        %3266 = vmatpush1.msra.mxu0 0.0
        %3267 = vmatprep.subr.mxu0 0.0
        %3268 = vmatpush1.msra.mxu0 0.0
        %3269 = vmatprep.subr.mxu0 0.0
        %3270 = vmatpush1.msra.mxu0 0.0
        %3271 = vmatprep.subr.mxu0 0.0
        %3272 = vmatpush1.msra.mxu0 0.0
        %3273 = vmatprep.subr.mxu0 0.0
        %3274 = vmatpush1.msra.mxu0 0.0
        %3275 = vmatprep.subr.mxu0 0.0
        %3276 = vmatpush1.msra.mxu0 0.0
        %3277 = vmatprep.subr.mxu0 0.0
        %3278 = vmatpush1.msra.mxu0 0.0
        %3279 = vmatprep.subr.mxu0 0.0
        %3280 = vmatpush1.msra.mxu0 0.0
        %3281 = vmatprep.subr.mxu0 0.0
        %3282 = vmatpush1.msra.mxu0 0.0
        %3283 = vmatprep.subr.mxu0 0.0
        %3284 = vmatpush1.msra.mxu0 0.0
        %3285 = vmatprep.subr.mxu0 0.0
        %3286 = vmatpush1.msra.mxu0 0.0
        %3287 = vmatprep.subr.mxu0 0.0
        %3288 = vmatpush1.msra.mxu0 0.0
        %3289 = vmatprep.subr.mxu0 0.0
        %3290 = vmatpush1.msra.mxu0 0.0
        %3291 = vmatprep.subr.mxu0 0.0
        %3292 = vmatpush1.msra.mxu0 0.0
        %3293 = vmatprep.subr.mxu0 0.0
        %3294 = vmatpush1.msra.mxu0 0.0
        %3295 = vmatprep.subr.mxu0 0.0
        %3296 = vmatpush1.msra.mxu0 0.0
        %3297 = vmatprep.subr.mxu0 0.0
        %3298 = vmatpush1.msra.mxu0 0.0
        %3299 = vmatprep.subr.mxu0 0.0
        %3300 = vmatpush1.msra.mxu0 0.0
        %3301 = vmatprep.subr.mxu0 0.0
        %3302 = vmatpush1.msra.mxu0 0.0
        %3303 = vmatprep.subr.mxu0 0.0
        %3304 = vmatpush1.msra.mxu0 0.0
        %3305 = vmatprep.subr.mxu0 0.0
        %3306 = vmatpush1.msra.mxu0 0.0
        %3307 = vmatprep.subr.mxu0 0.0
        %3308 = vmatpush1.msra.mxu0 0.0
        %3309 = vmatprep.subr.mxu0 0.0
        %3310 = vmatpush1.msra.mxu0 0.0
        %3311 = vmatprep.subr.mxu0 0.0
        %3312 = vmatpush1.msra.mxu0 0.0
        %3313 = vmatprep.subr.mxu0 0.0
        %3314 = vmatpush1.msra.mxu0 0.0
        %3315 = vmatprep.subr.mxu0 0.0
        %3316 = vmatpush1.msra.mxu0 0.0
        %3317 = vmatprep.subr.mxu0 0.0
        %3318 = vmatpush1.msra.mxu0 0.0
        %3319 = vmatprep.mubr.f32.mxu0 0.0
        %3320 = vmatmul.mubr.f32.gmra.mrb[0].mxu0 %v3250
        %v3321 = vpop.f32.mrb[0].mxu0
        %v3322 = vadd.f32 %v3247, %v3321
        %v3323 = vpop.f32.mrb[0].mxu0
        %3324 = vmatprep.mubr.f32.mxu0 0.0
        %3325 = vmatmul.mubr.f32.gmra.mrb[0].mxu0 %v3253
        %v3326 = vpop.f32.mrb[0].mxu0
        %v3327 = vadd.f32 %v3247, %v3326
        %v3328 = vpop.f32.mrb[0].mxu0
        %3329 = vdwg.mxu0
        %v3330 = vmul.f32 %v3322, 0.35355338
        %v3331 = vmul.f32 %v3327, 0.35355338
        %3336 = vrot.lane.b32.xlu0 %v3238, 96
        %v3337 = vpop.permute.xlu0 %3336
        %3338 = vrot.lane.b32.xlu0 %v3239, 96
        %v3339 = vpop.permute.xlu0 %3338
        %3340 = vrot.lane.b32.xlu0 %v3240, 96
        %v3341 = vpop.permute.xlu0 %3340
        %3342 = vrot.lane.b32.xlu0 %v3241, 96
        %v3343 = vpop.permute.xlu0 %3342
        %3348 = vrot.lane.b32.xlu0 %v3247, 96
        %v3349 = vpop.permute.xlu0 %3348
        %v3352 = vsel %vm938, %v3237, 0
        %3354 = vmatprep.subr.mxu0 0.0
        %3355 = vmatpush1.msra.mxu0 %v3337
        %3356 = vmatprep.subr.mxu0 0.0
        %3357 = vmatpush1.msra.mxu0 %v3339
        %3358 = vmatprep.subr.mxu0 0.0
        %3359 = vmatpush1.msra.mxu0 %v3341
        %3360 = vmatprep.subr.mxu0 0.0
        %3361 = vmatpush1.msra.mxu0 %v3343
        %3362 = vmatprep.subr.mxu0 0.0
        %3363 = vmatpush1.msra.mxu0 0.0
        %3364 = vmatprep.subr.mxu0 0.0
        %3365 = vmatpush1.msra.mxu0 0.0
        %3366 = vmatprep.subr.mxu0 0.0
        %3367 = vmatpush1.msra.mxu0 0.0
        %3368 = vmatprep.subr.mxu0 0.0
        %3369 = vmatpush1.msra.mxu0 0.0
        %3370 = vmatprep.subr.mxu0 0.0
        %3371 = vmatpush1.msra.mxu0 0.0
        %3372 = vmatprep.subr.mxu0 0.0
        %3373 = vmatpush1.msra.mxu0 0.0
        %3374 = vmatprep.subr.mxu0 0.0
        %3375 = vmatpush1.msra.mxu0 0.0
        %3376 = vmatprep.subr.mxu0 0.0
        %3377 = vmatpush1.msra.mxu0 0.0
        %3378 = vmatprep.subr.mxu0 0.0
        %3379 = vmatpush1.msra.mxu0 0.0
        %3380 = vmatprep.subr.mxu0 0.0
        %3381 = vmatpush1.msra.mxu0 0.0
        %3382 = vmatprep.subr.mxu0 0.0
        %3383 = vmatpush1.msra.mxu0 0.0
        %3384 = vmatprep.subr.mxu0 0.0
        %3385 = vmatpush1.msra.mxu0 0.0
        %3386 = vmatprep.subr.mxu0 0.0
        %3387 = vmatpush1.msra.mxu0 0.0
        %3388 = vmatprep.subr.mxu0 0.0
        %3389 = vmatpush1.msra.mxu0 0.0
        %3390 = vmatprep.subr.mxu0 0.0
        %3391 = vmatpush1.msra.mxu0 0.0
        %3392 = vmatprep.subr.mxu0 0.0
        %3393 = vmatpush1.msra.mxu0 0.0
        %3394 = vmatprep.subr.mxu0 0.0
        %3395 = vmatpush1.msra.mxu0 0.0
        %3396 = vmatprep.subr.mxu0 0.0
        %3397 = vmatpush1.msra.mxu0 0.0
        %3398 = vmatprep.subr.mxu0 0.0
        %3399 = vmatpush1.msra.mxu0 0.0
        %3400 = vmatprep.subr.mxu0 0.0
        %3401 = vmatpush1.msra.mxu0 0.0
        %3402 = vmatprep.subr.mxu0 0.0
        %3403 = vmatpush1.msra.mxu0 0.0
        %3404 = vmatprep.subr.mxu0 0.0
        %3405 = vmatpush1.msra.mxu0 0.0
        %3406 = vmatprep.subr.mxu0 0.0
        %3407 = vmatpush1.msra.mxu0 0.0
        %3408 = vmatprep.subr.mxu0 0.0
        %3409 = vmatpush1.msra.mxu0 0.0
        %3410 = vmatprep.subr.mxu0 0.0
        %3411 = vmatpush1.msra.mxu0 0.0
        %3412 = vmatprep.subr.mxu0 0.0
        %3413 = vmatpush1.msra.mxu0 0.0
        %3414 = vmatprep.subr.mxu0 0.0
        %3415 = vmatpush1.msra.mxu0 0.0
        %3416 = vmatprep.subr.mxu0 0.0
        %3417 = vmatpush1.msra.mxu0 0.0
        %3418 = vmatprep.mubr.f32.mxu0 0.0
        %3419 = vmatmul.mubr.f32.gmra.mrb[0].mxu0 %v3352
        %v3420 = vpop.f32.mrb[0].mxu0
        %v3421 = vadd.f32 %v3349, %v3420
        %v3422 = vpop.f32.mrb[0].mxu0
        %3423 = vdwg.mxu0
        %3424 = vrot.lane.b32.xlu0 %v3238, 64
        %v3425 = vpop.permute.xlu0 %3424
        %3426 = vrot.lane.b32.xlu0 %v3239, 64
        %v3427 = vpop.permute.xlu0 %3426
        %3428 = vrot.lane.b32.xlu0 %v3240, 64
        %v3429 = vpop.permute.xlu0 %3428
        %3430 = vrot.lane.b32.xlu0 %v3241, 64
        %v3431 = vpop.permute.xlu0 %3430
        %3436 = vrot.lane.b32.xlu0 %v3247, 64
        %v3437 = vpop.permute.xlu0 %3436
        %3439 = vmatprep.subr.mxu0 0.0
        %3440 = vmatpush1.msra.mxu0 %v3425
        %3441 = vmatprep.subr.mxu0 0.0
        %3442 = vmatpush1.msra.mxu0 %v3427
        %3443 = vmatprep.subr.mxu0 0.0
        %3444 = vmatpush1.msra.mxu0 %v3429
        %3445 = vmatprep.subr.mxu0 0.0
        %3446 = vmatpush1.msra.mxu0 %v3431
        %3447 = vmatprep.subr.mxu0 0.0
        %3448 = vmatpush1.msra.mxu0 0.0
        %3449 = vmatprep.subr.mxu0 0.0
        %3450 = vmatpush1.msra.mxu0 0.0
        %3451 = vmatprep.subr.mxu0 0.0
        %3452 = vmatpush1.msra.mxu0 0.0
        %3453 = vmatprep.subr.mxu0 0.0
        %3454 = vmatpush1.msra.mxu0 0.0
        %3455 = vmatprep.subr.mxu0 0.0
        %3456 = vmatpush1.msra.mxu0 0.0
        %3457 = vmatprep.subr.mxu0 0.0
        %3458 = vmatpush1.msra.mxu0 0.0
        %3459 = vmatprep.subr.mxu0 0.0
        %3460 = vmatpush1.msra.mxu0 0.0
        %3461 = vmatprep.subr.mxu0 0.0
        %3462 = vmatpush1.msra.mxu0 0.0
        %3463 = vmatprep.subr.mxu0 0.0
        %3464 = vmatpush1.msra.mxu0 0.0
        %3465 = vmatprep.subr.mxu0 0.0
        %3466 = vmatpush1.msra.mxu0 0.0
        %3467 = vmatprep.subr.mxu0 0.0
        %3468 = vmatpush1.msra.mxu0 0.0
        %3469 = vmatprep.subr.mxu0 0.0
        %3470 = vmatpush1.msra.mxu0 0.0
        %3471 = vmatprep.subr.mxu0 0.0
        %3472 = vmatpush1.msra.mxu0 0.0
        %3473 = vmatprep.subr.mxu0 0.0
        %3474 = vmatpush1.msra.mxu0 0.0
        %3475 = vmatprep.subr.mxu0 0.0
        %3476 = vmatpush1.msra.mxu0 0.0
        %3477 = vmatprep.subr.mxu0 0.0
        %3478 = vmatpush1.msra.mxu0 0.0
        %3479 = vmatprep.subr.mxu0 0.0
        %3480 = vmatpush1.msra.mxu0 0.0
        %3481 = vmatprep.subr.mxu0 0.0
        %3482 = vmatpush1.msra.mxu0 0.0
        %3483 = vmatprep.subr.mxu0 0.0
        %3484 = vmatpush1.msra.mxu0 0.0
        %3485 = vmatprep.subr.mxu0 0.0
        %3486 = vmatpush1.msra.mxu0 0.0
        %3487 = vmatprep.subr.mxu0 0.0
        %3488 = vmatpush1.msra.mxu0 0.0
        %3489 = vmatprep.subr.mxu0 0.0
        %3490 = vmatpush1.msra.mxu0 0.0
        %3491 = vmatprep.subr.mxu0 0.0
        %3492 = vmatpush1.msra.mxu0 0.0
        %3493 = vmatprep.subr.mxu0 0.0
        %3494 = vmatpush1.msra.mxu0 0.0
        %3495 = vmatprep.subr.mxu0 0.0
        %3496 = vmatpush1.msra.mxu0 0.0
        %3497 = vmatprep.subr.mxu0 0.0
        %3498 = vmatpush1.msra.mxu0 0.0
        %3499 = vmatprep.subr.mxu0 0.0
        %3500 = vmatpush1.msra.mxu0 0.0
        %3501 = vmatprep.subr.mxu0 0.0
        %3502 = vmatpush1.msra.mxu0 0.0
        %3503 = vmatprep.mubr.f32.mxu0 0.0
        %3504 = vmatmul.mubr.f32.gmra.mrb[0].mxu0 %v3352
        %v3505 = vpop.f32.mrb[0].mxu0
        %v3506 = vadd.f32 %v3437, %v3505
        %v3507 = vpop.f32.mrb[0].mxu0
        %3508 = vdwg.mxu0
        %v3510 = vsel %vm1206, %v3330, 0
        %v3513 = vsel %vm1206, %v3331, 0
        %v3516 = vsel %vm1206, %v3421, 0
        %3518 = vmatprep.subr.mxu0 0.0
        %3519 = vmatpush1.xpose.msra.mxu0 %v3516
        %3520 = vmatprep.subr.mxu0 0.0
        %3521 = vmatpush1.xpose.msra.mxu0 0.0
        %3522 = vmatprep.subr.mxu0 0.0
        %3523 = vmatpush1.xpose.msra.mxu0 0.0
        %3524 = vmatprep.subr.mxu0 0.0
        %3525 = vmatpush1.xpose.msra.mxu0 0.0
        %3526 = vmatprep.subr.mxu0 0.0
        %3527 = vmatpush1.xpose.msra.mxu0 0.0
        %3528 = vmatprep.subr.mxu0 0.0
        %3529 = vmatpush1.xpose.msra.mxu0 0.0
        %3530 = vmatprep.subr.mxu0 0.0
        %3531 = vmatpush1.xpose.msra.mxu0 0.0
        %3532 = vmatprep.subr.mxu0 0.0
        %3533 = vmatpush1.xpose.msra.mxu0 0.0
        %3534 = vmatprep.subr.mxu0 0.0
        %3535 = vmatpush1.xpose.msra.mxu0 0.0
        %3536 = vmatprep.subr.mxu0 0.0
        %3537 = vmatpush1.xpose.msra.mxu0 0.0
        %3538 = vmatprep.subr.mxu0 0.0
        %3539 = vmatpush1.xpose.msra.mxu0 0.0
        %3540 = vmatprep.subr.mxu0 0.0
        %3541 = vmatpush1.xpose.msra.mxu0 0.0
        %3542 = vmatprep.subr.mxu0 0.0
        %3543 = vmatpush1.xpose.msra.mxu0 0.0
        %3544 = vmatprep.subr.mxu0 0.0
        %3545 = vmatpush1.xpose.msra.mxu0 0.0
        %3546 = vmatprep.subr.mxu0 0.0
        %3547 = vmatpush1.xpose.msra.mxu0 0.0
        %3548 = vmatprep.subr.mxu0 0.0
        %3549 = vmatpush1.xpose.msra.mxu0 0.0
        %3550 = vmatprep.subr.mxu0 0.0
        %3551 = vmatpush1.xpose.msra.mxu0 0.0
        %3552 = vmatprep.subr.mxu0 0.0
        %3553 = vmatpush1.xpose.msra.mxu0 0.0
        %3554 = vmatprep.subr.mxu0 0.0
        %3555 = vmatpush1.xpose.msra.mxu0 0.0
        %3556 = vmatprep.subr.mxu0 0.0
        %3557 = vmatpush1.xpose.msra.mxu0 0.0
        %3558 = vmatprep.subr.mxu0 0.0
        %3559 = vmatpush1.xpose.msra.mxu0 0.0
        %3560 = vmatprep.subr.mxu0 0.0
        %3561 = vmatpush1.xpose.msra.mxu0 0.0
        %3562 = vmatprep.subr.mxu0 0.0
        %3563 = vmatpush1.xpose.msra.mxu0 0.0
        %3564 = vmatprep.subr.mxu0 0.0
        %3565 = vmatpush1.xpose.msra.mxu0 0.0
        %3566 = vmatprep.subr.mxu0 0.0
        %3567 = vmatpush1.xpose.msra.mxu0 0.0
        %3568 = vmatprep.subr.mxu0 0.0
        %3569 = vmatpush1.xpose.msra.mxu0 0.0
        %3570 = vmatprep.subr.mxu0 0.0
        %3571 = vmatpush1.xpose.msra.mxu0 0.0
        %3572 = vmatprep.subr.mxu0 0.0
        %3573 = vmatpush1.xpose.msra.mxu0 0.0
        %3574 = vmatprep.subr.mxu0 0.0
        %3575 = vmatpush1.xpose.msra.mxu0 0.0
        %3576 = vmatprep.subr.mxu0 0.0
        %3577 = vmatpush1.xpose.msra.mxu0 0.0
        %3578 = vmatprep.subr.mxu0 0.0
        %3579 = vmatpush1.xpose.msra.mxu0 0.0
        %3580 = vmatprep.subr.mxu0 0.0
        %3581 = vmatpush1.xpose.msra.mxu0 0.0
        %3582 = vmatprep.mubr.f32.mxu0 0.0
        %3583 = vmatmul.mubr.f32.gmra.mrb[0].mxu0 %v3510
        %v3584 = vpop.f32.mrb[0].mxu0
        %v3585 = vadd.f32 0.0, %v3584
        %v3586 = vpop.f32.mrb[0].mxu0
        %3587 = vmatprep.mubr.f32.mxu0 0.0
        %3588 = vmatmul.mubr.f32.gmra.mrb[0].mxu0 %v3513
        %v3589 = vpop.f32.mrb[0].mxu0
        %v3590 = vadd.f32 0.0, %v3589
        %v3591 = vpop.f32.mrb[0].mxu0
        %3592 = vdwg.mxu0
        %v3593 = vsel %vm2525, -1e+30, %v3585
        %v3594 = vsel %vm2525, -1e+30, %v3590
        %v3595 = vsel %vm1206, %v3593, -inf
        %3596 = vmax.xlane.f32.xlu0 %v3595
        %v3597 = vpop.xlane.xlu0 %3596
        %v3598 = vsel %vm1206, %v3594, -inf
        %3599 = vmax.xlane.f32.xlu0 %v3598
        %v3600 = vpop.xlane.xlu0 %3599
        %v3601 = vsub.f32 %v3593, %v3597
        %v3602 = vsub.f32 %v3594, %v3600
        %v3603 = vmul.f32 %v3601, 1.442695
        %v3604 = vpow.pop %v3603
        %v3605 = vmul.f32 %v3602, 1.442695
        %v3606 = vpow.pop %v3605
        %v3607 = vsel %vm1206, %v3604, 0.0
        %3608 = vadd.xlane.f32.xlu0 %v3607
        %v3609 = vpop.xlane.xlu0 %3608
        %v3610 = vsel %vm1206, %v3606, 0.0
        %3611 = vadd.xlane.f32.xlu0 %v3610
        %v3612 = vpop.xlane.xlu0 %3611
        %v3613 = vrcp.pop %v3609
        %v3614 = vrcp.pop %v3612
        %v3615 = vmul.f32 %v3604, %v3613
        %v3616 = vmul.f32 %v3606, %v3614
        %v3618 = vsel %vm1206, %v3615, 0
        %v3621 = vsel %vm1206, %v3616, 0
        %3623 = vmatprep.subr.mxu0 0.0
        %3624 = vmatpush1.msra.mxu0 %v3506
        %3625 = vmatprep.subr.mxu0 0.0
        %3626 = vmatpush1.msra.mxu0 0.0
        %3627 = vmatprep.subr.mxu0 0.0
        %3628 = vmatpush1.msra.mxu0 0.0
        %3629 = vmatprep.subr.mxu0 0.0
        %3630 = vmatpush1.msra.mxu0 0.0
        %3631 = vmatprep.subr.mxu0 0.0
        %3632 = vmatpush1.msra.mxu0 0.0
        %3633 = vmatprep.subr.mxu0 0.0
        %3634 = vmatpush1.msra.mxu0 0.0
        %3635 = vmatprep.subr.mxu0 0.0
        %3636 = vmatpush1.msra.mxu0 0.0
        %3637 = vmatprep.subr.mxu0 0.0
        %3638 = vmatpush1.msra.mxu0 0.0
        %3639 = vmatprep.subr.mxu0 0.0
        %3640 = vmatpush1.msra.mxu0 0.0
        %3641 = vmatprep.subr.mxu0 0.0
        %3642 = vmatpush1.msra.mxu0 0.0
        %3643 = vmatprep.subr.mxu0 0.0
        %3644 = vmatpush1.msra.mxu0 0.0
        %3645 = vmatprep.subr.mxu0 0.0
        %3646 = vmatpush1.msra.mxu0 0.0
        %3647 = vmatprep.subr.mxu0 0.0
        %3648 = vmatpush1.msra.mxu0 0.0
        %3649 = vmatprep.subr.mxu0 0.0
        %3650 = vmatpush1.msra.mxu0 0.0
        %3651 = vmatprep.subr.mxu0 0.0
        %3652 = vmatpush1.msra.mxu0 0.0
        %3653 = vmatprep.subr.mxu0 0.0
        %3654 = vmatpush1.msra.mxu0 0.0
        %3655 = vmatprep.subr.mxu0 0.0
        %3656 = vmatpush1.msra.mxu0 0.0
        %3657 = vmatprep.subr.mxu0 0.0
        %3658 = vmatpush1.msra.mxu0 0.0
        %3659 = vmatprep.subr.mxu0 0.0
        %3660 = vmatpush1.msra.mxu0 0.0
        %3661 = vmatprep.subr.mxu0 0.0
        %3662 = vmatpush1.msra.mxu0 0.0
        %3663 = vmatprep.subr.mxu0 0.0
        %3664 = vmatpush1.msra.mxu0 0.0
        %3665 = vmatprep.subr.mxu0 0.0
        %3666 = vmatpush1.msra.mxu0 0.0
        %3667 = vmatprep.subr.mxu0 0.0
        %3668 = vmatpush1.msra.mxu0 0.0
        %3669 = vmatprep.subr.mxu0 0.0
        %3670 = vmatpush1.msra.mxu0 0.0
        %3671 = vmatprep.subr.mxu0 0.0
        %3672 = vmatpush1.msra.mxu0 0.0
        %3673 = vmatprep.subr.mxu0 0.0
        %3674 = vmatpush1.msra.mxu0 0.0
        %3675 = vmatprep.subr.mxu0 0.0
        %3676 = vmatpush1.msra.mxu0 0.0
        %3677 = vmatprep.subr.mxu0 0.0
        %3678 = vmatpush1.msra.mxu0 0.0
        %3679 = vmatprep.subr.mxu0 0.0
        %3680 = vmatpush1.msra.mxu0 0.0
        %3681 = vmatprep.subr.mxu0 0.0
        %3682 = vmatpush1.msra.mxu0 0.0
        %3683 = vmatprep.subr.mxu0 0.0
        %3684 = vmatpush1.msra.mxu0 0.0
        %3685 = vmatprep.subr.mxu0 0.0
        %3686 = vmatpush1.msra.mxu0 0.0
        %3687 = vmatprep.mubr.f32.mxu0 0.0
        %3688 = vmatmul.mubr.f32.gmra.mrb[0].mxu0 %v3618
        %v3689 = vpop.f32.mrb[0].mxu0
        %v3690 = vadd.f32 0.0, %v3689
        %v3691 = vpop.f32.mrb[0].mxu0
        %3692 = vmatprep.mubr.f32.mxu0 0.0
        %3693 = vmatmul.mubr.f32.gmra.mrb[0].mxu0 %v3621
        %v3694 = vpop.f32.mrb[0].mxu0
        %v3695 = vadd.f32 0.0, %v3694
        %v3696 = vpop.f32.mrb[0].mxu0
        %3697 = vdwg.mxu0
        %3698 = vrot.lane.b32.xlu0 %v3330, 120
        %v3699 = vpop.permute.xlu0 %3698
        %3700 = vrot.lane.b32.xlu0 %v3331, 120
        %v3701 = vpop.permute.xlu0 %3700
        %3702 = vrot.lane.b32.xlu0 %v3421, 120
        %v3703 = vpop.permute.xlu0 %3702
        %v3704 = vsel %vm1206, %v3699, 0
        %v3706 = vsel %vm1206, %v3701, 0
        %v3708 = vsel %vm1206, %v3703, 0
        %3710 = vmatprep.subr.mxu0 0.0
        %3711 = vmatpush1.xpose.msra.mxu0 %v3708
        %3712 = vmatprep.subr.mxu0 0.0
        %3713 = vmatpush1.xpose.msra.mxu0 0.0
        %3714 = vmatprep.subr.mxu0 0.0
        %3715 = vmatpush1.xpose.msra.mxu0 0.0
        %3716 = vmatprep.subr.mxu0 0.0
        %3717 = vmatpush1.xpose.msra.mxu0 0.0
        %3718 = vmatprep.subr.mxu0 0.0
        %3719 = vmatpush1.xpose.msra.mxu0 0.0
        %3720 = vmatprep.subr.mxu0 0.0
        %3721 = vmatpush1.xpose.msra.mxu0 0.0
        %3722 = vmatprep.subr.mxu0 0.0
        %3723 = vmatpush1.xpose.msra.mxu0 0.0
        %3724 = vmatprep.subr.mxu0 0.0
        %3725 = vmatpush1.xpose.msra.mxu0 0.0
        %3726 = vmatprep.subr.mxu0 0.0
        %3727 = vmatpush1.xpose.msra.mxu0 0.0
        %3728 = vmatprep.subr.mxu0 0.0
        %3729 = vmatpush1.xpose.msra.mxu0 0.0
        %3730 = vmatprep.subr.mxu0 0.0
        %3731 = vmatpush1.xpose.msra.mxu0 0.0
        %3732 = vmatprep.subr.mxu0 0.0
        %3733 = vmatpush1.xpose.msra.mxu0 0.0
        %3734 = vmatprep.subr.mxu0 0.0
        %3735 = vmatpush1.xpose.msra.mxu0 0.0
        %3736 = vmatprep.subr.mxu0 0.0
        %3737 = vmatpush1.xpose.msra.mxu0 0.0
        %3738 = vmatprep.subr.mxu0 0.0
        %3739 = vmatpush1.xpose.msra.mxu0 0.0
        %3740 = vmatprep.subr.mxu0 0.0
        %3741 = vmatpush1.xpose.msra.mxu0 0.0
        %3742 = vmatprep.subr.mxu0 0.0
        %3743 = vmatpush1.xpose.msra.mxu0 0.0
        %3744 = vmatprep.subr.mxu0 0.0
        %3745 = vmatpush1.xpose.msra.mxu0 0.0
        %3746 = vmatprep.subr.mxu0 0.0
        %3747 = vmatpush1.xpose.msra.mxu0 0.0
        %3748 = vmatprep.subr.mxu0 0.0
        %3749 = vmatpush1.xpose.msra.mxu0 0.0
        %3750 = vmatprep.subr.mxu0 0.0
        %3751 = vmatpush1.xpose.msra.mxu0 0.0
        %3752 = vmatprep.subr.mxu0 0.0
        %3753 = vmatpush1.xpose.msra.mxu0 0.0
        %3754 = vmatprep.subr.mxu0 0.0
        %3755 = vmatpush1.xpose.msra.mxu0 0.0
        %3756 = vmatprep.subr.mxu0 0.0
        %3757 = vmatpush1.xpose.msra.mxu0 0.0
        %3758 = vmatprep.subr.mxu0 0.0
        %3759 = vmatpush1.xpose.msra.mxu0 0.0
        %3760 = vmatprep.subr.mxu0 0.0
        %3761 = vmatpush1.xpose.msra.mxu0 0.0
        %3762 = vmatprep.subr.mxu0 0.0
        %3763 = vmatpush1.xpose.msra.mxu0 0.0
        %3764 = vmatprep.subr.mxu0 0.0
        %3765 = vmatpush1.xpose.msra.mxu0 0.0
        %3766 = vmatprep.subr.mxu0 0.0
        %3767 = vmatpush1.xpose.msra.mxu0 0.0
        %3768 = vmatprep.subr.mxu0 0.0
        %3769 = vmatpush1.xpose.msra.mxu0 0.0
        %3770 = vmatprep.subr.mxu0 0.0
        %3771 = vmatpush1.xpose.msra.mxu0 0.0
        %3772 = vmatprep.subr.mxu0 0.0
        %3773 = vmatpush1.xpose.msra.mxu0 0.0
        %3774 = vmatprep.mubr.f32.mxu0 0.0
        %3775 = vmatmul.mubr.f32.gmra.mrb[0].mxu0 %v3704
        %v3776 = vpop.f32.mrb[0].mxu0
        %v3777 = vadd.f32 0.0, %v3776
        %v3778 = vpop.f32.mrb[0].mxu0
        %3779 = vmatprep.mubr.f32.mxu0 0.0
        %3780 = vmatmul.mubr.f32.gmra.mrb[0].mxu0 %v3706
        %v3781 = vpop.f32.mrb[0].mxu0
        %v3782 = vadd.f32 0.0, %v3781
        %v3783 = vpop.f32.mrb[0].mxu0
        %3784 = vdwg.mxu0
        %v3785 = vsel %vm2525, -1e+30, %v3777
        %v3786 = vsel %vm2525, -1e+30, %v3782
        %v3787 = vsel %vm1206, %v3785, -inf
        %3788 = vmax.xlane.f32.xlu0 %v3787
        %v3789 = vpop.xlane.xlu0 %3788
        %v3790 = vsel %vm1206, %v3786, -inf
        %3791 = vmax.xlane.f32.xlu0 %v3790
        %v3792 = vpop.xlane.xlu0 %3791
        %v3793 = vsub.f32 %v3785, %v3789
        %v3794 = vsub.f32 %v3786, %v3792
        %v3795 = vmul.f32 %v3793, 1.442695
        %v3796 = vpow.pop %v3795
        %v3797 = vmul.f32 %v3794, 1.442695
        %v3798 = vpow.pop %v3797
        %v3799 = vsel %vm1206, %v3796, 0.0
        %3800 = vadd.xlane.f32.xlu0 %v3799
        %v3801 = vpop.xlane.xlu0 %3800
        %v3802 = vsel %vm1206, %v3798, 0.0
        %3803 = vadd.xlane.f32.xlu0 %v3802
        %v3804 = vpop.xlane.xlu0 %3803
        %v3805 = vrcp.pop %v3801
        %v3806 = vrcp.pop %v3804
        %v3807 = vmul.f32 %v3796, %v3805
        %v3808 = vmul.f32 %v3798, %v3806
        %3810 = vrot.lane.b32.xlu0 %v3506, 120
        %v3811 = vpop.permute.xlu0 %3810
        %v3814 = vsel %vm1206, %v3807, 0
        %v3817 = vsel %vm1206, %v3808, 0
        %3819 = vmatprep.subr.mxu0 0.0
        %3820 = vmatpush1.msra.mxu0 %v3811
        %3821 = vmatprep.subr.mxu0 0.0
        %3822 = vmatpush1.msra.mxu0 0.0
        %3823 = vmatprep.subr.mxu0 0.0
        %3824 = vmatpush1.msra.mxu0 0.0
        %3825 = vmatprep.subr.mxu0 0.0
        %3826 = vmatpush1.msra.mxu0 0.0
        %3827 = vmatprep.subr.mxu0 0.0
        %3828 = vmatpush1.msra.mxu0 0.0
        %3829 = vmatprep.subr.mxu0 0.0
        %3830 = vmatpush1.msra.mxu0 0.0
        %3831 = vmatprep.subr.mxu0 0.0
        %3832 = vmatpush1.msra.mxu0 0.0
        %3833 = vmatprep.subr.mxu0 0.0
        %3834 = vmatpush1.msra.mxu0 0.0
        %3835 = vmatprep.subr.mxu0 0.0
        %3836 = vmatpush1.msra.mxu0 0.0
        %3837 = vmatprep.subr.mxu0 0.0
        %3838 = vmatpush1.msra.mxu0 0.0
        %3839 = vmatprep.subr.mxu0 0.0
        %3840 = vmatpush1.msra.mxu0 0.0
        %3841 = vmatprep.subr.mxu0 0.0
        %3842 = vmatpush1.msra.mxu0 0.0
        %3843 = vmatprep.subr.mxu0 0.0
        %3844 = vmatpush1.msra.mxu0 0.0
        %3845 = vmatprep.subr.mxu0 0.0
        %3846 = vmatpush1.msra.mxu0 0.0
        %3847 = vmatprep.subr.mxu0 0.0
        %3848 = vmatpush1.msra.mxu0 0.0
        %3849 = vmatprep.subr.mxu0 0.0
        %3850 = vmatpush1.msra.mxu0 0.0
        %3851 = vmatprep.subr.mxu0 0.0
        %3852 = vmatpush1.msra.mxu0 0.0
        %3853 = vmatprep.subr.mxu0 0.0
        %3854 = vmatpush1.msra.mxu0 0.0
        %3855 = vmatprep.subr.mxu0 0.0
        %3856 = vmatpush1.msra.mxu0 0.0
        %3857 = vmatprep.subr.mxu0 0.0
        %3858 = vmatpush1.msra.mxu0 0.0
        %3859 = vmatprep.subr.mxu0 0.0
        %3860 = vmatpush1.msra.mxu0 0.0
        %3861 = vmatprep.subr.mxu0 0.0
        %3862 = vmatpush1.msra.mxu0 0.0
        %3863 = vmatprep.subr.mxu0 0.0
        %3864 = vmatpush1.msra.mxu0 0.0
        %3865 = vmatprep.subr.mxu0 0.0
        %3866 = vmatpush1.msra.mxu0 0.0
        %3867 = vmatprep.subr.mxu0 0.0
        %3868 = vmatpush1.msra.mxu0 0.0
        %3869 = vmatprep.subr.mxu0 0.0
        %3870 = vmatpush1.msra.mxu0 0.0
        %3871 = vmatprep.subr.mxu0 0.0
        %3872 = vmatpush1.msra.mxu0 0.0
        %3873 = vmatprep.subr.mxu0 0.0
        %3874 = vmatpush1.msra.mxu0 0.0
        %3875 = vmatprep.subr.mxu0 0.0
        %3876 = vmatpush1.msra.mxu0 0.0
        %3877 = vmatprep.subr.mxu0 0.0
        %3878 = vmatpush1.msra.mxu0 0.0
        %3879 = vmatprep.subr.mxu0 0.0
        %3880 = vmatpush1.msra.mxu0 0.0
        %3881 = vmatprep.subr.mxu0 0.0
        %3882 = vmatpush1.msra.mxu0 0.0
        %3883 = vmatprep.mubr.f32.mxu0 0.0
        %3884 = vmatmul.mubr.f32.gmra.mrb[0].mxu0 %v3814
        %v3885 = vpop.f32.mrb[0].mxu0
        %v3886 = vadd.f32 0.0, %v3885
        %v3887 = vpop.f32.mrb[0].mxu0
        %3888 = vmatprep.mubr.f32.mxu0 0.0
        %3889 = vmatmul.mubr.f32.gmra.mrb[0].mxu0 %v3817
        %v3890 = vpop.f32.mrb[0].mxu0
        %v3891 = vadd.f32 0.0, %v3890
        %v3892 = vpop.f32.mrb[0].mxu0
        %3893 = vdwg.mxu0
        %3894 = vrot.lane.b32.xlu0 %v3330, 112
        %v3895 = vpop.permute.xlu0 %3894
        %3896 = vrot.lane.b32.xlu0 %v3331, 112
        %v3897 = vpop.permute.xlu0 %3896
        %3898 = vrot.lane.b32.xlu0 %v3421, 112
        %v3899 = vpop.permute.xlu0 %3898
        %v3900 = vsel %vm1206, %v3895, 0
        %v3902 = vsel %vm1206, %v3897, 0
        %v3904 = vsel %vm1206, %v3899, 0
        %3906 = vmatprep.subr.mxu0 0.0
        %3907 = vmatpush1.xpose.msra.mxu0 %v3904
        %3908 = vmatprep.subr.mxu0 0.0
        %3909 = vmatpush1.xpose.msra.mxu0 0.0
        %3910 = vmatprep.subr.mxu0 0.0
        %3911 = vmatpush1.xpose.msra.mxu0 0.0
        %3912 = vmatprep.subr.mxu0 0.0
        %3913 = vmatpush1.xpose.msra.mxu0 0.0
        %3914 = vmatprep.subr.mxu0 0.0
        %3915 = vmatpush1.xpose.msra.mxu0 0.0
        %3916 = vmatprep.subr.mxu0 0.0
        %3917 = vmatpush1.xpose.msra.mxu0 0.0
        %3918 = vmatprep.subr.mxu0 0.0
        %3919 = vmatpush1.xpose.msra.mxu0 0.0
        %3920 = vmatprep.subr.mxu0 0.0
        %3921 = vmatpush1.xpose.msra.mxu0 0.0
        %3922 = vmatprep.subr.mxu0 0.0
        %3923 = vmatpush1.xpose.msra.mxu0 0.0
        %3924 = vmatprep.subr.mxu0 0.0
        %3925 = vmatpush1.xpose.msra.mxu0 0.0
        %3926 = vmatprep.subr.mxu0 0.0
        %3927 = vmatpush1.xpose.msra.mxu0 0.0
        %3928 = vmatprep.subr.mxu0 0.0
        %3929 = vmatpush1.xpose.msra.mxu0 0.0
        %3930 = vmatprep.subr.mxu0 0.0
        %3931 = vmatpush1.xpose.msra.mxu0 0.0
        %3932 = vmatprep.subr.mxu0 0.0
        %3933 = vmatpush1.xpose.msra.mxu0 0.0
        %3934 = vmatprep.subr.mxu0 0.0
        %3935 = vmatpush1.xpose.msra.mxu0 0.0
        %3936 = vmatprep.subr.mxu0 0.0
        %3937 = vmatpush1.xpose.msra.mxu0 0.0
        %3938 = vmatprep.subr.mxu0 0.0
        %3939 = vmatpush1.xpose.msra.mxu0 0.0
        %3940 = vmatprep.subr.mxu0 0.0
        %3941 = vmatpush1.xpose.msra.mxu0 0.0
        %3942 = vmatprep.subr.mxu0 0.0
        %3943 = vmatpush1.xpose.msra.mxu0 0.0
        %3944 = vmatprep.subr.mxu0 0.0
        %3945 = vmatpush1.xpose.msra.mxu0 0.0
        %3946 = vmatprep.subr.mxu0 0.0
        %3947 = vmatpush1.xpose.msra.mxu0 0.0
        %3948 = vmatprep.subr.mxu0 0.0
        %3949 = vmatpush1.xpose.msra.mxu0 0.0
        %3950 = vmatprep.subr.mxu0 0.0
        %3951 = vmatpush1.xpose.msra.mxu0 0.0
        %3952 = vmatprep.subr.mxu0 0.0
        %3953 = vmatpush1.xpose.msra.mxu0 0.0
        %3954 = vmatprep.subr.mxu0 0.0
        %3955 = vmatpush1.xpose.msra.mxu0 0.0
        %3956 = vmatprep.subr.mxu0 0.0
        %3957 = vmatpush1.xpose.msra.mxu0 0.0
        %3958 = vmatprep.subr.mxu0 0.0
        %3959 = vmatpush1.xpose.msra.mxu0 0.0
        %3960 = vmatprep.subr.mxu0 0.0
        %3961 = vmatpush1.xpose.msra.mxu0 0.0
        %3962 = vmatprep.subr.mxu0 0.0
        %3963 = vmatpush1.xpose.msra.mxu0 0.0
        %3964 = vmatprep.subr.mxu0 0.0
        %3965 = vmatpush1.xpose.msra.mxu0 0.0
        %3966 = vmatprep.subr.mxu0 0.0
        %3967 = vmatpush1.xpose.msra.mxu0 0.0
        %3968 = vmatprep.subr.mxu0 0.0
        %3969 = vmatpush1.xpose.msra.mxu0 0.0
        %3970 = vmatprep.mubr.f32.mxu0 0.0
        %3971 = vmatmul.mubr.f32.gmra.mrb[0].mxu0 %v3900
        %v3972 = vpop.f32.mrb[0].mxu0
        %v3973 = vadd.f32 0.0, %v3972
        %v3974 = vpop.f32.mrb[0].mxu0
        %3975 = vmatprep.mubr.f32.mxu0 0.0
        %3976 = vmatmul.mubr.f32.gmra.mrb[0].mxu0 %v3902
        %v3977 = vpop.f32.mrb[0].mxu0
        %v3978 = vadd.f32 0.0, %v3977
        %v3979 = vpop.f32.mrb[0].mxu0
        %3980 = vdwg.mxu0
        %v3981 = vsel %vm2525, -1e+30, %v3973
        %v3982 = vsel %vm2525, -1e+30, %v3978
        %v3983 = vsel %vm1206, %v3981, -inf
        %3984 = vmax.xlane.f32.xlu0 %v3983
        %v3985 = vpop.xlane.xlu0 %3984
        %v3986 = vsel %vm1206, %v3982, -inf
        %3987 = vmax.xlane.f32.xlu0 %v3986
        %v3988 = vpop.xlane.xlu0 %3987
        %v3989 = vsub.f32 %v3981, %v3985
        %v3990 = vsub.f32 %v3982, %v3988
        %v3991 = vmul.f32 %v3989, 1.442695
        %v3992 = vpow.pop %v3991
        %v3993 = vmul.f32 %v3990, 1.442695
        %v3994 = vpow.pop %v3993
        %v3995 = vsel %vm1206, %v3992, 0.0
        %3996 = vadd.xlane.f32.xlu0 %v3995
        %v3997 = vpop.xlane.xlu0 %3996
        %v3998 = vsel %vm1206, %v3994, 0.0
        %3999 = vadd.xlane.f32.xlu0 %v3998
        %v4000 = vpop.xlane.xlu0 %3999
        %v4001 = vrcp.pop %v3997
        %v4002 = vrcp.pop %v4000
        %v4003 = vmul.f32 %v3992, %v4001
        %v4004 = vmul.f32 %v3994, %v4002
        %4005 = vrot.lane.b32.xlu0 %v3506, 112
        %v4006 = vpop.permute.xlu0 %4005
        %v4009 = vsel %vm1206, %v4003, 0
        %v4012 = vsel %vm1206, %v4004, 0
        %4014 = vmatprep.subr.mxu0 0.0
        %4015 = vmatpush1.msra.mxu0 %v4006
        %4016 = vmatprep.subr.mxu0 0.0
        %4017 = vmatpush1.msra.mxu0 0.0
        %4018 = vmatprep.subr.mxu0 0.0
        %4019 = vmatpush1.msra.mxu0 0.0
        %4020 = vmatprep.subr.mxu0 0.0
        %4021 = vmatpush1.msra.mxu0 0.0
        %4022 = vmatprep.subr.mxu0 0.0
        %4023 = vmatpush1.msra.mxu0 0.0
        %4024 = vmatprep.subr.mxu0 0.0
        %4025 = vmatpush1.msra.mxu0 0.0
        %4026 = vmatprep.subr.mxu0 0.0
        %4027 = vmatpush1.msra.mxu0 0.0
        %4028 = vmatprep.subr.mxu0 0.0
        %4029 = vmatpush1.msra.mxu0 0.0
        %4030 = vmatprep.subr.mxu0 0.0
        %4031 = vmatpush1.msra.mxu0 0.0
        %4032 = vmatprep.subr.mxu0 0.0
        %4033 = vmatpush1.msra.mxu0 0.0
        %4034 = vmatprep.subr.mxu0 0.0
        %4035 = vmatpush1.msra.mxu0 0.0
        %4036 = vmatprep.subr.mxu0 0.0
        %4037 = vmatpush1.msra.mxu0 0.0
        %4038 = vmatprep.subr.mxu0 0.0
        %4039 = vmatpush1.msra.mxu0 0.0
        %4040 = vmatprep.subr.mxu0 0.0
        %4041 = vmatpush1.msra.mxu0 0.0
        %4042 = vmatprep.subr.mxu0 0.0
        %4043 = vmatpush1.msra.mxu0 0.0
        %4044 = vmatprep.subr.mxu0 0.0
        %4045 = vmatpush1.msra.mxu0 0.0
        %4046 = vmatprep.subr.mxu0 0.0
        %4047 = vmatpush1.msra.mxu0 0.0
        %4048 = vmatprep.subr.mxu0 0.0
        %4049 = vmatpush1.msra.mxu0 0.0
        %4050 = vmatprep.subr.mxu0 0.0
        %4051 = vmatpush1.msra.mxu0 0.0
        %4052 = vmatprep.subr.mxu0 0.0
        %4053 = vmatpush1.msra.mxu0 0.0
        %4054 = vmatprep.subr.mxu0 0.0
        %4055 = vmatpush1.msra.mxu0 0.0
        %4056 = vmatprep.subr.mxu0 0.0
        %4057 = vmatpush1.msra.mxu0 0.0
        %4058 = vmatprep.subr.mxu0 0.0
        %4059 = vmatpush1.msra.mxu0 0.0
        %4060 = vmatprep.subr.mxu0 0.0
        %4061 = vmatpush1.msra.mxu0 0.0
        %4062 = vmatprep.subr.mxu0 0.0
        %4063 = vmatpush1.msra.mxu0 0.0
        %4064 = vmatprep.subr.mxu0 0.0
        %4065 = vmatpush1.msra.mxu0 0.0
        %4066 = vmatprep.subr.mxu0 0.0
        %4067 = vmatpush1.msra.mxu0 0.0
        %4068 = vmatprep.subr.mxu0 0.0
        %4069 = vmatpush1.msra.mxu0 0.0
        %4070 = vmatprep.subr.mxu0 0.0
        %4071 = vmatpush1.msra.mxu0 0.0
        %4072 = vmatprep.subr.mxu0 0.0
        %4073 = vmatpush1.msra.mxu0 0.0
        %4074 = vmatprep.subr.mxu0 0.0
        %4075 = vmatpush1.msra.mxu0 0.0
        %4076 = vmatprep.subr.mxu0 0.0
        %4077 = vmatpush1.msra.mxu0 0.0
        %4078 = vmatprep.mubr.f32.mxu0 0.0
        %4079 = vmatmul.mubr.f32.gmra.mrb[0].mxu0 %v4009
        %v4080 = vpop.f32.mrb[0].mxu0
        %v4081 = vadd.f32 0.0, %v4080
        %v4082 = vpop.f32.mrb[0].mxu0
        %4083 = vmatprep.mubr.f32.mxu0 0.0
        %4084 = vmatmul.mubr.f32.gmra.mrb[0].mxu0 %v4012
        %v4085 = vpop.f32.mrb[0].mxu0
        %v4086 = vadd.f32 0.0, %v4085
        %v4087 = vpop.f32.mrb[0].mxu0
        %4088 = vdwg.mxu0
        %4089 = vrot.lane.b32.xlu0 %v3330, 104
        %v4090 = vpop.permute.xlu0 %4089
        %4091 = vrot.lane.b32.xlu0 %v3331, 104
        %v4092 = vpop.permute.xlu0 %4091
        %4093 = vrot.lane.b32.xlu0 %v3421, 104
        %v4094 = vpop.permute.xlu0 %4093
        %v4095 = vsel %vm1206, %v4090, 0
        %v4097 = vsel %vm1206, %v4092, 0
        %v4099 = vsel %vm1206, %v4094, 0
        %4101 = vmatprep.subr.mxu0 0.0
        %4102 = vmatpush1.xpose.msra.mxu0 %v4099
        %4103 = vmatprep.subr.mxu0 0.0
        %4104 = vmatpush1.xpose.msra.mxu0 0.0
        %4105 = vmatprep.subr.mxu0 0.0
        %4106 = vmatpush1.xpose.msra.mxu0 0.0
        %4107 = vmatprep.subr.mxu0 0.0
        %4108 = vmatpush1.xpose.msra.mxu0 0.0
        %4109 = vmatprep.subr.mxu0 0.0
        %4110 = vmatpush1.xpose.msra.mxu0 0.0
        %4111 = vmatprep.subr.mxu0 0.0
        %4112 = vmatpush1.xpose.msra.mxu0 0.0
        %4113 = vmatprep.subr.mxu0 0.0
        %4114 = vmatpush1.xpose.msra.mxu0 0.0
        %4115 = vmatprep.subr.mxu0 0.0
        %4116 = vmatpush1.xpose.msra.mxu0 0.0
        %4117 = vmatprep.subr.mxu0 0.0
        %4118 = vmatpush1.xpose.msra.mxu0 0.0
        %4119 = vmatprep.subr.mxu0 0.0
        %4120 = vmatpush1.xpose.msra.mxu0 0.0
        %4121 = vmatprep.subr.mxu0 0.0
        %4122 = vmatpush1.xpose.msra.mxu0 0.0
        %4123 = vmatprep.subr.mxu0 0.0
        %4124 = vmatpush1.xpose.msra.mxu0 0.0
        %4125 = vmatprep.subr.mxu0 0.0
        %4126 = vmatpush1.xpose.msra.mxu0 0.0
        %4127 = vmatprep.subr.mxu0 0.0
        %4128 = vmatpush1.xpose.msra.mxu0 0.0
        %4129 = vmatprep.subr.mxu0 0.0
        %4130 = vmatpush1.xpose.msra.mxu0 0.0
        %4131 = vmatprep.subr.mxu0 0.0
        %4132 = vmatpush1.xpose.msra.mxu0 0.0
        %4133 = vmatprep.subr.mxu0 0.0
        %4134 = vmatpush1.xpose.msra.mxu0 0.0
        %4135 = vmatprep.subr.mxu0 0.0
        %4136 = vmatpush1.xpose.msra.mxu0 0.0
        %4137 = vmatprep.subr.mxu0 0.0
        %4138 = vmatpush1.xpose.msra.mxu0 0.0
        %4139 = vmatprep.subr.mxu0 0.0
        %4140 = vmatpush1.xpose.msra.mxu0 0.0
        %4141 = vmatprep.subr.mxu0 0.0
        %4142 = vmatpush1.xpose.msra.mxu0 0.0
        %4143 = vmatprep.subr.mxu0 0.0
        %4144 = vmatpush1.xpose.msra.mxu0 0.0
        %4145 = vmatprep.subr.mxu0 0.0
        %4146 = vmatpush1.xpose.msra.mxu0 0.0
        %4147 = vmatprep.subr.mxu0 0.0
        %4148 = vmatpush1.xpose.msra.mxu0 0.0
        %4149 = vmatprep.subr.mxu0 0.0
        %4150 = vmatpush1.xpose.msra.mxu0 0.0
        %4151 = vmatprep.subr.mxu0 0.0
        %4152 = vmatpush1.xpose.msra.mxu0 0.0
        %4153 = vmatprep.subr.mxu0 0.0
        %4154 = vmatpush1.xpose.msra.mxu0 0.0
        %4155 = vmatprep.subr.mxu0 0.0
        %4156 = vmatpush1.xpose.msra.mxu0 0.0
        %4157 = vmatprep.subr.mxu0 0.0
        %4158 = vmatpush1.xpose.msra.mxu0 0.0
        %4159 = vmatprep.subr.mxu0 0.0
        %4160 = vmatpush1.xpose.msra.mxu0 0.0
        %4161 = vmatprep.subr.mxu0 0.0
        %4162 = vmatpush1.xpose.msra.mxu0 0.0
        %4163 = vmatprep.subr.mxu0 0.0
        %4164 = vmatpush1.xpose.msra.mxu0 0.0
        %4165 = vmatprep.mubr.f32.mxu0 0.0
        %4166 = vmatmul.mubr.f32.gmra.mrb[0].mxu0 %v4095
        %v4167 = vpop.f32.mrb[0].mxu0
        %v4168 = vadd.f32 0.0, %v4167
        %v4169 = vpop.f32.mrb[0].mxu0
        %4170 = vmatprep.mubr.f32.mxu0 0.0
        %4171 = vmatmul.mubr.f32.gmra.mrb[0].mxu0 %v4097
        %v4172 = vpop.f32.mrb[0].mxu0
        %v4173 = vadd.f32 0.0, %v4172
        %v4174 = vpop.f32.mrb[0].mxu0
        %4175 = vdwg.mxu0
        %v4176 = vsel %vm2525, -1e+30, %v4168
        %v4177 = vsel %vm2525, -1e+30, %v4173
        %v4178 = vsel %vm1206, %v4176, -inf
        %4179 = vmax.xlane.f32.xlu0 %v4178
        %v4180 = vpop.xlane.xlu0 %4179
        %v4181 = vsel %vm1206, %v4177, -inf
        %4182 = vmax.xlane.f32.xlu0 %v4181
        %v4183 = vpop.xlane.xlu0 %4182
        %v4184 = vsub.f32 %v4176, %v4180
        %v4185 = vsub.f32 %v4177, %v4183
        %v4186 = vmul.f32 %v4184, 1.442695
        %v4187 = vpow.pop %v4186
        %v4188 = vmul.f32 %v4185, 1.442695
        %v4189 = vpow.pop %v4188
        %v4190 = vsel %vm1206, %v4187, 0.0
        %4191 = vadd.xlane.f32.xlu0 %v4190
        %v4192 = vpop.xlane.xlu0 %4191
        %v4193 = vsel %vm1206, %v4189, 0.0
        %4194 = vadd.xlane.f32.xlu0 %v4193
        %v4195 = vpop.xlane.xlu0 %4194
        %v4196 = vrcp.pop %v4192
        %v4197 = vrcp.pop %v4195
        %v4198 = vmul.f32 %v4187, %v4196
        %v4199 = vmul.f32 %v4189, %v4197
        %4200 = vrot.lane.b32.xlu0 %v3506, 104
        %v4201 = vpop.permute.xlu0 %4200
        %v4204 = vsel %vm1206, %v4198, 0
        %v4207 = vsel %vm1206, %v4199, 0
        %4209 = vmatprep.subr.mxu0 0.0
        %4210 = vmatpush1.msra.mxu0 %v4201
        %4211 = vmatprep.subr.mxu0 0.0
        %4212 = vmatpush1.msra.mxu0 0.0
        %4213 = vmatprep.subr.mxu0 0.0
        %4214 = vmatpush1.msra.mxu0 0.0
        %4215 = vmatprep.subr.mxu0 0.0
        %4216 = vmatpush1.msra.mxu0 0.0
        %4217 = vmatprep.subr.mxu0 0.0
        %4218 = vmatpush1.msra.mxu0 0.0
        %4219 = vmatprep.subr.mxu0 0.0
        %4220 = vmatpush1.msra.mxu0 0.0
        %4221 = vmatprep.subr.mxu0 0.0
        %4222 = vmatpush1.msra.mxu0 0.0
        %4223 = vmatprep.subr.mxu0 0.0
        %4224 = vmatpush1.msra.mxu0 0.0
        %4225 = vmatprep.subr.mxu0 0.0
        %4226 = vmatpush1.msra.mxu0 0.0
        %4227 = vmatprep.subr.mxu0 0.0
        %4228 = vmatpush1.msra.mxu0 0.0
        %4229 = vmatprep.subr.mxu0 0.0
        %4230 = vmatpush1.msra.mxu0 0.0
        %4231 = vmatprep.subr.mxu0 0.0
        %4232 = vmatpush1.msra.mxu0 0.0
        %4233 = vmatprep.subr.mxu0 0.0
        %4234 = vmatpush1.msra.mxu0 0.0
        %4235 = vmatprep.subr.mxu0 0.0
        %4236 = vmatpush1.msra.mxu0 0.0
        %4237 = vmatprep.subr.mxu0 0.0
        %4238 = vmatpush1.msra.mxu0 0.0
        %4239 = vmatprep.subr.mxu0 0.0
        %4240 = vmatpush1.msra.mxu0 0.0
        %4241 = vmatprep.subr.mxu0 0.0
        %4242 = vmatpush1.msra.mxu0 0.0
        %4243 = vmatprep.subr.mxu0 0.0
        %4244 = vmatpush1.msra.mxu0 0.0
        %4245 = vmatprep.subr.mxu0 0.0
        %4246 = vmatpush1.msra.mxu0 0.0
        %4247 = vmatprep.subr.mxu0 0.0
        %4248 = vmatpush1.msra.mxu0 0.0
        %4249 = vmatprep.subr.mxu0 0.0
        %4250 = vmatpush1.msra.mxu0 0.0
        %4251 = vmatprep.subr.mxu0 0.0
        %4252 = vmatpush1.msra.mxu0 0.0
        %4253 = vmatprep.subr.mxu0 0.0
        %4254 = vmatpush1.msra.mxu0 0.0
        %4255 = vmatprep.subr.mxu0 0.0
        %4256 = vmatpush1.msra.mxu0 0.0
        %4257 = vmatprep.subr.mxu0 0.0
        %4258 = vmatpush1.msra.mxu0 0.0
        %4259 = vmatprep.subr.mxu0 0.0
        %4260 = vmatpush1.msra.mxu0 0.0
        %4261 = vmatprep.subr.mxu0 0.0
        %4262 = vmatpush1.msra.mxu0 0.0
        %4263 = vmatprep.subr.mxu0 0.0
        %4264 = vmatpush1.msra.mxu0 0.0
        %4265 = vmatprep.subr.mxu0 0.0
        %4266 = vmatpush1.msra.mxu0 0.0
        %4267 = vmatprep.subr.mxu0 0.0
        %4268 = vmatpush1.msra.mxu0 0.0
        %4269 = vmatprep.subr.mxu0 0.0
        %4270 = vmatpush1.msra.mxu0 0.0
        %4271 = vmatprep.subr.mxu0 0.0
        %4272 = vmatpush1.msra.mxu0 0.0
        %4273 = vmatprep.mubr.f32.mxu0 0.0
        %4274 = vmatmul.mubr.f32.gmra.mrb[0].mxu0 %v4204
        %v4275 = vpop.f32.mrb[0].mxu0
        %v4276 = vadd.f32 0.0, %v4275
        %v4277 = vpop.f32.mrb[0].mxu0
        %4278 = vmatprep.mubr.f32.mxu0 0.0
        %4279 = vmatmul.mubr.f32.gmra.mrb[0].mxu0 %v4207
        %v4280 = vpop.f32.mrb[0].mxu0
        %v4281 = vadd.f32 0.0, %v4280
        %v4282 = vpop.f32.mrb[0].mxu0
        %4283 = vdwg.mxu0
        %4286 = vrot.lane.b32.xlu0 %v3886, 8
        %v4287 = vpop.permute.xlu0 %4286
        %4288 = vrot.lane.b32.xlu0 %v3891, 8
        %v4289 = vpop.permute.xlu0 %4288
        %4294 = vrot.lane.b32.xlu0 %v4081, 16
        %v4295 = vpop.permute.xlu0 %4294
        %4296 = vrot.lane.b32.xlu0 %v4086, 16
        %v4297 = vpop.permute.xlu0 %4296
        %4302 = vrot.lane.b32.xlu0 %v4276, 24
        %v4303 = vpop.permute.xlu0 %4302
        %4304 = vrot.lane.b32.xlu0 %v4281, 24
        %v4305 = vpop.permute.xlu0 %4304
        %v4308 = vsel %vm1206, %v3690, %v4287
        %v4309 = vsel %vm1206, %v3695, %v4289
        %v4310 = vsel %vm1303, %v4308, %v4295
        %v4311 = vsel %vm1303, %v4309, %v4297
        %v4312 = vsel %vm2043, %v4310, %v4303
        %v4313 = vsel %vm2043, %v4311, %v4305
        %4314 = vrot.lane.b32.xlu0 %v3238, 32
        %v4315 = vpop.permute.xlu0 %4314
        %4316 = vrot.lane.b32.xlu0 %v3239, 32
        %v4317 = vpop.permute.xlu0 %4316
        %4318 = vrot.lane.b32.xlu0 %v3240, 32
        %v4319 = vpop.permute.xlu0 %4318
        %4320 = vrot.lane.b32.xlu0 %v3241, 32
        %v4321 = vpop.permute.xlu0 %4320
        %4326 = vrot.lane.b32.xlu0 %v3247, 32
        %v4327 = vpop.permute.xlu0 %4326
        %v4330 = vsel %vm938, %v4312, 0
        %v4333 = vsel %vm938, %v4313, 0
        %4335 = vmatprep.subr.mxu0 0.0
        %4336 = vmatpush1.msra.mxu0 %v4315
        %4337 = vmatprep.subr.mxu0 0.0
        %4338 = vmatpush1.msra.mxu0 %v4317
        %4339 = vmatprep.subr.mxu0 0.0
        %4340 = vmatpush1.msra.mxu0 %v4319
        %4341 = vmatprep.subr.mxu0 0.0
        %4342 = vmatpush1.msra.mxu0 %v4321
        %4343 = vmatprep.subr.mxu0 0.0
        %4344 = vmatpush1.msra.mxu0 0.0
        %4345 = vmatprep.subr.mxu0 0.0
        %4346 = vmatpush1.msra.mxu0 0.0
        %4347 = vmatprep.subr.mxu0 0.0
        %4348 = vmatpush1.msra.mxu0 0.0
        %4349 = vmatprep.subr.mxu0 0.0
        %4350 = vmatpush1.msra.mxu0 0.0
        %4351 = vmatprep.subr.mxu0 0.0
        %4352 = vmatpush1.msra.mxu0 0.0
        %4353 = vmatprep.subr.mxu0 0.0
        %4354 = vmatpush1.msra.mxu0 0.0
        %4355 = vmatprep.subr.mxu0 0.0
        %4356 = vmatpush1.msra.mxu0 0.0
        %4357 = vmatprep.subr.mxu0 0.0
        %4358 = vmatpush1.msra.mxu0 0.0
        %4359 = vmatprep.subr.mxu0 0.0
        %4360 = vmatpush1.msra.mxu0 0.0
        %4361 = vmatprep.subr.mxu0 0.0
        %4362 = vmatpush1.msra.mxu0 0.0
        %4363 = vmatprep.subr.mxu0 0.0
        %4364 = vmatpush1.msra.mxu0 0.0
        %4365 = vmatprep.subr.mxu0 0.0
        %4366 = vmatpush1.msra.mxu0 0.0
        %4367 = vmatprep.subr.mxu0 0.0
        %4368 = vmatpush1.msra.mxu0 0.0
        %4369 = vmatprep.subr.mxu0 0.0
        %4370 = vmatpush1.msra.mxu0 0.0
        %4371 = vmatprep.subr.mxu0 0.0
        %4372 = vmatpush1.msra.mxu0 0.0
        %4373 = vmatprep.subr.mxu0 0.0
        %4374 = vmatpush1.msra.mxu0 0.0
        %4375 = vmatprep.subr.mxu0 0.0
        %4376 = vmatpush1.msra.mxu0 0.0
        %4377 = vmatprep.subr.mxu0 0.0
        %4378 = vmatpush1.msra.mxu0 0.0
        %4379 = vmatprep.subr.mxu0 0.0
        %4380 = vmatpush1.msra.mxu0 0.0
        %4381 = vmatprep.subr.mxu0 0.0
        %4382 = vmatpush1.msra.mxu0 0.0
        %4383 = vmatprep.subr.mxu0 0.0
        %4384 = vmatpush1.msra.mxu0 0.0
        %4385 = vmatprep.subr.mxu0 0.0
        %4386 = vmatpush1.msra.mxu0 0.0
        %4387 = vmatprep.subr.mxu0 0.0
        %4388 = vmatpush1.msra.mxu0 0.0
        %4389 = vmatprep.subr.mxu0 0.0
        %4390 = vmatpush1.msra.mxu0 0.0
        %4391 = vmatprep.subr.mxu0 0.0
        %4392 = vmatpush1.msra.mxu0 0.0
        %4393 = vmatprep.subr.mxu0 0.0
        %4394 = vmatpush1.msra.mxu0 0.0
        %4395 = vmatprep.subr.mxu0 0.0
        %4396 = vmatpush1.msra.mxu0 0.0
        %4397 = vmatprep.subr.mxu0 0.0
        %4398 = vmatpush1.msra.mxu0 0.0
        %4399 = vmatprep.mubr.f32.mxu0 0.0
        %4400 = vmatmul.mubr.f32.gmra.mrb[0].mxu0 %v4330
        %v4401 = vpop.f32.mrb[0].mxu0
        %v4402 = vadd.f32 %v4327, %v4401
        %v4403 = vpop.f32.mrb[0].mxu0
        %4404 = vmatprep.mubr.f32.mxu0 0.0
        %4405 = vmatmul.mubr.f32.gmra.mrb[0].mxu0 %v4333
        %v4406 = vpop.f32.mrb[0].mxu0
        %v4407 = vadd.f32 %v4327, %v4406
        %v4408 = vpop.f32.mrb[0].mxu0
        %4409 = vdwg.mxu0
        %v4410 = vld [vmem:[%s21] sm:$0x3]
        %v4411 = vadd.f32 %v2182, %v4402
        %v4412 = vadd.f32 %v2183, %v4407
        %v4413 = vsel %vm938, %v4411, 0.0
        %4414 = vadd.xlane.f32.xlu0 %v4413
        %v4415 = vpop.xlane.xlu0 %4414
        %v4416 = vsel %vm938, %v4412, 0.0
        %4417 = vadd.xlane.f32.xlu0 %v4416
        %v4418 = vpop.xlane.xlu0 %4417
        %v4419 = vmul.f32 %v4415, %v2151
        %v4420 = vmul.f32 %v4418, %v2151
        %v4421 = vsub.f32 %v4411, %v4419
        %v4422 = vsub.f32 %v4412, %v4420
        %v4423 = vmul.f32 %v4421, %v4421
        %v4424 = vmul.f32 %v4422, %v4422
        %v4425 = vsel %vm938, %v4423, 0.0
        %4426 = vadd.xlane.f32.xlu0 %v4425
        %v4427 = vpop.xlane.xlu0 %4426
        %v4428 = vsel %vm938, %v4424, 0.0
        %4429 = vadd.xlane.f32.xlu0 %v4428
        %v4430 = vpop.xlane.xlu0 %4429
        %v4431 = vmul.f32 %v4427, %v2151
        %v4432 = vmul.f32 %v4430, %v2151
        %v4433 = vadd.f32 %v4431, 1e-05
        %v4434 = vadd.f32 %v4432, 1e-05
        %v4435 = vrsqrt.pop %v4433
        %v4436 = vrsqrt.pop %v4434
        %v4437 = vmul.f32 %v4421, %v4435
        %v4438 = vmul.f32 %v4422, %v4436
        %v4439 = vlaneseq
        %v4440 = vshrl.u32 %v4439, 7
        %v4441 = vsub.s32 0, %v4440
        %v4442 = vrot.slane %v4410, %v4441
        %v4443 = vmul.f32 %v4437, %v4442
        %v4444 = vmul.f32 %v4438, %v4442
        %v4445 = vlaneseq
        %v4446 = vshrl.u32 %v4445, 7
        %v4447 = vsub.s32 1, %v4446
        %v4448 = vrot.slane %v4410, %v4447
        %v4449 = vadd.f32 %v4443, %v4448
        %v4450 = vadd.f32 %v4444, %v4448
        %v4451 = vld [vmem:[%s10] sm:$0xff]
        %v4452 = vld [vmem:[%s10 + $0x8] sm:$0xff]
        %v4453 = vld [vmem:[%s10 + $0x10] sm:$0xff]
        %v4454 = vld [vmem:[%s10 + $0x18] sm:$0xff]
        %v4455 = vld [vmem:[%s11] sm:$0x1]
        %v4457 = vlaneseq
        %v4458 = vshrl.u32 %v4457, 7
        %v4459 = vsub.s32 0, %v4458
        %v4460 = vrot.slane %v4455, %v4459
        %4462 = vmatprep.subr.mxu0 0.0
        %4463 = vmatpush1.msra.mxu0 %v4451
        %4464 = vmatprep.subr.mxu0 0.0
        %4465 = vmatpush1.msra.mxu0 %v4452
        %4466 = vmatprep.subr.mxu0 0.0
        %4467 = vmatpush1.msra.mxu0 %v4453
        %4468 = vmatprep.subr.mxu0 0.0
        %4469 = vmatpush1.msra.mxu0 %v4454
        %4470 = vmatprep.subr.mxu0 0.0
        %4471 = vmatpush1.msra.mxu0 0.0
        %4472 = vmatprep.subr.mxu0 0.0
        %4473 = vmatpush1.msra.mxu0 0.0
        %4474 = vmatprep.subr.mxu0 0.0
        %4475 = vmatpush1.msra.mxu0 0.0
        %4476 = vmatprep.subr.mxu0 0.0
        %4477 = vmatpush1.msra.mxu0 0.0
        %4478 = vmatprep.subr.mxu0 0.0
        %4479 = vmatpush1.msra.mxu0 0.0
        %4480 = vmatprep.subr.mxu0 0.0
        %4481 = vmatpush1.msra.mxu0 0.0
        %4482 = vmatprep.subr.mxu0 0.0
        %4483 = vmatpush1.msra.mxu0 0.0
        %4484 = vmatprep.subr.mxu0 0.0
        %4485 = vmatpush1.msra.mxu0 0.0
        %4486 = vmatprep.subr.mxu0 0.0
        %4487 = vmatpush1.msra.mxu0 0.0
        %4488 = vmatprep.subr.mxu0 0.0
        %4489 = vmatpush1.msra.mxu0 0.0
        %4490 = vmatprep.subr.mxu0 0.0
        %4491 = vmatpush1.msra.mxu0 0.0
        %4492 = vmatprep.subr.mxu0 0.0
        %4493 = vmatpush1.msra.mxu0 0.0
        %4494 = vmatprep.subr.mxu0 0.0
        %4495 = vmatpush1.msra.mxu0 0.0
        %4496 = vmatprep.subr.mxu0 0.0
        %4497 = vmatpush1.msra.mxu0 0.0
        %4498 = vmatprep.subr.mxu0 0.0
        %4499 = vmatpush1.msra.mxu0 0.0
        %4500 = vmatprep.subr.mxu0 0.0
        %4501 = vmatpush1.msra.mxu0 0.0
        %4502 = vmatprep.subr.mxu0 0.0
        %4503 = vmatpush1.msra.mxu0 0.0
        %4504 = vmatprep.subr.mxu0 0.0
        %4505 = vmatpush1.msra.mxu0 0.0
        %4506 = vmatprep.subr.mxu0 0.0
        %4507 = vmatpush1.msra.mxu0 0.0
        %4508 = vmatprep.subr.mxu0 0.0
        %4509 = vmatpush1.msra.mxu0 0.0
        %4510 = vmatprep.subr.mxu0 0.0
        %4511 = vmatpush1.msra.mxu0 0.0
        %4512 = vmatprep.subr.mxu0 0.0
        %4513 = vmatpush1.msra.mxu0 0.0
        %4514 = vmatprep.subr.mxu0 0.0
        %4515 = vmatpush1.msra.mxu0 0.0
        %4516 = vmatprep.subr.mxu0 0.0
        %4517 = vmatpush1.msra.mxu0 0.0
        %4518 = vmatprep.subr.mxu0 0.0
        %4519 = vmatpush1.msra.mxu0 0.0
        %4520 = vmatprep.subr.mxu0 0.0
        %4521 = vmatpush1.msra.mxu0 0.0
        %4522 = vmatprep.subr.mxu0 0.0
        %4523 = vmatpush1.msra.mxu0 0.0
        %4524 = vmatprep.subr.mxu0 0.0
        %4525 = vmatpush1.msra.mxu0 0.0
        %4526 = vmatprep.mubr.f32.mxu0 0.0
        %4527 = vmatmul.mubr.f32.gmra.mrb[0].mxu0 %v3352
        %v4528 = vpop.f32.mrb[0].mxu0
        %v4529 = vadd.f32 %v4460, %v4528
        %v4530 = vpop.f32.mrb[0].mxu0
        %4531 = vdwg.mxu0
        %v4532 = vmul.f32 %v4529, 0.35355338
        %4537 = vrot.lane.b32.xlu0 %v4451, 96
        %v4538 = vpop.permute.xlu0 %4537
        %4539 = vrot.lane.b32.xlu0 %v4452, 96
        %v4540 = vpop.permute.xlu0 %4539
        %4541 = vrot.lane.b32.xlu0 %v4453, 96
        %v4542 = vpop.permute.xlu0 %4541
        %4543 = vrot.lane.b32.xlu0 %v4454, 96
        %v4544 = vpop.permute.xlu0 %4543
        %4549 = vrot.lane.b32.xlu0 %v4460, 96
        %v4550 = vpop.permute.xlu0 %4549
        %v4553 = vsel %vm938, %v4449, 0
        %v4556 = vsel %vm938, %v4450, 0
        %4558 = vmatprep.subr.mxu0 0.0
        %4559 = vmatpush1.msra.mxu0 %v4538
        %4560 = vmatprep.subr.mxu0 0.0
        %4561 = vmatpush1.msra.mxu0 %v4540
        %4562 = vmatprep.subr.mxu0 0.0
        %4563 = vmatpush1.msra.mxu0 %v4542
        %4564 = vmatprep.subr.mxu0 0.0
        %4565 = vmatpush1.msra.mxu0 %v4544
        %4566 = vmatprep.subr.mxu0 0.0
        %4567 = vmatpush1.msra.mxu0 0.0
        %4568 = vmatprep.subr.mxu0 0.0
        %4569 = vmatpush1.msra.mxu0 0.0
        %4570 = vmatprep.subr.mxu0 0.0
        %4571 = vmatpush1.msra.mxu0 0.0
        %4572 = vmatprep.subr.mxu0 0.0
        %4573 = vmatpush1.msra.mxu0 0.0
        %4574 = vmatprep.subr.mxu0 0.0
        %4575 = vmatpush1.msra.mxu0 0.0
        %4576 = vmatprep.subr.mxu0 0.0
        %4577 = vmatpush1.msra.mxu0 0.0
        %4578 = vmatprep.subr.mxu0 0.0
        %4579 = vmatpush1.msra.mxu0 0.0
        %4580 = vmatprep.subr.mxu0 0.0
        %4581 = vmatpush1.msra.mxu0 0.0
        %4582 = vmatprep.subr.mxu0 0.0
        %4583 = vmatpush1.msra.mxu0 0.0
        %4584 = vmatprep.subr.mxu0 0.0
        %4585 = vmatpush1.msra.mxu0 0.0
        %4586 = vmatprep.subr.mxu0 0.0
        %4587 = vmatpush1.msra.mxu0 0.0
        %4588 = vmatprep.subr.mxu0 0.0
        %4589 = vmatpush1.msra.mxu0 0.0
        %4590 = vmatprep.subr.mxu0 0.0
        %4591 = vmatpush1.msra.mxu0 0.0
        %4592 = vmatprep.subr.mxu0 0.0
        %4593 = vmatpush1.msra.mxu0 0.0
        %4594 = vmatprep.subr.mxu0 0.0
        %4595 = vmatpush1.msra.mxu0 0.0
        %4596 = vmatprep.subr.mxu0 0.0
        %4597 = vmatpush1.msra.mxu0 0.0
        %4598 = vmatprep.subr.mxu0 0.0
        %4599 = vmatpush1.msra.mxu0 0.0
        %4600 = vmatprep.subr.mxu0 0.0
        %4601 = vmatpush1.msra.mxu0 0.0
        %4602 = vmatprep.subr.mxu0 0.0
        %4603 = vmatpush1.msra.mxu0 0.0
        %4604 = vmatprep.subr.mxu0 0.0
        %4605 = vmatpush1.msra.mxu0 0.0
        %4606 = vmatprep.subr.mxu0 0.0
        %4607 = vmatpush1.msra.mxu0 0.0
        %4608 = vmatprep.subr.mxu0 0.0
        %4609 = vmatpush1.msra.mxu0 0.0
        %4610 = vmatprep.subr.mxu0 0.0
        %4611 = vmatpush1.msra.mxu0 0.0
        %4612 = vmatprep.subr.mxu0 0.0
        %4613 = vmatpush1.msra.mxu0 0.0
        %4614 = vmatprep.subr.mxu0 0.0
        %4615 = vmatpush1.msra.mxu0 0.0
        %4616 = vmatprep.subr.mxu0 0.0
        %4617 = vmatpush1.msra.mxu0 0.0
        %4618 = vmatprep.subr.mxu0 0.0
        %4619 = vmatpush1.msra.mxu0 0.0
        %4620 = vmatprep.subr.mxu0 0.0
        %4621 = vmatpush1.msra.mxu0 0.0
        %4622 = vmatprep.mubr.f32.mxu0 0.0
        %4623 = vmatmul.mubr.f32.gmra.mrb[0].mxu0 %v4553
        %v4624 = vpop.f32.mrb[0].mxu0
        %v4625 = vadd.f32 %v4550, %v4624
        %v4626 = vpop.f32.mrb[0].mxu0
        %4627 = vmatprep.mubr.f32.mxu0 0.0
        %4628 = vmatmul.mubr.f32.gmra.mrb[0].mxu0 %v4556
        %v4629 = vpop.f32.mrb[0].mxu0
        %v4630 = vadd.f32 %v4550, %v4629
        %v4631 = vpop.f32.mrb[0].mxu0
        %4632 = vdwg.mxu0
        %4633 = vrot.lane.b32.xlu0 %v4451, 64
        %v4634 = vpop.permute.xlu0 %4633
        %4635 = vrot.lane.b32.xlu0 %v4452, 64
        %v4636 = vpop.permute.xlu0 %4635
        %4637 = vrot.lane.b32.xlu0 %v4453, 64
        %v4638 = vpop.permute.xlu0 %4637
        %4639 = vrot.lane.b32.xlu0 %v4454, 64
        %v4640 = vpop.permute.xlu0 %4639
        %4645 = vrot.lane.b32.xlu0 %v4460, 64
        %v4646 = vpop.permute.xlu0 %4645
        %4648 = vmatprep.subr.mxu0 0.0
        %4649 = vmatpush1.msra.mxu0 %v4634
        %4650 = vmatprep.subr.mxu0 0.0
        %4651 = vmatpush1.msra.mxu0 %v4636
        %4652 = vmatprep.subr.mxu0 0.0
        %4653 = vmatpush1.msra.mxu0 %v4638
        %4654 = vmatprep.subr.mxu0 0.0
        %4655 = vmatpush1.msra.mxu0 %v4640
        %4656 = vmatprep.subr.mxu0 0.0
        %4657 = vmatpush1.msra.mxu0 0.0
        %4658 = vmatprep.subr.mxu0 0.0
        %4659 = vmatpush1.msra.mxu0 0.0
        %4660 = vmatprep.subr.mxu0 0.0
        %4661 = vmatpush1.msra.mxu0 0.0
        %4662 = vmatprep.subr.mxu0 0.0
        %4663 = vmatpush1.msra.mxu0 0.0
        %4664 = vmatprep.subr.mxu0 0.0
        %4665 = vmatpush1.msra.mxu0 0.0
        %4666 = vmatprep.subr.mxu0 0.0
        %4667 = vmatpush1.msra.mxu0 0.0
        %4668 = vmatprep.subr.mxu0 0.0
        %4669 = vmatpush1.msra.mxu0 0.0
        %4670 = vmatprep.subr.mxu0 0.0
        %4671 = vmatpush1.msra.mxu0 0.0
        %4672 = vmatprep.subr.mxu0 0.0
        %4673 = vmatpush1.msra.mxu0 0.0
        %4674 = vmatprep.subr.mxu0 0.0
        %4675 = vmatpush1.msra.mxu0 0.0
        %4676 = vmatprep.subr.mxu0 0.0
        %4677 = vmatpush1.msra.mxu0 0.0
        %4678 = vmatprep.subr.mxu0 0.0
        %4679 = vmatpush1.msra.mxu0 0.0
        %4680 = vmatprep.subr.mxu0 0.0
        %4681 = vmatpush1.msra.mxu0 0.0
        %4682 = vmatprep.subr.mxu0 0.0
        %4683 = vmatpush1.msra.mxu0 0.0
        %4684 = vmatprep.subr.mxu0 0.0
        %4685 = vmatpush1.msra.mxu0 0.0
        %4686 = vmatprep.subr.mxu0 0.0
        %4687 = vmatpush1.msra.mxu0 0.0
        %4688 = vmatprep.subr.mxu0 0.0
        %4689 = vmatpush1.msra.mxu0 0.0
        %4690 = vmatprep.subr.mxu0 0.0
        %4691 = vmatpush1.msra.mxu0 0.0
        %4692 = vmatprep.subr.mxu0 0.0
        %4693 = vmatpush1.msra.mxu0 0.0
        %4694 = vmatprep.subr.mxu0 0.0
        %4695 = vmatpush1.msra.mxu0 0.0
        %4696 = vmatprep.subr.mxu0 0.0
        %4697 = vmatpush1.msra.mxu0 0.0
        %4698 = vmatprep.subr.mxu0 0.0
        %4699 = vmatpush1.msra.mxu0 0.0
        %4700 = vmatprep.subr.mxu0 0.0
        %4701 = vmatpush1.msra.mxu0 0.0
        %4702 = vmatprep.subr.mxu0 0.0
        %4703 = vmatpush1.msra.mxu0 0.0
        %4704 = vmatprep.subr.mxu0 0.0
        %4705 = vmatpush1.msra.mxu0 0.0
        %4706 = vmatprep.subr.mxu0 0.0
        %4707 = vmatpush1.msra.mxu0 0.0
        %4708 = vmatprep.subr.mxu0 0.0
        %4709 = vmatpush1.msra.mxu0 0.0
        %4710 = vmatprep.subr.mxu0 0.0
        %4711 = vmatpush1.msra.mxu0 0.0
        %4712 = vmatprep.mubr.f32.mxu0 0.0
        %4713 = vmatmul.mubr.f32.gmra.mrb[0].mxu0 %v4553
        %v4714 = vpop.f32.mrb[0].mxu0
        %v4715 = vadd.f32 %v4646, %v4714
        %v4716 = vpop.f32.mrb[0].mxu0
        %4717 = vmatprep.mubr.f32.mxu0 0.0
        %4718 = vmatmul.mubr.f32.gmra.mrb[0].mxu0 %v4556
        %v4719 = vpop.f32.mrb[0].mxu0
        %v4720 = vadd.f32 %v4646, %v4719
        %v4721 = vpop.f32.mrb[0].mxu0
        %4722 = vdwg.mxu0
        %v4724 = vsel %vm1206, %v4532, 0
        %v4727 = vsel %vm1206, %v4625, 0
        %v4730 = vsel %vm1206, %v4630, 0
        %4732 = vmatprep.subr.mxu0 0.0
        %4733 = vmatpush1.xpose.msra.mxu0 %v4727
        %4734 = vmatprep.subr.mxu0 0.0
        %4735 = vmatpush1.xpose.msra.mxu0 %v4730
        %4736 = vmatprep.subr.mxu0 0.0
        %4737 = vmatpush1.xpose.msra.mxu0 0.0
        %4738 = vmatprep.subr.mxu0 0.0
        %4739 = vmatpush1.xpose.msra.mxu0 0.0
        %4740 = vmatprep.subr.mxu0 0.0
        %4741 = vmatpush1.xpose.msra.mxu0 0.0
        %4742 = vmatprep.subr.mxu0 0.0
        %4743 = vmatpush1.xpose.msra.mxu0 0.0
        %4744 = vmatprep.subr.mxu0 0.0
        %4745 = vmatpush1.xpose.msra.mxu0 0.0
        %4746 = vmatprep.subr.mxu0 0.0
        %4747 = vmatpush1.xpose.msra.mxu0 0.0
        %4748 = vmatprep.subr.mxu0 0.0
        %4749 = vmatpush1.xpose.msra.mxu0 0.0
        %4750 = vmatprep.subr.mxu0 0.0
        %4751 = vmatpush1.xpose.msra.mxu0 0.0
        %4752 = vmatprep.subr.mxu0 0.0
        %4753 = vmatpush1.xpose.msra.mxu0 0.0
        %4754 = vmatprep.subr.mxu0 0.0
        %4755 = vmatpush1.xpose.msra.mxu0 0.0
        %4756 = vmatprep.subr.mxu0 0.0
        %4757 = vmatpush1.xpose.msra.mxu0 0.0
        %4758 = vmatprep.subr.mxu0 0.0
        %4759 = vmatpush1.xpose.msra.mxu0 0.0
        %4760 = vmatprep.subr.mxu0 0.0
        %4761 = vmatpush1.xpose.msra.mxu0 0.0
        %4762 = vmatprep.subr.mxu0 0.0
        %4763 = vmatpush1.xpose.msra.mxu0 0.0
        %4764 = vmatprep.subr.mxu0 0.0
        %4765 = vmatpush1.xpose.msra.mxu0 0.0
        %4766 = vmatprep.subr.mxu0 0.0
        %4767 = vmatpush1.xpose.msra.mxu0 0.0
        %4768 = vmatprep.subr.mxu0 0.0
        %4769 = vmatpush1.xpose.msra.mxu0 0.0
        %4770 = vmatprep.subr.mxu0 0.0
        %4771 = vmatpush1.xpose.msra.mxu0 0.0
        %4772 = vmatprep.subr.mxu0 0.0
        %4773 = vmatpush1.xpose.msra.mxu0 0.0
        %4774 = vmatprep.subr.mxu0 0.0
        %4775 = vmatpush1.xpose.msra.mxu0 0.0
        %4776 = vmatprep.subr.mxu0 0.0
        %4777 = vmatpush1.xpose.msra.mxu0 0.0
        %4778 = vmatprep.subr.mxu0 0.0
        %4779 = vmatpush1.xpose.msra.mxu0 0.0
        %4780 = vmatprep.subr.mxu0 0.0
        %4781 = vmatpush1.xpose.msra.mxu0 0.0
        %4782 = vmatprep.subr.mxu0 0.0
        %4783 = vmatpush1.xpose.msra.mxu0 0.0
        %4784 = vmatprep.subr.mxu0 0.0
        %4785 = vmatpush1.xpose.msra.mxu0 0.0
        %4786 = vmatprep.subr.mxu0 0.0
        %4787 = vmatpush1.xpose.msra.mxu0 0.0
        %4788 = vmatprep.subr.mxu0 0.0
        %4789 = vmatpush1.xpose.msra.mxu0 0.0
        %4790 = vmatprep.subr.mxu0 0.0
        %4791 = vmatpush1.xpose.msra.mxu0 0.0
        %4792 = vmatprep.subr.mxu0 0.0
        %4793 = vmatpush1.xpose.msra.mxu0 0.0
        %4794 = vmatprep.subr.mxu0 0.0
        %4795 = vmatpush1.xpose.msra.mxu0 0.0
        %4796 = vmatprep.mubr.f32.mxu0 0.0
        %4797 = vmatmul.mubr.f32.gmra.mrb[0].mxu0 %v4724
        %v4798 = vpop.f32.mrb[0].mxu0
        %v4799 = vadd.f32 0.0, %v4798
        %v4800 = vpop.f32.mrb[0].mxu0
        %4801 = vdwg.mxu0
        %v4802 = vsel %vm1303, %v4799, -inf
        %4803 = vmax.xlane.f32.xlu0 %v4802
        %v4804 = vpop.xlane.xlu0 %4803
        %v4805 = vsub.f32 %v4799, %v4804
        %v4806 = vmul.f32 %v4805, 1.442695
        %v4807 = vpow.pop %v4806
        %v4808 = vsel %vm1303, %v4807, 0.0
        %4809 = vadd.xlane.f32.xlu0 %v4808
        %v4810 = vpop.xlane.xlu0 %4809
        %v4811 = vrcp.pop %v4810
        %v4812 = vmul.f32 %v4807, %v4811
        %v4814 = vsel %vm1303, %v4812, 0
        %4816 = vmatprep.subr.mxu0 0.0
        %4817 = vmatpush1.msra.mxu0 %v4715
        %4818 = vmatprep.subr.mxu0 0.0
        %4819 = vmatpush1.msra.mxu0 %v4720
        %4820 = vmatprep.subr.mxu0 0.0
        %4821 = vmatpush1.msra.mxu0 0.0
        %4822 = vmatprep.subr.mxu0 0.0
        %4823 = vmatpush1.msra.mxu0 0.0
        %4824 = vmatprep.subr.mxu0 0.0
        %4825 = vmatpush1.msra.mxu0 0.0
        %4826 = vmatprep.subr.mxu0 0.0
        %4827 = vmatpush1.msra.mxu0 0.0
        %4828 = vmatprep.subr.mxu0 0.0
        %4829 = vmatpush1.msra.mxu0 0.0
        %4830 = vmatprep.subr.mxu0 0.0
        %4831 = vmatpush1.msra.mxu0 0.0
        %4832 = vmatprep.subr.mxu0 0.0
        %4833 = vmatpush1.msra.mxu0 0.0
        %4834 = vmatprep.subr.mxu0 0.0
        %4835 = vmatpush1.msra.mxu0 0.0
        %4836 = vmatprep.subr.mxu0 0.0
        %4837 = vmatpush1.msra.mxu0 0.0
        %4838 = vmatprep.subr.mxu0 0.0
        %4839 = vmatpush1.msra.mxu0 0.0
        %4840 = vmatprep.subr.mxu0 0.0
        %4841 = vmatpush1.msra.mxu0 0.0
        %4842 = vmatprep.subr.mxu0 0.0
        %4843 = vmatpush1.msra.mxu0 0.0
        %4844 = vmatprep.subr.mxu0 0.0
        %4845 = vmatpush1.msra.mxu0 0.0
        %4846 = vmatprep.subr.mxu0 0.0
        %4847 = vmatpush1.msra.mxu0 0.0
        %4848 = vmatprep.subr.mxu0 0.0
        %4849 = vmatpush1.msra.mxu0 0.0
        %4850 = vmatprep.subr.mxu0 0.0
        %4851 = vmatpush1.msra.mxu0 0.0
        %4852 = vmatprep.subr.mxu0 0.0
        %4853 = vmatpush1.msra.mxu0 0.0
        %4854 = vmatprep.subr.mxu0 0.0
        %4855 = vmatpush1.msra.mxu0 0.0
        %4856 = vmatprep.subr.mxu0 0.0
        %4857 = vmatpush1.msra.mxu0 0.0
        %4858 = vmatprep.subr.mxu0 0.0
        %4859 = vmatpush1.msra.mxu0 0.0
        %4860 = vmatprep.subr.mxu0 0.0
        %4861 = vmatpush1.msra.mxu0 0.0
        %4862 = vmatprep.subr.mxu0 0.0
        %4863 = vmatpush1.msra.mxu0 0.0
        %4864 = vmatprep.subr.mxu0 0.0
        %4865 = vmatpush1.msra.mxu0 0.0
        %4866 = vmatprep.subr.mxu0 0.0
        %4867 = vmatpush1.msra.mxu0 0.0
        %4868 = vmatprep.subr.mxu0 0.0
        %4869 = vmatpush1.msra.mxu0 0.0
        %4870 = vmatprep.subr.mxu0 0.0
        %4871 = vmatpush1.msra.mxu0 0.0
        %4872 = vmatprep.subr.mxu0 0.0
        %4873 = vmatpush1.msra.mxu0 0.0
        %4874 = vmatprep.subr.mxu0 0.0
        %4875 = vmatpush1.msra.mxu0 0.0
        %4876 = vmatprep.subr.mxu0 0.0
        %4877 = vmatpush1.msra.mxu0 0.0
        %4878 = vmatprep.subr.mxu0 0.0
        %4879 = vmatpush1.msra.mxu0 0.0
        %4880 = vmatprep.mubr.f32.mxu0 0.0
        %4881 = vmatmul.mubr.f32.gmra.mrb[0].mxu0 %v4814
        %v4882 = vpop.f32.mrb[0].mxu0
        %v4883 = vadd.f32 0.0, %v4882
        %v4884 = vpop.f32.mrb[0].mxu0
        %4885 = vdwg.mxu0
        %4886 = vrot.lane.b32.xlu0 %v4532, 120
        %v4887 = vpop.permute.xlu0 %4886
        %4888 = vrot.lane.b32.xlu0 %v4625, 120
        %v4889 = vpop.permute.xlu0 %4888
        %4890 = vrot.lane.b32.xlu0 %v4630, 120
        %v4891 = vpop.permute.xlu0 %4890
        %v4892 = vsel %vm1206, %v4887, 0
        %v4894 = vsel %vm1206, %v4889, 0
        %v4896 = vsel %vm1206, %v4891, 0
        %4898 = vmatprep.subr.mxu0 0.0
        %4899 = vmatpush1.xpose.msra.mxu0 %v4894
        %4900 = vmatprep.subr.mxu0 0.0
        %4901 = vmatpush1.xpose.msra.mxu0 %v4896
        %4902 = vmatprep.subr.mxu0 0.0
        %4903 = vmatpush1.xpose.msra.mxu0 0.0
        %4904 = vmatprep.subr.mxu0 0.0
        %4905 = vmatpush1.xpose.msra.mxu0 0.0
        %4906 = vmatprep.subr.mxu0 0.0
        %4907 = vmatpush1.xpose.msra.mxu0 0.0
        %4908 = vmatprep.subr.mxu0 0.0
        %4909 = vmatpush1.xpose.msra.mxu0 0.0
        %4910 = vmatprep.subr.mxu0 0.0
        %4911 = vmatpush1.xpose.msra.mxu0 0.0
        %4912 = vmatprep.subr.mxu0 0.0
        %4913 = vmatpush1.xpose.msra.mxu0 0.0
        %4914 = vmatprep.subr.mxu0 0.0
        %4915 = vmatpush1.xpose.msra.mxu0 0.0
        %4916 = vmatprep.subr.mxu0 0.0
        %4917 = vmatpush1.xpose.msra.mxu0 0.0
        %4918 = vmatprep.subr.mxu0 0.0
        %4919 = vmatpush1.xpose.msra.mxu0 0.0
        %4920 = vmatprep.subr.mxu0 0.0
        %4921 = vmatpush1.xpose.msra.mxu0 0.0
        %4922 = vmatprep.subr.mxu0 0.0
        %4923 = vmatpush1.xpose.msra.mxu0 0.0
        %4924 = vmatprep.subr.mxu0 0.0
        %4925 = vmatpush1.xpose.msra.mxu0 0.0
        %4926 = vmatprep.subr.mxu0 0.0
        %4927 = vmatpush1.xpose.msra.mxu0 0.0
        %4928 = vmatprep.subr.mxu0 0.0
        %4929 = vmatpush1.xpose.msra.mxu0 0.0
        %4930 = vmatprep.subr.mxu0 0.0
        %4931 = vmatpush1.xpose.msra.mxu0 0.0
        %4932 = vmatprep.subr.mxu0 0.0
        %4933 = vmatpush1.xpose.msra.mxu0 0.0
        %4934 = vmatprep.subr.mxu0 0.0
        %4935 = vmatpush1.xpose.msra.mxu0 0.0
        %4936 = vmatprep.subr.mxu0 0.0
        %4937 = vmatpush1.xpose.msra.mxu0 0.0
        %4938 = vmatprep.subr.mxu0 0.0
        %4939 = vmatpush1.xpose.msra.mxu0 0.0
        %4940 = vmatprep.subr.mxu0 0.0
        %4941 = vmatpush1.xpose.msra.mxu0 0.0
        %4942 = vmatprep.subr.mxu0 0.0
        %4943 = vmatpush1.xpose.msra.mxu0 0.0
        %4944 = vmatprep.subr.mxu0 0.0
        %4945 = vmatpush1.xpose.msra.mxu0 0.0
        %4946 = vmatprep.subr.mxu0 0.0
        %4947 = vmatpush1.xpose.msra.mxu0 0.0
        %4948 = vmatprep.subr.mxu0 0.0
        %4949 = vmatpush1.xpose.msra.mxu0 0.0
        %4950 = vmatprep.subr.mxu0 0.0
        %4951 = vmatpush1.xpose.msra.mxu0 0.0
        %4952 = vmatprep.subr.mxu0 0.0
        %4953 = vmatpush1.xpose.msra.mxu0 0.0
        %4954 = vmatprep.subr.mxu0 0.0
        %4955 = vmatpush1.xpose.msra.mxu0 0.0
        %4956 = vmatprep.subr.mxu0 0.0
        %4957 = vmatpush1.xpose.msra.mxu0 0.0
        %4958 = vmatprep.subr.mxu0 0.0
        %4959 = vmatpush1.xpose.msra.mxu0 0.0
        %4960 = vmatprep.subr.mxu0 0.0
        %4961 = vmatpush1.xpose.msra.mxu0 0.0
        %4962 = vmatprep.mubr.f32.mxu0 0.0
        %4963 = vmatmul.mubr.f32.gmra.mrb[0].mxu0 %v4892
        %v4964 = vpop.f32.mrb[0].mxu0
        %v4965 = vadd.f32 0.0, %v4964
        %v4966 = vpop.f32.mrb[0].mxu0
        %4967 = vdwg.mxu0
        %v4968 = vsel %vm1303, %v4965, -inf
        %4969 = vmax.xlane.f32.xlu0 %v4968
        %v4970 = vpop.xlane.xlu0 %4969
        %v4971 = vsub.f32 %v4965, %v4970
        %v4972 = vmul.f32 %v4971, 1.442695
        %v4973 = vpow.pop %v4972
        %v4974 = vsel %vm1303, %v4973, 0.0
        %4975 = vadd.xlane.f32.xlu0 %v4974
        %v4976 = vpop.xlane.xlu0 %4975
        %v4977 = vrcp.pop %v4976
        %v4978 = vmul.f32 %v4973, %v4977
        %4981 = vrot.lane.b32.xlu0 %v4715, 120
        %v4982 = vpop.permute.xlu0 %4981
        %4983 = vrot.lane.b32.xlu0 %v4720, 120
        %v4984 = vpop.permute.xlu0 %4983
        %v4988 = vsel %vm1303, %v4978, 0
        %4990 = vmatprep.subr.mxu0 0.0
        %4991 = vmatpush1.msra.mxu0 %v4982
        %4992 = vmatprep.subr.mxu0 0.0
        %4993 = vmatpush1.msra.mxu0 %v4984
        %4994 = vmatprep.subr.mxu0 0.0
        %4995 = vmatpush1.msra.mxu0 0.0
        %4996 = vmatprep.subr.mxu0 0.0
        %4997 = vmatpush1.msra.mxu0 0.0
        %4998 = vmatprep.subr.mxu0 0.0
        %4999 = vmatpush1.msra.mxu0 0.0
        %5000 = vmatprep.subr.mxu0 0.0
        %5001 = vmatpush1.msra.mxu0 0.0
        %5002 = vmatprep.subr.mxu0 0.0
        %5003 = vmatpush1.msra.mxu0 0.0
        %5004 = vmatprep.subr.mxu0 0.0
        %5005 = vmatpush1.msra.mxu0 0.0
        %5006 = vmatprep.subr.mxu0 0.0
        %5007 = vmatpush1.msra.mxu0 0.0
        %5008 = vmatprep.subr.mxu0 0.0
        %5009 = vmatpush1.msra.mxu0 0.0
        %5010 = vmatprep.subr.mxu0 0.0
        %5011 = vmatpush1.msra.mxu0 0.0
        %5012 = vmatprep.subr.mxu0 0.0
        %5013 = vmatpush1.msra.mxu0 0.0
        %5014 = vmatprep.subr.mxu0 0.0
        %5015 = vmatpush1.msra.mxu0 0.0
        %5016 = vmatprep.subr.mxu0 0.0
        %5017 = vmatpush1.msra.mxu0 0.0
        %5018 = vmatprep.subr.mxu0 0.0
        %5019 = vmatpush1.msra.mxu0 0.0
        %5020 = vmatprep.subr.mxu0 0.0
        %5021 = vmatpush1.msra.mxu0 0.0
        %5022 = vmatprep.subr.mxu0 0.0
        %5023 = vmatpush1.msra.mxu0 0.0
        %5024 = vmatprep.subr.mxu0 0.0
        %5025 = vmatpush1.msra.mxu0 0.0
        %5026 = vmatprep.subr.mxu0 0.0
        %5027 = vmatpush1.msra.mxu0 0.0
        %5028 = vmatprep.subr.mxu0 0.0
        %5029 = vmatpush1.msra.mxu0 0.0
        %5030 = vmatprep.subr.mxu0 0.0
        %5031 = vmatpush1.msra.mxu0 0.0
        %5032 = vmatprep.subr.mxu0 0.0
        %5033 = vmatpush1.msra.mxu0 0.0
        %5034 = vmatprep.subr.mxu0 0.0
        %5035 = vmatpush1.msra.mxu0 0.0
        %5036 = vmatprep.subr.mxu0 0.0
        %5037 = vmatpush1.msra.mxu0 0.0
        %5038 = vmatprep.subr.mxu0 0.0
        %5039 = vmatpush1.msra.mxu0 0.0
        %5040 = vmatprep.subr.mxu0 0.0
        %5041 = vmatpush1.msra.mxu0 0.0
        %5042 = vmatprep.subr.mxu0 0.0
        %5043 = vmatpush1.msra.mxu0 0.0
        %5044 = vmatprep.subr.mxu0 0.0
        %5045 = vmatpush1.msra.mxu0 0.0
        %5046 = vmatprep.subr.mxu0 0.0
        %5047 = vmatpush1.msra.mxu0 0.0
        %5048 = vmatprep.subr.mxu0 0.0
        %5049 = vmatpush1.msra.mxu0 0.0
        %5050 = vmatprep.subr.mxu0 0.0
        %5051 = vmatpush1.msra.mxu0 0.0
        %5052 = vmatprep.subr.mxu0 0.0
        %5053 = vmatpush1.msra.mxu0 0.0
        %5054 = vmatprep.mubr.f32.mxu0 0.0
        %5055 = vmatmul.mubr.f32.gmra.mrb[0].mxu0 %v4988
        %v5056 = vpop.f32.mrb[0].mxu0
        %v5057 = vadd.f32 0.0, %v5056
        %v5058 = vpop.f32.mrb[0].mxu0
        %5059 = vdwg.mxu0
        %5060 = vrot.lane.b32.xlu0 %v4532, 112
        %v5061 = vpop.permute.xlu0 %5060
        %5062 = vrot.lane.b32.xlu0 %v4625, 112
        %v5063 = vpop.permute.xlu0 %5062
        %5064 = vrot.lane.b32.xlu0 %v4630, 112
        %v5065 = vpop.permute.xlu0 %5064
        %v5066 = vsel %vm1206, %v5061, 0
        %v5068 = vsel %vm1206, %v5063, 0
        %v5070 = vsel %vm1206, %v5065, 0
        %5072 = vmatprep.subr.mxu0 0.0
        %5073 = vmatpush1.xpose.msra.mxu0 %v5068
        %5074 = vmatprep.subr.mxu0 0.0
        %5075 = vmatpush1.xpose.msra.mxu0 %v5070
        %5076 = vmatprep.subr.mxu0 0.0
        %5077 = vmatpush1.xpose.msra.mxu0 0.0
        %5078 = vmatprep.subr.mxu0 0.0
        %5079 = vmatpush1.xpose.msra.mxu0 0.0
        %5080 = vmatprep.subr.mxu0 0.0
        %5081 = vmatpush1.xpose.msra.mxu0 0.0
        %5082 = vmatprep.subr.mxu0 0.0
        %5083 = vmatpush1.xpose.msra.mxu0 0.0
        %5084 = vmatprep.subr.mxu0 0.0
        %5085 = vmatpush1.xpose.msra.mxu0 0.0
        %5086 = vmatprep.subr.mxu0 0.0
        %5087 = vmatpush1.xpose.msra.mxu0 0.0
        %5088 = vmatprep.subr.mxu0 0.0
        %5089 = vmatpush1.xpose.msra.mxu0 0.0
        %5090 = vmatprep.subr.mxu0 0.0
        %5091 = vmatpush1.xpose.msra.mxu0 0.0
        %5092 = vmatprep.subr.mxu0 0.0
        %5093 = vmatpush1.xpose.msra.mxu0 0.0
        %5094 = vmatprep.subr.mxu0 0.0
        %5095 = vmatpush1.xpose.msra.mxu0 0.0
        %5096 = vmatprep.subr.mxu0 0.0
        %5097 = vmatpush1.xpose.msra.mxu0 0.0
        %5098 = vmatprep.subr.mxu0 0.0
        %5099 = vmatpush1.xpose.msra.mxu0 0.0
        %5100 = vmatprep.subr.mxu0 0.0
        %5101 = vmatpush1.xpose.msra.mxu0 0.0
        %5102 = vmatprep.subr.mxu0 0.0
        %5103 = vmatpush1.xpose.msra.mxu0 0.0
        %5104 = vmatprep.subr.mxu0 0.0
        %5105 = vmatpush1.xpose.msra.mxu0 0.0
        %5106 = vmatprep.subr.mxu0 0.0
        %5107 = vmatpush1.xpose.msra.mxu0 0.0
        %5108 = vmatprep.subr.mxu0 0.0
        %5109 = vmatpush1.xpose.msra.mxu0 0.0
        %5110 = vmatprep.subr.mxu0 0.0
        %5111 = vmatpush1.xpose.msra.mxu0 0.0
        %5112 = vmatprep.subr.mxu0 0.0
        %5113 = vmatpush1.xpose.msra.mxu0 0.0
        %5114 = vmatprep.subr.mxu0 0.0
        %5115 = vmatpush1.xpose.msra.mxu0 0.0
        %5116 = vmatprep.subr.mxu0 0.0
        %5117 = vmatpush1.xpose.msra.mxu0 0.0
        %5118 = vmatprep.subr.mxu0 0.0
        %5119 = vmatpush1.xpose.msra.mxu0 0.0
        %5120 = vmatprep.subr.mxu0 0.0
        %5121 = vmatpush1.xpose.msra.mxu0 0.0
        %5122 = vmatprep.subr.mxu0 0.0
        %5123 = vmatpush1.xpose.msra.mxu0 0.0
        %5124 = vmatprep.subr.mxu0 0.0
        %5125 = vmatpush1.xpose.msra.mxu0 0.0
        %5126 = vmatprep.subr.mxu0 0.0
        %5127 = vmatpush1.xpose.msra.mxu0 0.0
        %5128 = vmatprep.subr.mxu0 0.0
        %5129 = vmatpush1.xpose.msra.mxu0 0.0
        %5130 = vmatprep.subr.mxu0 0.0
        %5131 = vmatpush1.xpose.msra.mxu0 0.0
        %5132 = vmatprep.subr.mxu0 0.0
        %5133 = vmatpush1.xpose.msra.mxu0 0.0
        %5134 = vmatprep.subr.mxu0 0.0
        %5135 = vmatpush1.xpose.msra.mxu0 0.0
        %5136 = vmatprep.mubr.f32.mxu0 0.0
        %5137 = vmatmul.mubr.f32.gmra.mrb[0].mxu0 %v5066
        %v5138 = vpop.f32.mrb[0].mxu0
        %v5139 = vadd.f32 0.0, %v5138
        %v5140 = vpop.f32.mrb[0].mxu0
        %5141 = vdwg.mxu0
        %v5142 = vsel %vm1303, %v5139, -inf
        %5143 = vmax.xlane.f32.xlu0 %v5142
        %v5144 = vpop.xlane.xlu0 %5143
        %v5145 = vsub.f32 %v5139, %v5144
        %v5146 = vmul.f32 %v5145, 1.442695
        %v5147 = vpow.pop %v5146
        %v5148 = vsel %vm1303, %v5147, 0.0
        %5149 = vadd.xlane.f32.xlu0 %v5148
        %v5150 = vpop.xlane.xlu0 %5149
        %v5151 = vrcp.pop %v5150
        %v5152 = vmul.f32 %v5147, %v5151
        %5153 = vrot.lane.b32.xlu0 %v4715, 112
        %v5154 = vpop.permute.xlu0 %5153
        %5155 = vrot.lane.b32.xlu0 %v4720, 112
        %v5156 = vpop.permute.xlu0 %5155
        %v5160 = vsel %vm1303, %v5152, 0
        %5162 = vmatprep.subr.mxu0 0.0
        %5163 = vmatpush1.msra.mxu0 %v5154
        %5164 = vmatprep.subr.mxu0 0.0
        %5165 = vmatpush1.msra.mxu0 %v5156
        %5166 = vmatprep.subr.mxu0 0.0
        %5167 = vmatpush1.msra.mxu0 0.0
        %5168 = vmatprep.subr.mxu0 0.0
        %5169 = vmatpush1.msra.mxu0 0.0
        %5170 = vmatprep.subr.mxu0 0.0
        %5171 = vmatpush1.msra.mxu0 0.0
        %5172 = vmatprep.subr.mxu0 0.0
        %5173 = vmatpush1.msra.mxu0 0.0
        %5174 = vmatprep.subr.mxu0 0.0
        %5175 = vmatpush1.msra.mxu0 0.0
        %5176 = vmatprep.subr.mxu0 0.0
        %5177 = vmatpush1.msra.mxu0 0.0
        %5178 = vmatprep.subr.mxu0 0.0
        %5179 = vmatpush1.msra.mxu0 0.0
        %5180 = vmatprep.subr.mxu0 0.0
        %5181 = vmatpush1.msra.mxu0 0.0
        %5182 = vmatprep.subr.mxu0 0.0
        %5183 = vmatpush1.msra.mxu0 0.0
        %5184 = vmatprep.subr.mxu0 0.0
        %5185 = vmatpush1.msra.mxu0 0.0
        %5186 = vmatprep.subr.mxu0 0.0
        %5187 = vmatpush1.msra.mxu0 0.0
        %5188 = vmatprep.subr.mxu0 0.0
        %5189 = vmatpush1.msra.mxu0 0.0
        %5190 = vmatprep.subr.mxu0 0.0
        %5191 = vmatpush1.msra.mxu0 0.0
        %5192 = vmatprep.subr.mxu0 0.0
        %5193 = vmatpush1.msra.mxu0 0.0
        %5194 = vmatprep.subr.mxu0 0.0
        %5195 = vmatpush1.msra.mxu0 0.0
        %5196 = vmatprep.subr.mxu0 0.0
        %5197 = vmatpush1.msra.mxu0 0.0
        %5198 = vmatprep.subr.mxu0 0.0
        %5199 = vmatpush1.msra.mxu0 0.0
        %5200 = vmatprep.subr.mxu0 0.0
        %5201 = vmatpush1.msra.mxu0 0.0
        %5202 = vmatprep.subr.mxu0 0.0
        %5203 = vmatpush1.msra.mxu0 0.0
        %5204 = vmatprep.subr.mxu0 0.0
        %5205 = vmatpush1.msra.mxu0 0.0
        %5206 = vmatprep.subr.mxu0 0.0
        %5207 = vmatpush1.msra.mxu0 0.0
        %5208 = vmatprep.subr.mxu0 0.0
        %5209 = vmatpush1.msra.mxu0 0.0
        %5210 = vmatprep.subr.mxu0 0.0
        %5211 = vmatpush1.msra.mxu0 0.0
        %5212 = vmatprep.subr.mxu0 0.0
        %5213 = vmatpush1.msra.mxu0 0.0
        %5214 = vmatprep.subr.mxu0 0.0
        %5215 = vmatpush1.msra.mxu0 0.0
        %5216 = vmatprep.subr.mxu0 0.0
        %5217 = vmatpush1.msra.mxu0 0.0
        %5218 = vmatprep.subr.mxu0 0.0
        %5219 = vmatpush1.msra.mxu0 0.0
        %5220 = vmatprep.subr.mxu0 0.0
        %5221 = vmatpush1.msra.mxu0 0.0
        %5222 = vmatprep.subr.mxu0 0.0
        %5223 = vmatpush1.msra.mxu0 0.0
        %5224 = vmatprep.subr.mxu0 0.0
        %5225 = vmatpush1.msra.mxu0 0.0
        %5226 = vmatprep.mubr.f32.mxu0 0.0
        %5227 = vmatmul.mubr.f32.gmra.mrb[0].mxu0 %v5160
        %v5228 = vpop.f32.mrb[0].mxu0
        %v5229 = vadd.f32 0.0, %v5228
        %v5230 = vpop.f32.mrb[0].mxu0
        %5231 = vdwg.mxu0
        %5232 = vrot.lane.b32.xlu0 %v4532, 104
        %v5233 = vpop.permute.xlu0 %5232
        %5234 = vrot.lane.b32.xlu0 %v4625, 104
        %v5235 = vpop.permute.xlu0 %5234
        %5236 = vrot.lane.b32.xlu0 %v4630, 104
        %v5237 = vpop.permute.xlu0 %5236
        %v5238 = vsel %vm1206, %v5233, 0
        %v5240 = vsel %vm1206, %v5235, 0
        %v5242 = vsel %vm1206, %v5237, 0
        %5244 = vmatprep.subr.mxu0 0.0
        %5245 = vmatpush1.xpose.msra.mxu0 %v5240
        %5246 = vmatprep.subr.mxu0 0.0
        %5247 = vmatpush1.xpose.msra.mxu0 %v5242
        %5248 = vmatprep.subr.mxu0 0.0
        %5249 = vmatpush1.xpose.msra.mxu0 0.0
        %5250 = vmatprep.subr.mxu0 0.0
        %5251 = vmatpush1.xpose.msra.mxu0 0.0
        %5252 = vmatprep.subr.mxu0 0.0
        %5253 = vmatpush1.xpose.msra.mxu0 0.0
        %5254 = vmatprep.subr.mxu0 0.0
        %5255 = vmatpush1.xpose.msra.mxu0 0.0
        %5256 = vmatprep.subr.mxu0 0.0
        %5257 = vmatpush1.xpose.msra.mxu0 0.0
        %5258 = vmatprep.subr.mxu0 0.0
        %5259 = vmatpush1.xpose.msra.mxu0 0.0
        %5260 = vmatprep.subr.mxu0 0.0
        %5261 = vmatpush1.xpose.msra.mxu0 0.0
        %5262 = vmatprep.subr.mxu0 0.0
        %5263 = vmatpush1.xpose.msra.mxu0 0.0
        %5264 = vmatprep.subr.mxu0 0.0
        %5265 = vmatpush1.xpose.msra.mxu0 0.0
        %5266 = vmatprep.subr.mxu0 0.0
        %5267 = vmatpush1.xpose.msra.mxu0 0.0
        %5268 = vmatprep.subr.mxu0 0.0
        %5269 = vmatpush1.xpose.msra.mxu0 0.0
        %5270 = vmatprep.subr.mxu0 0.0
        %5271 = vmatpush1.xpose.msra.mxu0 0.0
        %5272 = vmatprep.subr.mxu0 0.0
        %5273 = vmatpush1.xpose.msra.mxu0 0.0
        %5274 = vmatprep.subr.mxu0 0.0
        %5275 = vmatpush1.xpose.msra.mxu0 0.0
        %5276 = vmatprep.subr.mxu0 0.0
        %5277 = vmatpush1.xpose.msra.mxu0 0.0
        %5278 = vmatprep.subr.mxu0 0.0
        %5279 = vmatpush1.xpose.msra.mxu0 0.0
        %5280 = vmatprep.subr.mxu0 0.0
        %5281 = vmatpush1.xpose.msra.mxu0 0.0
        %5282 = vmatprep.subr.mxu0 0.0
        %5283 = vmatpush1.xpose.msra.mxu0 0.0
        %5284 = vmatprep.subr.mxu0 0.0
        %5285 = vmatpush1.xpose.msra.mxu0 0.0
        %5286 = vmatprep.subr.mxu0 0.0
        %5287 = vmatpush1.xpose.msra.mxu0 0.0
        %5288 = vmatprep.subr.mxu0 0.0
        %5289 = vmatpush1.xpose.msra.mxu0 0.0
        %5290 = vmatprep.subr.mxu0 0.0
        %5291 = vmatpush1.xpose.msra.mxu0 0.0
        %5292 = vmatprep.subr.mxu0 0.0
        %5293 = vmatpush1.xpose.msra.mxu0 0.0
        %5294 = vmatprep.subr.mxu0 0.0
        %5295 = vmatpush1.xpose.msra.mxu0 0.0
        %5296 = vmatprep.subr.mxu0 0.0
        %5297 = vmatpush1.xpose.msra.mxu0 0.0
        %5298 = vmatprep.subr.mxu0 0.0
        %5299 = vmatpush1.xpose.msra.mxu0 0.0
        %5300 = vmatprep.subr.mxu0 0.0
        %5301 = vmatpush1.xpose.msra.mxu0 0.0
        %5302 = vmatprep.subr.mxu0 0.0
        %5303 = vmatpush1.xpose.msra.mxu0 0.0
        %5304 = vmatprep.subr.mxu0 0.0
        %5305 = vmatpush1.xpose.msra.mxu0 0.0
        %5306 = vmatprep.subr.mxu0 0.0
        %5307 = vmatpush1.xpose.msra.mxu0 0.0
        %5308 = vmatprep.mubr.f32.mxu0 0.0
        %5309 = vmatmul.mubr.f32.gmra.mrb[0].mxu0 %v5238
        %v5310 = vpop.f32.mrb[0].mxu0
        %v5311 = vadd.f32 0.0, %v5310
        %v5312 = vpop.f32.mrb[0].mxu0
        %5313 = vdwg.mxu0
        %v5314 = vsel %vm1303, %v5311, -inf
        %5315 = vmax.xlane.f32.xlu0 %v5314
        %v5316 = vpop.xlane.xlu0 %5315
        %v5317 = vsub.f32 %v5311, %v5316
        %v5318 = vmul.f32 %v5317, 1.442695
        %v5319 = vpow.pop %v5318
        %v5320 = vsel %vm1303, %v5319, 0.0
        %5321 = vadd.xlane.f32.xlu0 %v5320
        %v5322 = vpop.xlane.xlu0 %5321
        %v5323 = vrcp.pop %v5322
        %v5324 = vmul.f32 %v5319, %v5323
        %5325 = vrot.lane.b32.xlu0 %v4715, 104
        %v5326 = vpop.permute.xlu0 %5325
        %5327 = vrot.lane.b32.xlu0 %v4720, 104
        %v5328 = vpop.permute.xlu0 %5327
        %v5332 = vsel %vm1303, %v5324, 0
        %5334 = vmatprep.subr.mxu0 0.0
        %5335 = vmatpush1.msra.mxu0 %v5326
        %5336 = vmatprep.subr.mxu0 0.0
        %5337 = vmatpush1.msra.mxu0 %v5328
        %5338 = vmatprep.subr.mxu0 0.0
        %5339 = vmatpush1.msra.mxu0 0.0
        %5340 = vmatprep.subr.mxu0 0.0
        %5341 = vmatpush1.msra.mxu0 0.0
        %5342 = vmatprep.subr.mxu0 0.0
        %5343 = vmatpush1.msra.mxu0 0.0
        %5344 = vmatprep.subr.mxu0 0.0
        %5345 = vmatpush1.msra.mxu0 0.0
        %5346 = vmatprep.subr.mxu0 0.0
        %5347 = vmatpush1.msra.mxu0 0.0
        %5348 = vmatprep.subr.mxu0 0.0
        %5349 = vmatpush1.msra.mxu0 0.0
        %5350 = vmatprep.subr.mxu0 0.0
        %5351 = vmatpush1.msra.mxu0 0.0
        %5352 = vmatprep.subr.mxu0 0.0
        %5353 = vmatpush1.msra.mxu0 0.0
        %5354 = vmatprep.subr.mxu0 0.0
        %5355 = vmatpush1.msra.mxu0 0.0
        %5356 = vmatprep.subr.mxu0 0.0
        %5357 = vmatpush1.msra.mxu0 0.0
        %5358 = vmatprep.subr.mxu0 0.0
        %5359 = vmatpush1.msra.mxu0 0.0
        %5360 = vmatprep.subr.mxu0 0.0
        %5361 = vmatpush1.msra.mxu0 0.0
        %5362 = vmatprep.subr.mxu0 0.0
        %5363 = vmatpush1.msra.mxu0 0.0
        %5364 = vmatprep.subr.mxu0 0.0
        %5365 = vmatpush1.msra.mxu0 0.0
        %5366 = vmatprep.subr.mxu0 0.0
        %5367 = vmatpush1.msra.mxu0 0.0
        %5368 = vmatprep.subr.mxu0 0.0
        %5369 = vmatpush1.msra.mxu0 0.0
        %5370 = vmatprep.subr.mxu0 0.0
        %5371 = vmatpush1.msra.mxu0 0.0
        %5372 = vmatprep.subr.mxu0 0.0
        %5373 = vmatpush1.msra.mxu0 0.0
        %5374 = vmatprep.subr.mxu0 0.0
        %5375 = vmatpush1.msra.mxu0 0.0
        %5376 = vmatprep.subr.mxu0 0.0
        %5377 = vmatpush1.msra.mxu0 0.0
        %5378 = vmatprep.subr.mxu0 0.0
        %5379 = vmatpush1.msra.mxu0 0.0
        %5380 = vmatprep.subr.mxu0 0.0
        %5381 = vmatpush1.msra.mxu0 0.0
        %5382 = vmatprep.subr.mxu0 0.0
        %5383 = vmatpush1.msra.mxu0 0.0
        %5384 = vmatprep.subr.mxu0 0.0
        %5385 = vmatpush1.msra.mxu0 0.0
        %5386 = vmatprep.subr.mxu0 0.0
        %5387 = vmatpush1.msra.mxu0 0.0
        %5388 = vmatprep.subr.mxu0 0.0
        %5389 = vmatpush1.msra.mxu0 0.0
        %5390 = vmatprep.subr.mxu0 0.0
        %5391 = vmatpush1.msra.mxu0 0.0
        %5392 = vmatprep.subr.mxu0 0.0
        %5393 = vmatpush1.msra.mxu0 0.0
        %5394 = vmatprep.subr.mxu0 0.0
        %5395 = vmatpush1.msra.mxu0 0.0
        %5396 = vmatprep.subr.mxu0 0.0
        %5397 = vmatpush1.msra.mxu0 0.0
        %5398 = vmatprep.mubr.f32.mxu0 0.0
        %5399 = vmatmul.mubr.f32.gmra.mrb[0].mxu0 %v5332
        %v5400 = vpop.f32.mrb[0].mxu0
        %v5401 = vadd.f32 0.0, %v5400
        %v5402 = vpop.f32.mrb[0].mxu0
        %5403 = vdwg.mxu0
        %5405 = vrot.lane.b32.xlu0 %v5057, 8
        %v5406 = vpop.permute.xlu0 %5405
        %5409 = vrot.lane.b32.xlu0 %v5229, 16
        %v5410 = vpop.permute.xlu0 %5409
        %5413 = vrot.lane.b32.xlu0 %v5401, 24
        %v5414 = vpop.permute.xlu0 %5413
        %v5416 = vsel %vm1206, %v4883, %v5406
        %v5417 = vsel %vm1303, %v5416, %v5410
        %v5418 = vsel %vm2043, %v5417, %v5414
        %5419 = vrot.lane.b32.xlu0 %v4451, 32
        %v5420 = vpop.permute.xlu0 %5419
        %5421 = vrot.lane.b32.xlu0 %v4452, 32
        %v5422 = vpop.permute.xlu0 %5421
        %5423 = vrot.lane.b32.xlu0 %v4453, 32
        %v5424 = vpop.permute.xlu0 %5423
        %5425 = vrot.lane.b32.xlu0 %v4454, 32
        %v5426 = vpop.permute.xlu0 %5425
        %5431 = vrot.lane.b32.xlu0 %v4460, 32
        %v5432 = vpop.permute.xlu0 %5431
        %v5435 = vsel %vm938, %v5418, 0
        %5437 = vmatprep.subr.mxu0 0.0
        %5438 = vmatpush1.msra.mxu0 %v5420
        %5439 = vmatprep.subr.mxu0 0.0
        %5440 = vmatpush1.msra.mxu0 %v5422
        %5441 = vmatprep.subr.mxu0 0.0
        %5442 = vmatpush1.msra.mxu0 %v5424
        %5443 = vmatprep.subr.mxu0 0.0
        %5444 = vmatpush1.msra.mxu0 %v5426
        %5445 = vmatprep.subr.mxu0 0.0
        %5446 = vmatpush1.msra.mxu0 0.0
        %5447 = vmatprep.subr.mxu0 0.0
        %5448 = vmatpush1.msra.mxu0 0.0
        %5449 = vmatprep.subr.mxu0 0.0
        %5450 = vmatpush1.msra.mxu0 0.0
        %5451 = vmatprep.subr.mxu0 0.0
        %5452 = vmatpush1.msra.mxu0 0.0
        %5453 = vmatprep.subr.mxu0 0.0
        %5454 = vmatpush1.msra.mxu0 0.0
        %5455 = vmatprep.subr.mxu0 0.0
        %5456 = vmatpush1.msra.mxu0 0.0
        %5457 = vmatprep.subr.mxu0 0.0
        %5458 = vmatpush1.msra.mxu0 0.0
        %5459 = vmatprep.subr.mxu0 0.0
        %5460 = vmatpush1.msra.mxu0 0.0
        %5461 = vmatprep.subr.mxu0 0.0
        %5462 = vmatpush1.msra.mxu0 0.0
        %5463 = vmatprep.subr.mxu0 0.0
        %5464 = vmatpush1.msra.mxu0 0.0
        %5465 = vmatprep.subr.mxu0 0.0
        %5466 = vmatpush1.msra.mxu0 0.0
        %5467 = vmatprep.subr.mxu0 0.0
        %5468 = vmatpush1.msra.mxu0 0.0
        %5469 = vmatprep.subr.mxu0 0.0
        %5470 = vmatpush1.msra.mxu0 0.0
        %5471 = vmatprep.subr.mxu0 0.0
        %5472 = vmatpush1.msra.mxu0 0.0
        %5473 = vmatprep.subr.mxu0 0.0
        %5474 = vmatpush1.msra.mxu0 0.0
        %5475 = vmatprep.subr.mxu0 0.0
        %5476 = vmatpush1.msra.mxu0 0.0
        %5477 = vmatprep.subr.mxu0 0.0
        %5478 = vmatpush1.msra.mxu0 0.0
        %5479 = vmatprep.subr.mxu0 0.0
        %5480 = vmatpush1.msra.mxu0 0.0
        %5481 = vmatprep.subr.mxu0 0.0
        %5482 = vmatpush1.msra.mxu0 0.0
        %5483 = vmatprep.subr.mxu0 0.0
        %5484 = vmatpush1.msra.mxu0 0.0
        %5485 = vmatprep.subr.mxu0 0.0
        %5486 = vmatpush1.msra.mxu0 0.0
        %5487 = vmatprep.subr.mxu0 0.0
        %5488 = vmatpush1.msra.mxu0 0.0
        %5489 = vmatprep.subr.mxu0 0.0
        %5490 = vmatpush1.msra.mxu0 0.0
        %5491 = vmatprep.subr.mxu0 0.0
        %5492 = vmatpush1.msra.mxu0 0.0
        %5493 = vmatprep.subr.mxu0 0.0
        %5494 = vmatpush1.msra.mxu0 0.0
        %5495 = vmatprep.subr.mxu0 0.0
        %5496 = vmatpush1.msra.mxu0 0.0
        %5497 = vmatprep.subr.mxu0 0.0
        %5498 = vmatpush1.msra.mxu0 0.0
        %5499 = vmatprep.subr.mxu0 0.0
        %5500 = vmatpush1.msra.mxu0 0.0
        %5501 = vmatprep.mubr.f32.mxu0 0.0
        %5502 = vmatmul.mubr.f32.gmra.mrb[0].mxu0 %v5435
        %v5503 = vpop.f32.mrb[0].mxu0
        %v5504 = vadd.f32 %v5432, %v5503
        %v5505 = vpop.f32.mrb[0].mxu0
        %5506 = vdwg.mxu0
        %v5507 = vld [vmem:[%s24] sm:$0x3]
        %v5508 = vadd.f32 %v3237, %v5504
        %v5509 = vsel %vm938, %v5508, 0.0
        %5510 = vadd.xlane.f32.xlu0 %v5509
        %v5511 = vpop.xlane.xlu0 %5510
        %v5512 = vmul.f32 %v5511, %v2151
        %v5513 = vsub.f32 %v5508, %v5512
        %v5514 = vmul.f32 %v5513, %v5513
        %v5515 = vsel %vm938, %v5514, 0.0
        %5516 = vadd.xlane.f32.xlu0 %v5515
        %v5517 = vpop.xlane.xlu0 %5516
        %v5518 = vmul.f32 %v5517, %v2151
        %v5519 = vadd.f32 %v5518, 1e-05
        %v5520 = vrsqrt.pop %v5519
        %v5521 = vmul.f32 %v5513, %v5520
        %v5522 = vlaneseq
        %v5523 = vshrl.u32 %v5522, 7
        %v5524 = vsub.s32 0, %v5523
        %v5525 = vrot.slane %v5507, %v5524
        %v5526 = vmul.f32 %v5521, %v5525
        %v5527 = vlaneseq
        %v5528 = vshrl.u32 %v5527, 7
        %v5529 = vsub.s32 1, %v5528
        %v5530 = vrot.slane %v5507, %v5529
        %v5531 = vadd.f32 %v5526, %v5530
        %v5532 = vld [vmem:[#allocation5] sm:$0xff]
        %v5533 = vld [vmem:[#allocation5 + $0x8] sm:$0xff]
        %v5534 = vld [vmem:[#allocation5 + $0x10] sm:$0xff]
        %v5535 = vld [vmem:[#allocation5 + $0x18] sm:$0xff]
        %v5536 = vld [vmem:[%s13] sm:$0x1]
        %v5538 = vlaneseq
        %v5539 = vshrl.u32 %v5538, 7
        %v5540 = vsub.s32 0, %v5539
        %v5541 = vrot.slane %v5536, %v5540
        %5543 = vmatprep.subr.mxu0 0.0
        %5544 = vmatpush1.msra.mxu0 %v5532
        %5545 = vmatprep.subr.mxu0 0.0
        %5546 = vmatpush1.msra.mxu0 %v5533
        %5547 = vmatprep.subr.mxu0 0.0
        %5548 = vmatpush1.msra.mxu0 %v5534
        %5549 = vmatprep.subr.mxu0 0.0
        %5550 = vmatpush1.msra.mxu0 %v5535
        %5551 = vmatprep.subr.mxu0 0.0
        %5552 = vmatpush1.msra.mxu0 0.0
        %5553 = vmatprep.subr.mxu0 0.0
        %5554 = vmatpush1.msra.mxu0 0.0
        %5555 = vmatprep.subr.mxu0 0.0
        %5556 = vmatpush1.msra.mxu0 0.0
        %5557 = vmatprep.subr.mxu0 0.0
        %5558 = vmatpush1.msra.mxu0 0.0
        %5559 = vmatprep.subr.mxu0 0.0
        %5560 = vmatpush1.msra.mxu0 0.0
        %5561 = vmatprep.subr.mxu0 0.0
        %5562 = vmatpush1.msra.mxu0 0.0
        %5563 = vmatprep.subr.mxu0 0.0
        %5564 = vmatpush1.msra.mxu0 0.0
        %5565 = vmatprep.subr.mxu0 0.0
        %5566 = vmatpush1.msra.mxu0 0.0
        %5567 = vmatprep.subr.mxu0 0.0
        %5568 = vmatpush1.msra.mxu0 0.0
        %5569 = vmatprep.subr.mxu0 0.0
        %5570 = vmatpush1.msra.mxu0 0.0
        %5571 = vmatprep.subr.mxu0 0.0
        %5572 = vmatpush1.msra.mxu0 0.0
        %5573 = vmatprep.subr.mxu0 0.0
        %5574 = vmatpush1.msra.mxu0 0.0
        %5575 = vmatprep.subr.mxu0 0.0
        %5576 = vmatpush1.msra.mxu0 0.0
        %5577 = vmatprep.subr.mxu0 0.0
        %5578 = vmatpush1.msra.mxu0 0.0
        %5579 = vmatprep.subr.mxu0 0.0
        %5580 = vmatpush1.msra.mxu0 0.0
        %5581 = vmatprep.subr.mxu0 0.0
        %5582 = vmatpush1.msra.mxu0 0.0
        %5583 = vmatprep.subr.mxu0 0.0
        %5584 = vmatpush1.msra.mxu0 0.0
        %5585 = vmatprep.subr.mxu0 0.0
        %5586 = vmatpush1.msra.mxu0 0.0
        %5587 = vmatprep.subr.mxu0 0.0
        %5588 = vmatpush1.msra.mxu0 0.0
        %5589 = vmatprep.subr.mxu0 0.0
        %5590 = vmatpush1.msra.mxu0 0.0
        %5591 = vmatprep.subr.mxu0 0.0
        %5592 = vmatpush1.msra.mxu0 0.0
        %5593 = vmatprep.subr.mxu0 0.0
        %5594 = vmatpush1.msra.mxu0 0.0
        %5595 = vmatprep.subr.mxu0 0.0
        %5596 = vmatpush1.msra.mxu0 0.0
        %5597 = vmatprep.subr.mxu0 0.0
        %5598 = vmatpush1.msra.mxu0 0.0
        %5599 = vmatprep.subr.mxu0 0.0
        %5600 = vmatpush1.msra.mxu0 0.0
        %5601 = vmatprep.subr.mxu0 0.0
        %5602 = vmatpush1.msra.mxu0 0.0
        %5603 = vmatprep.subr.mxu0 0.0
        %5604 = vmatpush1.msra.mxu0 0.0
        %5605 = vmatprep.subr.mxu0 0.0
        %5606 = vmatpush1.msra.mxu0 0.0
        %5607 = vmatprep.mubr.f32.mxu0 0.0
        %5608 = vmatmul.mubr.f32.gmra.mrb[0].mxu0 %v4553
        %v5609 = vpop.f32.mrb[0].mxu0
        %v5610 = vadd.f32 %v5541, %v5609
        %v5611 = vpop.f32.mrb[0].mxu0
        %5612 = vmatprep.mubr.f32.mxu0 0.0
        %5613 = vmatmul.mubr.f32.gmra.mrb[0].mxu0 %v4556
        %v5614 = vpop.f32.mrb[0].mxu0
        %v5615 = vadd.f32 %v5541, %v5614
        %v5616 = vpop.f32.mrb[0].mxu0
        %5617 = vdwg.mxu0
        %v5618 = vmax.f32 %v5610, 0.0
        %v5619 = vmax.f32 %v5615, 0.0
        %v5620 = vld [vmem:[%s14] sm:$0xff]
        %v5621 = vld [vmem:[%s14 + $0x8] sm:$0xff]
        %v5622 = vld [vmem:[%s14 + $0x10] sm:$0xff]
        %v5623 = vld [vmem:[%s14 + $0x18] sm:$0xff]
        %v5624 = vld [vmem:[%s14 + $0x20] sm:$0xff]
        %v5625 = vld [vmem:[%s14 + $0x28] sm:$0xff]
        %v5626 = vld [vmem:[%s14 + $0x30] sm:$0xff]
        %v5627 = vld [vmem:[%s14 + $0x38] sm:$0xff]
        %v5628 = vld [vmem:[%s15] sm:$0x1]
        %v5630 = vlaneseq
        %v5631 = vshrl.u32 %v5630, 7
        %v5632 = vsub.s32 0, %v5631
        %v5633 = vrot.slane %v5628, %v5632
        %vm5635 = vcmask 523264
        %v5637 = vsel %vm5635, %v5618, 0
        %v5640 = vsel %vm5635, %v5619, 0
        %5642 = vmatprep.subr.mxu0 0.0
        %5643 = vmatpush1.msra.mxu0 %v5620
        %5644 = vmatprep.subr.mxu0 0.0
        %5645 = vmatpush1.msra.mxu0 %v5621
        %5646 = vmatprep.subr.mxu0 0.0
        %5647 = vmatpush1.msra.mxu0 %v5622
        %5648 = vmatprep.subr.mxu0 0.0
        %5649 = vmatpush1.msra.mxu0 %v5623
        %5650 = vmatprep.subr.mxu0 0.0
        %5651 = vmatpush1.msra.mxu0 %v5624
        %5652 = vmatprep.subr.mxu0 0.0
        %5653 = vmatpush1.msra.mxu0 %v5625
        %5654 = vmatprep.subr.mxu0 0.0
        %5655 = vmatpush1.msra.mxu0 %v5626
        %5656 = vmatprep.subr.mxu0 0.0
        %5657 = vmatpush1.msra.mxu0 %v5627
        %5658 = vmatprep.subr.mxu0 0.0
        %5659 = vmatpush1.msra.mxu0 0.0
        %5660 = vmatprep.subr.mxu0 0.0
        %5661 = vmatpush1.msra.mxu0 0.0
        %5662 = vmatprep.subr.mxu0 0.0
        %5663 = vmatpush1.msra.mxu0 0.0
        %5664 = vmatprep.subr.mxu0 0.0
        %5665 = vmatpush1.msra.mxu0 0.0
        %5666 = vmatprep.subr.mxu0 0.0
        %5667 = vmatpush1.msra.mxu0 0.0
        %5668 = vmatprep.subr.mxu0 0.0
        %5669 = vmatpush1.msra.mxu0 0.0
        %5670 = vmatprep.subr.mxu0 0.0
        %5671 = vmatpush1.msra.mxu0 0.0
        %5672 = vmatprep.subr.mxu0 0.0
        %5673 = vmatpush1.msra.mxu0 0.0
        %5674 = vmatprep.subr.mxu0 0.0
        %5675 = vmatpush1.msra.mxu0 0.0
        %5676 = vmatprep.subr.mxu0 0.0
        %5677 = vmatpush1.msra.mxu0 0.0
        %5678 = vmatprep.subr.mxu0 0.0
        %5679 = vmatpush1.msra.mxu0 0.0
        %5680 = vmatprep.subr.mxu0 0.0
        %5681 = vmatpush1.msra.mxu0 0.0
        %5682 = vmatprep.subr.mxu0 0.0
        %5683 = vmatpush1.msra.mxu0 0.0
        %5684 = vmatprep.subr.mxu0 0.0
        %5685 = vmatpush1.msra.mxu0 0.0
        %5686 = vmatprep.subr.mxu0 0.0
        %5687 = vmatpush1.msra.mxu0 0.0
        %5688 = vmatprep.subr.mxu0 0.0
        %5689 = vmatpush1.msra.mxu0 0.0
        %5690 = vmatprep.subr.mxu0 0.0
        %5691 = vmatpush1.msra.mxu0 0.0
        %5692 = vmatprep.subr.mxu0 0.0
        %5693 = vmatpush1.msra.mxu0 0.0
        %5694 = vmatprep.subr.mxu0 0.0
        %5695 = vmatpush1.msra.mxu0 0.0
        %5696 = vmatprep.subr.mxu0 0.0
        %5697 = vmatpush1.msra.mxu0 0.0
        %5698 = vmatprep.subr.mxu0 0.0
        %5699 = vmatpush1.msra.mxu0 0.0
        %5700 = vmatprep.subr.mxu0 0.0
        %5701 = vmatpush1.msra.mxu0 0.0
        %5702 = vmatprep.subr.mxu0 0.0
        %5703 = vmatpush1.msra.mxu0 0.0
        %5704 = vmatprep.subr.mxu0 0.0
        %5705 = vmatpush1.msra.mxu0 0.0
        %5706 = vmatprep.mubr.f32.mxu0 0.0
        %5707 = vmatmul.mubr.f32.gmra.mrb[0].mxu0 %v5637
        %v5708 = vpop.f32.mrb[0].mxu0
        %v5709 = vadd.f32 %v5633, %v5708
        %v5710 = vpop.f32.mrb[0].mxu0
        %5711 = vmatprep.mubr.f32.mxu0 0.0
        %5712 = vmatmul.mubr.f32.gmra.mrb[0].mxu0 %v5640
        %v5713 = vpop.f32.mrb[0].mxu0
        %v5714 = vadd.f32 %v5633, %v5713
        %v5715 = vpop.f32.mrb[0].mxu0
        %5716 = vdwg.mxu0
        %v5717 = vld [vmem:[%s22] sm:$0x3]
        %v5718 = vadd.f32 %v4449, %v5709
        %v5719 = vadd.f32 %v4450, %v5714
        %v5720 = vsel %vm938, %v5718, 0.0
        %5721 = vadd.xlane.f32.xlu0 %v5720
        %v5722 = vpop.xlane.xlu0 %5721
        %v5723 = vsel %vm938, %v5719, 0.0
        %5724 = vadd.xlane.f32.xlu0 %v5723
        %v5725 = vpop.xlane.xlu0 %5724
        %v5726 = vmul.f32 %v5722, %v2151
        %v5727 = vmul.f32 %v5725, %v2151
        %v5728 = vsub.f32 %v5718, %v5726
        %v5729 = vsub.f32 %v5719, %v5727
        %v5730 = vmul.f32 %v5728, %v5728
        %v5731 = vmul.f32 %v5729, %v5729
        %v5732 = vsel %vm938, %v5730, 0.0
        %5733 = vadd.xlane.f32.xlu0 %v5732
        %v5734 = vpop.xlane.xlu0 %5733
        %v5735 = vsel %vm938, %v5731, 0.0
        %5736 = vadd.xlane.f32.xlu0 %v5735
        %v5737 = vpop.xlane.xlu0 %5736
        %v5738 = vmul.f32 %v5734, %v2151
        %v5739 = vmul.f32 %v5737, %v2151
        %v5740 = vadd.f32 %v5738, 1e-05
        %v5741 = vadd.f32 %v5739, 1e-05
        %v5742 = vrsqrt.pop %v5740
        %v5743 = vrsqrt.pop %v5741
        %v5744 = vmul.f32 %v5728, %v5742
        %v5745 = vmul.f32 %v5729, %v5743
        %v5746 = vlaneseq
        %v5747 = vshrl.u32 %v5746, 7
        %v5748 = vsub.s32 0, %v5747
        %v5749 = vrot.slane %v5717, %v5748
        %v5750 = vmul.f32 %v5744, %v5749
        %v5751 = vmul.f32 %v5745, %v5749
        %v5752 = vlaneseq
        %v5753 = vshrl.u32 %v5752, 7
        %v5754 = vsub.s32 1, %v5753
        %v5755 = vrot.slane %v5717, %v5754
        %v5756 = vadd.f32 %v5750, %v5755
        %v5757 = vadd.f32 %v5751, %v5755
        %v5758 = vld [vmem:[#allocation7] sm:$0xff]
        %v5759 = vld [vmem:[#allocation7 + $0x8] sm:$0xff]
        %v5760 = vld [vmem:[#allocation7 + $0x10] sm:$0xff]
        %v5761 = vld [vmem:[#allocation7 + $0x18] sm:$0xff]
        %v5762 = vld [vmem:[%s17] sm:$0x1]
        %v5764 = vlaneseq
        %v5765 = vshrl.u32 %v5764, 7
        %v5766 = vsub.s32 0, %v5765
        %v5767 = vrot.slane %v5762, %v5766
        %v5770 = vsel %vm938, %v5531, 0
        %5772 = vmatprep.subr.mxu0 0.0
        %5773 = vmatpush1.msra.mxu0 %v5758
        %5774 = vmatprep.subr.mxu0 0.0
        %5775 = vmatpush1.msra.mxu0 %v5759
        %5776 = vmatprep.subr.mxu0 0.0
        %5777 = vmatpush1.msra.mxu0 %v5760
        %5778 = vmatprep.subr.mxu0 0.0
        %5779 = vmatpush1.msra.mxu0 %v5761
        %5780 = vmatprep.subr.mxu0 0.0
        %5781 = vmatpush1.msra.mxu0 0.0
        %5782 = vmatprep.subr.mxu0 0.0
        %5783 = vmatpush1.msra.mxu0 0.0
        %5784 = vmatprep.subr.mxu0 0.0
        %5785 = vmatpush1.msra.mxu0 0.0
        %5786 = vmatprep.subr.mxu0 0.0
        %5787 = vmatpush1.msra.mxu0 0.0
        %5788 = vmatprep.subr.mxu0 0.0
        %5789 = vmatpush1.msra.mxu0 0.0
        %5790 = vmatprep.subr.mxu0 0.0
        %5791 = vmatpush1.msra.mxu0 0.0
        %5792 = vmatprep.subr.mxu0 0.0
        %5793 = vmatpush1.msra.mxu0 0.0
        %5794 = vmatprep.subr.mxu0 0.0
        %5795 = vmatpush1.msra.mxu0 0.0
        %5796 = vmatprep.subr.mxu0 0.0
        %5797 = vmatpush1.msra.mxu0 0.0
        %5798 = vmatprep.subr.mxu0 0.0
        %5799 = vmatpush1.msra.mxu0 0.0
        %5800 = vmatprep.subr.mxu0 0.0
        %5801 = vmatpush1.msra.mxu0 0.0
        %5802 = vmatprep.subr.mxu0 0.0
        %5803 = vmatpush1.msra.mxu0 0.0
        %5804 = vmatprep.subr.mxu0 0.0
        %5805 = vmatpush1.msra.mxu0 0.0
        %5806 = vmatprep.subr.mxu0 0.0
        %5807 = vmatpush1.msra.mxu0 0.0
        %5808 = vmatprep.subr.mxu0 0.0
        %5809 = vmatpush1.msra.mxu0 0.0
        %5810 = vmatprep.subr.mxu0 0.0
        %5811 = vmatpush1.msra.mxu0 0.0
        %5812 = vmatprep.subr.mxu0 0.0
        %5813 = vmatpush1.msra.mxu0 0.0
        %5814 = vmatprep.subr.mxu0 0.0
        %5815 = vmatpush1.msra.mxu0 0.0
        %5816 = vmatprep.subr.mxu0 0.0
        %5817 = vmatpush1.msra.mxu0 0.0
        %5818 = vmatprep.subr.mxu0 0.0
        %5819 = vmatpush1.msra.mxu0 0.0
        %5820 = vmatprep.subr.mxu0 0.0
        %5821 = vmatpush1.msra.mxu0 0.0
        %5822 = vmatprep.subr.mxu0 0.0
        %5823 = vmatpush1.msra.mxu0 0.0
        %5824 = vmatprep.subr.mxu0 0.0
        %5825 = vmatpush1.msra.mxu0 0.0
        %5826 = vmatprep.subr.mxu0 0.0
        %5827 = vmatpush1.msra.mxu0 0.0
        %5828 = vmatprep.subr.mxu0 0.0
        %5829 = vmatpush1.msra.mxu0 0.0
        %5830 = vmatprep.subr.mxu0 0.0
        %5831 = vmatpush1.msra.mxu0 0.0
        %5832 = vmatprep.subr.mxu0 0.0
        %5833 = vmatpush1.msra.mxu0 0.0
        %5834 = vmatprep.subr.mxu0 0.0
        %5835 = vmatpush1.msra.mxu0 0.0
        %5836 = vmatprep.mubr.f32.mxu0 0.0
        %5837 = vmatmul.mubr.f32.gmra.mrb[0].mxu0 %v5770
        %v5838 = vpop.f32.mrb[0].mxu0
        %v5839 = vadd.f32 %v5767, %v5838
        %v5840 = vpop.f32.mrb[0].mxu0
        %5841 = vdwg.mxu0
        %v5842 = vmax.f32 %v5839, 0.0
        %v5843 = vld [vmem:[%s18] sm:$0xff]
        %v5844 = vld [vmem:[%s18 + $0x8] sm:$0xff]
        %v5845 = vld [vmem:[%s18 + $0x10] sm:$0xff]
        %v5846 = vld [vmem:[%s18 + $0x18] sm:$0xff]
        %v5847 = vld [vmem:[%s18 + $0x20] sm:$0xff]
        %v5848 = vld [vmem:[%s18 + $0x28] sm:$0xff]
        %v5849 = vld [vmem:[%s18 + $0x30] sm:$0xff]
        %v5850 = vld [vmem:[%s18 + $0x38] sm:$0xff]
        %v5851 = vld [vmem:[%s19] sm:$0x1]
        %v5853 = vlaneseq
        %v5854 = vshrl.u32 %v5853, 7
        %v5855 = vsub.s32 0, %v5854
        %v5856 = vrot.slane %v5851, %v5855
        %v5859 = vsel %vm5635, %v5842, 0
        %5861 = vmatprep.subr.mxu0 0.0
        %5862 = vmatpush1.msra.mxu0 %v5843
        %5863 = vmatprep.subr.mxu0 0.0
        %5864 = vmatpush1.msra.mxu0 %v5844
        %5865 = vmatprep.subr.mxu0 0.0
        %5866 = vmatpush1.msra.mxu0 %v5845
        %5867 = vmatprep.subr.mxu0 0.0
        %5868 = vmatpush1.msra.mxu0 %v5846
        %5869 = vmatprep.subr.mxu0 0.0
        %5870 = vmatpush1.msra.mxu0 %v5847
        %5871 = vmatprep.subr.mxu0 0.0
        %5872 = vmatpush1.msra.mxu0 %v5848
        %5873 = vmatprep.subr.mxu0 0.0
        %5874 = vmatpush1.msra.mxu0 %v5849
        %5875 = vmatprep.subr.mxu0 0.0
        %5876 = vmatpush1.msra.mxu0 %v5850
        %5877 = vmatprep.subr.mxu0 0.0
        %5878 = vmatpush1.msra.mxu0 0.0
        %5879 = vmatprep.subr.mxu0 0.0
        %5880 = vmatpush1.msra.mxu0 0.0
        %5881 = vmatprep.subr.mxu0 0.0
        %5882 = vmatpush1.msra.mxu0 0.0
        %5883 = vmatprep.subr.mxu0 0.0
        %5884 = vmatpush1.msra.mxu0 0.0
        %5885 = vmatprep.subr.mxu0 0.0
        %5886 = vmatpush1.msra.mxu0 0.0
        %5887 = vmatprep.subr.mxu0 0.0
        %5888 = vmatpush1.msra.mxu0 0.0
        %5889 = vmatprep.subr.mxu0 0.0
        %5890 = vmatpush1.msra.mxu0 0.0
        %5891 = vmatprep.subr.mxu0 0.0
        %5892 = vmatpush1.msra.mxu0 0.0
        %5893 = vmatprep.subr.mxu0 0.0
        %5894 = vmatpush1.msra.mxu0 0.0
        %5895 = vmatprep.subr.mxu0 0.0
        %5896 = vmatpush1.msra.mxu0 0.0
        %5897 = vmatprep.subr.mxu0 0.0
        %5898 = vmatpush1.msra.mxu0 0.0
        %5899 = vmatprep.subr.mxu0 0.0
        %5900 = vmatpush1.msra.mxu0 0.0
        %5901 = vmatprep.subr.mxu0 0.0
        %5902 = vmatpush1.msra.mxu0 0.0
        %5903 = vmatprep.subr.mxu0 0.0
        %5904 = vmatpush1.msra.mxu0 0.0
        %5905 = vmatprep.subr.mxu0 0.0
        %5906 = vmatpush1.msra.mxu0 0.0
        %5907 = vmatprep.subr.mxu0 0.0
        %5908 = vmatpush1.msra.mxu0 0.0
        %5909 = vmatprep.subr.mxu0 0.0
        %5910 = vmatpush1.msra.mxu0 0.0
        %5911 = vmatprep.subr.mxu0 0.0
        %5912 = vmatpush1.msra.mxu0 0.0
        %5913 = vmatprep.subr.mxu0 0.0
        %5914 = vmatpush1.msra.mxu0 0.0
        %5915 = vmatprep.subr.mxu0 0.0
        %5916 = vmatpush1.msra.mxu0 0.0
        %5917 = vmatprep.subr.mxu0 0.0
        %5918 = vmatpush1.msra.mxu0 0.0
        %5919 = vmatprep.subr.mxu0 0.0
        %5920 = vmatpush1.msra.mxu0 0.0
        %5921 = vmatprep.subr.mxu0 0.0
        %5922 = vmatpush1.msra.mxu0 0.0
        %5923 = vmatprep.subr.mxu0 0.0
        %5924 = vmatpush1.msra.mxu0 0.0
        %5925 = vmatprep.mubr.f32.mxu0 0.0
        %5926 = vmatmul.mubr.f32.gmra.mrb[0].mxu0 %v5859
        %v5927 = vpop.f32.mrb[0].mxu0
        %v5928 = vadd.f32 %v5856, %v5927
        %v5929 = vpop.f32.mrb[0].mxu0
        %5930 = vdwg.mxu0
        %v5931 = vld [vmem:[%s25] sm:$0x3]
        %v5932 = vadd.f32 %v5531, %v5928
        %v5933 = vsel %vm938, %v5932, 0.0
        %5934 = vadd.xlane.f32.xlu0 %v5933
        %v5935 = vpop.xlane.xlu0 %5934
        %v5936 = vmul.f32 %v5935, %v2151
        %v5937 = vsub.f32 %v5932, %v5936
        %v5938 = vmul.f32 %v5937, %v5937
        %v5939 = vsel %vm938, %v5938, 0.0
        %5940 = vadd.xlane.f32.xlu0 %v5939
        %v5941 = vpop.xlane.xlu0 %5940
        %v5942 = vmul.f32 %v5941, %v2151
        %v5943 = vadd.f32 %v5942, 1e-05
        %v5944 = vrsqrt.pop %v5943
        %v5945 = vmul.f32 %v5937, %v5944
        %v5946 = vlaneseq
        %v5947 = vshrl.u32 %v5946, 7
        %v5948 = vsub.s32 0, %v5947
        %v5949 = vrot.slane %v5931, %v5948
        %v5950 = vmul.f32 %v5945, %v5949
        %v5951 = vlaneseq
        %v5952 = vshrl.u32 %v5951, 7
        %v5953 = vsub.s32 1, %v5952
        %v5954 = vrot.slane %v5931, %v5953
        %v5955 = vadd.f32 %v5950, %v5954
        %5956 = vst.msk [vmem:[%s903] sm:$0xff] %vm938, %v5756
        %5957 = vst.msk [vmem:[%s903 + $0x8] sm:$0xff] %vm938, %v5757
        %5958 = vst.msk [vmem:[%s910] sm:$0xff] %vm938, %v5955
        %s5959 = sand.u32 %s623, 1
        %s5960 = scalar_lea.sflag [#allocation4], %s5959
        %s5961 = sand.u32 %s623, 1
        %s5962 = smul.addr %s5961, 16
        %s5963 = scalar_lea.vmem [#allocation8], %s5962
        %s5964 = sand.u32 %s649, 1
        %s5965 = scalar_lea.sflag [#allocation10], %s5964
        %s5966 = sand.u32 %s649, 1
        %s5967 = smul.addr %s5966, 8
        %s5968 = scalar_lea.vmem [#allocation9], %s5967
        // Predicated region
        $region137: #{tpu_custom_call.1} parent=123 // pred_check
          %p5969 = pneg %p633
        $region138: #{tpu_custom_call.1} parent=123 // pred_check_branch
          %5971 = sbr.rel (%p5969) target = $region140
        $region139: #{tpu_custom_call.1} parent=123 // pred_region
          %s5973 = ssub.s32 256, 256
          %5974 = vsyncadd %s5960, %s5973
          %s5975 = smul.addr %s49, 2
          %s5976 = smul.addr %s5975, 128
          %s5977 = scalar_lea.hbm %s26, %s5976
          %s5978 = sshll.u32 %s5963, 4
          %s5979 = int_to_ptr.vmem [resolvable:$true] %s5978
          %5984 = dma.vmem_to_hbm [thread:$0]  %s5979, 256, %s5977, %s5960, 128, 128, 8
        $region140: #{tpu_custom_call.1} parent=123 // pred_fallthru
          _
        // Predicated region
        $region141: #{tpu_custom_call.1} parent=123 // pred_check
          %p5985 = pneg %p659
        $region142: #{tpu_custom_call.1} parent=123 // pred_check_branch
          %5987 = sbr.rel (%p5985) target = $region144
        $region143: #{tpu_custom_call.1} parent=123 // pred_region
          %s5989 = ssub.s32 128, 128
          %5990 = vsyncadd %s5965, %s5989
          %s5991 = smul.addr %s49, 128
          %s5992 = scalar_lea.hbm %s27, %s5991
          %s5994 = sshll.u32 %s5968, 4
          %s5995 = int_to_ptr.vmem [resolvable:$true] %s5994
          %5997 = dma.vmem_to_hbm [thread:$0]  %s5995, 128, %s5992, %s5965
        $region144: #{tpu_custom_call.1} parent=123 // pred_fallthru
          _
      $region124: #{tpu_custom_call.1} parent=5 // pred_fallthru
        _
      %p5998 = scmp.le.s32.totalorder 2, %s44
      // Predicated region
      $region145: #{tpu_custom_call.1} parent=5 // pred_check
        %p5999 = pneg %p5998
      $region146: #{tpu_custom_call.1} parent=5 // pred_check_branch
        %6001 = sbr.rel (%p5999) target = $region148
      $region147: #{tpu_custom_call.1} parent=5 // pred_region
        %s6002 = ssub.s32 %s44, 2
        // Predicated region
        $region149: #{tpu_custom_call.1} parent=147 // pred_check
          %p6003 = pneg %p639
        $region150: #{tpu_custom_call.1} parent=147 // pred_check_branch
          %6005 = sbr.rel (%p6003) target = $region152
        $region151: #{tpu_custom_call.1} parent=147 // pred_region
          %s6006 = sand.u32 %s624, 1
          %s6007 = scalar_lea.sflag [#allocation4], %s6006
          %s6008 = sand.u32 %s624, 1
          %s6009 = smul.addr %s6008, 16
          %s6010 = scalar_lea.vmem [#allocation8], %s6009
          %6011 = dma.done %s6007, 256
        $region152: #{tpu_custom_call.1} parent=147 // pred_fallthru
          _
        // Predicated region
        $region153: #{tpu_custom_call.1} parent=147 // pred_check
          %p6012 = pneg %p665
        $region154: #{tpu_custom_call.1} parent=147 // pred_check_branch
          %6014 = sbr.rel (%p6012) target = $region156
        $region155: #{tpu_custom_call.1} parent=147 // pred_region
          %s6015 = sand.u32 %s650, 1
          %s6016 = scalar_lea.sflag [#allocation10], %s6015
          %s6017 = sand.u32 %s650, 1
          %s6018 = smul.addr %s6017, 8
          %s6019 = scalar_lea.vmem [#allocation9], %s6018
          %6020 = dma.done %s6016, 128
        $region156: #{tpu_custom_call.1} parent=147 // pred_fallthru
          _
      $region148: #{tpu_custom_call.1} parent=5 // pred_fallthru
        _
    $region6: #{tpu_custom_call.1} parent=1 // loop_footer
      %s48 = sadd.s32 1, %s44
    $region7: #{tpu_custom_call.1} parent=1 // loop_footer_branch
      %43 = sbr.rel target = $region3
    $region8: #{tpu_custom_call.1} parent=1 // loop_exit
      _
    %6021 = vsyncpa [#allocation3], 1
    %s6022 = scalar_lea.sflag [#allocation3], 1
    %6023 = vsyncpa %s6022, 1
    %6024 = vsyncpa [#allocation6], 1
    %6025 = vsyncpa [#allocation4], 1
    %s6026 = scalar_lea.sflag [#allocation4], 1
    %6027 = vsyncpa %s6026, 1
    %6028 = vsyncpa [#allocation10], 1
    %s6029 = scalar_lea.sflag [#allocation10], 1
    %6030 = vsyncpa %s6029, 1

</llo_original>
